<compile_context>
chip_gen: v7x
topology: tpu7x:2x2x1
jax: 0.10.0
libtpu: 0.0.40
codegen_flags: <defaults>
</compile_context>

<pallas_src>
import math

import jax
import jax.numpy as jnp
from jax import lax
from jax.experimental import pallas as pl
from jax.experimental.pallas import tpu as pltpu

# ----- problem sizes (small, consistent with the module) -----
B, T, C = 2, 8, 28      # batch, sequence length, num_exp_coeffs
H = 128                 # LSTM hidden size per direction
N_EMO = 7               # n_emotions
BP = 8                  # batch rows padded to one full sublane tile
C_PAD = 128             # lane-padded input feature width
D_PAD = 128             # lane-padded width of the 64-wide seq2 intermediate
OUT_PAD = 128           # lane-padded logit width (only first N_EMO are real)


# ---------------------------------------------------------------------------
# Pallas kernel: full Discriminator forward (everything VMEM-resident)
# ---------------------------------------------------------------------------
def discriminator_kernel(
    x_ref,                                               # (T*BP, C_PAD)  bf16
    w1_ref, b1_ref, w2_ref, b2_ref,                      # seq1           bf16
    wih_ref, whh_ref, blstm_ref,                         # LSTM stacks    bf16
    w3_ref, b3_ref, w4_ref, b4_ref, w5_ref, b5_ref,      # seq2           bf16
    out_ref,                                             # (BP, OUT_PAD)  f32
    ginf_scr, ginr_scr,                                  # (T, BP, 4H)    f32
    o0f_scr, o0r_scr, o1f_scr, o1r_scr,                  # (T, BP, H)     f32
):
    f32 = jnp.float32
    bf16 = jnp.bfloat16

    def mm(a_bf, w_bf):                                  # bf16 x bf16 -> f32 acc
        return jnp.dot(a_bf, w_bf, preferred_element_type=f32)

    # ---- seq1: two batched matmuls over the whole (T*BP) slab ----
    x = x_ref[...]                                                    # bf16
    h = jnp.maximum(mm(x, w1_ref[...]) + b1_ref[...].astype(f32), 0.0)
    h = h.astype(bf16)                                                # (T*BP,512)
    s = jnp.maximum(mm(h, w2_ref[...]) + b2_ref[...].astype(f32), 0.0)
    s = s.astype(bf16)                                                # (T*BP,2H)

    # ---- one bidirectional LSTM layer, both directions interleaved ----
    def bilstm_layer(in_slabs, d_f, d_r, outf_scr, outr_scr):
        # in_slabs: list of bf16 (T*BP, k) pieces concatenated along features.
        wih_f = wih_ref[d_f]                             # bf16 (in, 4H)
        wih_r = wih_ref[d_r]
        b_f = blstm_ref[d_f].astype(f32)                 # (1, 4H)
        b_r = blstm_ref[d_r].astype(f32)

        def in_proj(w, b):                               # hoisted input proj.
            acc = b
            off = 0
            for sl in in_slabs:
                k = sl.shape[1]
                acc = acc + mm(sl, w[off:off + k, :])
                off += k
            return acc                                   # f32 (T*BP, 4H)

        # single bulk store per direction (no per-t scatter loop)
        ginf_scr[...] = in_proj(wih_f, b_f).reshape(T, BP, 4 * H)
        ginr_scr[...] = in_proj(wih_r, b_r).reshape(T, BP, 4 * H)

        whh_f = whh_ref[d_f]                             # bf16 (H, 4H)
        whh_r = whh_ref[d_r]

        def cell(gates, c):                              # PyTorch order (i,f,g,o)
            i_g = jax.nn.sigmoid(gates[:, 0 * H:1 * H])
            f_g = jax.nn.sigmoid(gates[:, 1 * H:2 * H])
            g_g = jnp.tanh(gates[:, 2 * H:3 * H])
            o_g = jax.nn.sigmoid(gates[:, 3 * H:4 * H])
            c_new = f_g * c + i_g * g_g
            h_new = o_g * jnp.tanh(c_new)
            return h_new, c_new

        def step(t, carry):
            hf, cf, hr, cr = carry                       # hf/hr bf16, cf/cr f32
            tr = T - 1 - t
            gf = ginf_scr[t] + mm(hf, whh_f)             # only h@W_hh is serial
            gr = ginr_scr[tr] + mm(hr, whh_r)
            hf_new, cf = cell(gf, cf)
            hr_new, cr = cell(gr, cr)
            outf_scr[t] = hf_new
            outr_scr[tr] = hr_new
            return hf_new.astype(bf16), cf, hr_new.astype(bf16), cr

        zh = jnp.zeros((BP, H), bf16)
        zc = jnp.zeros((BP, H), f32)
        lax.fori_loop(0, T, step, (zh, zc, zh, zc), unroll=True)

        outf = outf_scr[...].reshape(T * BP, H).astype(bf16)   # bulk load
        outr = outr_scr[...].reshape(T * BP, H).astype(bf16)
        return outf, outr                                # (T*BP, H) each, bf16

    # stacked weight order: [layer0-fwd, layer0-bwd, layer1-fwd, layer1-bwd]
    f0, r0 = bilstm_layer([s], 0, 1, o0f_scr, o0r_scr)
    f1, r1 = bilstm_layer([f0, r0], 2, 3, o1f_scr, o1r_scr)

    # ---- seq2 batched over the (T*BP) slab (w3 split over fwd/bwd halves) ----
    w3 = w3_ref[...]                                     # bf16 (2H, 128)
    z = jnp.maximum(mm(f1, w3[:H, :]) + mm(r1, w3[H:, :])
                    + b3_ref[...].astype(f32), 0.0)
    z = z.astype(bf16)                                   # (T*BP, 128)
    z = jnp.maximum(mm(z, w4_ref[...]) + b4_ref[...].astype(f32), 0.0)
    z = z.astype(bf16)                                   # (T*BP, D_PAD) lane-dense
    z = mm(z, w5_ref[...]) + b5_ref[...].astype(f32)     # (T*BP, OUT_PAD), 1/T folded

    # ---- mean over time = plain sum (1/T folded into w5/b5); rows t-major ----
    acc = z[0:BP, :]
    for t in range(1, T):
        acc = acc + z[t * BP:(t + 1) * BP, :]
    out_ref[...] = acc


# ---------------------------------------------------------------------------
# Wrapper: weight repacking (transpose / stack / pad / bf16), call, y-gather
# ---------------------------------------------------------------------------
def _pack_params(p):
    bf = lambda a: a.astype(jnp.bfloat16)
    tr = jnp.transpose

    # seq1: pad input feature dim 28 -> C_PAD with zero weight rows
    w1p = jnp.zeros((C_PAD, 512), jnp.float32).at[:C, :].set(tr(p["w1"]))
    # LSTM stacks: [layer0-fwd, layer0-bwd, layer1-fwd, layer1-bwd]
    wih = jnp.stack([tr(p["wih0f"]), tr(p["wih0r"]), tr(p["wih1f"]), tr(p["wih1r"])])
    whh = jnp.stack([tr(p["whh0f"]), tr(p["whh0r"]), tr(p["whh1f"]), tr(p["whh1r"])])
    bl = jnp.stack([p["b0f"], p["b0r"], p["b1f"], p["b1r"]])          # (4, 1, 4H)
    # seq2: lane-pad the 64-wide path and the 7-wide logits to 128 lanes,
    # and fold the 1/T of the time-mean into w5/b5 (exact: 1/8 is a power of 2).
    w4p = jnp.zeros((128, D_PAD), jnp.float32).at[:, :64].set(tr(p["w4"]))
    b4p = jnp.zeros((1, D_PAD), jnp.float32).at[:, :64].set(p["b4"])
    inv_t = 1.0 / T
    w5p = jnp.zeros((D_PAD, OUT_PAD), jnp.float32).at[:64, :N_EMO].set(tr(p["w5"]) * inv_t)
    b5p = jnp.zeros((1, OUT_PAD), jnp.float32).at[:, :N_EMO].set(p["b5"] * inv_t)
    return [bf(w1p), bf(p["b1"]), bf(tr(p["w2"])), bf(p["b2"]),
            bf(wih), bf(whh), bf(bl),
            bf(tr(p["w3"])), bf(p["b3"]), bf(w4p), bf(b4p),
            bf(w5p), bf(b5p)]


@jax.jit
def discriminator_forward(params, x, y):
    # t-major, sublane/lane-padded bf16 input slab: row (t*BP + b) holds x[b, t, :]
    x_tb = jnp.transpose(x.astype(jnp.float32), (1, 0, 2))            # (T, B, C)
    x_pad = jnp.zeros((T, BP, C_PAD), jnp.float32).at[:, :B, :C].set(x_tb)
    x_pad = x_pad.reshape(T * BP, C_PAD).astype(jnp.bfloat16)

    args = [x_pad] + _pack_params(params)
    in_specs = [pl.BlockSpec(memory_space=pltpu.MemorySpace.VMEM) for _ in args]
    out = pl.pallas_call(
        discriminator_kernel,
        out_shape=jax.ShapeDtypeStruct((BP, OUT_PAD), jnp.float32),
        in_specs=in_specs,
        out_specs=pl.BlockSpec(memory_space=pltpu.MemorySpace.VMEM),
        scratch_shapes=[
            pltpu.VMEM((T, BP, 4 * H), jnp.float32),   # gates-in, fwd
            pltpu.VMEM((T, BP, 4 * H), jnp.float32),   # gates-in, bwd
            pltpu.VMEM((T, BP, H), jnp.float32),       # layer0 out fwd
            pltpu.VMEM((T, BP, H), jnp.float32),       # layer0 out bwd
            pltpu.VMEM((T, BP, H), jnp.float32),       # layer1 out fwd
            pltpu.VMEM((T, BP, H), jnp.float32),       # layer1 out bwd
        ],
    )(*args)

    mean_logits = out[:B, :N_EMO]                                     # (B, 7)
    return mean_logits[jnp.arange(B), y]                              # (B,)


# ---------------------------------------------------------------------------
# Deterministic synthetic parameters (PyTorch-default-style uniform init,
# rounded to bf16-representable values so the bf16 weight transport is exact).
# NOTE: a real checkpoint would lose <0.4% through the bf16 repack, and a real
# nn.LSTM state dict has separate b_ih/b_hh that must be summed when packing.
# ---------------------------------------------------------------------------
def init_params(key):
    ks = iter(jax.random.split(key, 24))

    def uni(k, shape, fan_in):
        bound = 1.0 / math.sqrt(fan_in)
        w = jax.random.uniform(k, shape, jnp.float32, -bound, bound)
        return w.astype(jnp.bfloat16).astype(jnp.float32)

    p = {}
    # seq1
    p["w1"] = uni(next(ks), (512, C), C);      p["b1"] = uni(next(ks), (1, 512), C)
    p["w2"] = uni(next(ks), (256, 512), 512);  p["b2"] = uni(next(ks), (1, 256), 512)
    # LSTM (b = b_ih + b_hh collapsed into one row vector)
    for name, in_dim in (("0f", 256), ("0r", 256), ("1f", 2 * H), ("1r", 2 * H)):
        p["wih" + name] = uni(next(ks), (4 * H, in_dim), H)
        p["whh" + name] = uni(next(ks), (4 * H, H), H)
        p["b" + name] = uni(next(ks), (1, 4 * H), H)
    # seq2
    p["w3"] = uni(next(ks), (128, 256), 256);  p["b3"] = uni(next(ks), (1, 128), 256)
    p["w4"] = uni(next(ks), (64, 128), 128);   p["b4"] = uni(next(ks), (1, 64), 128)
    p["w5"] = uni(next(ks), (N_EMO, 64), 64);  p["b5"] = uni(next(ks), (1, N_EMO), 64)
    return p


# ---------------------------------------------------------------------------
# Pure-JAX f32 reference (same math) for a correctness check
# ---------------------------------------------------------------------------
def reference_forward(p, x, y):
    def lin(v, w, b):
        return v @ w.T + b

    h = jax.nn.relu(lin(x, p["w1"], p["b1"]))
    s1 = jax.nn.relu(lin(h, p["w2"], p["b2"]))            # (B, T, 256)

    def run_dir(inp, w_ih, w_hh, b, reverse):
        h = jnp.zeros((B, H), jnp.float32)
        c = jnp.zeros((B, H), jnp.float32)
        outs = [None] * T
        order = range(T - 1, -1, -1) if reverse else range(T)
        for t in order:
            gates = inp[:, t, :] @ w_ih.T + h @ w_hh.T + b
            i_g = jax.nn.sigmoid(gates[:, 0 * H:1 * H])
            f_g = jax.nn.sigmoid(gates[:, 1 * H:2 * H])
            g_g = jnp.tanh(gates[:, 2 * H:3 * H])
            o_g = jax.nn.sigmoid(gates[:, 3 * H:4 * H])
            c = f_g * c + i_g * g_g
            h = o_g * jnp.tanh(c)
            outs[t] = h
        return jnp.stack(outs, axis=1)                    # (B, T, H)

    l0 = jnp.concatenate(
        [run_dir(s1, p["wih0f"], p["whh0f"], p["b0f"], False),
         run_dir(s1, p["wih0r"], p["whh0r"], p["b0r"], True)], axis=-1)
    l1 = jnp.concatenate(
        [run_dir(l0, p["wih1f"], p["whh1f"], p["b1f"], False),
         run_dir(l0, p["wih1r"], p["whh1r"], p["b1r"], True)], axis=-1)

    z = jax.nn.relu(lin(l1, p["w3"], p["b3"]))
    z = jax.nn.relu(lin(z, p["w4"], p["b4"]))
    z = lin(z, p["w5"], p["b5"])                          # (B, T, 7)
    m = jnp.mean(z, axis=1)                               # (B, 7)
    return m[jnp.arange(B), y]                            # (B,)


if __name__ == "__main__":
    key = jax.random.PRNGKey(0)
    k_p, k_x, k_y = jax.random.split(key, 3)

    params = init_params(k_p)
    x = jax.random.normal(k_x, (B, T, C), jnp.float32)
    y = jax.random.randint(k_y, (B,), 0, N_EMO, jnp.int32)

    out = discriminator_forward(params, x, y)
    out = jax.block_until_ready(out)

    ref = jax.block_until_ready(reference_forward(params, x, y))
    assert out.shape == (B,)
    # bf16 MXU operands + bf16 activation rounding: stays well inside 3e-2
    assert float(jnp.max(jnp.abs(out - ref))) < 3e-2

    print("KERNEL_OK")
</pallas_src>

<mosaic_0001>
module attributes {stable_mosaic.version = 11 : i64} {
  func.func @discriminator_kernel(%arg0: memref<64x128xbf16, #tpu.memory_space<vmem>>, %arg1: memref<128x512xbf16, #tpu.memory_space<vmem>>, %arg2: memref<1x512xbf16, #tpu.memory_space<vmem>>, %arg3: memref<512x256xbf16, #tpu.memory_space<vmem>>, %arg4: memref<1x256xbf16, #tpu.memory_space<vmem>>, %arg5: memref<4x256x512xbf16, #tpu.memory_space<vmem>>, %arg6: memref<4x128x512xbf16, #tpu.memory_space<vmem>>, %arg7: memref<4x1x512xbf16, #tpu.memory_space<vmem>>, %arg8: memref<256x128xbf16, #tpu.memory_space<vmem>>, %arg9: memref<1x128xbf16, #tpu.memory_space<vmem>>, %arg10: memref<128x128xbf16, #tpu.memory_space<vmem>>, %arg11: memref<1x128xbf16, #tpu.memory_space<vmem>>, %arg12: memref<128x128xbf16, #tpu.memory_space<vmem>>, %arg13: memref<1x128xbf16, #tpu.memory_space<vmem>>, %arg14: memref<8x128xf32, #tpu.memory_space<vmem>>, %arg15: memref<8x8x512xf32, #tpu.memory_space<vmem>>, %arg16: memref<8x8x512xf32, #tpu.memory_space<vmem>>, %arg17: memref<8x8x128xf32, #tpu.memory_space<vmem>>, %arg18: memref<8x8x128xf32, #tpu.memory_space<vmem>>, %arg19: memref<8x8x128xf32, #tpu.memory_space<vmem>>, %arg20: memref<8x8x128xf32, #tpu.memory_space<vmem>>) attributes {dimension_semantics = [], scalar_prefetch = 0 : i64, scratch_operands = 6 : i64, tpu.core_type = #tpu.core_type<tc>} {
    %c0 = arith.constant 0 : index
    %c0_0 = arith.constant 0 : index
    %0 = vector.load %arg0[%c0, %c0_0] : memref<64x128xbf16, #tpu.memory_space<vmem>>, vector<64x128xbf16>
    %c0_1 = arith.constant 0 : index
    %c0_2 = arith.constant 0 : index
    %1 = vector.load %arg1[%c0_1, %c0_2] : memref<128x512xbf16, #tpu.memory_space<vmem>>, vector<128x512xbf16>
    %cst = arith.constant dense<0.000000e+00> : vector<64x512xf32>
    %2 = tpu.matmul %0, %1, %cst {dimension_numbers = #tpu.dot_dimension_numbers<[1], [0], [0], [1], [0, 0, 1, 1], [], []>} : vector<64x128xbf16>, vector<128x512xbf16>, vector<64x512xf32> -> vector<64x512xf32>
    %c0_3 = arith.constant 0 : index
    %c0_4 = arith.constant 0 : index
    %3 = vector.load %arg2[%c0_3, %c0_4] : memref<1x512xbf16, #tpu.memory_space<vmem>>, vector<1x512xbf16>
    %4 = arith.extf %3 : vector<1x512xbf16> to vector<1x512xf32>
    %5 = vector.broadcast %4 : vector<1x512xf32> to vector<64x512xf32>
    %6 = arith.addf %2, %5 : vector<64x512xf32>
    %cst_5 = arith.constant 0.000000e+00 : f32
    %7 = vector.broadcast %cst_5 : f32 to vector<64x512xf32>
    %8 = arith.maximumf %6, %7 : vector<64x512xf32>
    %9 = arith.truncf %8 : vector<64x512xf32> to vector<64x512xbf16>
    %c0_6 = arith.constant 0 : index
    %c0_7 = arith.constant 0 : index
    %10 = vector.load %arg3[%c0_6, %c0_7] : memref<512x256xbf16, #tpu.memory_space<vmem>>, vector<512x256xbf16>
    %cst_8 = arith.constant dense<0.000000e+00> : vector<64x256xf32>
    %11 = tpu.matmul %9, %10, %cst_8 {dimension_numbers = #tpu.dot_dimension_numbers<[1], [0], [0], [1], [0, 0, 1, 1], [], []>} : vector<64x512xbf16>, vector<512x256xbf16>, vector<64x256xf32> -> vector<64x256xf32>
    %c0_9 = arith.constant 0 : index
    %c0_10 = arith.constant 0 : index
    %12 = vector.load %arg4[%c0_9, %c0_10] : memref<1x256xbf16, #tpu.memory_space<vmem>>, vector<1x256xbf16>
    %13 = arith.extf %12 : vector<1x256xbf16> to vector<1x256xf32>
    %14 = vector.broadcast %13 : vector<1x256xf32> to vector<64x256xf32>
    %15 = arith.addf %11, %14 : vector<64x256xf32>
    %cst_11 = arith.constant 0.000000e+00 : f32
    %16 = vector.broadcast %cst_11 : f32 to vector<64x256xf32>
    %17 = arith.maximumf %15, %16 : vector<64x256xf32>
    %18 = arith.truncf %17 : vector<64x256xf32> to vector<64x256xbf16>
    %c0_12 = arith.constant 0 : index
    %c0_13 = arith.constant 0 : index
    %c0_14 = arith.constant 0 : index
    %19 = vector.load %arg5[%c0_12, %c0_13, %c0_14] : memref<4x256x512xbf16, #tpu.memory_space<vmem>>, vector<1x256x512xbf16>
    %20 = vector.shape_cast %19 : vector<1x256x512xbf16> to vector<256x512xbf16>
    %c1 = arith.constant 1 : index
    %c0_15 = arith.constant 0 : index
    %c0_16 = arith.constant 0 : index
    %21 = vector.load %arg5[%c1, %c0_15, %c0_16] : memref<4x256x512xbf16, #tpu.memory_space<vmem>>, vector<1x256x512xbf16>
    %22 = vector.shape_cast %21 : vector<1x256x512xbf16> to vector<256x512xbf16>
    %c0_17 = arith.constant 0 : index
    %c0_18 = arith.constant 0 : index
    %c0_19 = arith.constant 0 : index
    %23 = vector.load %arg7[%c0_17, %c0_18, %c0_19] : memref<4x1x512xbf16, #tpu.memory_space<vmem>>, vector<1x1x512xbf16>
    %24 = vector.shape_cast %23 : vector<1x1x512xbf16> to vector<1x512xbf16>
    %25 = arith.extf %24 : vector<1x512xbf16> to vector<1x512xf32>
    %c1_20 = arith.constant 1 : index
    %c0_21 = arith.constant 0 : index
    %c0_22 = arith.constant 0 : index
    %26 = vector.load %arg7[%c1_20, %c0_21, %c0_22] : memref<4x1x512xbf16, #tpu.memory_space<vmem>>, vector<1x1x512xbf16>
    %27 = vector.shape_cast %26 : vector<1x1x512xbf16> to vector<1x512xbf16>
    %28 = arith.extf %27 : vector<1x512xbf16> to vector<1x512xf32>
    %cst_23 = arith.constant dense<0.000000e+00> : vector<64x512xf32>
    %29 = tpu.matmul %18, %20, %cst_23 {dimension_numbers = #tpu.dot_dimension_numbers<[1], [0], [0], [1], [0, 0, 1, 1], [], []>} : vector<64x256xbf16>, vector<256x512xbf16>, vector<64x512xf32> -> vector<64x512xf32>
    %30 = vector.broadcast %25 : vector<1x512xf32> to vector<64x512xf32>
    %31 = arith.addf %30, %29 : vector<64x512xf32>
    %32 = vector.shape_cast %31 : vector<64x512xf32> to vector<8x8x512xf32>
    %c0_24 = arith.constant 0 : index
    %c0_25 = arith.constant 0 : index
    %c0_26 = arith.constant 0 : index
    %33 = vector.load %arg15[%c0_24, %c0_25, %c0_26] : memref<8x8x512xf32, #tpu.memory_space<vmem>>, vector<8x8x512xf32>
    tpu.vector_store %arg15[%c0_24, %c0_25, %c0_26], %32 {strides = array<i32>} : memref<8x8x512xf32, #tpu.memory_space<vmem>>, vector<8x8x512xf32>,
    %cst_27 = arith.constant dense<0.000000e+00> : vector<64x512xf32>
    %34 = tpu.matmul %18, %22, %cst_27 {dimension_numbers = #tpu.dot_dimension_numbers<[1], [0], [0], [1], [0, 0, 1, 1], [], []>} : vector<64x256xbf16>, vector<256x512xbf16>, vector<64x512xf32> -> vector<64x512xf32>
    %35 = vector.broadcast %28 : vector<1x512xf32> to vector<64x512xf32>
    %36 = arith.addf %35, %34 : vector<64x512xf32>
    %37 = vector.shape_cast %36 : vector<64x512xf32> to vector<8x8x512xf32>
    %c0_28 = arith.constant 0 : index
    %c0_29 = arith.constant 0 : index
    %c0_30 = arith.constant 0 : index
    %38 = vector.load %arg16[%c0_28, %c0_29, %c0_30] : memref<8x8x512xf32, #tpu.memory_space<vmem>>, vector<8x8x512xf32>
    tpu.vector_store %arg16[%c0_28, %c0_29, %c0_30], %37 {strides = array<i32>} : memref<8x8x512xf32, #tpu.memory_space<vmem>>, vector<8x8x512xf32>,
    %c0_31 = arith.constant 0 : index
    %c0_32 = arith.constant 0 : index
    %c0_33 = arith.constant 0 : index
    %39 = vector.load %arg6[%c0_31, %c0_32, %c0_33] : memref<4x128x512xbf16, #tpu.memory_space<vmem>>, vector<1x128x512xbf16>
    %40 = vector.shape_cast %39 : vector<1x128x512xbf16> to vector<128x512xbf16>
    %c1_34 = arith.constant 1 : index
    %c0_35 = arith.constant 0 : index
    %c0_36 = arith.constant 0 : index
    %41 = vector.load %arg6[%c1_34, %c0_35, %c0_36] : memref<4x128x512xbf16, #tpu.memory_space<vmem>>, vector<1x128x512xbf16>
    %42 = vector.shape_cast %41 : vector<1x128x512xbf16> to vector<128x512xbf16>
    %cst_37 = arith.constant 0.000000e+00 : bf16
    %43 = vector.broadcast %cst_37 : bf16 to vector<8x128xbf16>
    %cst_38 = arith.constant 0.000000e+00 : f32
    %44 = vector.broadcast %cst_38 : f32 to vector<8x128xf32>
    %c0_i32 = arith.constant 0 : i32
    %c7_i32 = arith.constant 7 : i32
    %45 = arith.subi %c7_i32, %c0_i32 : i32
    %46 = arith.index_cast %c0_i32 : i32 to index
    %c0_39 = arith.constant 0 : index
    %c0_40 = arith.constant 0 : index
    %47 = vector.load %arg15[%46, %c0_39, %c0_40] : memref<8x8x512xf32, #tpu.memory_space<vmem>>, vector<1x8x512xf32>
    %48 = vector.shape_cast %47 : vector<1x8x512xf32> to vector<8x512xf32>
    %cst_41 = arith.constant dense<0.000000e+00> : vector<8x512xf32>
    %49 = tpu.matmul %43, %40, %cst_41 {dimension_numbers = #tpu.dot_dimension_numbers<[1], [0], [0], [1], [0, 0, 1, 1], [], []>} : vector<8x128xbf16>, vector<128x512xbf16>, vector<8x512xf32> -> vector<8x512xf32>
    %50 = arith.addf %48, %49 : vector<8x512xf32>
    %51 = arith.index_cast %45 : i32 to index
    %c0_42 = arith.constant 0 : index
    %c0_43 = arith.constant 0 : index
    %52 = vector.load %arg16[%51, %c0_42, %c0_43] : memref<8x8x512xf32, #tpu.memory_space<vmem>>, vector<1x8x512xf32>
    %53 = vector.shape_cast %52 : vector<1x8x512xf32> to vector<8x512xf32>
    %cst_44 = arith.constant dense<0.000000e+00> : vector<8x512xf32>
    %54 = tpu.matmul %43, %42, %cst_44 {dimension_numbers = #tpu.dot_dimension_numbers<[1], [0], [0], [1], [0, 0, 1, 1], [], []>} : vector<8x128xbf16>, vector<128x512xbf16>, vector<8x512xf32> -> vector<8x512xf32>
    %55 = arith.addf %53, %54 : vector<8x512xf32>
    %56 = vector.extract_strided_slice %50 {offsets = [0, 0], sizes = [8, 128], strides = [1, 1]} : vector<8x512xf32> to vector<8x128xf32>
    %57 = arith.negf %56 : vector<8x128xf32>
    %58 = math.exp %57 : vector<8x128xf32>
    %cst_45 = arith.constant 1.000000e+00 : f32
    %59 = vector.broadcast %cst_45 : f32 to vector<8x128xf32>
    %60 = arith.addf %59, %58 : vector<8x128xf32>
    %61 = arith.divf %59, %60 : vector<8x128xf32>
    %62 = vector.extract_strided_slice %50 {offsets = [0, 128], sizes = [8, 128], strides = [1, 1]} : vector<8x512xf32> to vector<8x128xf32>
    %63 = arith.negf %62 : vector<8x128xf32>
    %64 = math.exp %63 : vector<8x128xf32>
    %cst_46 = arith.constant 1.000000e+00 : f32
    %65 = vector.broadcast %cst_46 : f32 to vector<8x128xf32>
    %66 = arith.addf %65, %64 : vector<8x128xf32>
    %67 = arith.divf %65, %66 : vector<8x128xf32>
    %68 = vector.extract_strided_slice %50 {offsets = [0, 256], sizes = [8, 128], strides = [1, 1]} : vector<8x512xf32> to vector<8x128xf32>
    %69 = math.tanh %68 : vector<8x128xf32>
    %70 = vector.extract_strided_slice %50 {offsets = [0, 384], sizes = [8, 128], strides = [1, 1]} : vector<8x512xf32> to vector<8x128xf32>
    %71 = arith.negf %70 : vector<8x128xf32>
    %72 = math.exp %71 : vector<8x128xf32>
    %cst_47 = arith.constant 1.000000e+00 : f32
    %73 = vector.broadcast %cst_47 : f32 to vector<8x128xf32>
    %74 = arith.addf %73, %72 : vector<8x128xf32>
    %75 = arith.divf %73, %74 : vector<8x128xf32>
    %76 = arith.mulf %67, %44 : vector<8x128xf32>
    %77 = arith.mulf %61, %69 : vector<8x128xf32>
    %78 = arith.addf %76, %77 : vector<8x128xf32>
    %79 = math.tanh %78 : vector<8x128xf32>
    %80 = arith.mulf %75, %79 : vector<8x128xf32>
    %81 = vector.extract_strided_slice %55 {offsets = [0, 0], sizes = [8, 128], strides = [1, 1]} : vector<8x512xf32> to vector<8x128xf32>
    %82 = arith.negf %81 : vector<8x128xf32>
    %83 = math.exp %82 : vector<8x128xf32>
    %cst_48 = arith.constant 1.000000e+00 : f32
    %84 = vector.broadcast %cst_48 : f32 to vector<8x128xf32>
    %85 = arith.addf %84, %83 : vector<8x128xf32>
    %86 = arith.divf %84, %85 : vector<8x128xf32>
    %87 = vector.extract_strided_slice %55 {offsets = [0, 128], sizes = [8, 128], strides = [1, 1]} : vector<8x512xf32> to vector<8x128xf32>
    %88 = arith.negf %87 : vector<8x128xf32>
    %89 = math.exp %88 : vector<8x128xf32>
    %cst_49 = arith.constant 1.000000e+00 : f32
    %90 = vector.broadcast %cst_49 : f32 to vector<8x128xf32>
    %91 = arith.addf %90, %89 : vector<8x128xf32>
    %92 = arith.divf %90, %91 : vector<8x128xf32>
    %93 = vector.extract_strided_slice %55 {offsets = [0, 256], sizes = [8, 128], strides = [1, 1]} : vector<8x512xf32> to vector<8x128xf32>
    %94 = math.tanh %93 : vector<8x128xf32>
    %95 = vector.extract_strided_slice %55 {offsets = [0, 384], sizes = [8, 128], strides = [1, 1]} : vector<8x512xf32> to vector<8x128xf32>
    %96 = arith.negf %95 : vector<8x128xf32>
    %97 = math.exp %96 : vector<8x128xf32>
    %cst_50 = arith.constant 1.000000e+00 : f32
    %98 = vector.broadcast %cst_50 : f32 to vector<8x128xf32>
    %99 = arith.addf %98, %97 : vector<8x128xf32>
    %100 = arith.divf %98, %99 : vector<8x128xf32>
    %101 = arith.mulf %92, %44 : vector<8x128xf32>
    %102 = arith.mulf %86, %94 : vector<8x128xf32>
    %103 = arith.addf %101, %102 : vector<8x128xf32>
    %104 = math.tanh %103 : vector<8x128xf32>
    %105 = arith.mulf %100, %104 : vector<8x128xf32>
    %106 = arith.index_cast %c0_i32 : i32 to index
    %c0_51 = arith.constant 0 : index
    %c0_52 = arith.constant 0 : index
    %107 = vector.load %arg17[%106, %c0_51, %c0_52] : memref<8x8x128xf32, #tpu.memory_space<vmem>>, vector<1x8x128xf32>
    %108 = vector.shape_cast %107 : vector<1x8x128xf32> to vector<8x128xf32>
    %109 = vector.shape_cast %80 : vector<8x128xf32> to vector<1x8x128xf32>
    tpu.vector_store %arg17[%106, %c0_51, %c0_52], %109 {strides = array<i32>} : memref<8x8x128xf32, #tpu.memory_space<vmem>>, vector<1x8x128xf32>,
    %110 = arith.index_cast %45 : i32 to index
    %c0_53 = arith.constant 0 : index
    %c0_54 = arith.constant 0 : index
    %111 = vector.load %arg18[%110, %c0_53, %c0_54] : memref<8x8x128xf32, #tpu.memory_space<vmem>>, vector<1x8x128xf32>
    %112 = vector.shape_cast %111 : vector<1x8x128xf32> to vector<8x128xf32>
    %113 = vector.shape_cast %105 : vector<8x128xf32> to vector<1x8x128xf32>
    tpu.vector_store %arg18[%110, %c0_53, %c0_54], %113 {strides = array<i32>} : memref<8x8x128xf32, #tpu.memory_space<vmem>>, vector<1x8x128xf32>,
    %114 = arith.truncf %80 : vector<8x128xf32> to vector<8x128xbf16>
    %115 = arith.truncf %105 : vector<8x128xf32> to vector<8x128xbf16>
    %c1_i32 = arith.constant 1 : i32
    %c7_i32_55 = arith.constant 7 : i32
    %116 = arith.subi %c7_i32_55, %c1_i32 : i32
    %117 = arith.index_cast %c1_i32 : i32 to index
    %c0_56 = arith.constant 0 : index
    %c0_57 = arith.constant 0 : index
    %118 = vector.load %arg15[%117, %c0_56, %c0_57] : memref<8x8x512xf32, #tpu.memory_space<vmem>>, vector<1x8x512xf32>
    %119 = vector.shape_cast %118 : vector<1x8x512xf32> to vector<8x512xf32>
    %cst_58 = arith.constant dense<0.000000e+00> : vector<8x512xf32>
    %120 = tpu.matmul %114, %40, %cst_58 {dimension_numbers = #tpu.dot_dimension_numbers<[1], [0], [0], [1], [0, 0, 1, 1], [], []>} : vector<8x128xbf16>, vector<128x512xbf16>, vector<8x512xf32> -> vector<8x512xf32>
    %121 = arith.addf %119, %120 : vector<8x512xf32>
    %122 = arith.index_cast %116 : i32 to index
    %c0_59 = arith.constant 0 : index
    %c0_60 = arith.constant 0 : index
    %123 = vector.load %arg16[%122, %c0_59, %c0_60] : memref<8x8x512xf32, #tpu.memory_space<vmem>>, vector<1x8x512xf32>
    %124 = vector.shape_cast %123 : vector<1x8x512xf32> to vector<8x512xf32>
    %cst_61 = arith.constant dense<0.000000e+00> : vector<8x512xf32>
    %125 = tpu.matmul %115, %42, %cst_61 {dimension_numbers = #tpu.dot_dimension_numbers<[1], [0], [0], [1], [0, 0, 1, 1], [], []>} : vector<8x128xbf16>, vector<128x512xbf16>, vector<8x512xf32> -> vector<8x512xf32>
    %126 = arith.addf %124, %125 : vector<8x512xf32>
    %127 = vector.extract_strided_slice %121 {offsets = [0, 0], sizes = [8, 128], strides = [1, 1]} : vector<8x512xf32> to vector<8x128xf32>
    %128 = arith.negf %127 : vector<8x128xf32>
    %129 = math.exp %128 : vector<8x128xf32>
    %cst_62 = arith.constant 1.000000e+00 : f32
    %130 = vector.broadcast %cst_62 : f32 to vector<8x128xf32>
    %131 = arith.addf %130, %129 : vector<8x128xf32>
    %132 = arith.divf %130, %131 : vector<8x128xf32>
    %133 = vector.extract_strided_slice %121 {offsets = [0, 128], sizes = [8, 128], strides = [1, 1]} : vector<8x512xf32> to vector<8x128xf32>
    %134 = arith.negf %133 : vector<8x128xf32>
    %135 = math.exp %134 : vector<8x128xf32>
    %cst_63 = arith.constant 1.000000e+00 : f32
    %136 = vector.broadcast %cst_63 : f32 to vector<8x128xf32>
    %137 = arith.addf %136, %135 : vector<8x128xf32>
    %138 = arith.divf %136, %137 : vector<8x128xf32>
    %139 = vector.extract_strided_slice %121 {offsets = [0, 256], sizes = [8, 128], strides = [1, 1]} : vector<8x512xf32> to vector<8x128xf32>
    %140 = math.tanh %139 : vector<8x128xf32>
    %141 = vector.extract_strided_slice %121 {offsets = [0, 384], sizes = [8, 128], strides = [1, 1]} : vector<8x512xf32> to vector<8x128xf32>
    %142 = arith.negf %141 : vector<8x128xf32>
    %143 = math.exp %142 : vector<8x128xf32>
    %cst_64 = arith.constant 1.000000e+00 : f32
    %144 = vector.broadcast %cst_64 : f32 to vector<8x128xf32>
    %145 = arith.addf %144, %143 : vector<8x128xf32>
    %146 = arith.divf %144, %145 : vector<8x128xf32>
    %147 = arith.mulf %138, %78 : vector<8x128xf32>
    %148 = arith.mulf %132, %140 : vector<8x128xf32>
    %149 = arith.addf %147, %148 : vector<8x128xf32>
    %150 = math.tanh %149 : vector<8x128xf32>
    %151 = arith.mulf %146, %150 : vector<8x128xf32>
    %152 = vector.extract_strided_slice %126 {offsets = [0, 0], sizes = [8, 128], strides = [1, 1]} : vector<8x512xf32> to vector<8x128xf32>
    %153 = arith.negf %152 : vector<8x128xf32>
    %154 = math.exp %153 : vector<8x128xf32>
    %cst_65 = arith.constant 1.000000e+00 : f32
    %155 = vector.broadcast %cst_65 : f32 to vector<8x128xf32>
    %156 = arith.addf %155, %154 : vector<8x128xf32>
    %157 = arith.divf %155, %156 : vector<8x128xf32>
    %158 = vector.extract_strided_slice %126 {offsets = [0, 128], sizes = [8, 128], strides = [1, 1]} : vector<8x512xf32> to vector<8x128xf32>
    %159 = arith.negf %158 : vector<8x128xf32>
    %160 = math.exp %159 : vector<8x128xf32>
    %cst_66 = arith.constant 1.000000e+00 : f32
    %161 = vector.broadcast %cst_66 : f32 to vector<8x128xf32>
    %162 = arith.addf %161, %160 : vector<8x128xf32>
    %163 = arith.divf %161, %162 : vector<8x128xf32>
    %164 = vector.extract_strided_slice %126 {offsets = [0, 256], sizes = [8, 128], strides = [1, 1]} : vector<8x512xf32> to vector<8x128xf32>
    %165 = math.tanh %164 : vector<8x128xf32>
    %166 = vector.extract_strided_slice %126 {offsets = [0, 384], sizes = [8, 128], strides = [1, 1]} : vector<8x512xf32> to vector<8x128xf32>
    %167 = arith.negf %166 : vector<8x128xf32>
    %168 = math.exp %167 : vector<8x128xf32>
    %cst_67 = arith.constant 1.000000e+00 : f32
    %169 = vector.broadcast %cst_67 : f32 to vector<8x128xf32>
    %170 = arith.addf %169, %168 : vector<8x128xf32>
    %171 = arith.divf %169, %170 : vector<8x128xf32>
    %172 = arith.mulf %163, %103 : vector<8x128xf32>
    %173 = arith.mulf %157, %165 : vector<8x128xf32>
    %174 = arith.addf %172, %173 : vector<8x128xf32>
    %175 = math.tanh %174 : vector<8x128xf32>
    %176 = arith.mulf %171, %175 : vector<8x128xf32>
    %177 = arith.index_cast %c1_i32 : i32 to index
    %c0_68 = arith.constant 0 : index
    %c0_69 = arith.constant 0 : index
    %178 = vector.load %arg17[%177, %c0_68, %c0_69] : memref<8x8x128xf32, #tpu.memory_space<vmem>>, vector<1x8x128xf32>
    %179 = vector.shape_cast %178 : vector<1x8x128xf32> to vector<8x128xf32>
    %180 = vector.shape_cast %151 : vector<8x128xf32> to vector<1x8x128xf32>
    tpu.vector_store %arg17[%177, %c0_68, %c0_69], %180 {strides = array<i32>} : memref<8x8x128xf32, #tpu.memory_space<vmem>>, vector<1x8x128xf32>,
    %181 = arith.index_cast %116 : i32 to index
    %c0_70 = arith.constant 0 : index
    %c0_71 = arith.constant 0 : index
    %182 = vector.load %arg18[%181, %c0_70, %c0_71] : memref<8x8x128xf32, #tpu.memory_space<vmem>>, vector<1x8x128xf32>
    %183 = vector.shape_cast %182 : vector<1x8x128xf32> to vector<8x128xf32>
    %184 = vector.shape_cast %176 : vector<8x128xf32> to vector<1x8x128xf32>
    tpu.vector_store %arg18[%181, %c0_70, %c0_71], %184 {strides = array<i32>} : memref<8x8x128xf32, #tpu.memory_space<vmem>>, vector<1x8x128xf32>,
    %185 = arith.truncf %151 : vector<8x128xf32> to vector<8x128xbf16>
    %186 = arith.truncf %176 : vector<8x128xf32> to vector<8x128xbf16>
    %c2_i32 = arith.constant 2 : i32
    %c7_i32_72 = arith.constant 7 : i32
    %187 = arith.subi %c7_i32_72, %c2_i32 : i32
    %188 = arith.index_cast %c2_i32 : i32 to index
    %c0_73 = arith.constant 0 : index
    %c0_74 = arith.constant 0 : index
    %189 = vector.load %arg15[%188, %c0_73, %c0_74] : memref<8x8x512xf32, #tpu.memory_space<vmem>>, vector<1x8x512xf32>
    %190 = vector.shape_cast %189 : vector<1x8x512xf32> to vector<8x512xf32>
    %cst_75 = arith.constant dense<0.000000e+00> : vector<8x512xf32>
    %191 = tpu.matmul %185, %40, %cst_75 {dimension_numbers = #tpu.dot_dimension_numbers<[1], [0], [0], [1], [0, 0, 1, 1], [], []>} : vector<8x128xbf16>, vector<128x512xbf16>, vector<8x512xf32> -> vector<8x512xf32>
    %192 = arith.addf %190, %191 : vector<8x512xf32>
    %193 = arith.index_cast %187 : i32 to index
    %c0_76 = arith.constant 0 : index
    %c0_77 = arith.constant 0 : index
    %194 = vector.load %arg16[%193, %c0_76, %c0_77] : memref<8x8x512xf32, #tpu.memory_space<vmem>>, vector<1x8x512xf32>
    %195 = vector.shape_cast %194 : vector<1x8x512xf32> to vector<8x512xf32>
    %cst_78 = arith.constant dense<0.000000e+00> : vector<8x512xf32>
    %196 = tpu.matmul %186, %42, %cst_78 {dimension_numbers = #tpu.dot_dimension_numbers<[1], [0], [0], [1], [0, 0, 1, 1], [], []>} : vector<8x128xbf16>, vector<128x512xbf16>, vector<8x512xf32> -> vector<8x512xf32>
    %197 = arith.addf %195, %196 : vector<8x512xf32>
    %198 = vector.extract_strided_slice %192 {offsets = [0, 0], sizes = [8, 128], strides = [1, 1]} : vector<8x512xf32> to vector<8x128xf32>
    %199 = arith.negf %198 : vector<8x128xf32>
    %200 = math.exp %199 : vector<8x128xf32>
    %cst_79 = arith.constant 1.000000e+00 : f32
    %201 = vector.broadcast %cst_79 : f32 to vector<8x128xf32>
    %202 = arith.addf %201, %200 : vector<8x128xf32>
    %203 = arith.divf %201, %202 : vector<8x128xf32>
    %204 = vector.extract_strided_slice %192 {offsets = [0, 128], sizes = [8, 128], strides = [1, 1]} : vector<8x512xf32> to vector<8x128xf32>
    %205 = arith.negf %204 : vector<8x128xf32>
    %206 = math.exp %205 : vector<8x128xf32>
    %cst_80 = arith.constant 1.000000e+00 : f32
    %207 = vector.broadcast %cst_80 : f32 to vector<8x128xf32>
    %208 = arith.addf %207, %206 : vector<8x128xf32>
    %209 = arith.divf %207, %208 : vector<8x128xf32>
    %210 = vector.extract_strided_slice %192 {offsets = [0, 256], sizes = [8, 128], strides = [1, 1]} : vector<8x512xf32> to vector<8x128xf32>
    %211 = math.tanh %210 : vector<8x128xf32>
    %212 = vector.extract_strided_slice %192 {offsets = [0, 384], sizes = [8, 128], strides = [1, 1]} : vector<8x512xf32> to vector<8x128xf32>
    %213 = arith.negf %212 : vector<8x128xf32>
    %214 = math.exp %213 : vector<8x128xf32>
    %cst_81 = arith.constant 1.000000e+00 : f32
    %215 = vector.broadcast %cst_81 : f32 to vector<8x128xf32>
    %216 = arith.addf %215, %214 : vector<8x128xf32>
    %217 = arith.divf %215, %216 : vector<8x128xf32>
    %218 = arith.mulf %209, %149 : vector<8x128xf32>
    %219 = arith.mulf %203, %211 : vector<8x128xf32>
    %220 = arith.addf %218, %219 : vector<8x128xf32>
    %221 = math.tanh %220 : vector<8x128xf32>
    %222 = arith.mulf %217, %221 : vector<8x128xf32>
    %223 = vector.extract_strided_slice %197 {offsets = [0, 0], sizes = [8, 128], strides = [1, 1]} : vector<8x512xf32> to vector<8x128xf32>
    %224 = arith.negf %223 : vector<8x128xf32>
    %225 = math.exp %224 : vector<8x128xf32>
    %cst_82 = arith.constant 1.000000e+00 : f32
    %226 = vector.broadcast %cst_82 : f32 to vector<8x128xf32>
    %227 = arith.addf %226, %225 : vector<8x128xf32>
    %228 = arith.divf %226, %227 : vector<8x128xf32>
    %229 = vector.extract_strided_slice %197 {offsets = [0, 128], sizes = [8, 128], strides = [1, 1]} : vector<8x512xf32> to vector<8x128xf32>
    %230 = arith.negf %229 : vector<8x128xf32>
    %231 = math.exp %230 : vector<8x128xf32>
    %cst_83 = arith.constant 1.000000e+00 : f32
    %232 = vector.broadcast %cst_83 : f32 to vector<8x128xf32>
    %233 = arith.addf %232, %231 : vector<8x128xf32>
    %234 = arith.divf %232, %233 : vector<8x128xf32>
    %235 = vector.extract_strided_slice %197 {offsets = [0, 256], sizes = [8, 128], strides = [1, 1]} : vector<8x512xf32> to vector<8x128xf32>
    %236 = math.tanh %235 : vector<8x128xf32>
    %237 = vector.extract_strided_slice %197 {offsets = [0, 384], sizes = [8, 128], strides = [1, 1]} : vector<8x512xf32> to vector<8x128xf32>
    %238 = arith.negf %237 : vector<8x128xf32>
    %239 = math.exp %238 : vector<8x128xf32>
    %cst_84 = arith.constant 1.000000e+00 : f32
    %240 = vector.broadcast %cst_84 : f32 to vector<8x128xf32>
    %241 = arith.addf %240, %239 : vector<8x128xf32>
    %242 = arith.divf %240, %241 : vector<8x128xf32>
    %243 = arith.mulf %234, %174 : vector<8x128xf32>
    %244 = arith.mulf %228, %236 : vector<8x128xf32>
    %245 = arith.addf %243, %244 : vector<8x128xf32>
    %246 = math.tanh %245 : vector<8x128xf32>
    %247 = arith.mulf %242, %246 : vector<8x128xf32>
    %248 = arith.index_cast %c2_i32 : i32 to index
    %c0_85 = arith.constant 0 : index
    %c0_86 = arith.constant 0 : index
    %249 = vector.load %arg17[%248, %c0_85, %c0_86] : memref<8x8x128xf32, #tpu.memory_space<vmem>>, vector<1x8x128xf32>
    %250 = vector.shape_cast %249 : vector<1x8x128xf32> to vector<8x128xf32>
    %251 = vector.shape_cast %222 : vector<8x128xf32> to vector<1x8x128xf32>
    tpu.vector_store %arg17[%248, %c0_85, %c0_86], %251 {strides = array<i32>} : memref<8x8x128xf32, #tpu.memory_space<vmem>>, vector<1x8x128xf32>,
    %252 = arith.index_cast %187 : i32 to index
    %c0_87 = arith.constant 0 : index
    %c0_88 = arith.constant 0 : index
    %253 = vector.load %arg18[%252, %c0_87, %c0_88] : memref<8x8x128xf32, #tpu.memory_space<vmem>>, vector<1x8x128xf32>
    %254 = vector.shape_cast %253 : vector<1x8x128xf32> to vector<8x128xf32>
    %255 = vector.shape_cast %247 : vector<8x128xf32> to vector<1x8x128xf32>
    tpu.vector_store %arg18[%252, %c0_87, %c0_88], %255 {strides = array<i32>} : memref<8x8x128xf32, #tpu.memory_space<vmem>>, vector<1x8x128xf32>,
    %256 = arith.truncf %222 : vector<8x128xf32> to vector<8x128xbf16>
    %257 = arith.truncf %247 : vector<8x128xf32> to vector<8x128xbf16>
    %c3_i32 = arith.constant 3 : i32
    %c7_i32_89 = arith.constant 7 : i32
    %258 = arith.subi %c7_i32_89, %c3_i32 : i32
    %259 = arith.index_cast %c3_i32 : i32 to index
    %c0_90 = arith.constant 0 : index
    %c0_91 = arith.constant 0 : index
    %260 = vector.load %arg15[%259, %c0_90, %c0_91] : memref<8x8x512xf32, #tpu.memory_space<vmem>>, vector<1x8x512xf32>
    %261 = vector.shape_cast %260 : vector<1x8x512xf32> to vector<8x512xf32>
    %cst_92 = arith.constant dense<0.000000e+00> : vector<8x512xf32>
    %262 = tpu.matmul %256, %40, %cst_92 {dimension_numbers = #tpu.dot_dimension_numbers<[1], [0], [0], [1], [0, 0, 1, 1], [], []>} : vector<8x128xbf16>, vector<128x512xbf16>, vector<8x512xf32> -> vector<8x512xf32>
    %263 = arith.addf %261, %262 : vector<8x512xf32>
    %264 = arith.index_cast %258 : i32 to index
    %c0_93 = arith.constant 0 : index
    %c0_94 = arith.constant 0 : index
    %265 = vector.load %arg16[%264, %c0_93, %c0_94] : memref<8x8x512xf32, #tpu.memory_space<vmem>>, vector<1x8x512xf32>
    %266 = vector.shape_cast %265 : vector<1x8x512xf32> to vector<8x512xf32>
    %cst_95 = arith.constant dense<0.000000e+00> : vector<8x512xf32>
    %267 = tpu.matmul %257, %42, %cst_95 {dimension_numbers = #tpu.dot_dimension_numbers<[1], [0], [0], [1], [0, 0, 1, 1], [], []>} : vector<8x128xbf16>, vector<128x512xbf16>, vector<8x512xf32> -> vector<8x512xf32>
    %268 = arith.addf %266, %267 : vector<8x512xf32>
    %269 = vector.extract_strided_slice %263 {offsets = [0, 0], sizes = [8, 128], strides = [1, 1]} : vector<8x512xf32> to vector<8x128xf32>
    %270 = arith.negf %269 : vector<8x128xf32>
    %271 = math.exp %270 : vector<8x128xf32>
    %cst_96 = arith.constant 1.000000e+00 : f32
    %272 = vector.broadcast %cst_96 : f32 to vector<8x128xf32>
    %273 = arith.addf %272, %271 : vector<8x128xf32>
    %274 = arith.divf %272, %273 : vector<8x128xf32>
    %275 = vector.extract_strided_slice %263 {offsets = [0, 128], sizes = [8, 128], strides = [1, 1]} : vector<8x512xf32> to vector<8x128xf32>
    %276 = arith.negf %275 : vector<8x128xf32>
    %277 = math.exp %276 : vector<8x128xf32>
    %cst_97 = arith.constant 1.000000e+00 : f32
    %278 = vector.broadcast %cst_97 : f32 to vector<8x128xf32>
    %279 = arith.addf %278, %277 : vector<8x128xf32>
    %280 = arith.divf %278, %279 : vector<8x128xf32>
    %281 = vector.extract_strided_slice %263 {offsets = [0, 256], sizes = [8, 128], strides = [1, 1]} : vector<8x512xf32> to vector<8x128xf32>
    %282 = math.tanh %281 : vector<8x128xf32>
    %283 = vector.extract_strided_slice %263 {offsets = [0, 384], sizes = [8, 128], strides = [1, 1]} : vector<8x512xf32> to vector<8x128xf32>
    %284 = arith.negf %283 : vector<8x128xf32>
    %285 = math.exp %284 : vector<8x128xf32>
    %cst_98 = arith.constant 1.000000e+00 : f32
    %286 = vector.broadcast %cst_98 : f32 to vector<8x128xf32>
    %287 = arith.addf %286, %285 : vector<8x128xf32>
    %288 = arith.divf %286, %287 : vector<8x128xf32>
    %289 = arith.mulf %280, %220 : vector<8x128xf32>
    %290 = arith.mulf %274, %282 : vector<8x128xf32>
    %291 = arith.addf %289, %290 : vector<8x128xf32>
    %292 = math.tanh %291 : vector<8x128xf32>
    %293 = arith.mulf %288, %292 : vector<8x128xf32>
    %294 = vector.extract_strided_slice %268 {offsets = [0, 0], sizes = [8, 128], strides = [1, 1]} : vector<8x512xf32> to vector<8x128xf32>
    %295 = arith.negf %294 : vector<8x128xf32>
    %296 = math.exp %295 : vector<8x128xf32>
    %cst_99 = arith.constant 1.000000e+00 : f32
    %297 = vector.broadcast %cst_99 : f32 to vector<8x128xf32>
    %298 = arith.addf %297, %296 : vector<8x128xf32>
    %299 = arith.divf %297, %298 : vector<8x128xf32>
    %300 = vector.extract_strided_slice %268 {offsets = [0, 128], sizes = [8, 128], strides = [1, 1]} : vector<8x512xf32> to vector<8x128xf32>
    %301 = arith.negf %300 : vector<8x128xf32>
    %302 = math.exp %301 : vector<8x128xf32>
    %cst_100 = arith.constant 1.000000e+00 : f32
    %303 = vector.broadcast %cst_100 : f32 to vector<8x128xf32>
    %304 = arith.addf %303, %302 : vector<8x128xf32>
    %305 = arith.divf %303, %304 : vector<8x128xf32>
    %306 = vector.extract_strided_slice %268 {offsets = [0, 256], sizes = [8, 128], strides = [1, 1]} : vector<8x512xf32> to vector<8x128xf32>
    %307 = math.tanh %306 : vector<8x128xf32>
    %308 = vector.extract_strided_slice %268 {offsets = [0, 384], sizes = [8, 128], strides = [1, 1]} : vector<8x512xf32> to vector<8x128xf32>
    %309 = arith.negf %308 : vector<8x128xf32>
    %310 = math.exp %309 : vector<8x128xf32>
    %cst_101 = arith.constant 1.000000e+00 : f32
    %311 = vector.broadcast %cst_101 : f32 to vector<8x128xf32>
    %312 = arith.addf %311, %310 : vector<8x128xf32>
    %313 = arith.divf %311, %312 : vector<8x128xf32>
    %314 = arith.mulf %305, %245 : vector<8x128xf32>
    %315 = arith.mulf %299, %307 : vector<8x128xf32>
    %316 = arith.addf %314, %315 : vector<8x128xf32>
    %317 = math.tanh %316 : vector<8x128xf32>
    %318 = arith.mulf %313, %317 : vector<8x128xf32>
    %319 = arith.index_cast %c3_i32 : i32 to index
    %c0_102 = arith.constant 0 : index
    %c0_103 = arith.constant 0 : index
    %320 = vector.load %arg17[%319, %c0_102, %c0_103] : memref<8x8x128xf32, #tpu.memory_space<vmem>>, vector<1x8x128xf32>
    %321 = vector.shape_cast %320 : vector<1x8x128xf32> to vector<8x128xf32>
    %322 = vector.shape_cast %293 : vector<8x128xf32> to vector<1x8x128xf32>
    tpu.vector_store %arg17[%319, %c0_102, %c0_103], %322 {strides = array<i32>} : memref<8x8x128xf32, #tpu.memory_space<vmem>>, vector<1x8x128xf32>,
    %323 = arith.index_cast %258 : i32 to index
    %c0_104 = arith.constant 0 : index
    %c0_105 = arith.constant 0 : index
    %324 = vector.load %arg18[%323, %c0_104, %c0_105] : memref<8x8x128xf32, #tpu.memory_space<vmem>>, vector<1x8x128xf32>
    %325 = vector.shape_cast %324 : vector<1x8x128xf32> to vector<8x128xf32>
    %326 = vector.shape_cast %318 : vector<8x128xf32> to vector<1x8x128xf32>
    tpu.vector_store %arg18[%323, %c0_104, %c0_105], %326 {strides = array<i32>} : memref<8x8x128xf32, #tpu.memory_space<vmem>>, vector<1x8x128xf32>,
    %327 = arith.truncf %293 : vector<8x128xf32> to vector<8x128xbf16>
    %328 = arith.truncf %318 : vector<8x128xf32> to vector<8x128xbf16>
    %c4_i32 = arith.constant 4 : i32
    %c7_i32_106 = arith.constant 7 : i32
    %329 = arith.subi %c7_i32_106, %c4_i32 : i32
    %330 = arith.index_cast %c4_i32 : i32 to index
    %c0_107 = arith.constant 0 : index
    %c0_108 = arith.constant 0 : index
    %331 = vector.load %arg15[%330, %c0_107, %c0_108] : memref<8x8x512xf32, #tpu.memory_space<vmem>>, vector<1x8x512xf32>
    %332 = vector.shape_cast %331 : vector<1x8x512xf32> to vector<8x512xf32>
    %cst_109 = arith.constant dense<0.000000e+00> : vector<8x512xf32>
    %333 = tpu.matmul %327, %40, %cst_109 {dimension_numbers = #tpu.dot_dimension_numbers<[1], [0], [0], [1], [0, 0, 1, 1], [], []>} : vector<8x128xbf16>, vector<128x512xbf16>, vector<8x512xf32> -> vector<8x512xf32>
    %334 = arith.addf %332, %333 : vector<8x512xf32>
    %335 = arith.index_cast %329 : i32 to index
    %c0_110 = arith.constant 0 : index
    %c0_111 = arith.constant 0 : index
    %336 = vector.load %arg16[%335, %c0_110, %c0_111] : memref<8x8x512xf32, #tpu.memory_space<vmem>>, vector<1x8x512xf32>
    %337 = vector.shape_cast %336 : vector<1x8x512xf32> to vector<8x512xf32>
    %cst_112 = arith.constant dense<0.000000e+00> : vector<8x512xf32>
    %338 = tpu.matmul %328, %42, %cst_112 {dimension_numbers = #tpu.dot_dimension_numbers<[1], [0], [0], [1], [0, 0, 1, 1], [], []>} : vector<8x128xbf16>, vector<128x512xbf16>, vector<8x512xf32> -> vector<8x512xf32>
    %339 = arith.addf %337, %338 : vector<8x512xf32>
    %340 = vector.extract_strided_slice %334 {offsets = [0, 0], sizes = [8, 128], strides = [1, 1]} : vector<8x512xf32> to vector<8x128xf32>
    %341 = arith.negf %340 : vector<8x128xf32>
    %342 = math.exp %341 : vector<8x128xf32>
    %cst_113 = arith.constant 1.000000e+00 : f32
    %343 = vector.broadcast %cst_113 : f32 to vector<8x128xf32>
    %344 = arith.addf %343, %342 : vector<8x128xf32>
    %345 = arith.divf %343, %344 : vector<8x128xf32>
    %346 = vector.extract_strided_slice %334 {offsets = [0, 128], sizes = [8, 128], strides = [1, 1]} : vector<8x512xf32> to vector<8x128xf32>
    %347 = arith.negf %346 : vector<8x128xf32>
    %348 = math.exp %347 : vector<8x128xf32>
    %cst_114 = arith.constant 1.000000e+00 : f32
    %349 = vector.broadcast %cst_114 : f32 to vector<8x128xf32>
    %350 = arith.addf %349, %348 : vector<8x128xf32>
    %351 = arith.divf %349, %350 : vector<8x128xf32>
    %352 = vector.extract_strided_slice %334 {offsets = [0, 256], sizes = [8, 128], strides = [1, 1]} : vector<8x512xf32> to vector<8x128xf32>
    %353 = math.tanh %352 : vector<8x128xf32>
    %354 = vector.extract_strided_slice %334 {offsets = [0, 384], sizes = [8, 128], strides = [1, 1]} : vector<8x512xf32> to vector<8x128xf32>
    %355 = arith.negf %354 : vector<8x128xf32>
    %356 = math.exp %355 : vector<8x128xf32>
    %cst_115 = arith.constant 1.000000e+00 : f32
    %357 = vector.broadcast %cst_115 : f32 to vector<8x128xf32>
    %358 = arith.addf %357, %356 : vector<8x128xf32>
    %359 = arith.divf %357, %358 : vector<8x128xf32>
    %360 = arith.mulf %351, %291 : vector<8x128xf32>
    %361 = arith.mulf %345, %353 : vector<8x128xf32>
    %362 = arith.addf %360, %361 : vector<8x128xf32>
    %363 = math.tanh %362 : vector<8x128xf32>
    %364 = arith.mulf %359, %363 : vector<8x128xf32>
    %365 = vector.extract_strided_slice %339 {offsets = [0, 0], sizes = [8, 128], strides = [1, 1]} : vector<8x512xf32> to vector<8x128xf32>
    %366 = arith.negf %365 : vector<8x128xf32>
    %367 = math.exp %366 : vector<8x128xf32>
    %cst_116 = arith.constant 1.000000e+00 : f32
    %368 = vector.broadcast %cst_116 : f32 to vector<8x128xf32>
    %369 = arith.addf %368, %367 : vector<8x128xf32>
    %370 = arith.divf %368, %369 : vector<8x128xf32>
    %371 = vector.extract_strided_slice %339 {offsets = [0, 128], sizes = [8, 128], strides = [1, 1]} : vector<8x512xf32> to vector<8x128xf32>
    %372 = arith.negf %371 : vector<8x128xf32>
    %373 = math.exp %372 : vector<8x128xf32>
    %cst_117 = arith.constant 1.000000e+00 : f32
    %374 = vector.broadcast %cst_117 : f32 to vector<8x128xf32>
    %375 = arith.addf %374, %373 : vector<8x128xf32>
    %376 = arith.divf %374, %375 : vector<8x128xf32>
    %377 = vector.extract_strided_slice %339 {offsets = [0, 256], sizes = [8, 128], strides = [1, 1]} : vector<8x512xf32> to vector<8x128xf32>
    %378 = math.tanh %377 : vector<8x128xf32>
    %379 = vector.extract_strided_slice %339 {offsets = [0, 384], sizes = [8, 128], strides = [1, 1]} : vector<8x512xf32> to vector<8x128xf32>
    %380 = arith.negf %379 : vector<8x128xf32>
    %381 = math.exp %380 : vector<8x128xf32>
    %cst_118 = arith.constant 1.000000e+00 : f32
    %382 = vector.broadcast %cst_118 : f32 to vector<8x128xf32>
    %383 = arith.addf %382, %381 : vector<8x128xf32>
    %384 = arith.divf %382, %383 : vector<8x128xf32>
    %385 = arith.mulf %376, %316 : vector<8x128xf32>
    %386 = arith.mulf %370, %378 : vector<8x128xf32>
    %387 = arith.addf %385, %386 : vector<8x128xf32>
    %388 = math.tanh %387 : vector<8x128xf32>
    %389 = arith.mulf %384, %388 : vector<8x128xf32>
    %390 = arith.index_cast %c4_i32 : i32 to index
    %c0_119 = arith.constant 0 : index
    %c0_120 = arith.constant 0 : index
    %391 = vector.load %arg17[%390, %c0_119, %c0_120] : memref<8x8x128xf32, #tpu.memory_space<vmem>>, vector<1x8x128xf32>
    %392 = vector.shape_cast %391 : vector<1x8x128xf32> to vector<8x128xf32>
    %393 = vector.shape_cast %364 : vector<8x128xf32> to vector<1x8x128xf32>
    tpu.vector_store %arg17[%390, %c0_119, %c0_120], %393 {strides = array<i32>} : memref<8x8x128xf32, #tpu.memory_space<vmem>>, vector<1x8x128xf32>,
    %394 = arith.index_cast %329 : i32 to index
    %c0_121 = arith.constant 0 : index
    %c0_122 = arith.constant 0 : index
    %395 = vector.load %arg18[%394, %c0_121, %c0_122] : memref<8x8x128xf32, #tpu.memory_space<vmem>>, vector<1x8x128xf32>
    %396 = vector.shape_cast %395 : vector<1x8x128xf32> to vector<8x128xf32>
    %397 = vector.shape_cast %389 : vector<8x128xf32> to vector<1x8x128xf32>
    tpu.vector_store %arg18[%394, %c0_121, %c0_122], %397 {strides = array<i32>} : memref<8x8x128xf32, #tpu.memory_space<vmem>>, vector<1x8x128xf32>,
    %398 = arith.truncf %364 : vector<8x128xf32> to vector<8x128xbf16>
    %399 = arith.truncf %389 : vector<8x128xf32> to vector<8x128xbf16>
    %c5_i32 = arith.constant 5 : i32
    %c7_i32_123 = arith.constant 7 : i32
    %400 = arith.subi %c7_i32_123, %c5_i32 : i32
    %401 = arith.index_cast %c5_i32 : i32 to index
    %c0_124 = arith.constant 0 : index
    %c0_125 = arith.constant 0 : index
    %402 = vector.load %arg15[%401, %c0_124, %c0_125] : memref<8x8x512xf32, #tpu.memory_space<vmem>>, vector<1x8x512xf32>
    %403 = vector.shape_cast %402 : vector<1x8x512xf32> to vector<8x512xf32>
    %cst_126 = arith.constant dense<0.000000e+00> : vector<8x512xf32>
    %404 = tpu.matmul %398, %40, %cst_126 {dimension_numbers = #tpu.dot_dimension_numbers<[1], [0], [0], [1], [0, 0, 1, 1], [], []>} : vector<8x128xbf16>, vector<128x512xbf16>, vector<8x512xf32> -> vector<8x512xf32>
    %405 = arith.addf %403, %404 : vector<8x512xf32>
    %406 = arith.index_cast %400 : i32 to index
    %c0_127 = arith.constant 0 : index
    %c0_128 = arith.constant 0 : index
    %407 = vector.load %arg16[%406, %c0_127, %c0_128] : memref<8x8x512xf32, #tpu.memory_space<vmem>>, vector<1x8x512xf32>
    %408 = vector.shape_cast %407 : vector<1x8x512xf32> to vector<8x512xf32>
    %cst_129 = arith.constant dense<0.000000e+00> : vector<8x512xf32>
    %409 = tpu.matmul %399, %42, %cst_129 {dimension_numbers = #tpu.dot_dimension_numbers<[1], [0], [0], [1], [0, 0, 1, 1], [], []>} : vector<8x128xbf16>, vector<128x512xbf16>, vector<8x512xf32> -> vector<8x512xf32>
    %410 = arith.addf %408, %409 : vector<8x512xf32>
    %411 = vector.extract_strided_slice %405 {offsets = [0, 0], sizes = [8, 128], strides = [1, 1]} : vector<8x512xf32> to vector<8x128xf32>
    %412 = arith.negf %411 : vector<8x128xf32>
    %413 = math.exp %412 : vector<8x128xf32>
    %cst_130 = arith.constant 1.000000e+00 : f32
    %414 = vector.broadcast %cst_130 : f32 to vector<8x128xf32>
    %415 = arith.addf %414, %413 : vector<8x128xf32>
    %416 = arith.divf %414, %415 : vector<8x128xf32>
    %417 = vector.extract_strided_slice %405 {offsets = [0, 128], sizes = [8, 128], strides = [1, 1]} : vector<8x512xf32> to vector<8x128xf32>
    %418 = arith.negf %417 : vector<8x128xf32>
    %419 = math.exp %418 : vector<8x128xf32>
    %cst_131 = arith.constant 1.000000e+00 : f32
    %420 = vector.broadcast %cst_131 : f32 to vector<8x128xf32>
    %421 = arith.addf %420, %419 : vector<8x128xf32>
    %422 = arith.divf %420, %421 : vector<8x128xf32>
    %423 = vector.extract_strided_slice %405 {offsets = [0, 256], sizes = [8, 128], strides = [1, 1]} : vector<8x512xf32> to vector<8x128xf32>
    %424 = math.tanh %423 : vector<8x128xf32>
    %425 = vector.extract_strided_slice %405 {offsets = [0, 384], sizes = [8, 128], strides = [1, 1]} : vector<8x512xf32> to vector<8x128xf32>
    %426 = arith.negf %425 : vector<8x128xf32>
    %427 = math.exp %426 : vector<8x128xf32>
    %cst_132 = arith.constant 1.000000e+00 : f32
    %428 = vector.broadcast %cst_132 : f32 to vector<8x128xf32>
    %429 = arith.addf %428, %427 : vector<8x128xf32>
    %430 = arith.divf %428, %429 : vector<8x128xf32>
    %431 = arith.mulf %422, %362 : vector<8x128xf32>
    %432 = arith.mulf %416, %424 : vector<8x128xf32>
    %433 = arith.addf %431, %432 : vector<8x128xf32>
    %434 = math.tanh %433 : vector<8x128xf32>
    %435 = arith.mulf %430, %434 : vector<8x128xf32>
    %436 = vector.extract_strided_slice %410 {offsets = [0, 0], sizes = [8, 128], strides = [1, 1]} : vector<8x512xf32> to vector<8x128xf32>
    %437 = arith.negf %436 : vector<8x128xf32>
    %438 = math.exp %437 : vector<8x128xf32>
    %cst_133 = arith.constant 1.000000e+00 : f32
    %439 = vector.broadcast %cst_133 : f32 to vector<8x128xf32>
    %440 = arith.addf %439, %438 : vector<8x128xf32>
    %441 = arith.divf %439, %440 : vector<8x128xf32>
    %442 = vector.extract_strided_slice %410 {offsets = [0, 128], sizes = [8, 128], strides = [1, 1]} : vector<8x512xf32> to vector<8x128xf32>
    %443 = arith.negf %442 : vector<8x128xf32>
    %444 = math.exp %443 : vector<8x128xf32>
    %cst_134 = arith.constant 1.000000e+00 : f32
    %445 = vector.broadcast %cst_134 : f32 to vector<8x128xf32>
    %446 = arith.addf %445, %444 : vector<8x128xf32>
    %447 = arith.divf %445, %446 : vector<8x128xf32>
    %448 = vector.extract_strided_slice %410 {offsets = [0, 256], sizes = [8, 128], strides = [1, 1]} : vector<8x512xf32> to vector<8x128xf32>
    %449 = math.tanh %448 : vector<8x128xf32>
    %450 = vector.extract_strided_slice %410 {offsets = [0, 384], sizes = [8, 128], strides = [1, 1]} : vector<8x512xf32> to vector<8x128xf32>
    %451 = arith.negf %450 : vector<8x128xf32>
    %452 = math.exp %451 : vector<8x128xf32>
    %cst_135 = arith.constant 1.000000e+00 : f32
    %453 = vector.broadcast %cst_135 : f32 to vector<8x128xf32>
    %454 = arith.addf %453, %452 : vector<8x128xf32>
    %455 = arith.divf %453, %454 : vector<8x128xf32>
    %456 = arith.mulf %447, %387 : vector<8x128xf32>
    %457 = arith.mulf %441, %449 : vector<8x128xf32>
    %458 = arith.addf %456, %457 : vector<8x128xf32>
    %459 = math.tanh %458 : vector<8x128xf32>
    %460 = arith.mulf %455, %459 : vector<8x128xf32>
    %461 = arith.index_cast %c5_i32 : i32 to index
    %c0_136 = arith.constant 0 : index
    %c0_137 = arith.constant 0 : index
    %462 = vector.load %arg17[%461, %c0_136, %c0_137] : memref<8x8x128xf32, #tpu.memory_space<vmem>>, vector<1x8x128xf32>
    %463 = vector.shape_cast %462 : vector<1x8x128xf32> to vector<8x128xf32>
    %464 = vector.shape_cast %435 : vector<8x128xf32> to vector<1x8x128xf32>
    tpu.vector_store %arg17[%461, %c0_136, %c0_137], %464 {strides = array<i32>} : memref<8x8x128xf32, #tpu.memory_space<vmem>>, vector<1x8x128xf32>,
    %465 = arith.index_cast %400 : i32 to index
    %c0_138 = arith.constant 0 : index
    %c0_139 = arith.constant 0 : index
    %466 = vector.load %arg18[%465, %c0_138, %c0_139] : memref<8x8x128xf32, #tpu.memory_space<vmem>>, vector<1x8x128xf32>
    %467 = vector.shape_cast %466 : vector<1x8x128xf32> to vector<8x128xf32>
    %468 = vector.shape_cast %460 : vector<8x128xf32> to vector<1x8x128xf32>
    tpu.vector_store %arg18[%465, %c0_138, %c0_139], %468 {strides = array<i32>} : memref<8x8x128xf32, #tpu.memory_space<vmem>>, vector<1x8x128xf32>,
    %469 = arith.truncf %435 : vector<8x128xf32> to vector<8x128xbf16>
    %470 = arith.truncf %460 : vector<8x128xf32> to vector<8x128xbf16>
    %c6_i32 = arith.constant 6 : i32
    %c7_i32_140 = arith.constant 7 : i32
    %471 = arith.subi %c7_i32_140, %c6_i32 : i32
    %472 = arith.index_cast %c6_i32 : i32 to index
    %c0_141 = arith.constant 0 : index
    %c0_142 = arith.constant 0 : index
    %473 = vector.load %arg15[%472, %c0_141, %c0_142] : memref<8x8x512xf32, #tpu.memory_space<vmem>>, vector<1x8x512xf32>
    %474 = vector.shape_cast %473 : vector<1x8x512xf32> to vector<8x512xf32>
    %cst_143 = arith.constant dense<0.000000e+00> : vector<8x512xf32>
    %475 = tpu.matmul %469, %40, %cst_143 {dimension_numbers = #tpu.dot_dimension_numbers<[1], [0], [0], [1], [0, 0, 1, 1], [], []>} : vector<8x128xbf16>, vector<128x512xbf16>, vector<8x512xf32> -> vector<8x512xf32>
    %476 = arith.addf %474, %475 : vector<8x512xf32>
    %477 = arith.index_cast %471 : i32 to index
    %c0_144 = arith.constant 0 : index
    %c0_145 = arith.constant 0 : index
    %478 = vector.load %arg16[%477, %c0_144, %c0_145] : memref<8x8x512xf32, #tpu.memory_space<vmem>>, vector<1x8x512xf32>
    %479 = vector.shape_cast %478 : vector<1x8x512xf32> to vector<8x512xf32>
    %cst_146 = arith.constant dense<0.000000e+00> : vector<8x512xf32>
    %480 = tpu.matmul %470, %42, %cst_146 {dimension_numbers = #tpu.dot_dimension_numbers<[1], [0], [0], [1], [0, 0, 1, 1], [], []>} : vector<8x128xbf16>, vector<128x512xbf16>, vector<8x512xf32> -> vector<8x512xf32>
    %481 = arith.addf %479, %480 : vector<8x512xf32>
    %482 = vector.extract_strided_slice %476 {offsets = [0, 0], sizes = [8, 128], strides = [1, 1]} : vector<8x512xf32> to vector<8x128xf32>
    %483 = arith.negf %482 : vector<8x128xf32>
    %484 = math.exp %483 : vector<8x128xf32>
    %cst_147 = arith.constant 1.000000e+00 : f32
    %485 = vector.broadcast %cst_147 : f32 to vector<8x128xf32>
    %486 = arith.addf %485, %484 : vector<8x128xf32>
    %487 = arith.divf %485, %486 : vector<8x128xf32>
    %488 = vector.extract_strided_slice %476 {offsets = [0, 128], sizes = [8, 128], strides = [1, 1]} : vector<8x512xf32> to vector<8x128xf32>
    %489 = arith.negf %488 : vector<8x128xf32>
    %490 = math.exp %489 : vector<8x128xf32>
    %cst_148 = arith.constant 1.000000e+00 : f32
    %491 = vector.broadcast %cst_148 : f32 to vector<8x128xf32>
    %492 = arith.addf %491, %490 : vector<8x128xf32>
    %493 = arith.divf %491, %492 : vector<8x128xf32>
    %494 = vector.extract_strided_slice %476 {offsets = [0, 256], sizes = [8, 128], strides = [1, 1]} : vector<8x512xf32> to vector<8x128xf32>
    %495 = math.tanh %494 : vector<8x128xf32>
    %496 = vector.extract_strided_slice %476 {offsets = [0, 384], sizes = [8, 128], strides = [1, 1]} : vector<8x512xf32> to vector<8x128xf32>
    %497 = arith.negf %496 : vector<8x128xf32>
    %498 = math.exp %497 : vector<8x128xf32>
    %cst_149 = arith.constant 1.000000e+00 : f32
    %499 = vector.broadcast %cst_149 : f32 to vector<8x128xf32>
    %500 = arith.addf %499, %498 : vector<8x128xf32>
    %501 = arith.divf %499, %500 : vector<8x128xf32>
    %502 = arith.mulf %493, %433 : vector<8x128xf32>
    %503 = arith.mulf %487, %495 : vector<8x128xf32>
    %504 = arith.addf %502, %503 : vector<8x128xf32>
    %505 = math.tanh %504 : vector<8x128xf32>
    %506 = arith.mulf %501, %505 : vector<8x128xf32>
    %507 = vector.extract_strided_slice %481 {offsets = [0, 0], sizes = [8, 128], strides = [1, 1]} : vector<8x512xf32> to vector<8x128xf32>
    %508 = arith.negf %507 : vector<8x128xf32>
    %509 = math.exp %508 : vector<8x128xf32>
    %cst_150 = arith.constant 1.000000e+00 : f32
    %510 = vector.broadcast %cst_150 : f32 to vector<8x128xf32>
    %511 = arith.addf %510, %509 : vector<8x128xf32>
    %512 = arith.divf %510, %511 : vector<8x128xf32>
    %513 = vector.extract_strided_slice %481 {offsets = [0, 128], sizes = [8, 128], strides = [1, 1]} : vector<8x512xf32> to vector<8x128xf32>
    %514 = arith.negf %513 : vector<8x128xf32>
    %515 = math.exp %514 : vector<8x128xf32>
    %cst_151 = arith.constant 1.000000e+00 : f32
    %516 = vector.broadcast %cst_151 : f32 to vector<8x128xf32>
    %517 = arith.addf %516, %515 : vector<8x128xf32>
    %518 = arith.divf %516, %517 : vector<8x128xf32>
    %519 = vector.extract_strided_slice %481 {offsets = [0, 256], sizes = [8, 128], strides = [1, 1]} : vector<8x512xf32> to vector<8x128xf32>
    %520 = math.tanh %519 : vector<8x128xf32>
    %521 = vector.extract_strided_slice %481 {offsets = [0, 384], sizes = [8, 128], strides = [1, 1]} : vector<8x512xf32> to vector<8x128xf32>
    %522 = arith.negf %521 : vector<8x128xf32>
    %523 = math.exp %522 : vector<8x128xf32>
    %cst_152 = arith.constant 1.000000e+00 : f32
    %524 = vector.broadcast %cst_152 : f32 to vector<8x128xf32>
    %525 = arith.addf %524, %523 : vector<8x128xf32>
    %526 = arith.divf %524, %525 : vector<8x128xf32>
    %527 = arith.mulf %518, %458 : vector<8x128xf32>
    %528 = arith.mulf %512, %520 : vector<8x128xf32>
    %529 = arith.addf %527, %528 : vector<8x128xf32>
    %530 = math.tanh %529 : vector<8x128xf32>
    %531 = arith.mulf %526, %530 : vector<8x128xf32>
    %532 = arith.index_cast %c6_i32 : i32 to index
    %c0_153 = arith.constant 0 : index
    %c0_154 = arith.constant 0 : index
    %533 = vector.load %arg17[%532, %c0_153, %c0_154] : memref<8x8x128xf32, #tpu.memory_space<vmem>>, vector<1x8x128xf32>
    %534 = vector.shape_cast %533 : vector<1x8x128xf32> to vector<8x128xf32>
    %535 = vector.shape_cast %506 : vector<8x128xf32> to vector<1x8x128xf32>
    tpu.vector_store %arg17[%532, %c0_153, %c0_154], %535 {strides = array<i32>} : memref<8x8x128xf32, #tpu.memory_space<vmem>>, vector<1x8x128xf32>,
    %536 = arith.index_cast %471 : i32 to index
    %c0_155 = arith.constant 0 : index
    %c0_156 = arith.constant 0 : index
    %537 = vector.load %arg18[%536, %c0_155, %c0_156] : memref<8x8x128xf32, #tpu.memory_space<vmem>>, vector<1x8x128xf32>
    %538 = vector.shape_cast %537 : vector<1x8x128xf32> to vector<8x128xf32>
    %539 = vector.shape_cast %531 : vector<8x128xf32> to vector<1x8x128xf32>
    tpu.vector_store %arg18[%536, %c0_155, %c0_156], %539 {strides = array<i32>} : memref<8x8x128xf32, #tpu.memory_space<vmem>>, vector<1x8x128xf32>,
    %540 = arith.truncf %506 : vector<8x128xf32> to vector<8x128xbf16>
    %541 = arith.truncf %531 : vector<8x128xf32> to vector<8x128xbf16>
    %c7_i32_157 = arith.constant 7 : i32
    %c7_i32_158 = arith.constant 7 : i32
    %542 = arith.subi %c7_i32_158, %c7_i32_157 : i32
    %543 = arith.index_cast %c7_i32_157 : i32 to index
    %c0_159 = arith.constant 0 : index
    %c0_160 = arith.constant 0 : index
    %544 = vector.load %arg15[%543, %c0_159, %c0_160] : memref<8x8x512xf32, #tpu.memory_space<vmem>>, vector<1x8x512xf32>
    %545 = vector.shape_cast %544 : vector<1x8x512xf32> to vector<8x512xf32>
    %cst_161 = arith.constant dense<0.000000e+00> : vector<8x512xf32>
    %546 = tpu.matmul %540, %40, %cst_161 {dimension_numbers = #tpu.dot_dimension_numbers<[1], [0], [0], [1], [0, 0, 1, 1], [], []>} : vector<8x128xbf16>, vector<128x512xbf16>, vector<8x512xf32> -> vector<8x512xf32>
    %547 = arith.addf %545, %546 : vector<8x512xf32>
    %548 = arith.index_cast %542 : i32 to index
    %c0_162 = arith.constant 0 : index
    %c0_163 = arith.constant 0 : index
    %549 = vector.load %arg16[%548, %c0_162, %c0_163] : memref<8x8x512xf32, #tpu.memory_space<vmem>>, vector<1x8x512xf32>
    %550 = vector.shape_cast %549 : vector<1x8x512xf32> to vector<8x512xf32>
    %cst_164 = arith.constant dense<0.000000e+00> : vector<8x512xf32>
    %551 = tpu.matmul %541, %42, %cst_164 {dimension_numbers = #tpu.dot_dimension_numbers<[1], [0], [0], [1], [0, 0, 1, 1], [], []>} : vector<8x128xbf16>, vector<128x512xbf16>, vector<8x512xf32> -> vector<8x512xf32>
    %552 = arith.addf %550, %551 : vector<8x512xf32>
    %553 = vector.extract_strided_slice %547 {offsets = [0, 0], sizes = [8, 128], strides = [1, 1]} : vector<8x512xf32> to vector<8x128xf32>
    %554 = arith.negf %553 : vector<8x128xf32>
    %555 = math.exp %554 : vector<8x128xf32>
    %cst_165 = arith.constant 1.000000e+00 : f32
    %556 = vector.broadcast %cst_165 : f32 to vector<8x128xf32>
    %557 = arith.addf %556, %555 : vector<8x128xf32>
    %558 = arith.divf %556, %557 : vector<8x128xf32>
    %559 = vector.extract_strided_slice %547 {offsets = [0, 128], sizes = [8, 128], strides = [1, 1]} : vector<8x512xf32> to vector<8x128xf32>
    %560 = arith.negf %559 : vector<8x128xf32>
    %561 = math.exp %560 : vector<8x128xf32>
    %cst_166 = arith.constant 1.000000e+00 : f32
    %562 = vector.broadcast %cst_166 : f32 to vector<8x128xf32>
    %563 = arith.addf %562, %561 : vector<8x128xf32>
    %564 = arith.divf %562, %563 : vector<8x128xf32>
    %565 = vector.extract_strided_slice %547 {offsets = [0, 256], sizes = [8, 128], strides = [1, 1]} : vector<8x512xf32> to vector<8x128xf32>
    %566 = math.tanh %565 : vector<8x128xf32>
    %567 = vector.extract_strided_slice %547 {offsets = [0, 384], sizes = [8, 128], strides = [1, 1]} : vector<8x512xf32> to vector<8x128xf32>
    %568 = arith.negf %567 : vector<8x128xf32>
    %569 = math.exp %568 : vector<8x128xf32>
    %cst_167 = arith.constant 1.000000e+00 : f32
    %570 = vector.broadcast %cst_167 : f32 to vector<8x128xf32>
    %571 = arith.addf %570, %569 : vector<8x128xf32>
    %572 = arith.divf %570, %571 : vector<8x128xf32>
    %573 = arith.mulf %564, %504 : vector<8x128xf32>
    %574 = arith.mulf %558, %566 : vector<8x128xf32>
    %575 = arith.addf %573, %574 : vector<8x128xf32>
    %576 = math.tanh %575 : vector<8x128xf32>
    %577 = arith.mulf %572, %576 : vector<8x128xf32>
    %578 = vector.extract_strided_slice %552 {offsets = [0, 0], sizes = [8, 128], strides = [1, 1]} : vector<8x512xf32> to vector<8x128xf32>
    %579 = arith.negf %578 : vector<8x128xf32>
    %580 = math.exp %579 : vector<8x128xf32>
    %cst_168 = arith.constant 1.000000e+00 : f32
    %581 = vector.broadcast %cst_168 : f32 to vector<8x128xf32>
    %582 = arith.addf %581, %580 : vector<8x128xf32>
    %583 = arith.divf %581, %582 : vector<8x128xf32>
    %584 = vector.extract_strided_slice %552 {offsets = [0, 128], sizes = [8, 128], strides = [1, 1]} : vector<8x512xf32> to vector<8x128xf32>
    %585 = arith.negf %584 : vector<8x128xf32>
    %586 = math.exp %585 : vector<8x128xf32>
    %cst_169 = arith.constant 1.000000e+00 : f32
    %587 = vector.broadcast %cst_169 : f32 to vector<8x128xf32>
    %588 = arith.addf %587, %586 : vector<8x128xf32>
    %589 = arith.divf %587, %588 : vector<8x128xf32>
    %590 = vector.extract_strided_slice %552 {offsets = [0, 256], sizes = [8, 128], strides = [1, 1]} : vector<8x512xf32> to vector<8x128xf32>
    %591 = math.tanh %590 : vector<8x128xf32>
    %592 = vector.extract_strided_slice %552 {offsets = [0, 384], sizes = [8, 128], strides = [1, 1]} : vector<8x512xf32> to vector<8x128xf32>
    %593 = arith.negf %592 : vector<8x128xf32>
    %594 = math.exp %593 : vector<8x128xf32>
    %cst_170 = arith.constant 1.000000e+00 : f32
    %595 = vector.broadcast %cst_170 : f32 to vector<8x128xf32>
    %596 = arith.addf %595, %594 : vector<8x128xf32>
    %597 = arith.divf %595, %596 : vector<8x128xf32>
    %598 = arith.mulf %589, %529 : vector<8x128xf32>
    %599 = arith.mulf %583, %591 : vector<8x128xf32>
    %600 = arith.addf %598, %599 : vector<8x128xf32>
    %601 = math.tanh %600 : vector<8x128xf32>
    %602 = arith.mulf %597, %601 : vector<8x128xf32>
    %603 = arith.index_cast %c7_i32_157 : i32 to index
    %c0_171 = arith.constant 0 : index
    %c0_172 = arith.constant 0 : index
    %604 = vector.load %arg17[%603, %c0_171, %c0_172] : memref<8x8x128xf32, #tpu.memory_space<vmem>>, vector<1x8x128xf32>
    %605 = vector.shape_cast %604 : vector<1x8x128xf32> to vector<8x128xf32>
    %606 = vector.shape_cast %577 : vector<8x128xf32> to vector<1x8x128xf32>
    tpu.vector_store %arg17[%603, %c0_171, %c0_172], %606 {strides = array<i32>} : memref<8x8x128xf32, #tpu.memory_space<vmem>>, vector<1x8x128xf32>,
    %607 = arith.index_cast %542 : i32 to index
    %c0_173 = arith.constant 0 : index
    %c0_174 = arith.constant 0 : index
    %608 = vector.load %arg18[%607, %c0_173, %c0_174] : memref<8x8x128xf32, #tpu.memory_space<vmem>>, vector<1x8x128xf32>
    %609 = vector.shape_cast %608 : vector<1x8x128xf32> to vector<8x128xf32>
    %610 = vector.shape_cast %602 : vector<8x128xf32> to vector<1x8x128xf32>
    tpu.vector_store %arg18[%607, %c0_173, %c0_174], %610 {strides = array<i32>} : memref<8x8x128xf32, #tpu.memory_space<vmem>>, vector<1x8x128xf32>,
    %611 = arith.truncf %577 : vector<8x128xf32> to vector<8x128xbf16>
    %612 = arith.truncf %602 : vector<8x128xf32> to vector<8x128xbf16>
    %c8_i32 = arith.constant 8 : i32
    %c0_175 = arith.constant 0 : index
    %c0_176 = arith.constant 0 : index
    %c0_177 = arith.constant 0 : index
    %613 = vector.load %arg17[%c0_175, %c0_176, %c0_177] : memref<8x8x128xf32, #tpu.memory_space<vmem>>, vector<8x8x128xf32>
    %614 = vector.shape_cast %613 : vector<8x8x128xf32> to vector<64x128xf32>
    %615 = arith.truncf %614 : vector<64x128xf32> to vector<64x128xbf16>
    %c0_178 = arith.constant 0 : index
    %c0_179 = arith.constant 0 : index
    %c0_180 = arith.constant 0 : index
    %616 = vector.load %arg18[%c0_178, %c0_179, %c0_180] : memref<8x8x128xf32, #tpu.memory_space<vmem>>, vector<8x8x128xf32>
    %617 = vector.shape_cast %616 : vector<8x8x128xf32> to vector<64x128xf32>
    %618 = arith.truncf %617 : vector<64x128xf32> to vector<64x128xbf16>
    %c2 = arith.constant 2 : index
    %c0_181 = arith.constant 0 : index
    %c0_182 = arith.constant 0 : index
    %619 = vector.load %arg5[%c2, %c0_181, %c0_182] : memref<4x256x512xbf16, #tpu.memory_space<vmem>>, vector<1x256x512xbf16>
    %620 = vector.shape_cast %619 : vector<1x256x512xbf16> to vector<256x512xbf16>
    %c3 = arith.constant 3 : index
    %c0_183 = arith.constant 0 : index
    %c0_184 = arith.constant 0 : index
    %621 = vector.load %arg5[%c3, %c0_183, %c0_184] : memref<4x256x512xbf16, #tpu.memory_space<vmem>>, vector<1x256x512xbf16>
    %622 = vector.shape_cast %621 : vector<1x256x512xbf16> to vector<256x512xbf16>
    %c2_185 = arith.constant 2 : index
    %c0_186 = arith.constant 0 : index
    %c0_187 = arith.constant 0 : index
    %623 = vector.load %arg7[%c2_185, %c0_186, %c0_187] : memref<4x1x512xbf16, #tpu.memory_space<vmem>>, vector<1x1x512xbf16>
    %624 = vector.shape_cast %623 : vector<1x1x512xbf16> to vector<1x512xbf16>
    %625 = arith.extf %624 : vector<1x512xbf16> to vector<1x512xf32>
    %c3_188 = arith.constant 3 : index
    %c0_189 = arith.constant 0 : index
    %c0_190 = arith.constant 0 : index
    %626 = vector.load %arg7[%c3_188, %c0_189, %c0_190] : memref<4x1x512xbf16, #tpu.memory_space<vmem>>, vector<1x1x512xbf16>
    %627 = vector.shape_cast %626 : vector<1x1x512xbf16> to vector<1x512xbf16>
    %628 = arith.extf %627 : vector<1x512xbf16> to vector<1x512xf32>
    %629 = vector.extract_strided_slice %620 {offsets = [0, 0], sizes = [128, 512], strides = [1, 1]} : vector<256x512xbf16> to vector<128x512xbf16>
    %cst_191 = arith.constant dense<0.000000e+00> : vector<64x512xf32>
    %630 = tpu.matmul %615, %629, %cst_191 {dimension_numbers = #tpu.dot_dimension_numbers<[1], [0], [0], [1], [0, 0, 1, 1], [], []>} : vector<64x128xbf16>, vector<128x512xbf16>, vector<64x512xf32> -> vector<64x512xf32>
    %631 = vector.broadcast %625 : vector<1x512xf32> to vector<64x512xf32>
    %632 = arith.addf %631, %630 : vector<64x512xf32>
    %633 = vector.extract_strided_slice %620 {offsets = [128, 0], sizes = [128, 512], strides = [1, 1]} : vector<256x512xbf16> to vector<128x512xbf16>
    %cst_192 = arith.constant dense<0.000000e+00> : vector<64x512xf32>
    %634 = tpu.matmul %618, %633, %cst_192 {dimension_numbers = #tpu.dot_dimension_numbers<[1], [0], [0], [1], [0, 0, 1, 1], [], []>} : vector<64x128xbf16>, vector<128x512xbf16>, vector<64x512xf32> -> vector<64x512xf32>
    %635 = arith.addf %632, %634 : vector<64x512xf32>
    %636 = vector.shape_cast %635 : vector<64x512xf32> to vector<8x8x512xf32>
    %c0_193 = arith.constant 0 : index
    %c0_194 = arith.constant 0 : index
    %c0_195 = arith.constant 0 : index
    %637 = vector.load %arg15[%c0_193, %c0_194, %c0_195] : memref<8x8x512xf32, #tpu.memory_space<vmem>>, vector<8x8x512xf32>
    tpu.vector_store %arg15[%c0_193, %c0_194, %c0_195], %636 {strides = array<i32>} : memref<8x8x512xf32, #tpu.memory_space<vmem>>, vector<8x8x512xf32>,
    %638 = vector.extract_strided_slice %622 {offsets = [0, 0], sizes = [128, 512], strides = [1, 1]} : vector<256x512xbf16> to vector<128x512xbf16>
    %cst_196 = arith.constant dense<0.000000e+00> : vector<64x512xf32>
    %639 = tpu.matmul %615, %638, %cst_196 {dimension_numbers = #tpu.dot_dimension_numbers<[1], [0], [0], [1], [0, 0, 1, 1], [], []>} : vector<64x128xbf16>, vector<128x512xbf16>, vector<64x512xf32> -> vector<64x512xf32>
    %640 = vector.broadcast %628 : vector<1x512xf32> to vector<64x512xf32>
    %641 = arith.addf %640, %639 : vector<64x512xf32>
    %642 = vector.extract_strided_slice %622 {offsets = [128, 0], sizes = [128, 512], strides = [1, 1]} : vector<256x512xbf16> to vector<128x512xbf16>
    %cst_197 = arith.constant dense<0.000000e+00> : vector<64x512xf32>
    %643 = tpu.matmul %618, %642, %cst_197 {dimension_numbers = #tpu.dot_dimension_numbers<[1], [0], [0], [1], [0, 0, 1, 1], [], []>} : vector<64x128xbf16>, vector<128x512xbf16>, vector<64x512xf32> -> vector<64x512xf32>
    %644 = arith.addf %641, %643 : vector<64x512xf32>
    %645 = vector.shape_cast %644 : vector<64x512xf32> to vector<8x8x512xf32>
    %c0_198 = arith.constant 0 : index
    %c0_199 = arith.constant 0 : index
    %c0_200 = arith.constant 0 : index
    %646 = vector.load %arg16[%c0_198, %c0_199, %c0_200] : memref<8x8x512xf32, #tpu.memory_space<vmem>>, vector<8x8x512xf32>
    tpu.vector_store %arg16[%c0_198, %c0_199, %c0_200], %645 {strides = array<i32>} : memref<8x8x512xf32, #tpu.memory_space<vmem>>, vector<8x8x512xf32>,
    %c2_201 = arith.constant 2 : index
    %c0_202 = arith.constant 0 : index
    %c0_203 = arith.constant 0 : index
    %647 = vector.load %arg6[%c2_201, %c0_202, %c0_203] : memref<4x128x512xbf16, #tpu.memory_space<vmem>>, vector<1x128x512xbf16>
    %648 = vector.shape_cast %647 : vector<1x128x512xbf16> to vector<128x512xbf16>
    %c3_204 = arith.constant 3 : index
    %c0_205 = arith.constant 0 : index
    %c0_206 = arith.constant 0 : index
    %649 = vector.load %arg6[%c3_204, %c0_205, %c0_206] : memref<4x128x512xbf16, #tpu.memory_space<vmem>>, vector<1x128x512xbf16>
    %650 = vector.shape_cast %649 : vector<1x128x512xbf16> to vector<128x512xbf16>
    %cst_207 = arith.constant 0.000000e+00 : bf16
    %651 = vector.broadcast %cst_207 : bf16 to vector<8x128xbf16>
    %cst_208 = arith.constant 0.000000e+00 : f32
    %652 = vector.broadcast %cst_208 : f32 to vector<8x128xf32>
    %c0_i32_209 = arith.constant 0 : i32
    %c7_i32_210 = arith.constant 7 : i32
    %653 = arith.subi %c7_i32_210, %c0_i32_209 : i32
    %654 = arith.index_cast %c0_i32_209 : i32 to index
    %c0_211 = arith.constant 0 : index
    %c0_212 = arith.constant 0 : index
    %655 = vector.load %arg15[%654, %c0_211, %c0_212] : memref<8x8x512xf32, #tpu.memory_space<vmem>>, vector<1x8x512xf32>
    %656 = vector.shape_cast %655 : vector<1x8x512xf32> to vector<8x512xf32>
    %cst_213 = arith.constant dense<0.000000e+00> : vector<8x512xf32>
    %657 = tpu.matmul %651, %648, %cst_213 {dimension_numbers = #tpu.dot_dimension_numbers<[1], [0], [0], [1], [0, 0, 1, 1], [], []>} : vector<8x128xbf16>, vector<128x512xbf16>, vector<8x512xf32> -> vector<8x512xf32>
    %658 = arith.addf %656, %657 : vector<8x512xf32>
    %659 = arith.index_cast %653 : i32 to index
    %c0_214 = arith.constant 0 : index
    %c0_215 = arith.constant 0 : index
    %660 = vector.load %arg16[%659, %c0_214, %c0_215] : memref<8x8x512xf32, #tpu.memory_space<vmem>>, vector<1x8x512xf32>
    %661 = vector.shape_cast %660 : vector<1x8x512xf32> to vector<8x512xf32>
    %cst_216 = arith.constant dense<0.000000e+00> : vector<8x512xf32>
    %662 = tpu.matmul %651, %650, %cst_216 {dimension_numbers = #tpu.dot_dimension_numbers<[1], [0], [0], [1], [0, 0, 1, 1], [], []>} : vector<8x128xbf16>, vector<128x512xbf16>, vector<8x512xf32> -> vector<8x512xf32>
    %663 = arith.addf %661, %662 : vector<8x512xf32>
    %664 = vector.extract_strided_slice %658 {offsets = [0, 0], sizes = [8, 128], strides = [1, 1]} : vector<8x512xf32> to vector<8x128xf32>
    %665 = arith.negf %664 : vector<8x128xf32>
    %666 = math.exp %665 : vector<8x128xf32>
    %cst_217 = arith.constant 1.000000e+00 : f32
    %667 = vector.broadcast %cst_217 : f32 to vector<8x128xf32>
    %668 = arith.addf %667, %666 : vector<8x128xf32>
    %669 = arith.divf %667, %668 : vector<8x128xf32>
    %670 = vector.extract_strided_slice %658 {offsets = [0, 128], sizes = [8, 128], strides = [1, 1]} : vector<8x512xf32> to vector<8x128xf32>
    %671 = arith.negf %670 : vector<8x128xf32>
    %672 = math.exp %671 : vector<8x128xf32>
    %cst_218 = arith.constant 1.000000e+00 : f32
    %673 = vector.broadcast %cst_218 : f32 to vector<8x128xf32>
    %674 = arith.addf %673, %672 : vector<8x128xf32>
    %675 = arith.divf %673, %674 : vector<8x128xf32>
    %676 = vector.extract_strided_slice %658 {offsets = [0, 256], sizes = [8, 128], strides = [1, 1]} : vector<8x512xf32> to vector<8x128xf32>
    %677 = math.tanh %676 : vector<8x128xf32>
    %678 = vector.extract_strided_slice %658 {offsets = [0, 384], sizes = [8, 128], strides = [1, 1]} : vector<8x512xf32> to vector<8x128xf32>
    %679 = arith.negf %678 : vector<8x128xf32>
    %680 = math.exp %679 : vector<8x128xf32>
    %cst_219 = arith.constant 1.000000e+00 : f32
    %681 = vector.broadcast %cst_219 : f32 to vector<8x128xf32>
    %682 = arith.addf %681, %680 : vector<8x128xf32>
    %683 = arith.divf %681, %682 : vector<8x128xf32>
    %684 = arith.mulf %675, %652 : vector<8x128xf32>
    %685 = arith.mulf %669, %677 : vector<8x128xf32>
    %686 = arith.addf %684, %685 : vector<8x128xf32>
    %687 = math.tanh %686 : vector<8x128xf32>
    %688 = arith.mulf %683, %687 : vector<8x128xf32>
    %689 = vector.extract_strided_slice %663 {offsets = [0, 0], sizes = [8, 128], strides = [1, 1]} : vector<8x512xf32> to vector<8x128xf32>
    %690 = arith.negf %689 : vector<8x128xf32>
    %691 = math.exp %690 : vector<8x128xf32>
    %cst_220 = arith.constant 1.000000e+00 : f32
    %692 = vector.broadcast %cst_220 : f32 to vector<8x128xf32>
    %693 = arith.addf %692, %691 : vector<8x128xf32>
    %694 = arith.divf %692, %693 : vector<8x128xf32>
    %695 = vector.extract_strided_slice %663 {offsets = [0, 128], sizes = [8, 128], strides = [1, 1]} : vector<8x512xf32> to vector<8x128xf32>
    %696 = arith.negf %695 : vector<8x128xf32>
    %697 = math.exp %696 : vector<8x128xf32>
    %cst_221 = arith.constant 1.000000e+00 : f32
    %698 = vector.broadcast %cst_221 : f32 to vector<8x128xf32>
    %699 = arith.addf %698, %697 : vector<8x128xf32>
    %700 = arith.divf %698, %699 : vector<8x128xf32>
    %701 = vector.extract_strided_slice %663 {offsets = [0, 256], sizes = [8, 128], strides = [1, 1]} : vector<8x512xf32> to vector<8x128xf32>
    %702 = math.tanh %701 : vector<8x128xf32>
    %703 = vector.extract_strided_slice %663 {offsets = [0, 384], sizes = [8, 128], strides = [1, 1]} : vector<8x512xf32> to vector<8x128xf32>
    %704 = arith.negf %703 : vector<8x128xf32>
    %705 = math.exp %704 : vector<8x128xf32>
    %cst_222 = arith.constant 1.000000e+00 : f32
    %706 = vector.broadcast %cst_222 : f32 to vector<8x128xf32>
    %707 = arith.addf %706, %705 : vector<8x128xf32>
    %708 = arith.divf %706, %707 : vector<8x128xf32>
    %709 = arith.mulf %700, %652 : vector<8x128xf32>
    %710 = arith.mulf %694, %702 : vector<8x128xf32>
    %711 = arith.addf %709, %710 : vector<8x128xf32>
    %712 = math.tanh %711 : vector<8x128xf32>
    %713 = arith.mulf %708, %712 : vector<8x128xf32>
    %714 = arith.index_cast %c0_i32_209 : i32 to index
    %c0_223 = arith.constant 0 : index
    %c0_224 = arith.constant 0 : index
    %715 = vector.load %arg19[%714, %c0_223, %c0_224] : memref<8x8x128xf32, #tpu.memory_space<vmem>>, vector<1x8x128xf32>
    %716 = vector.shape_cast %715 : vector<1x8x128xf32> to vector<8x128xf32>
    %717 = vector.shape_cast %688 : vector<8x128xf32> to vector<1x8x128xf32>
    tpu.vector_store %arg19[%714, %c0_223, %c0_224], %717 {strides = array<i32>} : memref<8x8x128xf32, #tpu.memory_space<vmem>>, vector<1x8x128xf32>,
    %718 = arith.index_cast %653 : i32 to index
    %c0_225 = arith.constant 0 : index
    %c0_226 = arith.constant 0 : index
    %719 = vector.load %arg20[%718, %c0_225, %c0_226] : memref<8x8x128xf32, #tpu.memory_space<vmem>>, vector<1x8x128xf32>
    %720 = vector.shape_cast %719 : vector<1x8x128xf32> to vector<8x128xf32>
    %721 = vector.shape_cast %713 : vector<8x128xf32> to vector<1x8x128xf32>
    tpu.vector_store %arg20[%718, %c0_225, %c0_226], %721 {strides = array<i32>} : memref<8x8x128xf32, #tpu.memory_space<vmem>>, vector<1x8x128xf32>,
    %722 = arith.truncf %688 : vector<8x128xf32> to vector<8x128xbf16>
    %723 = arith.truncf %713 : vector<8x128xf32> to vector<8x128xbf16>
    %c1_i32_227 = arith.constant 1 : i32
    %c7_i32_228 = arith.constant 7 : i32
    %724 = arith.subi %c7_i32_228, %c1_i32_227 : i32
    %725 = arith.index_cast %c1_i32_227 : i32 to index
    %c0_229 = arith.constant 0 : index
    %c0_230 = arith.constant 0 : index
    %726 = vector.load %arg15[%725, %c0_229, %c0_230] : memref<8x8x512xf32, #tpu.memory_space<vmem>>, vector<1x8x512xf32>
    %727 = vector.shape_cast %726 : vector<1x8x512xf32> to vector<8x512xf32>
    %cst_231 = arith.constant dense<0.000000e+00> : vector<8x512xf32>
    %728 = tpu.matmul %722, %648, %cst_231 {dimension_numbers = #tpu.dot_dimension_numbers<[1], [0], [0], [1], [0, 0, 1, 1], [], []>} : vector<8x128xbf16>, vector<128x512xbf16>, vector<8x512xf32> -> vector<8x512xf32>
    %729 = arith.addf %727, %728 : vector<8x512xf32>
    %730 = arith.index_cast %724 : i32 to index
    %c0_232 = arith.constant 0 : index
    %c0_233 = arith.constant 0 : index
    %731 = vector.load %arg16[%730, %c0_232, %c0_233] : memref<8x8x512xf32, #tpu.memory_space<vmem>>, vector<1x8x512xf32>
    %732 = vector.shape_cast %731 : vector<1x8x512xf32> to vector<8x512xf32>
    %cst_234 = arith.constant dense<0.000000e+00> : vector<8x512xf32>
    %733 = tpu.matmul %723, %650, %cst_234 {dimension_numbers = #tpu.dot_dimension_numbers<[1], [0], [0], [1], [0, 0, 1, 1], [], []>} : vector<8x128xbf16>, vector<128x512xbf16>, vector<8x512xf32> -> vector<8x512xf32>
    %734 = arith.addf %732, %733 : vector<8x512xf32>
    %735 = vector.extract_strided_slice %729 {offsets = [0, 0], sizes = [8, 128], strides = [1, 1]} : vector<8x512xf32> to vector<8x128xf32>
    %736 = arith.negf %735 : vector<8x128xf32>
    %737 = math.exp %736 : vector<8x128xf32>
    %cst_235 = arith.constant 1.000000e+00 : f32
    %738 = vector.broadcast %cst_235 : f32 to vector<8x128xf32>
    %739 = arith.addf %738, %737 : vector<8x128xf32>
    %740 = arith.divf %738, %739 : vector<8x128xf32>
    %741 = vector.extract_strided_slice %729 {offsets = [0, 128], sizes = [8, 128], strides = [1, 1]} : vector<8x512xf32> to vector<8x128xf32>
    %742 = arith.negf %741 : vector<8x128xf32>
    %743 = math.exp %742 : vector<8x128xf32>
    %cst_236 = arith.constant 1.000000e+00 : f32
    %744 = vector.broadcast %cst_236 : f32 to vector<8x128xf32>
    %745 = arith.addf %744, %743 : vector<8x128xf32>
    %746 = arith.divf %744, %745 : vector<8x128xf32>
    %747 = vector.extract_strided_slice %729 {offsets = [0, 256], sizes = [8, 128], strides = [1, 1]} : vector<8x512xf32> to vector<8x128xf32>
    %748 = math.tanh %747 : vector<8x128xf32>
    %749 = vector.extract_strided_slice %729 {offsets = [0, 384], sizes = [8, 128], strides = [1, 1]} : vector<8x512xf32> to vector<8x128xf32>
    %750 = arith.negf %749 : vector<8x128xf32>
    %751 = math.exp %750 : vector<8x128xf32>
    %cst_237 = arith.constant 1.000000e+00 : f32
    %752 = vector.broadcast %cst_237 : f32 to vector<8x128xf32>
    %753 = arith.addf %752, %751 : vector<8x128xf32>
    %754 = arith.divf %752, %753 : vector<8x128xf32>
    %755 = arith.mulf %746, %686 : vector<8x128xf32>
    %756 = arith.mulf %740, %748 : vector<8x128xf32>
    %757 = arith.addf %755, %756 : vector<8x128xf32>
    %758 = math.tanh %757 : vector<8x128xf32>
    %759 = arith.mulf %754, %758 : vector<8x128xf32>
    %760 = vector.extract_strided_slice %734 {offsets = [0, 0], sizes = [8, 128], strides = [1, 1]} : vector<8x512xf32> to vector<8x128xf32>
    %761 = arith.negf %760 : vector<8x128xf32>
    %762 = math.exp %761 : vector<8x128xf32>
    %cst_238 = arith.constant 1.000000e+00 : f32
    %763 = vector.broadcast %cst_238 : f32 to vector<8x128xf32>
    %764 = arith.addf %763, %762 : vector<8x128xf32>
    %765 = arith.divf %763, %764 : vector<8x128xf32>
    %766 = vector.extract_strided_slice %734 {offsets = [0, 128], sizes = [8, 128], strides = [1, 1]} : vector<8x512xf32> to vector<8x128xf32>
    %767 = arith.negf %766 : vector<8x128xf32>
    %768 = math.exp %767 : vector<8x128xf32>
    %cst_239 = arith.constant 1.000000e+00 : f32
    %769 = vector.broadcast %cst_239 : f32 to vector<8x128xf32>
    %770 = arith.addf %769, %768 : vector<8x128xf32>
    %771 = arith.divf %769, %770 : vector<8x128xf32>
    %772 = vector.extract_strided_slice %734 {offsets = [0, 256], sizes = [8, 128], strides = [1, 1]} : vector<8x512xf32> to vector<8x128xf32>
    %773 = math.tanh %772 : vector<8x128xf32>
    %774 = vector.extract_strided_slice %734 {offsets = [0, 384], sizes = [8, 128], strides = [1, 1]} : vector<8x512xf32> to vector<8x128xf32>
    %775 = arith.negf %774 : vector<8x128xf32>
    %776 = math.exp %775 : vector<8x128xf32>
    %cst_240 = arith.constant 1.000000e+00 : f32
    %777 = vector.broadcast %cst_240 : f32 to vector<8x128xf32>
    %778 = arith.addf %777, %776 : vector<8x128xf32>
    %779 = arith.divf %777, %778 : vector<8x128xf32>
    %780 = arith.mulf %771, %711 : vector<8x128xf32>
    %781 = arith.mulf %765, %773 : vector<8x128xf32>
    %782 = arith.addf %780, %781 : vector<8x128xf32>
    %783 = math.tanh %782 : vector<8x128xf32>
    %784 = arith.mulf %779, %783 : vector<8x128xf32>
    %785 = arith.index_cast %c1_i32_227 : i32 to index
    %c0_241 = arith.constant 0 : index
    %c0_242 = arith.constant 0 : index
    %786 = vector.load %arg19[%785, %c0_241, %c0_242] : memref<8x8x128xf32, #tpu.memory_space<vmem>>, vector<1x8x128xf32>
    %787 = vector.shape_cast %786 : vector<1x8x128xf32> to vector<8x128xf32>
    %788 = vector.shape_cast %759 : vector<8x128xf32> to vector<1x8x128xf32>
    tpu.vector_store %arg19[%785, %c0_241, %c0_242], %788 {strides = array<i32>} : memref<8x8x128xf32, #tpu.memory_space<vmem>>, vector<1x8x128xf32>,
    %789 = arith.index_cast %724 : i32 to index
    %c0_243 = arith.constant 0 : index
    %c0_244 = arith.constant 0 : index
    %790 = vector.load %arg20[%789, %c0_243, %c0_244] : memref<8x8x128xf32, #tpu.memory_space<vmem>>, vector<1x8x128xf32>
    %791 = vector.shape_cast %790 : vector<1x8x128xf32> to vector<8x128xf32>
    %792 = vector.shape_cast %784 : vector<8x128xf32> to vector<1x8x128xf32>
    tpu.vector_store %arg20[%789, %c0_243, %c0_244], %792 {strides = array<i32>} : memref<8x8x128xf32, #tpu.memory_space<vmem>>, vector<1x8x128xf32>,
    %793 = arith.truncf %759 : vector<8x128xf32> to vector<8x128xbf16>
    %794 = arith.truncf %784 : vector<8x128xf32> to vector<8x128xbf16>
    %c2_i32_245 = arith.constant 2 : i32
    %c7_i32_246 = arith.constant 7 : i32
    %795 = arith.subi %c7_i32_246, %c2_i32_245 : i32
    %796 = arith.index_cast %c2_i32_245 : i32 to index
    %c0_247 = arith.constant 0 : index
    %c0_248 = arith.constant 0 : index
    %797 = vector.load %arg15[%796, %c0_247, %c0_248] : memref<8x8x512xf32, #tpu.memory_space<vmem>>, vector<1x8x512xf32>
    %798 = vector.shape_cast %797 : vector<1x8x512xf32> to vector<8x512xf32>
    %cst_249 = arith.constant dense<0.000000e+00> : vector<8x512xf32>
    %799 = tpu.matmul %793, %648, %cst_249 {dimension_numbers = #tpu.dot_dimension_numbers<[1], [0], [0], [1], [0, 0, 1, 1], [], []>} : vector<8x128xbf16>, vector<128x512xbf16>, vector<8x512xf32> -> vector<8x512xf32>
    %800 = arith.addf %798, %799 : vector<8x512xf32>
    %801 = arith.index_cast %795 : i32 to index
    %c0_250 = arith.constant 0 : index
    %c0_251 = arith.constant 0 : index
    %802 = vector.load %arg16[%801, %c0_250, %c0_251] : memref<8x8x512xf32, #tpu.memory_space<vmem>>, vector<1x8x512xf32>
    %803 = vector.shape_cast %802 : vector<1x8x512xf32> to vector<8x512xf32>
    %cst_252 = arith.constant dense<0.000000e+00> : vector<8x512xf32>
    %804 = tpu.matmul %794, %650, %cst_252 {dimension_numbers = #tpu.dot_dimension_numbers<[1], [0], [0], [1], [0, 0, 1, 1], [], []>} : vector<8x128xbf16>, vector<128x512xbf16>, vector<8x512xf32> -> vector<8x512xf32>
    %805 = arith.addf %803, %804 : vector<8x512xf32>
    %806 = vector.extract_strided_slice %800 {offsets = [0, 0], sizes = [8, 128], strides = [1, 1]} : vector<8x512xf32> to vector<8x128xf32>
    %807 = arith.negf %806 : vector<8x128xf32>
    %808 = math.exp %807 : vector<8x128xf32>
    %cst_253 = arith.constant 1.000000e+00 : f32
    %809 = vector.broadcast %cst_253 : f32 to vector<8x128xf32>
    %810 = arith.addf %809, %808 : vector<8x128xf32>
    %811 = arith.divf %809, %810 : vector<8x128xf32>
    %812 = vector.extract_strided_slice %800 {offsets = [0, 128], sizes = [8, 128], strides = [1, 1]} : vector<8x512xf32> to vector<8x128xf32>
    %813 = arith.negf %812 : vector<8x128xf32>
    %814 = math.exp %813 : vector<8x128xf32>
    %cst_254 = arith.constant 1.000000e+00 : f32
    %815 = vector.broadcast %cst_254 : f32 to vector<8x128xf32>
    %816 = arith.addf %815, %814 : vector<8x128xf32>
    %817 = arith.divf %815, %816 : vector<8x128xf32>
    %818 = vector.extract_strided_slice %800 {offsets = [0, 256], sizes = [8, 128], strides = [1, 1]} : vector<8x512xf32> to vector<8x128xf32>
    %819 = math.tanh %818 : vector<8x128xf32>
    %820 = vector.extract_strided_slice %800 {offsets = [0, 384], sizes = [8, 128], strides = [1, 1]} : vector<8x512xf32> to vector<8x128xf32>
    %821 = arith.negf %820 : vector<8x128xf32>
    %822 = math.exp %821 : vector<8x128xf32>
    %cst_255 = arith.constant 1.000000e+00 : f32
    %823 = vector.broadcast %cst_255 : f32 to vector<8x128xf32>
    %824 = arith.addf %823, %822 : vector<8x128xf32>
    %825 = arith.divf %823, %824 : vector<8x128xf32>
    %826 = arith.mulf %817, %757 : vector<8x128xf32>
    %827 = arith.mulf %811, %819 : vector<8x128xf32>
    %828 = arith.addf %826, %827 : vector<8x128xf32>
    %829 = math.tanh %828 : vector<8x128xf32>
    %830 = arith.mulf %825, %829 : vector<8x128xf32>
    %831 = vector.extract_strided_slice %805 {offsets = [0, 0], sizes = [8, 128], strides = [1, 1]} : vector<8x512xf32> to vector<8x128xf32>
    %832 = arith.negf %831 : vector<8x128xf32>
    %833 = math.exp %832 : vector<8x128xf32>
    %cst_256 = arith.constant 1.000000e+00 : f32
    %834 = vector.broadcast %cst_256 : f32 to vector<8x128xf32>
    %835 = arith.addf %834, %833 : vector<8x128xf32>
    %836 = arith.divf %834, %835 : vector<8x128xf32>
    %837 = vector.extract_strided_slice %805 {offsets = [0, 128], sizes = [8, 128], strides = [1, 1]} : vector<8x512xf32> to vector<8x128xf32>
    %838 = arith.negf %837 : vector<8x128xf32>
    %839 = math.exp %838 : vector<8x128xf32>
    %cst_257 = arith.constant 1.000000e+00 : f32
    %840 = vector.broadcast %cst_257 : f32 to vector<8x128xf32>
    %841 = arith.addf %840, %839 : vector<8x128xf32>
    %842 = arith.divf %840, %841 : vector<8x128xf32>
    %843 = vector.extract_strided_slice %805 {offsets = [0, 256], sizes = [8, 128], strides = [1, 1]} : vector<8x512xf32> to vector<8x128xf32>
    %844 = math.tanh %843 : vector<8x128xf32>
    %845 = vector.extract_strided_slice %805 {offsets = [0, 384], sizes = [8, 128], strides = [1, 1]} : vector<8x512xf32> to vector<8x128xf32>
    %846 = arith.negf %845 : vector<8x128xf32>
    %847 = math.exp %846 : vector<8x128xf32>
    %cst_258 = arith.constant 1.000000e+00 : f32
    %848 = vector.broadcast %cst_258 : f32 to vector<8x128xf32>
    %849 = arith.addf %848, %847 : vector<8x128xf32>
    %850 = arith.divf %848, %849 : vector<8x128xf32>
    %851 = arith.mulf %842, %782 : vector<8x128xf32>
    %852 = arith.mulf %836, %844 : vector<8x128xf32>
    %853 = arith.addf %851, %852 : vector<8x128xf32>
    %854 = math.tanh %853 : vector<8x128xf32>
    %855 = arith.mulf %850, %854 : vector<8x128xf32>
    %856 = arith.index_cast %c2_i32_245 : i32 to index
    %c0_259 = arith.constant 0 : index
    %c0_260 = arith.constant 0 : index
    %857 = vector.load %arg19[%856, %c0_259, %c0_260] : memref<8x8x128xf32, #tpu.memory_space<vmem>>, vector<1x8x128xf32>
    %858 = vector.shape_cast %857 : vector<1x8x128xf32> to vector<8x128xf32>
    %859 = vector.shape_cast %830 : vector<8x128xf32> to vector<1x8x128xf32>
    tpu.vector_store %arg19[%856, %c0_259, %c0_260], %859 {strides = array<i32>} : memref<8x8x128xf32, #tpu.memory_space<vmem>>, vector<1x8x128xf32>,
    %860 = arith.index_cast %795 : i32 to index
    %c0_261 = arith.constant 0 : index
    %c0_262 = arith.constant 0 : index
    %861 = vector.load %arg20[%860, %c0_261, %c0_262] : memref<8x8x128xf32, #tpu.memory_space<vmem>>, vector<1x8x128xf32>
    %862 = vector.shape_cast %861 : vector<1x8x128xf32> to vector<8x128xf32>
    %863 = vector.shape_cast %855 : vector<8x128xf32> to vector<1x8x128xf32>
    tpu.vector_store %arg20[%860, %c0_261, %c0_262], %863 {strides = array<i32>} : memref<8x8x128xf32, #tpu.memory_space<vmem>>, vector<1x8x128xf32>,
    %864 = arith.truncf %830 : vector<8x128xf32> to vector<8x128xbf16>
    %865 = arith.truncf %855 : vector<8x128xf32> to vector<8x128xbf16>
    %c3_i32_263 = arith.constant 3 : i32
    %c7_i32_264 = arith.constant 7 : i32
    %866 = arith.subi %c7_i32_264, %c3_i32_263 : i32
    %867 = arith.index_cast %c3_i32_263 : i32 to index
    %c0_265 = arith.constant 0 : index
    %c0_266 = arith.constant 0 : index
    %868 = vector.load %arg15[%867, %c0_265, %c0_266] : memref<8x8x512xf32, #tpu.memory_space<vmem>>, vector<1x8x512xf32>
    %869 = vector.shape_cast %868 : vector<1x8x512xf32> to vector<8x512xf32>
    %cst_267 = arith.constant dense<0.000000e+00> : vector<8x512xf32>
    %870 = tpu.matmul %864, %648, %cst_267 {dimension_numbers = #tpu.dot_dimension_numbers<[1], [0], [0], [1], [0, 0, 1, 1], [], []>} : vector<8x128xbf16>, vector<128x512xbf16>, vector<8x512xf32> -> vector<8x512xf32>
    %871 = arith.addf %869, %870 : vector<8x512xf32>
    %872 = arith.index_cast %866 : i32 to index
    %c0_268 = arith.constant 0 : index
    %c0_269 = arith.constant 0 : index
    %873 = vector.load %arg16[%872, %c0_268, %c0_269] : memref<8x8x512xf32, #tpu.memory_space<vmem>>, vector<1x8x512xf32>
    %874 = vector.shape_cast %873 : vector<1x8x512xf32> to vector<8x512xf32>
    %cst_270 = arith.constant dense<0.000000e+00> : vector<8x512xf32>
    %875 = tpu.matmul %865, %650, %cst_270 {dimension_numbers = #tpu.dot_dimension_numbers<[1], [0], [0], [1], [0, 0, 1, 1], [], []>} : vector<8x128xbf16>, vector<128x512xbf16>, vector<8x512xf32> -> vector<8x512xf32>
    %876 = arith.addf %874, %875 : vector<8x512xf32>
    %877 = vector.extract_strided_slice %871 {offsets = [0, 0], sizes = [8, 128], strides = [1, 1]} : vector<8x512xf32> to vector<8x128xf32>
    %878 = arith.negf %877 : vector<8x128xf32>
    %879 = math.exp %878 : vector<8x128xf32>
    %cst_271 = arith.constant 1.000000e+00 : f32
    %880 = vector.broadcast %cst_271 : f32 to vector<8x128xf32>
    %881 = arith.addf %880, %879 : vector<8x128xf32>
    %882 = arith.divf %880, %881 : vector<8x128xf32>
    %883 = vector.extract_strided_slice %871 {offsets = [0, 128], sizes = [8, 128], strides = [1, 1]} : vector<8x512xf32> to vector<8x128xf32>
    %884 = arith.negf %883 : vector<8x128xf32>
    %885 = math.exp %884 : vector<8x128xf32>
    %cst_272 = arith.constant 1.000000e+00 : f32
    %886 = vector.broadcast %cst_272 : f32 to vector<8x128xf32>
    %887 = arith.addf %886, %885 : vector<8x128xf32>
    %888 = arith.divf %886, %887 : vector<8x128xf32>
    %889 = vector.extract_strided_slice %871 {offsets = [0, 256], sizes = [8, 128], strides = [1, 1]} : vector<8x512xf32> to vector<8x128xf32>
    %890 = math.tanh %889 : vector<8x128xf32>
    %891 = vector.extract_strided_slice %871 {offsets = [0, 384], sizes = [8, 128], strides = [1, 1]} : vector<8x512xf32> to vector<8x128xf32>
    %892 = arith.negf %891 : vector<8x128xf32>
    %893 = math.exp %892 : vector<8x128xf32>
    %cst_273 = arith.constant 1.000000e+00 : f32
    %894 = vector.broadcast %cst_273 : f32 to vector<8x128xf32>
    %895 = arith.addf %894, %893 : vector<8x128xf32>
    %896 = arith.divf %894, %895 : vector<8x128xf32>
    %897 = arith.mulf %888, %828 : vector<8x128xf32>
    %898 = arith.mulf %882, %890 : vector<8x128xf32>
    %899 = arith.addf %897, %898 : vector<8x128xf32>
    %900 = math.tanh %899 : vector<8x128xf32>
    %901 = arith.mulf %896, %900 : vector<8x128xf32>
    %902 = vector.extract_strided_slice %876 {offsets = [0, 0], sizes = [8, 128], strides = [1, 1]} : vector<8x512xf32> to vector<8x128xf32>
    %903 = arith.negf %902 : vector<8x128xf32>
    %904 = math.exp %903 : vector<8x128xf32>
    %cst_274 = arith.constant 1.000000e+00 : f32
    %905 = vector.broadcast %cst_274 : f32 to vector<8x128xf32>
    %906 = arith.addf %905, %904 : vector<8x128xf32>
    %907 = arith.divf %905, %906 : vector<8x128xf32>
    %908 = vector.extract_strided_slice %876 {offsets = [0, 128], sizes = [8, 128], strides = [1, 1]} : vector<8x512xf32> to vector<8x128xf32>
    %909 = arith.negf %908 : vector<8x128xf32>
    %910 = math.exp %909 : vector<8x128xf32>
    %cst_275 = arith.constant 1.000000e+00 : f32
    %911 = vector.broadcast %cst_275 : f32 to vector<8x128xf32>
    %912 = arith.addf %911, %910 : vector<8x128xf32>
    %913 = arith.divf %911, %912 : vector<8x128xf32>
    %914 = vector.extract_strided_slice %876 {offsets = [0, 256], sizes = [8, 128], strides = [1, 1]} : vector<8x512xf32> to vector<8x128xf32>
    %915 = math.tanh %914 : vector<8x128xf32>
    %916 = vector.extract_strided_slice %876 {offsets = [0, 384], sizes = [8, 128], strides = [1, 1]} : vector<8x512xf32> to vector<8x128xf32>
    %917 = arith.negf %916 : vector<8x128xf32>
    %918 = math.exp %917 : vector<8x128xf32>
    %cst_276 = arith.constant 1.000000e+00 : f32
    %919 = vector.broadcast %cst_276 : f32 to vector<8x128xf32>
    %920 = arith.addf %919, %918 : vector<8x128xf32>
    %921 = arith.divf %919, %920 : vector<8x128xf32>
    %922 = arith.mulf %913, %853 : vector<8x128xf32>
    %923 = arith.mulf %907, %915 : vector<8x128xf32>
    %924 = arith.addf %922, %923 : vector<8x128xf32>
    %925 = math.tanh %924 : vector<8x128xf32>
    %926 = arith.mulf %921, %925 : vector<8x128xf32>
    %927 = arith.index_cast %c3_i32_263 : i32 to index
    %c0_277 = arith.constant 0 : index
    %c0_278 = arith.constant 0 : index
    %928 = vector.load %arg19[%927, %c0_277, %c0_278] : memref<8x8x128xf32, #tpu.memory_space<vmem>>, vector<1x8x128xf32>
    %929 = vector.shape_cast %928 : vector<1x8x128xf32> to vector<8x128xf32>
    %930 = vector.shape_cast %901 : vector<8x128xf32> to vector<1x8x128xf32>
    tpu.vector_store %arg19[%927, %c0_277, %c0_278], %930 {strides = array<i32>} : memref<8x8x128xf32, #tpu.memory_space<vmem>>, vector<1x8x128xf32>,
    %931 = arith.index_cast %866 : i32 to index
    %c0_279 = arith.constant 0 : index
    %c0_280 = arith.constant 0 : index
    %932 = vector.load %arg20[%931, %c0_279, %c0_280] : memref<8x8x128xf32, #tpu.memory_space<vmem>>, vector<1x8x128xf32>
    %933 = vector.shape_cast %932 : vector<1x8x128xf32> to vector<8x128xf32>
    %934 = vector.shape_cast %926 : vector<8x128xf32> to vector<1x8x128xf32>
    tpu.vector_store %arg20[%931, %c0_279, %c0_280], %934 {strides = array<i32>} : memref<8x8x128xf32, #tpu.memory_space<vmem>>, vector<1x8x128xf32>,
    %935 = arith.truncf %901 : vector<8x128xf32> to vector<8x128xbf16>
    %936 = arith.truncf %926 : vector<8x128xf32> to vector<8x128xbf16>
    %c4_i32_281 = arith.constant 4 : i32
    %c7_i32_282 = arith.constant 7 : i32
    %937 = arith.subi %c7_i32_282, %c4_i32_281 : i32
    %938 = arith.index_cast %c4_i32_281 : i32 to index
    %c0_283 = arith.constant 0 : index
    %c0_284 = arith.constant 0 : index
    %939 = vector.load %arg15[%938, %c0_283, %c0_284] : memref<8x8x512xf32, #tpu.memory_space<vmem>>, vector<1x8x512xf32>
    %940 = vector.shape_cast %939 : vector<1x8x512xf32> to vector<8x512xf32>
    %cst_285 = arith.constant dense<0.000000e+00> : vector<8x512xf32>
    %941 = tpu.matmul %935, %648, %cst_285 {dimension_numbers = #tpu.dot_dimension_numbers<[1], [0], [0], [1], [0, 0, 1, 1], [], []>} : vector<8x128xbf16>, vector<128x512xbf16>, vector<8x512xf32> -> vector<8x512xf32>
    %942 = arith.addf %940, %941 : vector<8x512xf32>
    %943 = arith.index_cast %937 : i32 to index
    %c0_286 = arith.constant 0 : index
    %c0_287 = arith.constant 0 : index
    %944 = vector.load %arg16[%943, %c0_286, %c0_287] : memref<8x8x512xf32, #tpu.memory_space<vmem>>, vector<1x8x512xf32>
    %945 = vector.shape_cast %944 : vector<1x8x512xf32> to vector<8x512xf32>
    %cst_288 = arith.constant dense<0.000000e+00> : vector<8x512xf32>
    %946 = tpu.matmul %936, %650, %cst_288 {dimension_numbers = #tpu.dot_dimension_numbers<[1], [0], [0], [1], [0, 0, 1, 1], [], []>} : vector<8x128xbf16>, vector<128x512xbf16>, vector<8x512xf32> -> vector<8x512xf32>
    %947 = arith.addf %945, %946 : vector<8x512xf32>
    %948 = vector.extract_strided_slice %942 {offsets = [0, 0], sizes = [8, 128], strides = [1, 1]} : vector<8x512xf32> to vector<8x128xf32>
    %949 = arith.negf %948 : vector<8x128xf32>
    %950 = math.exp %949 : vector<8x128xf32>
    %cst_289 = arith.constant 1.000000e+00 : f32
    %951 = vector.broadcast %cst_289 : f32 to vector<8x128xf32>
    %952 = arith.addf %951, %950 : vector<8x128xf32>
    %953 = arith.divf %951, %952 : vector<8x128xf32>
    %954 = vector.extract_strided_slice %942 {offsets = [0, 128], sizes = [8, 128], strides = [1, 1]} : vector<8x512xf32> to vector<8x128xf32>
    %955 = arith.negf %954 : vector<8x128xf32>
    %956 = math.exp %955 : vector<8x128xf32>
    %cst_290 = arith.constant 1.000000e+00 : f32
    %957 = vector.broadcast %cst_290 : f32 to vector<8x128xf32>
    %958 = arith.addf %957, %956 : vector<8x128xf32>
    %959 = arith.divf %957, %958 : vector<8x128xf32>
    %960 = vector.extract_strided_slice %942 {offsets = [0, 256], sizes = [8, 128], strides = [1, 1]} : vector<8x512xf32> to vector<8x128xf32>
    %961 = math.tanh %960 : vector<8x128xf32>
    %962 = vector.extract_strided_slice %942 {offsets = [0, 384], sizes = [8, 128], strides = [1, 1]} : vector<8x512xf32> to vector<8x128xf32>
    %963 = arith.negf %962 : vector<8x128xf32>
    %964 = math.exp %963 : vector<8x128xf32>
    %cst_291 = arith.constant 1.000000e+00 : f32
    %965 = vector.broadcast %cst_291 : f32 to vector<8x128xf32>
    %966 = arith.addf %965, %964 : vector<8x128xf32>
    %967 = arith.divf %965, %966 : vector<8x128xf32>
    %968 = arith.mulf %959, %899 : vector<8x128xf32>
    %969 = arith.mulf %953, %961 : vector<8x128xf32>
    %970 = arith.addf %968, %969 : vector<8x128xf32>
    %971 = math.tanh %970 : vector<8x128xf32>
    %972 = arith.mulf %967, %971 : vector<8x128xf32>
    %973 = vector.extract_strided_slice %947 {offsets = [0, 0], sizes = [8, 128], strides = [1, 1]} : vector<8x512xf32> to vector<8x128xf32>
    %974 = arith.negf %973 : vector<8x128xf32>
    %975 = math.exp %974 : vector<8x128xf32>
    %cst_292 = arith.constant 1.000000e+00 : f32
    %976 = vector.broadcast %cst_292 : f32 to vector<8x128xf32>
    %977 = arith.addf %976, %975 : vector<8x128xf32>
    %978 = arith.divf %976, %977 : vector<8x128xf32>
    %979 = vector.extract_strided_slice %947 {offsets = [0, 128], sizes = [8, 128], strides = [1, 1]} : vector<8x512xf32> to vector<8x128xf32>
    %980 = arith.negf %979 : vector<8x128xf32>
    %981 = math.exp %980 : vector<8x128xf32>
    %cst_293 = arith.constant 1.000000e+00 : f32
    %982 = vector.broadcast %cst_293 : f32 to vector<8x128xf32>
    %983 = arith.addf %982, %981 : vector<8x128xf32>
    %984 = arith.divf %982, %983 : vector<8x128xf32>
    %985 = vector.extract_strided_slice %947 {offsets = [0, 256], sizes = [8, 128], strides = [1, 1]} : vector<8x512xf32> to vector<8x128xf32>
    %986 = math.tanh %985 : vector<8x128xf32>
    %987 = vector.extract_strided_slice %947 {offsets = [0, 384], sizes = [8, 128], strides = [1, 1]} : vector<8x512xf32> to vector<8x128xf32>
    %988 = arith.negf %987 : vector<8x128xf32>
    %989 = math.exp %988 : vector<8x128xf32>
    %cst_294 = arith.constant 1.000000e+00 : f32
    %990 = vector.broadcast %cst_294 : f32 to vector<8x128xf32>
    %991 = arith.addf %990, %989 : vector<8x128xf32>
    %992 = arith.divf %990, %991 : vector<8x128xf32>
    %993 = arith.mulf %984, %924 : vector<8x128xf32>
    %994 = arith.mulf %978, %986 : vector<8x128xf32>
    %995 = arith.addf %993, %994 : vector<8x128xf32>
    %996 = math.tanh %995 : vector<8x128xf32>
    %997 = arith.mulf %992, %996 : vector<8x128xf32>
    %998 = arith.index_cast %c4_i32_281 : i32 to index
    %c0_295 = arith.constant 0 : index
    %c0_296 = arith.constant 0 : index
    %999 = vector.load %arg19[%998, %c0_295, %c0_296] : memref<8x8x128xf32, #tpu.memory_space<vmem>>, vector<1x8x128xf32>
    %1000 = vector.shape_cast %999 : vector<1x8x128xf32> to vector<8x128xf32>
    %1001 = vector.shape_cast %972 : vector<8x128xf32> to vector<1x8x128xf32>
    tpu.vector_store %arg19[%998, %c0_295, %c0_296], %1001 {strides = array<i32>} : memref<8x8x128xf32, #tpu.memory_space<vmem>>, vector<1x8x128xf32>,
    %1002 = arith.index_cast %937 : i32 to index
    %c0_297 = arith.constant 0 : index
    %c0_298 = arith.constant 0 : index
    %1003 = vector.load %arg20[%1002, %c0_297, %c0_298] : memref<8x8x128xf32, #tpu.memory_space<vmem>>, vector<1x8x128xf32>
    %1004 = vector.shape_cast %1003 : vector<1x8x128xf32> to vector<8x128xf32>
    %1005 = vector.shape_cast %997 : vector<8x128xf32> to vector<1x8x128xf32>
    tpu.vector_store %arg20[%1002, %c0_297, %c0_298], %1005 {strides = array<i32>} : memref<8x8x128xf32, #tpu.memory_space<vmem>>, vector<1x8x128xf32>,
    %1006 = arith.truncf %972 : vector<8x128xf32> to vector<8x128xbf16>
    %1007 = arith.truncf %997 : vector<8x128xf32> to vector<8x128xbf16>
    %c5_i32_299 = arith.constant 5 : i32
    %c7_i32_300 = arith.constant 7 : i32
    %1008 = arith.subi %c7_i32_300, %c5_i32_299 : i32
    %1009 = arith.index_cast %c5_i32_299 : i32 to index
    %c0_301 = arith.constant 0 : index
    %c0_302 = arith.constant 0 : index
    %1010 = vector.load %arg15[%1009, %c0_301, %c0_302] : memref<8x8x512xf32, #tpu.memory_space<vmem>>, vector<1x8x512xf32>
    %1011 = vector.shape_cast %1010 : vector<1x8x512xf32> to vector<8x512xf32>
    %cst_303 = arith.constant dense<0.000000e+00> : vector<8x512xf32>
    %1012 = tpu.matmul %1006, %648, %cst_303 {dimension_numbers = #tpu.dot_dimension_numbers<[1], [0], [0], [1], [0, 0, 1, 1], [], []>} : vector<8x128xbf16>, vector<128x512xbf16>, vector<8x512xf32> -> vector<8x512xf32>
    %1013 = arith.addf %1011, %1012 : vector<8x512xf32>
    %1014 = arith.index_cast %1008 : i32 to index
    %c0_304 = arith.constant 0 : index
    %c0_305 = arith.constant 0 : index
    %1015 = vector.load %arg16[%1014, %c0_304, %c0_305] : memref<8x8x512xf32, #tpu.memory_space<vmem>>, vector<1x8x512xf32>
    %1016 = vector.shape_cast %1015 : vector<1x8x512xf32> to vector<8x512xf32>
    %cst_306 = arith.constant dense<0.000000e+00> : vector<8x512xf32>
    %1017 = tpu.matmul %1007, %650, %cst_306 {dimension_numbers = #tpu.dot_dimension_numbers<[1], [0], [0], [1], [0, 0, 1, 1], [], []>} : vector<8x128xbf16>, vector<128x512xbf16>, vector<8x512xf32> -> vector<8x512xf32>
    %1018 = arith.addf %1016, %1017 : vector<8x512xf32>
    %1019 = vector.extract_strided_slice %1013 {offsets = [0, 0], sizes = [8, 128], strides = [1, 1]} : vector<8x512xf32> to vector<8x128xf32>
    %1020 = arith.negf %1019 : vector<8x128xf32>
    %1021 = math.exp %1020 : vector<8x128xf32>
    %cst_307 = arith.constant 1.000000e+00 : f32
    %1022 = vector.broadcast %cst_307 : f32 to vector<8x128xf32>
    %1023 = arith.addf %1022, %1021 : vector<8x128xf32>
    %1024 = arith.divf %1022, %1023 : vector<8x128xf32>
    %1025 = vector.extract_strided_slice %1013 {offsets = [0, 128], sizes = [8, 128], strides = [1, 1]} : vector<8x512xf32> to vector<8x128xf32>
    %1026 = arith.negf %1025 : vector<8x128xf32>
    %1027 = math.exp %1026 : vector<8x128xf32>
    %cst_308 = arith.constant 1.000000e+00 : f32
    %1028 = vector.broadcast %cst_308 : f32 to vector<8x128xf32>
    %1029 = arith.addf %1028, %1027 : vector<8x128xf32>
    %1030 = arith.divf %1028, %1029 : vector<8x128xf32>
    %1031 = vector.extract_strided_slice %1013 {offsets = [0, 256], sizes = [8, 128], strides = [1, 1]} : vector<8x512xf32> to vector<8x128xf32>
    %1032 = math.tanh %1031 : vector<8x128xf32>
    %1033 = vector.extract_strided_slice %1013 {offsets = [0, 384], sizes = [8, 128], strides = [1, 1]} : vector<8x512xf32> to vector<8x128xf32>
    %1034 = arith.negf %1033 : vector<8x128xf32>
    %1035 = math.exp %1034 : vector<8x128xf32>
    %cst_309 = arith.constant 1.000000e+00 : f32
    %1036 = vector.broadcast %cst_309 : f32 to vector<8x128xf32>
    %1037 = arith.addf %1036, %1035 : vector<8x128xf32>
    %1038 = arith.divf %1036, %1037 : vector<8x128xf32>
    %1039 = arith.mulf %1030, %970 : vector<8x128xf32>
    %1040 = arith.mulf %1024, %1032 : vector<8x128xf32>
    %1041 = arith.addf %1039, %1040 : vector<8x128xf32>
    %1042 = math.tanh %1041 : vector<8x128xf32>
    %1043 = arith.mulf %1038, %1042 : vector<8x128xf32>
    %1044 = vector.extract_strided_slice %1018 {offsets = [0, 0], sizes = [8, 128], strides = [1, 1]} : vector<8x512xf32> to vector<8x128xf32>
    %1045 = arith.negf %1044 : vector<8x128xf32>
    %1046 = math.exp %1045 : vector<8x128xf32>
    %cst_310 = arith.constant 1.000000e+00 : f32
    %1047 = vector.broadcast %cst_310 : f32 to vector<8x128xf32>
    %1048 = arith.addf %1047, %1046 : vector<8x128xf32>
    %1049 = arith.divf %1047, %1048 : vector<8x128xf32>
    %1050 = vector.extract_strided_slice %1018 {offsets = [0, 128], sizes = [8, 128], strides = [1, 1]} : vector<8x512xf32> to vector<8x128xf32>
    %1051 = arith.negf %1050 : vector<8x128xf32>
    %1052 = math.exp %1051 : vector<8x128xf32>
    %cst_311 = arith.constant 1.000000e+00 : f32
    %1053 = vector.broadcast %cst_311 : f32 to vector<8x128xf32>
    %1054 = arith.addf %1053, %1052 : vector<8x128xf32>
    %1055 = arith.divf %1053, %1054 : vector<8x128xf32>
    %1056 = vector.extract_strided_slice %1018 {offsets = [0, 256], sizes = [8, 128], strides = [1, 1]} : vector<8x512xf32> to vector<8x128xf32>
    %1057 = math.tanh %1056 : vector<8x128xf32>
    %1058 = vector.extract_strided_slice %1018 {offsets = [0, 384], sizes = [8, 128], strides = [1, 1]} : vector<8x512xf32> to vector<8x128xf32>
    %1059 = arith.negf %1058 : vector<8x128xf32>
    %1060 = math.exp %1059 : vector<8x128xf32>
    %cst_312 = arith.constant 1.000000e+00 : f32
    %1061 = vector.broadcast %cst_312 : f32 to vector<8x128xf32>
    %1062 = arith.addf %1061, %1060 : vector<8x128xf32>
    %1063 = arith.divf %1061, %1062 : vector<8x128xf32>
    %1064 = arith.mulf %1055, %995 : vector<8x128xf32>
    %1065 = arith.mulf %1049, %1057 : vector<8x128xf32>
    %1066 = arith.addf %1064, %1065 : vector<8x128xf32>
    %1067 = math.tanh %1066 : vector<8x128xf32>
    %1068 = arith.mulf %1063, %1067 : vector<8x128xf32>
    %1069 = arith.index_cast %c5_i32_299 : i32 to index
    %c0_313 = arith.constant 0 : index
    %c0_314 = arith.constant 0 : index
    %1070 = vector.load %arg19[%1069, %c0_313, %c0_314] : memref<8x8x128xf32, #tpu.memory_space<vmem>>, vector<1x8x128xf32>
    %1071 = vector.shape_cast %1070 : vector<1x8x128xf32> to vector<8x128xf32>
    %1072 = vector.shape_cast %1043 : vector<8x128xf32> to vector<1x8x128xf32>
    tpu.vector_store %arg19[%1069, %c0_313, %c0_314], %1072 {strides = array<i32>} : memref<8x8x128xf32, #tpu.memory_space<vmem>>, vector<1x8x128xf32>,
    %1073 = arith.index_cast %1008 : i32 to index
    %c0_315 = arith.constant 0 : index
    %c0_316 = arith.constant 0 : index
    %1074 = vector.load %arg20[%1073, %c0_315, %c0_316] : memref<8x8x128xf32, #tpu.memory_space<vmem>>, vector<1x8x128xf32>
    %1075 = vector.shape_cast %1074 : vector<1x8x128xf32> to vector<8x128xf32>
    %1076 = vector.shape_cast %1068 : vector<8x128xf32> to vector<1x8x128xf32>
    tpu.vector_store %arg20[%1073, %c0_315, %c0_316], %1076 {strides = array<i32>} : memref<8x8x128xf32, #tpu.memory_space<vmem>>, vector<1x8x128xf32>,
    %1077 = arith.truncf %1043 : vector<8x128xf32> to vector<8x128xbf16>
    %1078 = arith.truncf %1068 : vector<8x128xf32> to vector<8x128xbf16>
    %c6_i32_317 = arith.constant 6 : i32
    %c7_i32_318 = arith.constant 7 : i32
    %1079 = arith.subi %c7_i32_318, %c6_i32_317 : i32
    %1080 = arith.index_cast %c6_i32_317 : i32 to index
    %c0_319 = arith.constant 0 : index
    %c0_320 = arith.constant 0 : index
    %1081 = vector.load %arg15[%1080, %c0_319, %c0_320] : memref<8x8x512xf32, #tpu.memory_space<vmem>>, vector<1x8x512xf32>
    %1082 = vector.shape_cast %1081 : vector<1x8x512xf32> to vector<8x512xf32>
    %cst_321 = arith.constant dense<0.000000e+00> : vector<8x512xf32>
    %1083 = tpu.matmul %1077, %648, %cst_321 {dimension_numbers = #tpu.dot_dimension_numbers<[1], [0], [0], [1], [0, 0, 1, 1], [], []>} : vector<8x128xbf16>, vector<128x512xbf16>, vector<8x512xf32> -> vector<8x512xf32>
    %1084 = arith.addf %1082, %1083 : vector<8x512xf32>
    %1085 = arith.index_cast %1079 : i32 to index
    %c0_322 = arith.constant 0 : index
    %c0_323 = arith.constant 0 : index
    %1086 = vector.load %arg16[%1085, %c0_322, %c0_323] : memref<8x8x512xf32, #tpu.memory_space<vmem>>, vector<1x8x512xf32>
    %1087 = vector.shape_cast %1086 : vector<1x8x512xf32> to vector<8x512xf32>
    %cst_324 = arith.constant dense<0.000000e+00> : vector<8x512xf32>
    %1088 = tpu.matmul %1078, %650, %cst_324 {dimension_numbers = #tpu.dot_dimension_numbers<[1], [0], [0], [1], [0, 0, 1, 1], [], []>} : vector<8x128xbf16>, vector<128x512xbf16>, vector<8x512xf32> -> vector<8x512xf32>
    %1089 = arith.addf %1087, %1088 : vector<8x512xf32>
    %1090 = vector.extract_strided_slice %1084 {offsets = [0, 0], sizes = [8, 128], strides = [1, 1]} : vector<8x512xf32> to vector<8x128xf32>
    %1091 = arith.negf %1090 : vector<8x128xf32>
    %1092 = math.exp %1091 : vector<8x128xf32>
    %cst_325 = arith.constant 1.000000e+00 : f32
    %1093 = vector.broadcast %cst_325 : f32 to vector<8x128xf32>
    %1094 = arith.addf %1093, %1092 : vector<8x128xf32>
    %1095 = arith.divf %1093, %1094 : vector<8x128xf32>
    %1096 = vector.extract_strided_slice %1084 {offsets = [0, 128], sizes = [8, 128], strides = [1, 1]} : vector<8x512xf32> to vector<8x128xf32>
    %1097 = arith.negf %1096 : vector<8x128xf32>
    %1098 = math.exp %1097 : vector<8x128xf32>
    %cst_326 = arith.constant 1.000000e+00 : f32
    %1099 = vector.broadcast %cst_326 : f32 to vector<8x128xf32>
    %1100 = arith.addf %1099, %1098 : vector<8x128xf32>
    %1101 = arith.divf %1099, %1100 : vector<8x128xf32>
    %1102 = vector.extract_strided_slice %1084 {offsets = [0, 256], sizes = [8, 128], strides = [1, 1]} : vector<8x512xf32> to vector<8x128xf32>
    %1103 = math.tanh %1102 : vector<8x128xf32>
    %1104 = vector.extract_strided_slice %1084 {offsets = [0, 384], sizes = [8, 128], strides = [1, 1]} : vector<8x512xf32> to vector<8x128xf32>
    %1105 = arith.negf %1104 : vector<8x128xf32>
    %1106 = math.exp %1105 : vector<8x128xf32>
    %cst_327 = arith.constant 1.000000e+00 : f32
    %1107 = vector.broadcast %cst_327 : f32 to vector<8x128xf32>
    %1108 = arith.addf %1107, %1106 : vector<8x128xf32>
    %1109 = arith.divf %1107, %1108 : vector<8x128xf32>
    %1110 = arith.mulf %1101, %1041 : vector<8x128xf32>
    %1111 = arith.mulf %1095, %1103 : vector<8x128xf32>
    %1112 = arith.addf %1110, %1111 : vector<8x128xf32>
    %1113 = math.tanh %1112 : vector<8x128xf32>
    %1114 = arith.mulf %1109, %1113 : vector<8x128xf32>
    %1115 = vector.extract_strided_slice %1089 {offsets = [0, 0], sizes = [8, 128], strides = [1, 1]} : vector<8x512xf32> to vector<8x128xf32>
    %1116 = arith.negf %1115 : vector<8x128xf32>
    %1117 = math.exp %1116 : vector<8x128xf32>
    %cst_328 = arith.constant 1.000000e+00 : f32
    %1118 = vector.broadcast %cst_328 : f32 to vector<8x128xf32>
    %1119 = arith.addf %1118, %1117 : vector<8x128xf32>
    %1120 = arith.divf %1118, %1119 : vector<8x128xf32>
    %1121 = vector.extract_strided_slice %1089 {offsets = [0, 128], sizes = [8, 128], strides = [1, 1]} : vector<8x512xf32> to vector<8x128xf32>
    %1122 = arith.negf %1121 : vector<8x128xf32>
    %1123 = math.exp %1122 : vector<8x128xf32>
    %cst_329 = arith.constant 1.000000e+00 : f32
    %1124 = vector.broadcast %cst_329 : f32 to vector<8x128xf32>
    %1125 = arith.addf %1124, %1123 : vector<8x128xf32>
    %1126 = arith.divf %1124, %1125 : vector<8x128xf32>
    %1127 = vector.extract_strided_slice %1089 {offsets = [0, 256], sizes = [8, 128], strides = [1, 1]} : vector<8x512xf32> to vector<8x128xf32>
    %1128 = math.tanh %1127 : vector<8x128xf32>
    %1129 = vector.extract_strided_slice %1089 {offsets = [0, 384], sizes = [8, 128], strides = [1, 1]} : vector<8x512xf32> to vector<8x128xf32>
    %1130 = arith.negf %1129 : vector<8x128xf32>
    %1131 = math.exp %1130 : vector<8x128xf32>
    %cst_330 = arith.constant 1.000000e+00 : f32
    %1132 = vector.broadcast %cst_330 : f32 to vector<8x128xf32>
    %1133 = arith.addf %1132, %1131 : vector<8x128xf32>
    %1134 = arith.divf %1132, %1133 : vector<8x128xf32>
    %1135 = arith.mulf %1126, %1066 : vector<8x128xf32>
    %1136 = arith.mulf %1120, %1128 : vector<8x128xf32>
    %1137 = arith.addf %1135, %1136 : vector<8x128xf32>
    %1138 = math.tanh %1137 : vector<8x128xf32>
    %1139 = arith.mulf %1134, %1138 : vector<8x128xf32>
    %1140 = arith.index_cast %c6_i32_317 : i32 to index
    %c0_331 = arith.constant 0 : index
    %c0_332 = arith.constant 0 : index
    %1141 = vector.load %arg19[%1140, %c0_331, %c0_332] : memref<8x8x128xf32, #tpu.memory_space<vmem>>, vector<1x8x128xf32>
    %1142 = vector.shape_cast %1141 : vector<1x8x128xf32> to vector<8x128xf32>
    %1143 = vector.shape_cast %1114 : vector<8x128xf32> to vector<1x8x128xf32>
    tpu.vector_store %arg19[%1140, %c0_331, %c0_332], %1143 {strides = array<i32>} : memref<8x8x128xf32, #tpu.memory_space<vmem>>, vector<1x8x128xf32>,
    %1144 = arith.index_cast %1079 : i32 to index
    %c0_333 = arith.constant 0 : index
    %c0_334 = arith.constant 0 : index
    %1145 = vector.load %arg20[%1144, %c0_333, %c0_334] : memref<8x8x128xf32, #tpu.memory_space<vmem>>, vector<1x8x128xf32>
    %1146 = vector.shape_cast %1145 : vector<1x8x128xf32> to vector<8x128xf32>
    %1147 = vector.shape_cast %1139 : vector<8x128xf32> to vector<1x8x128xf32>
    tpu.vector_store %arg20[%1144, %c0_333, %c0_334], %1147 {strides = array<i32>} : memref<8x8x128xf32, #tpu.memory_space<vmem>>, vector<1x8x128xf32>,
    %1148 = arith.truncf %1114 : vector<8x128xf32> to vector<8x128xbf16>
    %1149 = arith.truncf %1139 : vector<8x128xf32> to vector<8x128xbf16>
    %c7_i32_335 = arith.constant 7 : i32
    %c7_i32_336 = arith.constant 7 : i32
    %1150 = arith.subi %c7_i32_336, %c7_i32_335 : i32
    %1151 = arith.index_cast %c7_i32_335 : i32 to index
    %c0_337 = arith.constant 0 : index
    %c0_338 = arith.constant 0 : index
    %1152 = vector.load %arg15[%1151, %c0_337, %c0_338] : memref<8x8x512xf32, #tpu.memory_space<vmem>>, vector<1x8x512xf32>
    %1153 = vector.shape_cast %1152 : vector<1x8x512xf32> to vector<8x512xf32>
    %cst_339 = arith.constant dense<0.000000e+00> : vector<8x512xf32>
    %1154 = tpu.matmul %1148, %648, %cst_339 {dimension_numbers = #tpu.dot_dimension_numbers<[1], [0], [0], [1], [0, 0, 1, 1], [], []>} : vector<8x128xbf16>, vector<128x512xbf16>, vector<8x512xf32> -> vector<8x512xf32>
    %1155 = arith.addf %1153, %1154 : vector<8x512xf32>
    %1156 = arith.index_cast %1150 : i32 to index
    %c0_340 = arith.constant 0 : index
    %c0_341 = arith.constant 0 : index
    %1157 = vector.load %arg16[%1156, %c0_340, %c0_341] : memref<8x8x512xf32, #tpu.memory_space<vmem>>, vector<1x8x512xf32>
    %1158 = vector.shape_cast %1157 : vector<1x8x512xf32> to vector<8x512xf32>
    %cst_342 = arith.constant dense<0.000000e+00> : vector<8x512xf32>
    %1159 = tpu.matmul %1149, %650, %cst_342 {dimension_numbers = #tpu.dot_dimension_numbers<[1], [0], [0], [1], [0, 0, 1, 1], [], []>} : vector<8x128xbf16>, vector<128x512xbf16>, vector<8x512xf32> -> vector<8x512xf32>
    %1160 = arith.addf %1158, %1159 : vector<8x512xf32>
    %1161 = vector.extract_strided_slice %1155 {offsets = [0, 0], sizes = [8, 128], strides = [1, 1]} : vector<8x512xf32> to vector<8x128xf32>
    %1162 = arith.negf %1161 : vector<8x128xf32>
    %1163 = math.exp %1162 : vector<8x128xf32>
    %cst_343 = arith.constant 1.000000e+00 : f32
    %1164 = vector.broadcast %cst_343 : f32 to vector<8x128xf32>
    %1165 = arith.addf %1164, %1163 : vector<8x128xf32>
    %1166 = arith.divf %1164, %1165 : vector<8x128xf32>
    %1167 = vector.extract_strided_slice %1155 {offsets = [0, 128], sizes = [8, 128], strides = [1, 1]} : vector<8x512xf32> to vector<8x128xf32>
    %1168 = arith.negf %1167 : vector<8x128xf32>
    %1169 = math.exp %1168 : vector<8x128xf32>
    %cst_344 = arith.constant 1.000000e+00 : f32
    %1170 = vector.broadcast %cst_344 : f32 to vector<8x128xf32>
    %1171 = arith.addf %1170, %1169 : vector<8x128xf32>
    %1172 = arith.divf %1170, %1171 : vector<8x128xf32>
    %1173 = vector.extract_strided_slice %1155 {offsets = [0, 256], sizes = [8, 128], strides = [1, 1]} : vector<8x512xf32> to vector<8x128xf32>
    %1174 = math.tanh %1173 : vector<8x128xf32>
    %1175 = vector.extract_strided_slice %1155 {offsets = [0, 384], sizes = [8, 128], strides = [1, 1]} : vector<8x512xf32> to vector<8x128xf32>
    %1176 = arith.negf %1175 : vector<8x128xf32>
    %1177 = math.exp %1176 : vector<8x128xf32>
    %cst_345 = arith.constant 1.000000e+00 : f32
    %1178 = vector.broadcast %cst_345 : f32 to vector<8x128xf32>
    %1179 = arith.addf %1178, %1177 : vector<8x128xf32>
    %1180 = arith.divf %1178, %1179 : vector<8x128xf32>
    %1181 = arith.mulf %1172, %1112 : vector<8x128xf32>
    %1182 = arith.mulf %1166, %1174 : vector<8x128xf32>
    %1183 = arith.addf %1181, %1182 : vector<8x128xf32>
    %1184 = math.tanh %1183 : vector<8x128xf32>
    %1185 = arith.mulf %1180, %1184 : vector<8x128xf32>
    %1186 = vector.extract_strided_slice %1160 {offsets = [0, 0], sizes = [8, 128], strides = [1, 1]} : vector<8x512xf32> to vector<8x128xf32>
    %1187 = arith.negf %1186 : vector<8x128xf32>
    %1188 = math.exp %1187 : vector<8x128xf32>
    %cst_346 = arith.constant 1.000000e+00 : f32
    %1189 = vector.broadcast %cst_346 : f32 to vector<8x128xf32>
    %1190 = arith.addf %1189, %1188 : vector<8x128xf32>
    %1191 = arith.divf %1189, %1190 : vector<8x128xf32>
    %1192 = vector.extract_strided_slice %1160 {offsets = [0, 128], sizes = [8, 128], strides = [1, 1]} : vector<8x512xf32> to vector<8x128xf32>
    %1193 = arith.negf %1192 : vector<8x128xf32>
    %1194 = math.exp %1193 : vector<8x128xf32>
    %cst_347 = arith.constant 1.000000e+00 : f32
    %1195 = vector.broadcast %cst_347 : f32 to vector<8x128xf32>
    %1196 = arith.addf %1195, %1194 : vector<8x128xf32>
    %1197 = arith.divf %1195, %1196 : vector<8x128xf32>
    %1198 = vector.extract_strided_slice %1160 {offsets = [0, 256], sizes = [8, 128], strides = [1, 1]} : vector<8x512xf32> to vector<8x128xf32>
    %1199 = math.tanh %1198 : vector<8x128xf32>
    %1200 = vector.extract_strided_slice %1160 {offsets = [0, 384], sizes = [8, 128], strides = [1, 1]} : vector<8x512xf32> to vector<8x128xf32>
    %1201 = arith.negf %1200 : vector<8x128xf32>
    %1202 = math.exp %1201 : vector<8x128xf32>
    %cst_348 = arith.constant 1.000000e+00 : f32
    %1203 = vector.broadcast %cst_348 : f32 to vector<8x128xf32>
    %1204 = arith.addf %1203, %1202 : vector<8x128xf32>
    %1205 = arith.divf %1203, %1204 : vector<8x128xf32>
    %1206 = arith.mulf %1197, %1137 : vector<8x128xf32>
    %1207 = arith.mulf %1191, %1199 : vector<8x128xf32>
    %1208 = arith.addf %1206, %1207 : vector<8x128xf32>
    %1209 = math.tanh %1208 : vector<8x128xf32>
    %1210 = arith.mulf %1205, %1209 : vector<8x128xf32>
    %1211 = arith.index_cast %c7_i32_335 : i32 to index
    %c0_349 = arith.constant 0 : index
    %c0_350 = arith.constant 0 : index
    %1212 = vector.load %arg19[%1211, %c0_349, %c0_350] : memref<8x8x128xf32, #tpu.memory_space<vmem>>, vector<1x8x128xf32>
    %1213 = vector.shape_cast %1212 : vector<1x8x128xf32> to vector<8x128xf32>
    %1214 = vector.shape_cast %1185 : vector<8x128xf32> to vector<1x8x128xf32>
    tpu.vector_store %arg19[%1211, %c0_349, %c0_350], %1214 {strides = array<i32>} : memref<8x8x128xf32, #tpu.memory_space<vmem>>, vector<1x8x128xf32>,
    %1215 = arith.index_cast %1150 : i32 to index
    %c0_351 = arith.constant 0 : index
    %c0_352 = arith.constant 0 : index
    %1216 = vector.load %arg20[%1215, %c0_351, %c0_352] : memref<8x8x128xf32, #tpu.memory_space<vmem>>, vector<1x8x128xf32>
    %1217 = vector.shape_cast %1216 : vector<1x8x128xf32> to vector<8x128xf32>
    %1218 = vector.shape_cast %1210 : vector<8x128xf32> to vector<1x8x128xf32>
    tpu.vector_store %arg20[%1215, %c0_351, %c0_352], %1218 {strides = array<i32>} : memref<8x8x128xf32, #tpu.memory_space<vmem>>, vector<1x8x128xf32>,
    %1219 = arith.truncf %1185 : vector<8x128xf32> to vector<8x128xbf16>
    %1220 = arith.truncf %1210 : vector<8x128xf32> to vector<8x128xbf16>
    %c8_i32_353 = arith.constant 8 : i32
    %c0_354 = arith.constant 0 : index
    %c0_355 = arith.constant 0 : index
    %c0_356 = arith.constant 0 : index
    %1221 = vector.load %arg19[%c0_354, %c0_355, %c0_356] : memref<8x8x128xf32, #tpu.memory_space<vmem>>, vector<8x8x128xf32>
    %1222 = vector.shape_cast %1221 : vector<8x8x128xf32> to vector<64x128xf32>
    %1223 = arith.truncf %1222 : vector<64x128xf32> to vector<64x128xbf16>
    %c0_357 = arith.constant 0 : index
    %c0_358 = arith.constant 0 : index
    %c0_359 = arith.constant 0 : index
    %1224 = vector.load %arg20[%c0_357, %c0_358, %c0_359] : memref<8x8x128xf32, #tpu.memory_space<vmem>>, vector<8x8x128xf32>
    %1225 = vector.shape_cast %1224 : vector<8x8x128xf32> to vector<64x128xf32>
    %1226 = arith.truncf %1225 : vector<64x128xf32> to vector<64x128xbf16>
    %c0_360 = arith.constant 0 : index
    %c0_361 = arith.constant 0 : index
    %1227 = vector.load %arg8[%c0_360, %c0_361] : memref<256x128xbf16, #tpu.memory_space<vmem>>, vector<256x128xbf16>
    %1228 = vector.extract_strided_slice %1227 {offsets = [0, 0], sizes = [128, 128], strides = [1, 1]} : vector<256x128xbf16> to vector<128x128xbf16>
    %cst_362 = arith.constant dense<0.000000e+00> : vector<64x128xf32>
    %1229 = tpu.matmul %1223, %1228, %cst_362 {dimension_numbers = #tpu.dot_dimension_numbers<[1], [0], [0], [1], [0, 0, 1, 1], [], []>} : vector<64x128xbf16>, vector<128x128xbf16>, vector<64x128xf32> -> vector<64x128xf32>
    %1230 = vector.extract_strided_slice %1227 {offsets = [128, 0], sizes = [128, 128], strides = [1, 1]} : vector<256x128xbf16> to vector<128x128xbf16>
    %cst_363 = arith.constant dense<0.000000e+00> : vector<64x128xf32>
    %1231 = tpu.matmul %1226, %1230, %cst_363 {dimension_numbers = #tpu.dot_dimension_numbers<[1], [0], [0], [1], [0, 0, 1, 1], [], []>} : vector<64x128xbf16>, vector<128x128xbf16>, vector<64x128xf32> -> vector<64x128xf32>
    %1232 = arith.addf %1229, %1231 : vector<64x128xf32>
    %c0_364 = arith.constant 0 : index
    %c0_365 = arith.constant 0 : index
    %1233 = vector.load %arg9[%c0_364, %c0_365] : memref<1x128xbf16, #tpu.memory_space<vmem>>, vector<1x128xbf16>
    %1234 = arith.extf %1233 : vector<1x128xbf16> to vector<1x128xf32>
    %1235 = vector.broadcast %1234 : vector<1x128xf32> to vector<64x128xf32>
    %1236 = arith.addf %1232, %1235 : vector<64x128xf32>
    %cst_366 = arith.constant 0.000000e+00 : f32
    %1237 = vector.broadcast %cst_366 : f32 to vector<64x128xf32>
    %1238 = arith.maximumf %1236, %1237 : vector<64x128xf32>
    %1239 = arith.truncf %1238 : vector<64x128xf32> to vector<64x128xbf16>
    %c0_367 = arith.constant 0 : index
    %c0_368 = arith.constant 0 : index
    %1240 = vector.load %arg10[%c0_367, %c0_368] : memref<128x128xbf16, #tpu.memory_space<vmem>>, vector<128x128xbf16>
    %cst_369 = arith.constant dense<0.000000e+00> : vector<64x128xf32>
    %1241 = tpu.matmul %1239, %1240, %cst_369 {dimension_numbers = #tpu.dot_dimension_numbers<[1], [0], [0], [1], [0, 0, 1, 1], [], []>} : vector<64x128xbf16>, vector<128x128xbf16>, vector<64x128xf32> -> vector<64x128xf32>
    %c0_370 = arith.constant 0 : index
    %c0_371 = arith.constant 0 : index
    %1242 = vector.load %arg11[%c0_370, %c0_371] : memref<1x128xbf16, #tpu.memory_space<vmem>>, vector<1x128xbf16>
    %1243 = arith.extf %1242 : vector<1x128xbf16> to vector<1x128xf32>
    %1244 = vector.broadcast %1243 : vector<1x128xf32> to vector<64x128xf32>
    %1245 = arith.addf %1241, %1244 : vector<64x128xf32>
    %cst_372 = arith.constant 0.000000e+00 : f32
    %1246 = vector.broadcast %cst_372 : f32 to vector<64x128xf32>
    %1247 = arith.maximumf %1245, %1246 : vector<64x128xf32>
    %1248 = arith.truncf %1247 : vector<64x128xf32> to vector<64x128xbf16>
    %c0_373 = arith.constant 0 : index
    %c0_374 = arith.constant 0 : index
    %1249 = vector.load %arg12[%c0_373, %c0_374] : memref<128x128xbf16, #tpu.memory_space<vmem>>, vector<128x128xbf16>
    %cst_375 = arith.constant dense<0.000000e+00> : vector<64x128xf32>
    %1250 = tpu.matmul %1248, %1249, %cst_375 {dimension_numbers = #tpu.dot_dimension_numbers<[1], [0], [0], [1], [0, 0, 1, 1], [], []>} : vector<64x128xbf16>, vector<128x128xbf16>, vector<64x128xf32> -> vector<64x128xf32>
    %c0_376 = arith.constant 0 : index
    %c0_377 = arith.constant 0 : index
    %1251 = vector.load %arg13[%c0_376, %c0_377] : memref<1x128xbf16, #tpu.memory_space<vmem>>, vector<1x128xbf16>
    %1252 = arith.extf %1251 : vector<1x128xbf16> to vector<1x128xf32>
    %1253 = vector.broadcast %1252 : vector<1x128xf32> to vector<64x128xf32>
    %1254 = arith.addf %1250, %1253 : vector<64x128xf32>
    %1255 = vector.extract_strided_slice %1254 {offsets = [0, 0], sizes = [8, 128], strides = [1, 1]} : vector<64x128xf32> to vector<8x128xf32>
    %1256 = vector.extract_strided_slice %1254 {offsets = [8, 0], sizes = [8, 128], strides = [1, 1]} : vector<64x128xf32> to vector<8x128xf32>
    %1257 = arith.addf %1255, %1256 : vector<8x128xf32>
    %1258 = vector.extract_strided_slice %1254 {offsets = [16, 0], sizes = [8, 128], strides = [1, 1]} : vector<64x128xf32> to vector<8x128xf32>
    %1259 = arith.addf %1257, %1258 : vector<8x128xf32>
    %1260 = vector.extract_strided_slice %1254 {offsets = [24, 0], sizes = [8, 128], strides = [1, 1]} : vector<64x128xf32> to vector<8x128xf32>
    %1261 = arith.addf %1259, %1260 : vector<8x128xf32>
    %1262 = vector.extract_strided_slice %1254 {offsets = [32, 0], sizes = [8, 128], strides = [1, 1]} : vector<64x128xf32> to vector<8x128xf32>
    %1263 = arith.addf %1261, %1262 : vector<8x128xf32>
    %1264 = vector.extract_strided_slice %1254 {offsets = [40, 0], sizes = [8, 128], strides = [1, 1]} : vector<64x128xf32> to vector<8x128xf32>
    %1265 = arith.addf %1263, %1264 : vector<8x128xf32>
    %1266 = vector.extract_strided_slice %1254 {offsets = [48, 0], sizes = [8, 128], strides = [1, 1]} : vector<64x128xf32> to vector<8x128xf32>
    %1267 = arith.addf %1265, %1266 : vector<8x128xf32>
    %1268 = vector.extract_strided_slice %1254 {offsets = [56, 0], sizes = [8, 128], strides = [1, 1]} : vector<64x128xf32> to vector<8x128xf32>
    %1269 = arith.addf %1267, %1268 : vector<8x128xf32>
    %c0_378 = arith.constant 0 : index
    %c0_379 = arith.constant 0 : index
    %1270 = vector.load %arg14[%c0_378, %c0_379] : memref<8x128xf32, #tpu.memory_space<vmem>>, vector<8x128xf32>
    tpu.vector_store %arg14[%c0_378, %c0_379], %1269 {strides = array<i32>} : memref<8x128xf32, #tpu.memory_space<vmem>>, vector<8x128xf32>,
    return
  }
}

</mosaic_0001>

<llo_original>
// kernel: discriminator_forward.1
$region0: #{discriminator_forward.1}
  #allocation0 [shape = 'u32[]', space=smem, size = 0x4, offset = 0x4, fixed_abs, tag = 'smem constant byte address 0x4 - core index']
  #allocation1 [shape = 'u32[144,128]{1,0:T(1,128)}', space=vmem, size = 0x12000, scoped, tag = 'internal scratch']
  #allocation2 [shape = 'f32[8,8,512]{2,1,0:T(8,128)}', space=vmem, size = 0x20000, scoped, tag = 'scratch operand']
  #allocation3 [shape = 'f32[8,8,512]{2,1,0:T(8,128)}', space=vmem, size = 0x20000, scoped, tag = 'scratch operand']
  #allocation4 [shape = 'f32[8,8,128]{2,1,0:T(8,128)}', space=vmem, size = 0x8000, scoped, tag = 'scratch operand']
  #allocation5 [shape = 'f32[8,8,128]{2,1,0:T(8,128)}', space=vmem, size = 0x8000, scoped, tag = 'scratch operand']
  #allocation6 [shape = 'f32[8,8,128]{2,1,0:T(8,128)}', space=vmem, size = 0x8000, scoped, tag = 'scratch operand']
  #allocation7 [shape = 'f32[8,8,128]{2,1,0:T(8,128)}', space=vmem, size = 0x8000, scoped, tag = 'scratch operand']
  %s0 = inlined_call_operand.vmem [shape: bf16[64,128], index: 0, kind: input, shape index: {}]
  %s1 = inlined_call_operand.vmem [shape: bf16[128,512], index: 1, kind: input, shape index: {}]
  %s2 = inlined_call_operand.vmem [shape: bf16[1,512], index: 2, kind: input, shape index: {}]
  %s3 = inlined_call_operand.vmem [shape: bf16[512,256], index: 3, kind: input, shape index: {}]
  %s4 = inlined_call_operand.vmem [shape: bf16[1,256], index: 4, kind: input, shape index: {}]
  %s5 = inlined_call_operand.vmem [shape: bf16[4,256,512], index: 5, kind: input, shape index: {}]
  %s6 = inlined_call_operand.vmem [shape: bf16[4,128,512], index: 6, kind: input, shape index: {}]
  %s7 = inlined_call_operand.vmem [shape: bf16[4,1,512], index: 7, kind: input, shape index: {}]
  %s8 = inlined_call_operand.vmem [shape: bf16[256,128], index: 8, kind: input, shape index: {}]
  %s9 = inlined_call_operand.vmem [shape: bf16[1,128], index: 9, kind: input, shape index: {}]
  %s10 = inlined_call_operand.vmem [shape: bf16[128,128], index: 10, kind: input, shape index: {}]
  %s11 = inlined_call_operand.vmem [shape: bf16[1,128], index: 11, kind: input, shape index: {}]
  %s12 = inlined_call_operand.vmem [shape: bf16[128,128], index: 12, kind: input, shape index: {}]
  %s13 = inlined_call_operand.vmem [shape: bf16[1,128], index: 13, kind: input, shape index: {}]
  %s14 = inlined_call_operand.vmem [shape: f32[8,128], index: 14, kind: output, shape index: {}]
  %s15 = sld [smem:[#allocation0]]
  $region66: #{discriminator_forward.1} parent=0
    _
  %s17 = ssub.s32 1, %s15
  %s18 = scalar_select 0, %s17, %s15
  // Predicated region
  $region2: #{discriminator_forward.1} parent=0 // pred_check
    _
  $region3: #{discriminator_forward.1} parent=0 // pred_check_branch
    %20 = sbr.rel (0) target = $region5
  $region4: #{discriminator_forward.1} parent=0 // pred_region
    _
  $region5: #{discriminator_forward.1} parent=0 // pred_fallthru
    _
  // Predicated region
  $region6: #{discriminator_forward.1} parent=0 // pred_check
    _
  $region7: #{discriminator_forward.1} parent=0 // pred_check_branch
    %22 = sbr.rel (0) target = $region9
  $region8: #{discriminator_forward.1} parent=0 // pred_region
    _
  $region9: #{discriminator_forward.1} parent=0 // pred_fallthru
    _
  // Predicated region
  $region10: #{discriminator_forward.1} parent=0 // pred_check
    _
  $region11: #{discriminator_forward.1} parent=0 // pred_check_branch
    %24 = sbr.rel (0) target = $region13
  $region12: #{discriminator_forward.1} parent=0 // pred_region
    _
  $region13: #{discriminator_forward.1} parent=0 // pred_fallthru
    _
  // Predicated region
  $region14: #{discriminator_forward.1} parent=0 // pred_check
    _
  $region15: #{discriminator_forward.1} parent=0 // pred_check_branch
    %26 = sbr.rel (0) target = $region17
  $region16: #{discriminator_forward.1} parent=0 // pred_region
    _
  $region17: #{discriminator_forward.1} parent=0 // pred_fallthru
    _
  // Predicated region
  $region18: #{discriminator_forward.1} parent=0 // pred_check
    _
  $region19: #{discriminator_forward.1} parent=0 // pred_check_branch
    %28 = sbr.rel (0) target = $region21
  $region20: #{discriminator_forward.1} parent=0 // pred_region
    _
  $region21: #{discriminator_forward.1} parent=0 // pred_fallthru
    _
  // Predicated region
  $region22: #{discriminator_forward.1} parent=0 // pred_check
    _
  $region23: #{discriminator_forward.1} parent=0 // pred_check_branch
    %30 = sbr.rel (0) target = $region25
  $region24: #{discriminator_forward.1} parent=0 // pred_region
    _
  $region25: #{discriminator_forward.1} parent=0 // pred_fallthru
    _
  // Predicated region
  $region26: #{discriminator_forward.1} parent=0 // pred_check
    _
  $region27: #{discriminator_forward.1} parent=0 // pred_check_branch
    %32 = sbr.rel (0) target = $region29
  $region28: #{discriminator_forward.1} parent=0 // pred_region
    _
  $region29: #{discriminator_forward.1} parent=0 // pred_fallthru
    _
  // Predicated region
  $region30: #{discriminator_forward.1} parent=0 // pred_check
    _
  $region31: #{discriminator_forward.1} parent=0 // pred_check_branch
    %34 = sbr.rel (0) target = $region33
  $region32: #{discriminator_forward.1} parent=0 // pred_region
    _
  $region33: #{discriminator_forward.1} parent=0 // pred_fallthru
    _
  // Predicated region
  $region34: #{discriminator_forward.1} parent=0 // pred_check
    _
  $region35: #{discriminator_forward.1} parent=0 // pred_check_branch
    %36 = sbr.rel (0) target = $region37
  $region36: #{discriminator_forward.1} parent=0 // pred_region
    _
  $region37: #{discriminator_forward.1} parent=0 // pred_fallthru
    _
  // Predicated region
  $region38: #{discriminator_forward.1} parent=0 // pred_check
    _
  $region39: #{discriminator_forward.1} parent=0 // pred_check_branch
    %38 = sbr.rel (0) target = $region41
  $region40: #{discriminator_forward.1} parent=0 // pred_region
    _
  $region41: #{discriminator_forward.1} parent=0 // pred_fallthru
    _
  // Predicated region
  $region42: #{discriminator_forward.1} parent=0 // pred_check
    _
  $region43: #{discriminator_forward.1} parent=0 // pred_check_branch
    %40 = sbr.rel (0) target = $region45
  $region44: #{discriminator_forward.1} parent=0 // pred_region
    _
  $region45: #{discriminator_forward.1} parent=0 // pred_fallthru
    _
  // Predicated region
  $region46: #{discriminator_forward.1} parent=0 // pred_check
    _
  $region47: #{discriminator_forward.1} parent=0 // pred_check_branch
    %42 = sbr.rel (0) target = $region49
  $region48: #{discriminator_forward.1} parent=0 // pred_region
    _
  $region49: #{discriminator_forward.1} parent=0 // pred_fallthru
    _
  // Predicated region
  $region50: #{discriminator_forward.1} parent=0 // pred_check
    _
  $region51: #{discriminator_forward.1} parent=0 // pred_check_branch
    %44 = sbr.rel (0) target = $region53
  $region52: #{discriminator_forward.1} parent=0 // pred_region
    _
  $region53: #{discriminator_forward.1} parent=0 // pred_fallthru
    _
  // Predicated region
  $region54: #{discriminator_forward.1} parent=0 // pred_check
    _
  $region55: #{discriminator_forward.1} parent=0 // pred_check_branch
    %46 = sbr.rel (0) target = $region57
  $region56: #{discriminator_forward.1} parent=0 // pred_region
    _
  $region57: #{discriminator_forward.1} parent=0 // pred_fallthru
    _
  %v48 = vld [vmem:[%s0] sm:$0xf]
  %v49 = vld [vmem:[%s0 + $0x4] sm:$0xf]
  %v50 = vld [vmem:[%s0 + $0x8] sm:$0xf]
  %v51 = vld [vmem:[%s0 + $0xc] sm:$0xf]
  %v52 = vld [vmem:[%s0 + $0x10] sm:$0xf]
  %v53 = vld [vmem:[%s0 + $0x14] sm:$0xf]
  %v54 = vld [vmem:[%s0 + $0x18] sm:$0xf]
  %v55 = vld [vmem:[%s0 + $0x1c] sm:$0xf]
  %v56 = vld [vmem:[%s1] sm:$0xff]
  %v57 = vld [vmem:[%s1 + $0x8] sm:$0xff]
  %v58 = vld [vmem:[%s1 + $0x10] sm:$0xff]
  %v59 = vld [vmem:[%s1 + $0x18] sm:$0xff]
  %v60 = vld [vmem:[%s1 + $0x20] sm:$0xff]
  %v61 = vld [vmem:[%s1 + $0x28] sm:$0xff]
  %v62 = vld [vmem:[%s1 + $0x30] sm:$0xff]
  %v63 = vld [vmem:[%s1 + $0x38] sm:$0xff]
  %v64 = vld [vmem:[%s1 + $0x40] sm:$0xff]
  %v65 = vld [vmem:[%s1 + $0x48] sm:$0xff]
  %v66 = vld [vmem:[%s1 + $0x50] sm:$0xff]
  %v67 = vld [vmem:[%s1 + $0x58] sm:$0xff]
  %v68 = vld [vmem:[%s1 + $0x60] sm:$0xff]
  %v69 = vld [vmem:[%s1 + $0x68] sm:$0xff]
  %v70 = vld [vmem:[%s1 + $0x70] sm:$0xff]
  %v71 = vld [vmem:[%s1 + $0x78] sm:$0xff]
  %v72 = vld [vmem:[%s1 + $0x80] sm:$0xff]
  %v73 = vld [vmem:[%s1 + $0x88] sm:$0xff]
  %v74 = vld [vmem:[%s1 + $0x90] sm:$0xff]
  %v75 = vld [vmem:[%s1 + $0x98] sm:$0xff]
  %v76 = vld [vmem:[%s1 + $0xa0] sm:$0xff]
  %v77 = vld [vmem:[%s1 + $0xa8] sm:$0xff]
  %v78 = vld [vmem:[%s1 + $0xb0] sm:$0xff]
  %v79 = vld [vmem:[%s1 + $0xb8] sm:$0xff]
  %v80 = vld [vmem:[%s1 + $0xc0] sm:$0xff]
  %v81 = vld [vmem:[%s1 + $0xc8] sm:$0xff]
  %v82 = vld [vmem:[%s1 + $0xd0] sm:$0xff]
  %v83 = vld [vmem:[%s1 + $0xd8] sm:$0xff]
  %v84 = vld [vmem:[%s1 + $0xe0] sm:$0xff]
  %v85 = vld [vmem:[%s1 + $0xe8] sm:$0xff]
  %v86 = vld [vmem:[%s1 + $0xf0] sm:$0xff]
  %v87 = vld [vmem:[%s1 + $0xf8] sm:$0xff]
  %v88 = vld [vmem:[%s2] sm:$0xf]
  %v89 = vunpack.c.l.bf16 %v88
  %v91 = vlaneseq
  %v92 = vshrl.u32 %v91, 7
  %v93 = vsub.s32 0, %v92
  %v94 = vrot.slane %v89, %v93
  %v95 = vlaneseq
  %v96 = vshrl.u32 %v95, 7
  %v97 = vsub.s32 2, %v96
  %v98 = vrot.slane %v89, %v97
  %v99 = vlaneseq
  %v100 = vshrl.u32 %v99, 7
  %v101 = vsub.s32 4, %v100
  %v102 = vrot.slane %v89, %v101
  %v103 = vlaneseq
  %v104 = vshrl.u32 %v103, 7
  %v105 = vsub.s32 6, %v104
  %v106 = vrot.slane %v89, %v105
  %v111 = vlaneseq
  %v112 = vshrl.u32 %v111, 7
  %v113 = vsub.s32 0, %v112
  %v114 = vrot.slane %v94, %v113
  %v115 = vlaneseq
  %v116 = vshrl.u32 %v115, 7
  %v117 = vsub.s32 0, %v116
  %v118 = vrot.slane %v98, %v117
  %v119 = vlaneseq
  %v120 = vshrl.u32 %v119, 7
  %v121 = vsub.s32 0, %v120
  %v122 = vrot.slane %v102, %v121
  %v123 = vlaneseq
  %v124 = vshrl.u32 %v123, 7
  %v125 = vsub.s32 0, %v124
  %v126 = vrot.slane %v106, %v125
  %v135 = vunpack.c.l.b16 %v48
  %v136 = vunpack.c.l.b16 %v49
  %v137 = vunpack.c.l.b16 %v50
  %v138 = vunpack.c.l.b16 %v51
  %v139 = vunpack.c.l.b16 %v52
  %v140 = vunpack.c.l.b16 %v53
  %v141 = vunpack.c.l.b16 %v54
  %v142 = vunpack.c.l.b16 %v55
  %v143 = vpack.c.b16 %v136, %v135
  %v144 = vpack.c.b16 %v138, %v137
  %v145 = vpack.c.b16 %v140, %v139
  %v146 = vpack.c.b16 %v142, %v141
  %v183 = vunpack.c.l.b16 %v56
  %v184 = vunpack.c.h.b16 %v56
  %v185 = vunpack.c.l.b16 %v57
  %v186 = vunpack.c.h.b16 %v57
  %v187 = vunpack.c.l.b16 %v58
  %v188 = vunpack.c.h.b16 %v58
  %v189 = vunpack.c.l.b16 %v59
  %v190 = vunpack.c.h.b16 %v59
  %v191 = vunpack.c.l.b16 %v60
  %v192 = vunpack.c.h.b16 %v60
  %v193 = vunpack.c.l.b16 %v61
  %v194 = vunpack.c.h.b16 %v61
  %v195 = vunpack.c.l.b16 %v62
  %v196 = vunpack.c.h.b16 %v62
  %v197 = vunpack.c.l.b16 %v63
  %v198 = vunpack.c.h.b16 %v63
  %v199 = vunpack.c.l.b16 %v64
  %v200 = vunpack.c.h.b16 %v64
  %v201 = vunpack.c.l.b16 %v65
  %v202 = vunpack.c.h.b16 %v65
  %v203 = vunpack.c.l.b16 %v66
  %v204 = vunpack.c.h.b16 %v66
  %v205 = vunpack.c.l.b16 %v67
  %v206 = vunpack.c.h.b16 %v67
  %v207 = vunpack.c.l.b16 %v68
  %v208 = vunpack.c.h.b16 %v68
  %v209 = vunpack.c.l.b16 %v69
  %v210 = vunpack.c.h.b16 %v69
  %v211 = vunpack.c.l.b16 %v70
  %v212 = vunpack.c.h.b16 %v70
  %v213 = vunpack.c.l.b16 %v71
  %v214 = vunpack.c.h.b16 %v71
  %v215 = vunpack.c.l.b16 %v72
  %v216 = vunpack.c.h.b16 %v72
  %v217 = vunpack.c.l.b16 %v73
  %v218 = vunpack.c.h.b16 %v73
  %v219 = vunpack.c.l.b16 %v74
  %v220 = vunpack.c.h.b16 %v74
  %v221 = vunpack.c.l.b16 %v75
  %v222 = vunpack.c.h.b16 %v75
  %v223 = vunpack.c.l.b16 %v76
  %v224 = vunpack.c.h.b16 %v76
  %v225 = vunpack.c.l.b16 %v77
  %v226 = vunpack.c.h.b16 %v77
  %v227 = vunpack.c.l.b16 %v78
  %v228 = vunpack.c.h.b16 %v78
  %v229 = vunpack.c.l.b16 %v79
  %v230 = vunpack.c.h.b16 %v79
  %v231 = vunpack.c.l.b16 %v80
  %v232 = vunpack.c.h.b16 %v80
  %v233 = vunpack.c.l.b16 %v81
  %v234 = vunpack.c.h.b16 %v81
  %v235 = vunpack.c.l.b16 %v82
  %v236 = vunpack.c.h.b16 %v82
  %v237 = vunpack.c.l.b16 %v83
  %v238 = vunpack.c.h.b16 %v83
  %v239 = vunpack.c.l.b16 %v84
  %v240 = vunpack.c.h.b16 %v84
  %v241 = vunpack.c.l.b16 %v85
  %v242 = vunpack.c.h.b16 %v85
  %v243 = vunpack.c.l.b16 %v86
  %v244 = vunpack.c.h.b16 %v86
  %v245 = vunpack.c.l.b16 %v87
  %v246 = vunpack.c.h.b16 %v87
  %v247 = vpack.c.b16 %v187, %v183
  %v248 = vpack.c.b16 %v188, %v184
  %v249 = vpack.c.b16 %v189, %v185
  %v250 = vpack.c.b16 %v190, %v186
  %v251 = vpack.c.b16 %v195, %v191
  %v252 = vpack.c.b16 %v196, %v192
  %v253 = vpack.c.b16 %v197, %v193
  %v254 = vpack.c.b16 %v198, %v194
  %v255 = vpack.c.b16 %v203, %v199
  %v256 = vpack.c.b16 %v204, %v200
  %v257 = vpack.c.b16 %v205, %v201
  %v258 = vpack.c.b16 %v206, %v202
  %v259 = vpack.c.b16 %v211, %v207
  %v260 = vpack.c.b16 %v212, %v208
  %v261 = vpack.c.b16 %v213, %v209
  %v262 = vpack.c.b16 %v214, %v210
  %v263 = vpack.c.b16 %v219, %v215
  %v264 = vpack.c.b16 %v220, %v216
  %v265 = vpack.c.b16 %v221, %v217
  %v266 = vpack.c.b16 %v222, %v218
  %v267 = vpack.c.b16 %v227, %v223
  %v268 = vpack.c.b16 %v228, %v224
  %v269 = vpack.c.b16 %v229, %v225
  %v270 = vpack.c.b16 %v230, %v226
  %v271 = vpack.c.b16 %v235, %v231
  %v272 = vpack.c.b16 %v236, %v232
  %v273 = vpack.c.b16 %v237, %v233
  %v274 = vpack.c.b16 %v238, %v234
  %v275 = vpack.c.b16 %v243, %v239
  %v276 = vpack.c.b16 %v244, %v240
  %v277 = vpack.c.b16 %v245, %v241
  %v278 = vpack.c.b16 %v246, %v242
  %311 = vmatprep.subr.bf16.mxu0 %v248
  %312 = vmatpush1.bf16.msra.mxu0 %v247
  %313 = vmatprep.subr.bf16.mxu0 %v252
  %314 = vmatpush1.bf16.msra.mxu0 %v251
  %315 = vmatprep.subr.bf16.mxu0 %v256
  %316 = vmatpush1.bf16.msra.mxu0 %v255
  %317 = vmatprep.subr.bf16.mxu0 %v260
  %318 = vmatpush1.bf16.msra.mxu0 %v259
  %319 = vmatprep.subr.bf16.mxu0 %v264
  %320 = vmatpush1.bf16.msra.mxu0 %v263
  %321 = vmatprep.subr.bf16.mxu0 %v268
  %322 = vmatpush1.bf16.msra.mxu0 %v267
  %323 = vmatprep.subr.bf16.mxu0 %v272
  %324 = vmatpush1.bf16.msra.mxu0 %v271
  %325 = vmatprep.subr.bf16.mxu0 %v276
  %326 = vmatpush1.bf16.msra.mxu0 %v275
  %327 = vmatprep.subr.bf16.mxu0 0
  %328 = vmatpush1.bf16.msra.mxu0 0
  %329 = vmatprep.subr.bf16.mxu0 0
  %330 = vmatpush1.bf16.msra.mxu0 0
  %331 = vmatprep.subr.bf16.mxu0 0
  %332 = vmatpush1.bf16.msra.mxu0 0
  %333 = vmatprep.subr.bf16.mxu0 0
  %334 = vmatpush1.bf16.msra.mxu0 0
  %335 = vmatprep.subr.bf16.mxu0 0
  %336 = vmatpush1.bf16.msra.mxu0 0
  %337 = vmatprep.subr.bf16.mxu0 0
  %338 = vmatpush1.bf16.msra.mxu0 0
  %339 = vmatprep.subr.bf16.mxu0 0
  %340 = vmatpush1.bf16.msra.mxu0 0
  %341 = vmatprep.subr.bf16.mxu0 0
  %342 = vmatpush1.bf16.msra.mxu0 0
  %343 = vmatprep.mubr.bf16.mxu0 0
  %344 = vmatmul.mubr.bf16.gmra.mrb[0].mxu0 %v143
  %v345 = vpop.f32.mrb[0].mxu0
  %v346 = vadd.f32 %v114, %v345
  %v347 = vpop.f32.mrb[0].mxu0
  %v348 = vadd.f32 %v118, %v347
  %v349 = vpop.f32.mrb[0].mxu0
  %v350 = vadd.f32 %v114, %v349
  %v351 = vpop.f32.mrb[0].mxu0
  %v352 = vadd.f32 %v118, %v351
  %353 = vmatprep.mubr.bf16.mxu0 0
  %354 = vmatmul.mubr.bf16.gmra.mrb[0].mxu0 %v144
  %v355 = vpop.f32.mrb[0].mxu0
  %v356 = vadd.f32 %v114, %v355
  %v357 = vpop.f32.mrb[0].mxu0
  %v358 = vadd.f32 %v118, %v357
  %v359 = vpop.f32.mrb[0].mxu0
  %v360 = vadd.f32 %v114, %v359
  %v361 = vpop.f32.mrb[0].mxu0
  %v362 = vadd.f32 %v118, %v361
  %363 = vmatprep.mubr.bf16.mxu0 0
  %364 = vmatmul.mubr.bf16.gmra.mrb[0].mxu0 %v145
  %v365 = vpop.f32.mrb[0].mxu0
  %v366 = vadd.f32 %v114, %v365
  %v367 = vpop.f32.mrb[0].mxu0
  %v368 = vadd.f32 %v118, %v367
  %v369 = vpop.f32.mrb[0].mxu0
  %v370 = vadd.f32 %v114, %v369
  %v371 = vpop.f32.mrb[0].mxu0
  %v372 = vadd.f32 %v118, %v371
  %373 = vmatprep.mubr.bf16.mxu0 0
  %374 = vmatmul.mubr.bf16.gmra.mrb[0].mxu0 %v146
  %v375 = vpop.f32.mrb[0].mxu0
  %v376 = vadd.f32 %v114, %v375
  %v377 = vpop.f32.mrb[0].mxu0
  %v378 = vadd.f32 %v118, %v377
  %v379 = vpop.f32.mrb[0].mxu0
  %v380 = vadd.f32 %v114, %v379
  %v381 = vpop.f32.mrb[0].mxu0
  %v382 = vadd.f32 %v118, %v381
  %383 = vdwg.mxu0
  %384 = vmatprep.subr.bf16.mxu0 %v250
  %385 = vmatpush1.bf16.msra.mxu0 %v249
  %386 = vmatprep.subr.bf16.mxu0 %v254
  %387 = vmatpush1.bf16.msra.mxu0 %v253
  %388 = vmatprep.subr.bf16.mxu0 %v258
  %389 = vmatpush1.bf16.msra.mxu0 %v257
  %390 = vmatprep.subr.bf16.mxu0 %v262
  %391 = vmatpush1.bf16.msra.mxu0 %v261
  %392 = vmatprep.subr.bf16.mxu0 %v266
  %393 = vmatpush1.bf16.msra.mxu0 %v265
  %394 = vmatprep.subr.bf16.mxu0 %v270
  %395 = vmatpush1.bf16.msra.mxu0 %v269
  %396 = vmatprep.subr.bf16.mxu0 %v274
  %397 = vmatpush1.bf16.msra.mxu0 %v273
  %398 = vmatprep.subr.bf16.mxu0 %v278
  %399 = vmatpush1.bf16.msra.mxu0 %v277
  %400 = vmatprep.subr.bf16.mxu0 0
  %401 = vmatpush1.bf16.msra.mxu0 0
  %402 = vmatprep.subr.bf16.mxu0 0
  %403 = vmatpush1.bf16.msra.mxu0 0
  %404 = vmatprep.subr.bf16.mxu0 0
  %405 = vmatpush1.bf16.msra.mxu0 0
  %406 = vmatprep.subr.bf16.mxu0 0
  %407 = vmatpush1.bf16.msra.mxu0 0
  %408 = vmatprep.subr.bf16.mxu0 0
  %409 = vmatpush1.bf16.msra.mxu0 0
  %410 = vmatprep.subr.bf16.mxu0 0
  %411 = vmatpush1.bf16.msra.mxu0 0
  %412 = vmatprep.subr.bf16.mxu0 0
  %413 = vmatpush1.bf16.msra.mxu0 0
  %414 = vmatprep.subr.bf16.mxu0 0
  %415 = vmatpush1.bf16.msra.mxu0 0
  %416 = vmatprep.mubr.bf16.mxu0 0
  %417 = vmatmul.mubr.bf16.gmra.mrb[0].mxu0 %v143
  %v418 = vpop.f32.mrb[0].mxu0
  %v419 = vadd.f32 %v122, %v418
  %v420 = vpop.f32.mrb[0].mxu0
  %v421 = vadd.f32 %v126, %v420
  %v422 = vpop.f32.mrb[0].mxu0
  %v423 = vadd.f32 %v122, %v422
  %v424 = vpop.f32.mrb[0].mxu0
  %v425 = vadd.f32 %v126, %v424
  %426 = vmatprep.mubr.bf16.mxu0 0
  %427 = vmatmul.mubr.bf16.gmra.mrb[0].mxu0 %v144
  %v428 = vpop.f32.mrb[0].mxu0
  %v429 = vadd.f32 %v122, %v428
  %v430 = vpop.f32.mrb[0].mxu0
  %v431 = vadd.f32 %v126, %v430
  %v432 = vpop.f32.mrb[0].mxu0
  %v433 = vadd.f32 %v122, %v432
  %v434 = vpop.f32.mrb[0].mxu0
  %v435 = vadd.f32 %v126, %v434
  %436 = vmatprep.mubr.bf16.mxu0 0
  %437 = vmatmul.mubr.bf16.gmra.mrb[0].mxu0 %v145
  %v438 = vpop.f32.mrb[0].mxu0
  %v439 = vadd.f32 %v122, %v438
  %v440 = vpop.f32.mrb[0].mxu0
  %v441 = vadd.f32 %v126, %v440
  %v442 = vpop.f32.mrb[0].mxu0
  %v443 = vadd.f32 %v122, %v442
  %v444 = vpop.f32.mrb[0].mxu0
  %v445 = vadd.f32 %v126, %v444
  %446 = vmatprep.mubr.bf16.mxu0 0
  %447 = vmatmul.mubr.bf16.gmra.mrb[0].mxu0 %v146
  %v448 = vpop.f32.mrb[0].mxu0
  %v449 = vadd.f32 %v122, %v448
  %v450 = vpop.f32.mrb[0].mxu0
  %v451 = vadd.f32 %v126, %v450
  %v452 = vpop.f32.mrb[0].mxu0
  %v453 = vadd.f32 %v122, %v452
  %v454 = vpop.f32.mrb[0].mxu0
  %v455 = vadd.f32 %v126, %v454
  %456 = vdwg.mxu0
  %v457 = vmax.f32 %v346, 0.0
  %v458 = vmax.f32 %v348, 0.0
  %v459 = vmax.f32 %v419, 0.0
  %v460 = vmax.f32 %v421, 0.0
  %v461 = vmax.f32 %v350, 0.0
  %v462 = vmax.f32 %v352, 0.0
  %v463 = vmax.f32 %v423, 0.0
  %v464 = vmax.f32 %v425, 0.0
  %v465 = vmax.f32 %v356, 0.0
  %v466 = vmax.f32 %v358, 0.0
  %v467 = vmax.f32 %v429, 0.0
  %v468 = vmax.f32 %v431, 0.0
  %v469 = vmax.f32 %v360, 0.0
  %v470 = vmax.f32 %v362, 0.0
  %v471 = vmax.f32 %v433, 0.0
  %v472 = vmax.f32 %v435, 0.0
  %v473 = vmax.f32 %v366, 0.0
  %v474 = vmax.f32 %v368, 0.0
  %v475 = vmax.f32 %v439, 0.0
  %v476 = vmax.f32 %v441, 0.0
  %v477 = vmax.f32 %v370, 0.0
  %v478 = vmax.f32 %v372, 0.0
  %v479 = vmax.f32 %v443, 0.0
  %v480 = vmax.f32 %v445, 0.0
  %v481 = vmax.f32 %v376, 0.0
  %v482 = vmax.f32 %v378, 0.0
  %v483 = vmax.f32 %v449, 0.0
  %v484 = vmax.f32 %v451, 0.0
  %v485 = vmax.f32 %v380, 0.0
  %v486 = vmax.f32 %v382, 0.0
  %v487 = vmax.f32 %v453, 0.0
  %v488 = vmax.f32 %v455, 0.0
  %v489 = vpack.c.bf16 %v461, %v457
  %v490 = vpack.c.bf16 %v462, %v458
  %v491 = vpack.c.bf16 %v463, %v459
  %v492 = vpack.c.bf16 %v464, %v460
  %v493 = vpack.c.bf16 %v469, %v465
  %v494 = vpack.c.bf16 %v470, %v466
  %v495 = vpack.c.bf16 %v471, %v467
  %v496 = vpack.c.bf16 %v472, %v468
  %v497 = vpack.c.bf16 %v477, %v473
  %v498 = vpack.c.bf16 %v478, %v474
  %v499 = vpack.c.bf16 %v479, %v475
  %v500 = vpack.c.bf16 %v480, %v476
  %v501 = vpack.c.bf16 %v485, %v481
  %v502 = vpack.c.bf16 %v486, %v482
  %v503 = vpack.c.bf16 %v487, %v483
  %v504 = vpack.c.bf16 %v488, %v484
  %v505 = vld [vmem:[%s3] sm:$0xff]
  %v506 = vld [vmem:[%s3 + $0x8] sm:$0xff]
  %v507 = vld [vmem:[%s3 + $0x10] sm:$0xff]
  %v508 = vld [vmem:[%s3 + $0x18] sm:$0xff]
  %v509 = vld [vmem:[%s3 + $0x20] sm:$0xff]
  %v510 = vld [vmem:[%s3 + $0x28] sm:$0xff]
  %v511 = vld [vmem:[%s3 + $0x30] sm:$0xff]
  %v512 = vld [vmem:[%s3 + $0x38] sm:$0xff]
  %v513 = vld [vmem:[%s3 + $0x40] sm:$0xff]
  %v514 = vld [vmem:[%s3 + $0x48] sm:$0xff]
  %v515 = vld [vmem:[%s3 + $0x50] sm:$0xff]
  %v516 = vld [vmem:[%s3 + $0x58] sm:$0xff]
  %v517 = vld [vmem:[%s3 + $0x60] sm:$0xff]
  %v518 = vld [vmem:[%s3 + $0x68] sm:$0xff]
  %v519 = vld [vmem:[%s3 + $0x70] sm:$0xff]
  %v520 = vld [vmem:[%s3 + $0x78] sm:$0xff]
  %v521 = vld [vmem:[%s3 + $0x80] sm:$0xff]
  %v522 = vld [vmem:[%s3 + $0x88] sm:$0xff]
  %v523 = vld [vmem:[%s3 + $0x90] sm:$0xff]
  %v524 = vld [vmem:[%s3 + $0x98] sm:$0xff]
  %v525 = vld [vmem:[%s3 + $0xa0] sm:$0xff]
  %v526 = vld [vmem:[%s3 + $0xa8] sm:$0xff]
  %v527 = vld [vmem:[%s3 + $0xb0] sm:$0xff]
  %v528 = vld [vmem:[%s3 + $0xb8] sm:$0xff]
  %v529 = vld [vmem:[%s3 + $0xc0] sm:$0xff]
  %v530 = vld [vmem:[%s3 + $0xc8] sm:$0xff]
  %v531 = vld [vmem:[%s3 + $0xd0] sm:$0xff]
  %v532 = vld [vmem:[%s3 + $0xd8] sm:$0xff]
  %v533 = vld [vmem:[%s3 + $0xe0] sm:$0xff]
  %v534 = vld [vmem:[%s3 + $0xe8] sm:$0xff]
  %v535 = vld [vmem:[%s3 + $0xf0] sm:$0xff]
  %v536 = vld [vmem:[%s3 + $0xf8] sm:$0xff]
  %v537 = vld [vmem:[%s3 + $0x100] sm:$0xff]
  %v538 = vld [vmem:[%s3 + $0x108] sm:$0xff]
  %v539 = vld [vmem:[%s3 + $0x110] sm:$0xff]
  %v540 = vld [vmem:[%s3 + $0x118] sm:$0xff]
  %v541 = vld [vmem:[%s3 + $0x120] sm:$0xff]
  %v542 = vld [vmem:[%s3 + $0x128] sm:$0xff]
  %v543 = vld [vmem:[%s3 + $0x130] sm:$0xff]
  %v544 = vld [vmem:[%s3 + $0x138] sm:$0xff]
  %v545 = vld [vmem:[%s3 + $0x140] sm:$0xff]
  %v546 = vld [vmem:[%s3 + $0x148] sm:$0xff]
  %v547 = vld [vmem:[%s3 + $0x150] sm:$0xff]
  %v548 = vld [vmem:[%s3 + $0x158] sm:$0xff]
  %v549 = vld [vmem:[%s3 + $0x160] sm:$0xff]
  %v550 = vld [vmem:[%s3 + $0x168] sm:$0xff]
  %v551 = vld [vmem:[%s3 + $0x170] sm:$0xff]
  %v552 = vld [vmem:[%s3 + $0x178] sm:$0xff]
  %v553 = vld [vmem:[%s3 + $0x180] sm:$0xff]
  %v554 = vld [vmem:[%s3 + $0x188] sm:$0xff]
  %v555 = vld [vmem:[%s3 + $0x190] sm:$0xff]
  %v556 = vld [vmem:[%s3 + $0x198] sm:$0xff]
  %v557 = vld [vmem:[%s3 + $0x1a0] sm:$0xff]
  %v558 = vld [vmem:[%s3 + $0x1a8] sm:$0xff]
  %v559 = vld [vmem:[%s3 + $0x1b0] sm:$0xff]
  %v560 = vld [vmem:[%s3 + $0x1b8] sm:$0xff]
  %v561 = vld [vmem:[%s3 + $0x1c0] sm:$0xff]
  %v562 = vld [vmem:[%s3 + $0x1c8] sm:$0xff]
  %v563 = vld [vmem:[%s3 + $0x1d0] sm:$0xff]
  %v564 = vld [vmem:[%s3 + $0x1d8] sm:$0xff]
  %v565 = vld [vmem:[%s3 + $0x1e0] sm:$0xff]
  %v566 = vld [vmem:[%s3 + $0x1e8] sm:$0xff]
  %v567 = vld [vmem:[%s3 + $0x1f0] sm:$0xff]
  %v568 = vld [vmem:[%s3 + $0x1f8] sm:$0xff]
  %v569 = vld [vmem:[%s4] sm:$0x3]
  %v570 = vunpack.c.l.bf16 %v569
  %v572 = vlaneseq
  %v573 = vshrl.u32 %v572, 7
  %v574 = vsub.s32 0, %v573
  %v575 = vrot.slane %v570, %v574
  %v576 = vlaneseq
  %v577 = vshrl.u32 %v576, 7
  %v578 = vsub.s32 2, %v577
  %v579 = vrot.slane %v570, %v578
  %v582 = vlaneseq
  %v583 = vshrl.u32 %v582, 7
  %v584 = vsub.s32 0, %v583
  %v585 = vrot.slane %v575, %v584
  %v586 = vlaneseq
  %v587 = vshrl.u32 %v586, 7
  %v588 = vsub.s32 0, %v587
  %v589 = vrot.slane %v579, %v588
  %v654 = vunpack.c.l.b16 %v505
  %v655 = vunpack.c.h.b16 %v505
  %v656 = vunpack.c.l.b16 %v506
  %v657 = vunpack.c.h.b16 %v506
  %v658 = vunpack.c.l.b16 %v507
  %v659 = vunpack.c.h.b16 %v507
  %v660 = vunpack.c.l.b16 %v508
  %v661 = vunpack.c.h.b16 %v508
  %v662 = vunpack.c.l.b16 %v509
  %v663 = vunpack.c.h.b16 %v509
  %v664 = vunpack.c.l.b16 %v510
  %v665 = vunpack.c.h.b16 %v510
  %v666 = vunpack.c.l.b16 %v511
  %v667 = vunpack.c.h.b16 %v511
  %v668 = vunpack.c.l.b16 %v512
  %v669 = vunpack.c.h.b16 %v512
  %v670 = vunpack.c.l.b16 %v513
  %v671 = vunpack.c.h.b16 %v513
  %v672 = vunpack.c.l.b16 %v514
  %v673 = vunpack.c.h.b16 %v514
  %v674 = vunpack.c.l.b16 %v515
  %v675 = vunpack.c.h.b16 %v515
  %v676 = vunpack.c.l.b16 %v516
  %v677 = vunpack.c.h.b16 %v516
  %v678 = vunpack.c.l.b16 %v517
  %v679 = vunpack.c.h.b16 %v517
  %v680 = vunpack.c.l.b16 %v518
  %v681 = vunpack.c.h.b16 %v518
  %v682 = vunpack.c.l.b16 %v519
  %v683 = vunpack.c.h.b16 %v519
  %v684 = vunpack.c.l.b16 %v520
  %v685 = vunpack.c.h.b16 %v520
  %v686 = vunpack.c.l.b16 %v521
  %v687 = vunpack.c.h.b16 %v521
  %v688 = vunpack.c.l.b16 %v522
  %v689 = vunpack.c.h.b16 %v522
  %v690 = vunpack.c.l.b16 %v523
  %v691 = vunpack.c.h.b16 %v523
  %v692 = vunpack.c.l.b16 %v524
  %v693 = vunpack.c.h.b16 %v524
  %v694 = vunpack.c.l.b16 %v525
  %v695 = vunpack.c.h.b16 %v525
  %v696 = vunpack.c.l.b16 %v526
  %v697 = vunpack.c.h.b16 %v526
  %v698 = vunpack.c.l.b16 %v527
  %v699 = vunpack.c.h.b16 %v527
  %v700 = vunpack.c.l.b16 %v528
  %v701 = vunpack.c.h.b16 %v528
  %v702 = vunpack.c.l.b16 %v529
  %v703 = vunpack.c.h.b16 %v529
  %v704 = vunpack.c.l.b16 %v530
  %v705 = vunpack.c.h.b16 %v530
  %v706 = vunpack.c.l.b16 %v531
  %v707 = vunpack.c.h.b16 %v531
  %v708 = vunpack.c.l.b16 %v532
  %v709 = vunpack.c.h.b16 %v532
  %v710 = vunpack.c.l.b16 %v533
  %v711 = vunpack.c.h.b16 %v533
  %v712 = vunpack.c.l.b16 %v534
  %v713 = vunpack.c.h.b16 %v534
  %v714 = vunpack.c.l.b16 %v535
  %v715 = vunpack.c.h.b16 %v535
  %v716 = vunpack.c.l.b16 %v536
  %v717 = vunpack.c.h.b16 %v536
  %v718 = vunpack.c.l.b16 %v537
  %v719 = vunpack.c.h.b16 %v537
  %v720 = vunpack.c.l.b16 %v538
  %v721 = vunpack.c.h.b16 %v538
  %v722 = vunpack.c.l.b16 %v539
  %v723 = vunpack.c.h.b16 %v539
  %v724 = vunpack.c.l.b16 %v540
  %v725 = vunpack.c.h.b16 %v540
  %v726 = vunpack.c.l.b16 %v541
  %v727 = vunpack.c.h.b16 %v541
  %v728 = vunpack.c.l.b16 %v542
  %v729 = vunpack.c.h.b16 %v542
  %v730 = vunpack.c.l.b16 %v543
  %v731 = vunpack.c.h.b16 %v543
  %v732 = vunpack.c.l.b16 %v544
  %v733 = vunpack.c.h.b16 %v544
  %v734 = vunpack.c.l.b16 %v545
  %v735 = vunpack.c.h.b16 %v545
  %v736 = vunpack.c.l.b16 %v546
  %v737 = vunpack.c.h.b16 %v546
  %v738 = vunpack.c.l.b16 %v547
  %v739 = vunpack.c.h.b16 %v547
  %v740 = vunpack.c.l.b16 %v548
  %v741 = vunpack.c.h.b16 %v548
  %v742 = vunpack.c.l.b16 %v549
  %v743 = vunpack.c.h.b16 %v549
  %v744 = vunpack.c.l.b16 %v550
  %v745 = vunpack.c.h.b16 %v550
  %v746 = vunpack.c.l.b16 %v551
  %v747 = vunpack.c.h.b16 %v551
  %v748 = vunpack.c.l.b16 %v552
  %v749 = vunpack.c.h.b16 %v552
  %v750 = vunpack.c.l.b16 %v553
  %v751 = vunpack.c.h.b16 %v553
  %v752 = vunpack.c.l.b16 %v554
  %v753 = vunpack.c.h.b16 %v554
  %v754 = vunpack.c.l.b16 %v555
  %v755 = vunpack.c.h.b16 %v555
  %v756 = vunpack.c.l.b16 %v556
  %v757 = vunpack.c.h.b16 %v556
  %v758 = vunpack.c.l.b16 %v557
  %v759 = vunpack.c.h.b16 %v557
  %v760 = vunpack.c.l.b16 %v558
  %v761 = vunpack.c.h.b16 %v558
  %v762 = vunpack.c.l.b16 %v559
  %v763 = vunpack.c.h.b16 %v559
  %v764 = vunpack.c.l.b16 %v560
  %v765 = vunpack.c.h.b16 %v560
  %v766 = vunpack.c.l.b16 %v561
  %v767 = vunpack.c.h.b16 %v561
  %v768 = vunpack.c.l.b16 %v562
  %v769 = vunpack.c.h.b16 %v562
  %v770 = vunpack.c.l.b16 %v563
  %v771 = vunpack.c.h.b16 %v563
  %v772 = vunpack.c.l.b16 %v564
  %v773 = vunpack.c.h.b16 %v564
  %v774 = vunpack.c.l.b16 %v565
  %v775 = vunpack.c.h.b16 %v565
  %v776 = vunpack.c.l.b16 %v566
  %v777 = vunpack.c.h.b16 %v566
  %v778 = vunpack.c.l.b16 %v567
  %v779 = vunpack.c.h.b16 %v567
  %v780 = vunpack.c.l.b16 %v568
  %v781 = vunpack.c.h.b16 %v568
  %v782 = vpack.c.b16 %v656, %v654
  %v783 = vpack.c.b16 %v657, %v655
  %v784 = vpack.c.b16 %v660, %v658
  %v785 = vpack.c.b16 %v661, %v659
  %v786 = vpack.c.b16 %v664, %v662
  %v787 = vpack.c.b16 %v665, %v663
  %v788 = vpack.c.b16 %v668, %v666
  %v789 = vpack.c.b16 %v669, %v667
  %v790 = vpack.c.b16 %v672, %v670
  %v791 = vpack.c.b16 %v673, %v671
  %v792 = vpack.c.b16 %v676, %v674
  %v793 = vpack.c.b16 %v677, %v675
  %v794 = vpack.c.b16 %v680, %v678
  %v795 = vpack.c.b16 %v681, %v679
  %v796 = vpack.c.b16 %v684, %v682
  %v797 = vpack.c.b16 %v685, %v683
  %v798 = vpack.c.b16 %v688, %v686
  %v799 = vpack.c.b16 %v689, %v687
  %v800 = vpack.c.b16 %v692, %v690
  %v801 = vpack.c.b16 %v693, %v691
  %v802 = vpack.c.b16 %v696, %v694
  %v803 = vpack.c.b16 %v697, %v695
  %v804 = vpack.c.b16 %v700, %v698
  %v805 = vpack.c.b16 %v701, %v699
  %v806 = vpack.c.b16 %v704, %v702
  %v807 = vpack.c.b16 %v705, %v703
  %v808 = vpack.c.b16 %v708, %v706
  %v809 = vpack.c.b16 %v709, %v707
  %v810 = vpack.c.b16 %v712, %v710
  %v811 = vpack.c.b16 %v713, %v711
  %v812 = vpack.c.b16 %v716, %v714
  %v813 = vpack.c.b16 %v717, %v715
  %v814 = vpack.c.b16 %v720, %v718
  %v815 = vpack.c.b16 %v721, %v719
  %v816 = vpack.c.b16 %v724, %v722
  %v817 = vpack.c.b16 %v725, %v723
  %v818 = vpack.c.b16 %v728, %v726
  %v819 = vpack.c.b16 %v729, %v727
  %v820 = vpack.c.b16 %v732, %v730
  %v821 = vpack.c.b16 %v733, %v731
  %v822 = vpack.c.b16 %v736, %v734
  %v823 = vpack.c.b16 %v737, %v735
  %v824 = vpack.c.b16 %v740, %v738
  %v825 = vpack.c.b16 %v741, %v739
  %v826 = vpack.c.b16 %v744, %v742
  %v827 = vpack.c.b16 %v745, %v743
  %v828 = vpack.c.b16 %v748, %v746
  %v829 = vpack.c.b16 %v749, %v747
  %v830 = vpack.c.b16 %v752, %v750
  %v831 = vpack.c.b16 %v753, %v751
  %v832 = vpack.c.b16 %v756, %v754
  %v833 = vpack.c.b16 %v757, %v755
  %v834 = vpack.c.b16 %v760, %v758
  %v835 = vpack.c.b16 %v761, %v759
  %v836 = vpack.c.b16 %v764, %v762
  %v837 = vpack.c.b16 %v765, %v763
  %v838 = vpack.c.b16 %v768, %v766
  %v839 = vpack.c.b16 %v769, %v767
  %v840 = vpack.c.b16 %v772, %v770
  %v841 = vpack.c.b16 %v773, %v771
  %v842 = vpack.c.b16 %v776, %v774
  %v843 = vpack.c.b16 %v777, %v775
  %v844 = vpack.c.b16 %v780, %v778
  %v845 = vpack.c.b16 %v781, %v779
  %910 = vmatprep.subr.bf16.mxu0 %v783
  %911 = vmatpush1.bf16.msra.mxu0 %v782
  %912 = vmatprep.subr.bf16.mxu0 %v785
  %913 = vmatpush1.bf16.msra.mxu0 %v784
  %914 = vmatprep.subr.bf16.mxu0 %v787
  %915 = vmatpush1.bf16.msra.mxu0 %v786
  %916 = vmatprep.subr.bf16.mxu0 %v789
  %917 = vmatpush1.bf16.msra.mxu0 %v788
  %918 = vmatprep.subr.bf16.mxu0 %v791
  %919 = vmatpush1.bf16.msra.mxu0 %v790
  %920 = vmatprep.subr.bf16.mxu0 %v793
  %921 = vmatpush1.bf16.msra.mxu0 %v792
  %922 = vmatprep.subr.bf16.mxu0 %v795
  %923 = vmatpush1.bf16.msra.mxu0 %v794
  %924 = vmatprep.subr.bf16.mxu0 %v797
  %925 = vmatpush1.bf16.msra.mxu0 %v796
  %926 = vmatprep.subr.bf16.mxu0 %v799
  %927 = vmatpush1.bf16.msra.mxu0 %v798
  %928 = vmatprep.subr.bf16.mxu0 %v801
  %929 = vmatpush1.bf16.msra.mxu0 %v800
  %930 = vmatprep.subr.bf16.mxu0 %v803
  %931 = vmatpush1.bf16.msra.mxu0 %v802
  %932 = vmatprep.subr.bf16.mxu0 %v805
  %933 = vmatpush1.bf16.msra.mxu0 %v804
  %934 = vmatprep.subr.bf16.mxu0 %v807
  %935 = vmatpush1.bf16.msra.mxu0 %v806
  %936 = vmatprep.subr.bf16.mxu0 %v809
  %937 = vmatpush1.bf16.msra.mxu0 %v808
  %938 = vmatprep.subr.bf16.mxu0 %v811
  %939 = vmatpush1.bf16.msra.mxu0 %v810
  %940 = vmatprep.subr.bf16.mxu0 %v813
  %941 = vmatpush1.bf16.msra.mxu0 %v812
  %942 = vmatprep.mubr.bf16.mxu0 %v490
  %943 = vmatmul.mubr.bf16.gmra.mrb[0].mxu0 %v489
  %v944 = vpop.f32.mrb[0].mxu0
  %v945 = vadd.f32 %v585, %v944
  %v946 = vpop.f32.mrb[0].mxu0
  %v947 = vadd.f32 %v589, %v946
  %v948 = vpop.f32.mrb[0].mxu0
  %v949 = vadd.f32 %v585, %v948
  %v950 = vpop.f32.mrb[0].mxu0
  %v951 = vadd.f32 %v589, %v950
  %952 = vmatprep.mubr.bf16.mxu0 %v494
  %953 = vmatmul.mubr.bf16.gmra.mrb[0].mxu0 %v493
  %v954 = vpop.f32.mrb[0].mxu0
  %v955 = vadd.f32 %v585, %v954
  %v956 = vpop.f32.mrb[0].mxu0
  %v957 = vadd.f32 %v589, %v956
  %v958 = vpop.f32.mrb[0].mxu0
  %v959 = vadd.f32 %v585, %v958
  %v960 = vpop.f32.mrb[0].mxu0
  %v961 = vadd.f32 %v589, %v960
  %962 = vmatprep.mubr.bf16.mxu0 %v498
  %963 = vmatmul.mubr.bf16.gmra.mrb[0].mxu0 %v497
  %v964 = vpop.f32.mrb[0].mxu0
  %v965 = vadd.f32 %v585, %v964
  %v966 = vpop.f32.mrb[0].mxu0
  %v967 = vadd.f32 %v589, %v966
  %v968 = vpop.f32.mrb[0].mxu0
  %v969 = vadd.f32 %v585, %v968
  %v970 = vpop.f32.mrb[0].mxu0
  %v971 = vadd.f32 %v589, %v970
  %972 = vmatprep.mubr.bf16.mxu0 %v502
  %973 = vmatmul.mubr.bf16.gmra.mrb[0].mxu0 %v501
  %v974 = vpop.f32.mrb[0].mxu0
  %v975 = vadd.f32 %v585, %v974
  %v976 = vpop.f32.mrb[0].mxu0
  %v977 = vadd.f32 %v589, %v976
  %v978 = vpop.f32.mrb[0].mxu0
  %v979 = vadd.f32 %v585, %v978
  %v980 = vpop.f32.mrb[0].mxu0
  %v981 = vadd.f32 %v589, %v980
  %982 = vdwg.mxu0
  %983 = vmatprep.subr.bf16.mxu0 %v815
  %984 = vmatpush1.bf16.msra.mxu0 %v814
  %985 = vmatprep.subr.bf16.mxu0 %v817
  %986 = vmatpush1.bf16.msra.mxu0 %v816
  %987 = vmatprep.subr.bf16.mxu0 %v819
  %988 = vmatpush1.bf16.msra.mxu0 %v818
  %989 = vmatprep.subr.bf16.mxu0 %v821
  %990 = vmatpush1.bf16.msra.mxu0 %v820
  %991 = vmatprep.subr.bf16.mxu0 %v823
  %992 = vmatpush1.bf16.msra.mxu0 %v822
  %993 = vmatprep.subr.bf16.mxu0 %v825
  %994 = vmatpush1.bf16.msra.mxu0 %v824
  %995 = vmatprep.subr.bf16.mxu0 %v827
  %996 = vmatpush1.bf16.msra.mxu0 %v826
  %997 = vmatprep.subr.bf16.mxu0 %v829
  %998 = vmatpush1.bf16.msra.mxu0 %v828
  %999 = vmatprep.subr.bf16.mxu0 %v831
  %1000 = vmatpush1.bf16.msra.mxu0 %v830
  %1001 = vmatprep.subr.bf16.mxu0 %v833
  %1002 = vmatpush1.bf16.msra.mxu0 %v832
  %1003 = vmatprep.subr.bf16.mxu0 %v835
  %1004 = vmatpush1.bf16.msra.mxu0 %v834
  %1005 = vmatprep.subr.bf16.mxu0 %v837
  %1006 = vmatpush1.bf16.msra.mxu0 %v836
  %1007 = vmatprep.subr.bf16.mxu0 %v839
  %1008 = vmatpush1.bf16.msra.mxu0 %v838
  %1009 = vmatprep.subr.bf16.mxu0 %v841
  %1010 = vmatpush1.bf16.msra.mxu0 %v840
  %1011 = vmatprep.subr.bf16.mxu0 %v843
  %1012 = vmatpush1.bf16.msra.mxu0 %v842
  %1013 = vmatprep.subr.bf16.mxu0 %v845
  %1014 = vmatpush1.bf16.msra.mxu0 %v844
  %1015 = vmatprep.mubr.bf16.mxu0 %v492
  %1016 = vmatmul.mubr.bf16.gmra.mrb[0].mxu0 %v491
  %v1017 = vpop.f32.mrb[0].mxu0
  %v1018 = vadd.f32 %v945, %v1017
  %v1019 = vpop.f32.mrb[0].mxu0
  %v1020 = vadd.f32 %v947, %v1019
  %v1021 = vpop.f32.mrb[0].mxu0
  %v1022 = vadd.f32 %v949, %v1021
  %v1023 = vpop.f32.mrb[0].mxu0
  %v1024 = vadd.f32 %v951, %v1023
  %1025 = vmatprep.mubr.bf16.mxu0 %v496
  %1026 = vmatmul.mubr.bf16.gmra.mrb[0].mxu0 %v495
  %v1027 = vpop.f32.mrb[0].mxu0
  %v1028 = vadd.f32 %v955, %v1027
  %v1029 = vpop.f32.mrb[0].mxu0
  %v1030 = vadd.f32 %v957, %v1029
  %v1031 = vpop.f32.mrb[0].mxu0
  %v1032 = vadd.f32 %v959, %v1031
  %v1033 = vpop.f32.mrb[0].mxu0
  %v1034 = vadd.f32 %v961, %v1033
  %1035 = vmatprep.mubr.bf16.mxu0 %v500
  %1036 = vmatmul.mubr.bf16.gmra.mrb[0].mxu0 %v499
  %v1037 = vpop.f32.mrb[0].mxu0
  %v1038 = vadd.f32 %v965, %v1037
  %v1039 = vpop.f32.mrb[0].mxu0
  %v1040 = vadd.f32 %v967, %v1039
  %v1041 = vpop.f32.mrb[0].mxu0
  %v1042 = vadd.f32 %v969, %v1041
  %v1043 = vpop.f32.mrb[0].mxu0
  %v1044 = vadd.f32 %v971, %v1043
  %1045 = vmatprep.mubr.bf16.mxu0 %v504
  %1046 = vmatmul.mubr.bf16.gmra.mrb[0].mxu0 %v503
  %v1047 = vpop.f32.mrb[0].mxu0
  %v1048 = vadd.f32 %v975, %v1047
  %v1049 = vpop.f32.mrb[0].mxu0
  %v1050 = vadd.f32 %v977, %v1049
  %v1051 = vpop.f32.mrb[0].mxu0
  %v1052 = vadd.f32 %v979, %v1051
  %v1053 = vpop.f32.mrb[0].mxu0
  %v1054 = vadd.f32 %v981, %v1053
  %1055 = vdwg.mxu0
  %v1056 = vmax.f32 %v1018, 0.0
  %v1057 = vmax.f32 %v1020, 0.0
  %v1058 = vmax.f32 %v1022, 0.0
  %v1059 = vmax.f32 %v1024, 0.0
  %v1060 = vmax.f32 %v1028, 0.0
  %v1061 = vmax.f32 %v1030, 0.0
  %v1062 = vmax.f32 %v1032, 0.0
  %v1063 = vmax.f32 %v1034, 0.0
  %v1064 = vmax.f32 %v1038, 0.0
  %v1065 = vmax.f32 %v1040, 0.0
  %v1066 = vmax.f32 %v1042, 0.0
  %v1067 = vmax.f32 %v1044, 0.0
  %v1068 = vmax.f32 %v1048, 0.0
  %v1069 = vmax.f32 %v1050, 0.0
  %v1070 = vmax.f32 %v1052, 0.0
  %v1071 = vmax.f32 %v1054, 0.0
  %v1072 = vpack.c.bf16 %v1058, %v1056
  %v1073 = vpack.c.bf16 %v1059, %v1057
  %v1074 = vpack.c.bf16 %v1062, %v1060
  %v1075 = vpack.c.bf16 %v1063, %v1061
  %v1076 = vpack.c.bf16 %v1066, %v1064
  %v1077 = vpack.c.bf16 %v1067, %v1065
  %v1078 = vpack.c.bf16 %v1070, %v1068
  %v1079 = vpack.c.bf16 %v1071, %v1069
  %v1080 = vld [vmem:[%s5] sm:$0xff]
  %v1081 = vld [vmem:[%s5 + $0x8] sm:$0xff]
  %v1082 = vld [vmem:[%s5 + $0x10] sm:$0xff]
  %v1083 = vld [vmem:[%s5 + $0x18] sm:$0xff]
  %v1084 = vld [vmem:[%s5 + $0x20] sm:$0xff]
  %v1085 = vld [vmem:[%s5 + $0x28] sm:$0xff]
  %v1086 = vld [vmem:[%s5 + $0x30] sm:$0xff]
  %v1087 = vld [vmem:[%s5 + $0x38] sm:$0xff]
  %v1088 = vld [vmem:[%s5 + $0x40] sm:$0xff]
  %v1089 = vld [vmem:[%s5 + $0x48] sm:$0xff]
  %v1090 = vld [vmem:[%s5 + $0x50] sm:$0xff]
  %v1091 = vld [vmem:[%s5 + $0x58] sm:$0xff]
  %v1092 = vld [vmem:[%s5 + $0x60] sm:$0xff]
  %v1093 = vld [vmem:[%s5 + $0x68] sm:$0xff]
  %v1094 = vld [vmem:[%s5 + $0x70] sm:$0xff]
  %v1095 = vld [vmem:[%s5 + $0x78] sm:$0xff]
  %v1096 = vld [vmem:[%s5 + $0x80] sm:$0xff]
  %v1097 = vld [vmem:[%s5 + $0x88] sm:$0xff]
  %v1098 = vld [vmem:[%s5 + $0x90] sm:$0xff]
  %v1099 = vld [vmem:[%s5 + $0x98] sm:$0xff]
  %v1100 = vld [vmem:[%s5 + $0xa0] sm:$0xff]
  %v1101 = vld [vmem:[%s5 + $0xa8] sm:$0xff]
  %v1102 = vld [vmem:[%s5 + $0xb0] sm:$0xff]
  %v1103 = vld [vmem:[%s5 + $0xb8] sm:$0xff]
  %v1104 = vld [vmem:[%s5 + $0xc0] sm:$0xff]
  %v1105 = vld [vmem:[%s5 + $0xc8] sm:$0xff]
  %v1106 = vld [vmem:[%s5 + $0xd0] sm:$0xff]
  %v1107 = vld [vmem:[%s5 + $0xd8] sm:$0xff]
  %v1108 = vld [vmem:[%s5 + $0xe0] sm:$0xff]
  %v1109 = vld [vmem:[%s5 + $0xe8] sm:$0xff]
  %v1110 = vld [vmem:[%s5 + $0xf0] sm:$0xff]
  %v1111 = vld [vmem:[%s5 + $0xf8] sm:$0xff]
  %v1112 = vld [vmem:[%s5 + $0x100] sm:$0xff]
  %v1113 = vld [vmem:[%s5 + $0x108] sm:$0xff]
  %v1114 = vld [vmem:[%s5 + $0x110] sm:$0xff]
  %v1115 = vld [vmem:[%s5 + $0x118] sm:$0xff]
  %v1116 = vld [vmem:[%s5 + $0x120] sm:$0xff]
  %v1117 = vld [vmem:[%s5 + $0x128] sm:$0xff]
  %v1118 = vld [vmem:[%s5 + $0x130] sm:$0xff]
  %v1119 = vld [vmem:[%s5 + $0x138] sm:$0xff]
  %v1120 = vld [vmem:[%s5 + $0x140] sm:$0xff]
  %v1121 = vld [vmem:[%s5 + $0x148] sm:$0xff]
  %v1122 = vld [vmem:[%s5 + $0x150] sm:$0xff]
  %v1123 = vld [vmem:[%s5 + $0x158] sm:$0xff]
  %v1124 = vld [vmem:[%s5 + $0x160] sm:$0xff]
  %v1125 = vld [vmem:[%s5 + $0x168] sm:$0xff]
  %v1126 = vld [vmem:[%s5 + $0x170] sm:$0xff]
  %v1127 = vld [vmem:[%s5 + $0x178] sm:$0xff]
  %v1128 = vld [vmem:[%s5 + $0x180] sm:$0xff]
  %v1129 = vld [vmem:[%s5 + $0x188] sm:$0xff]
  %v1130 = vld [vmem:[%s5 + $0x190] sm:$0xff]
  %v1131 = vld [vmem:[%s5 + $0x198] sm:$0xff]
  %v1132 = vld [vmem:[%s5 + $0x1a0] sm:$0xff]
  %v1133 = vld [vmem:[%s5 + $0x1a8] sm:$0xff]
  %v1134 = vld [vmem:[%s5 + $0x1b0] sm:$0xff]
  %v1135 = vld [vmem:[%s5 + $0x1b8] sm:$0xff]
  %v1136 = vld [vmem:[%s5 + $0x1c0] sm:$0xff]
  %v1137 = vld [vmem:[%s5 + $0x1c8] sm:$0xff]
  %v1138 = vld [vmem:[%s5 + $0x1d0] sm:$0xff]
  %v1139 = vld [vmem:[%s5 + $0x1d8] sm:$0xff]
  %v1140 = vld [vmem:[%s5 + $0x1e0] sm:$0xff]
  %v1141 = vld [vmem:[%s5 + $0x1e8] sm:$0xff]
  %v1142 = vld [vmem:[%s5 + $0x1f0] sm:$0xff]
  %v1143 = vld [vmem:[%s5 + $0x1f8] sm:$0xff]
  %s1144 = scalar_lea.vmem %s5, 512
  %v1145 = vld [vmem:[%s1144] sm:$0xff]
  %v1146 = vld [vmem:[%s1144 + $0x8] sm:$0xff]
  %v1147 = vld [vmem:[%s1144 + $0x10] sm:$0xff]
  %v1148 = vld [vmem:[%s1144 + $0x18] sm:$0xff]
  %v1149 = vld [vmem:[%s1144 + $0x20] sm:$0xff]
  %v1150 = vld [vmem:[%s1144 + $0x28] sm:$0xff]
  %v1151 = vld [vmem:[%s1144 + $0x30] sm:$0xff]
  %v1152 = vld [vmem:[%s1144 + $0x38] sm:$0xff]
  %v1153 = vld [vmem:[%s1144 + $0x40] sm:$0xff]
  %v1154 = vld [vmem:[%s1144 + $0x48] sm:$0xff]
  %v1155 = vld [vmem:[%s1144 + $0x50] sm:$0xff]
  %v1156 = vld [vmem:[%s1144 + $0x58] sm:$0xff]
  %v1157 = vld [vmem:[%s1144 + $0x60] sm:$0xff]
  %v1158 = vld [vmem:[%s1144 + $0x68] sm:$0xff]
  %v1159 = vld [vmem:[%s1144 + $0x70] sm:$0xff]
  %v1160 = vld [vmem:[%s1144 + $0x78] sm:$0xff]
  %v1161 = vld [vmem:[%s1144 + $0x80] sm:$0xff]
  %v1162 = vld [vmem:[%s1144 + $0x88] sm:$0xff]
  %v1163 = vld [vmem:[%s1144 + $0x90] sm:$0xff]
  %v1164 = vld [vmem:[%s1144 + $0x98] sm:$0xff]
  %v1165 = vld [vmem:[%s1144 + $0xa0] sm:$0xff]
  %v1166 = vld [vmem:[%s1144 + $0xa8] sm:$0xff]
  %v1167 = vld [vmem:[%s1144 + $0xb0] sm:$0xff]
  %v1168 = vld [vmem:[%s1144 + $0xb8] sm:$0xff]
  %v1169 = vld [vmem:[%s1144 + $0xc0] sm:$0xff]
  %v1170 = vld [vmem:[%s1144 + $0xc8] sm:$0xff]
  %v1171 = vld [vmem:[%s1144 + $0xd0] sm:$0xff]
  %v1172 = vld [vmem:[%s1144 + $0xd8] sm:$0xff]
  %v1173 = vld [vmem:[%s1144 + $0xe0] sm:$0xff]
  %v1174 = vld [vmem:[%s1144 + $0xe8] sm:$0xff]
  %v1175 = vld [vmem:[%s1144 + $0xf0] sm:$0xff]
  %v1176 = vld [vmem:[%s1144 + $0xf8] sm:$0xff]
  %v1177 = vld [vmem:[%s1144 + $0x100] sm:$0xff]
  %v1178 = vld [vmem:[%s1144 + $0x108] sm:$0xff]
  %v1179 = vld [vmem:[%s1144 + $0x110] sm:$0xff]
  %v1180 = vld [vmem:[%s1144 + $0x118] sm:$0xff]
  %v1181 = vld [vmem:[%s1144 + $0x120] sm:$0xff]
  %v1182 = vld [vmem:[%s1144 + $0x128] sm:$0xff]
  %v1183 = vld [vmem:[%s1144 + $0x130] sm:$0xff]
  %v1184 = vld [vmem:[%s1144 + $0x138] sm:$0xff]
  %v1185 = vld [vmem:[%s1144 + $0x140] sm:$0xff]
  %v1186 = vld [vmem:[%s1144 + $0x148] sm:$0xff]
  %v1187 = vld [vmem:[%s1144 + $0x150] sm:$0xff]
  %v1188 = vld [vmem:[%s1144 + $0x158] sm:$0xff]
  %v1189 = vld [vmem:[%s1144 + $0x160] sm:$0xff]
  %v1190 = vld [vmem:[%s1144 + $0x168] sm:$0xff]
  %v1191 = vld [vmem:[%s1144 + $0x170] sm:$0xff]
  %v1192 = vld [vmem:[%s1144 + $0x178] sm:$0xff]
  %v1193 = vld [vmem:[%s1144 + $0x180] sm:$0xff]
  %v1194 = vld [vmem:[%s1144 + $0x188] sm:$0xff]
  %v1195 = vld [vmem:[%s1144 + $0x190] sm:$0xff]
  %v1196 = vld [vmem:[%s1144 + $0x198] sm:$0xff]
  %v1197 = vld [vmem:[%s1144 + $0x1a0] sm:$0xff]
  %v1198 = vld [vmem:[%s1144 + $0x1a8] sm:$0xff]
  %v1199 = vld [vmem:[%s1144 + $0x1b0] sm:$0xff]
  %v1200 = vld [vmem:[%s1144 + $0x1b8] sm:$0xff]
  %v1201 = vld [vmem:[%s1144 + $0x1c0] sm:$0xff]
  %v1202 = vld [vmem:[%s1144 + $0x1c8] sm:$0xff]
  %v1203 = vld [vmem:[%s1144 + $0x1d0] sm:$0xff]
  %v1204 = vld [vmem:[%s1144 + $0x1d8] sm:$0xff]
  %v1205 = vld [vmem:[%s1144 + $0x1e0] sm:$0xff]
  %v1206 = vld [vmem:[%s1144 + $0x1e8] sm:$0xff]
  %v1207 = vld [vmem:[%s1144 + $0x1f0] sm:$0xff]
  %v1208 = vld [vmem:[%s1144 + $0x1f8] sm:$0xff]
  %v1209 = vld [vmem:[%s7] sm:$0xf]
  %v1210 = vunpack.c.l.bf16 %v1209
  %s1211 = scalar_lea.vmem %s7, 4
  %v1212 = vld [vmem:[%s1211] sm:$0xf]
  %v1213 = vunpack.c.l.bf16 %v1212
  %v1278 = vunpack.c.l.b16 %v1080
  %v1279 = vunpack.c.h.b16 %v1080
  %v1280 = vunpack.c.l.b16 %v1081
  %v1281 = vunpack.c.h.b16 %v1081
  %v1282 = vunpack.c.l.b16 %v1082
  %v1283 = vunpack.c.h.b16 %v1082
  %v1284 = vunpack.c.l.b16 %v1083
  %v1285 = vunpack.c.h.b16 %v1083
  %v1286 = vunpack.c.l.b16 %v1084
  %v1287 = vunpack.c.h.b16 %v1084
  %v1288 = vunpack.c.l.b16 %v1085
  %v1289 = vunpack.c.h.b16 %v1085
  %v1290 = vunpack.c.l.b16 %v1086
  %v1291 = vunpack.c.h.b16 %v1086
  %v1292 = vunpack.c.l.b16 %v1087
  %v1293 = vunpack.c.h.b16 %v1087
  %v1294 = vunpack.c.l.b16 %v1088
  %v1295 = vunpack.c.h.b16 %v1088
  %v1296 = vunpack.c.l.b16 %v1089
  %v1297 = vunpack.c.h.b16 %v1089
  %v1298 = vunpack.c.l.b16 %v1090
  %v1299 = vunpack.c.h.b16 %v1090
  %v1300 = vunpack.c.l.b16 %v1091
  %v1301 = vunpack.c.h.b16 %v1091
  %v1302 = vunpack.c.l.b16 %v1092
  %v1303 = vunpack.c.h.b16 %v1092
  %v1304 = vunpack.c.l.b16 %v1093
  %v1305 = vunpack.c.h.b16 %v1093
  %v1306 = vunpack.c.l.b16 %v1094
  %v1307 = vunpack.c.h.b16 %v1094
  %v1308 = vunpack.c.l.b16 %v1095
  %v1309 = vunpack.c.h.b16 %v1095
  %v1310 = vunpack.c.l.b16 %v1096
  %v1311 = vunpack.c.h.b16 %v1096
  %v1312 = vunpack.c.l.b16 %v1097
  %v1313 = vunpack.c.h.b16 %v1097
  %v1314 = vunpack.c.l.b16 %v1098
  %v1315 = vunpack.c.h.b16 %v1098
  %v1316 = vunpack.c.l.b16 %v1099
  %v1317 = vunpack.c.h.b16 %v1099
  %v1318 = vunpack.c.l.b16 %v1100
  %v1319 = vunpack.c.h.b16 %v1100
  %v1320 = vunpack.c.l.b16 %v1101
  %v1321 = vunpack.c.h.b16 %v1101
  %v1322 = vunpack.c.l.b16 %v1102
  %v1323 = vunpack.c.h.b16 %v1102
  %v1324 = vunpack.c.l.b16 %v1103
  %v1325 = vunpack.c.h.b16 %v1103
  %v1326 = vunpack.c.l.b16 %v1104
  %v1327 = vunpack.c.h.b16 %v1104
  %v1328 = vunpack.c.l.b16 %v1105
  %v1329 = vunpack.c.h.b16 %v1105
  %v1330 = vunpack.c.l.b16 %v1106
  %v1331 = vunpack.c.h.b16 %v1106
  %v1332 = vunpack.c.l.b16 %v1107
  %v1333 = vunpack.c.h.b16 %v1107
  %v1334 = vunpack.c.l.b16 %v1108
  %v1335 = vunpack.c.h.b16 %v1108
  %v1336 = vunpack.c.l.b16 %v1109
  %v1337 = vunpack.c.h.b16 %v1109
  %v1338 = vunpack.c.l.b16 %v1110
  %v1339 = vunpack.c.h.b16 %v1110
  %v1340 = vunpack.c.l.b16 %v1111
  %v1341 = vunpack.c.h.b16 %v1111
  %v1342 = vunpack.c.l.b16 %v1112
  %v1343 = vunpack.c.h.b16 %v1112
  %v1344 = vunpack.c.l.b16 %v1113
  %v1345 = vunpack.c.h.b16 %v1113
  %v1346 = vunpack.c.l.b16 %v1114
  %v1347 = vunpack.c.h.b16 %v1114
  %v1348 = vunpack.c.l.b16 %v1115
  %v1349 = vunpack.c.h.b16 %v1115
  %v1350 = vunpack.c.l.b16 %v1116
  %v1351 = vunpack.c.h.b16 %v1116
  %v1352 = vunpack.c.l.b16 %v1117
  %v1353 = vunpack.c.h.b16 %v1117
  %v1354 = vunpack.c.l.b16 %v1118
  %v1355 = vunpack.c.h.b16 %v1118
  %v1356 = vunpack.c.l.b16 %v1119
  %v1357 = vunpack.c.h.b16 %v1119
  %v1358 = vunpack.c.l.b16 %v1120
  %v1359 = vunpack.c.h.b16 %v1120
  %v1360 = vunpack.c.l.b16 %v1121
  %v1361 = vunpack.c.h.b16 %v1121
  %v1362 = vunpack.c.l.b16 %v1122
  %v1363 = vunpack.c.h.b16 %v1122
  %v1364 = vunpack.c.l.b16 %v1123
  %v1365 = vunpack.c.h.b16 %v1123
  %v1366 = vunpack.c.l.b16 %v1124
  %v1367 = vunpack.c.h.b16 %v1124
  %v1368 = vunpack.c.l.b16 %v1125
  %v1369 = vunpack.c.h.b16 %v1125
  %v1370 = vunpack.c.l.b16 %v1126
  %v1371 = vunpack.c.h.b16 %v1126
  %v1372 = vunpack.c.l.b16 %v1127
  %v1373 = vunpack.c.h.b16 %v1127
  %v1374 = vunpack.c.l.b16 %v1128
  %v1375 = vunpack.c.h.b16 %v1128
  %v1376 = vunpack.c.l.b16 %v1129
  %v1377 = vunpack.c.h.b16 %v1129
  %v1378 = vunpack.c.l.b16 %v1130
  %v1379 = vunpack.c.h.b16 %v1130
  %v1380 = vunpack.c.l.b16 %v1131
  %v1381 = vunpack.c.h.b16 %v1131
  %v1382 = vunpack.c.l.b16 %v1132
  %v1383 = vunpack.c.h.b16 %v1132
  %v1384 = vunpack.c.l.b16 %v1133
  %v1385 = vunpack.c.h.b16 %v1133
  %v1386 = vunpack.c.l.b16 %v1134
  %v1387 = vunpack.c.h.b16 %v1134
  %v1388 = vunpack.c.l.b16 %v1135
  %v1389 = vunpack.c.h.b16 %v1135
  %v1390 = vunpack.c.l.b16 %v1136
  %v1391 = vunpack.c.h.b16 %v1136
  %v1392 = vunpack.c.l.b16 %v1137
  %v1393 = vunpack.c.h.b16 %v1137
  %v1394 = vunpack.c.l.b16 %v1138
  %v1395 = vunpack.c.h.b16 %v1138
  %v1396 = vunpack.c.l.b16 %v1139
  %v1397 = vunpack.c.h.b16 %v1139
  %v1398 = vunpack.c.l.b16 %v1140
  %v1399 = vunpack.c.h.b16 %v1140
  %v1400 = vunpack.c.l.b16 %v1141
  %v1401 = vunpack.c.h.b16 %v1141
  %v1402 = vunpack.c.l.b16 %v1142
  %v1403 = vunpack.c.h.b16 %v1142
  %v1404 = vunpack.c.l.b16 %v1143
  %v1405 = vunpack.c.h.b16 %v1143
  %v1406 = vpack.c.b16 %v1282, %v1278
  %v1407 = vpack.c.b16 %v1283, %v1279
  %v1408 = vpack.c.b16 %v1284, %v1280
  %v1409 = vpack.c.b16 %v1285, %v1281
  %v1410 = vpack.c.b16 %v1290, %v1286
  %v1411 = vpack.c.b16 %v1291, %v1287
  %v1412 = vpack.c.b16 %v1292, %v1288
  %v1413 = vpack.c.b16 %v1293, %v1289
  %v1414 = vpack.c.b16 %v1298, %v1294
  %v1415 = vpack.c.b16 %v1299, %v1295
  %v1416 = vpack.c.b16 %v1300, %v1296
  %v1417 = vpack.c.b16 %v1301, %v1297
  %v1418 = vpack.c.b16 %v1306, %v1302
  %v1419 = vpack.c.b16 %v1307, %v1303
  %v1420 = vpack.c.b16 %v1308, %v1304
  %v1421 = vpack.c.b16 %v1309, %v1305
  %v1422 = vpack.c.b16 %v1314, %v1310
  %v1423 = vpack.c.b16 %v1315, %v1311
  %v1424 = vpack.c.b16 %v1316, %v1312
  %v1425 = vpack.c.b16 %v1317, %v1313
  %v1426 = vpack.c.b16 %v1322, %v1318
  %v1427 = vpack.c.b16 %v1323, %v1319
  %v1428 = vpack.c.b16 %v1324, %v1320
  %v1429 = vpack.c.b16 %v1325, %v1321
  %v1430 = vpack.c.b16 %v1330, %v1326
  %v1431 = vpack.c.b16 %v1331, %v1327
  %v1432 = vpack.c.b16 %v1332, %v1328
  %v1433 = vpack.c.b16 %v1333, %v1329
  %v1434 = vpack.c.b16 %v1338, %v1334
  %v1435 = vpack.c.b16 %v1339, %v1335
  %v1436 = vpack.c.b16 %v1340, %v1336
  %v1437 = vpack.c.b16 %v1341, %v1337
  %v1438 = vpack.c.b16 %v1346, %v1342
  %v1439 = vpack.c.b16 %v1347, %v1343
  %v1440 = vpack.c.b16 %v1348, %v1344
  %v1441 = vpack.c.b16 %v1349, %v1345
  %v1442 = vpack.c.b16 %v1354, %v1350
  %v1443 = vpack.c.b16 %v1355, %v1351
  %v1444 = vpack.c.b16 %v1356, %v1352
  %v1445 = vpack.c.b16 %v1357, %v1353
  %v1446 = vpack.c.b16 %v1362, %v1358
  %v1447 = vpack.c.b16 %v1363, %v1359
  %v1448 = vpack.c.b16 %v1364, %v1360
  %v1449 = vpack.c.b16 %v1365, %v1361
  %v1450 = vpack.c.b16 %v1370, %v1366
  %v1451 = vpack.c.b16 %v1371, %v1367
  %v1452 = vpack.c.b16 %v1372, %v1368
  %v1453 = vpack.c.b16 %v1373, %v1369
  %v1454 = vpack.c.b16 %v1378, %v1374
  %v1455 = vpack.c.b16 %v1379, %v1375
  %v1456 = vpack.c.b16 %v1380, %v1376
  %v1457 = vpack.c.b16 %v1381, %v1377
  %v1458 = vpack.c.b16 %v1386, %v1382
  %v1459 = vpack.c.b16 %v1387, %v1383
  %v1460 = vpack.c.b16 %v1388, %v1384
  %v1461 = vpack.c.b16 %v1389, %v1385
  %v1462 = vpack.c.b16 %v1394, %v1390
  %v1463 = vpack.c.b16 %v1395, %v1391
  %v1464 = vpack.c.b16 %v1396, %v1392
  %v1465 = vpack.c.b16 %v1397, %v1393
  %v1466 = vpack.c.b16 %v1402, %v1398
  %v1467 = vpack.c.b16 %v1403, %v1399
  %v1468 = vpack.c.b16 %v1404, %v1400
  %v1469 = vpack.c.b16 %v1405, %v1401
  %1534 = vmatprep.subr.bf16.mxu0 %v1407
  %1535 = vmatpush1.bf16.msra.mxu0 %v1406
  %1536 = vmatprep.subr.bf16.mxu0 %v1411
  %1537 = vmatpush1.bf16.msra.mxu0 %v1410
  %1538 = vmatprep.subr.bf16.mxu0 %v1415
  %1539 = vmatpush1.bf16.msra.mxu0 %v1414
  %1540 = vmatprep.subr.bf16.mxu0 %v1419
  %1541 = vmatpush1.bf16.msra.mxu0 %v1418
  %1542 = vmatprep.subr.bf16.mxu0 %v1423
  %1543 = vmatpush1.bf16.msra.mxu0 %v1422
  %1544 = vmatprep.subr.bf16.mxu0 %v1427
  %1545 = vmatpush1.bf16.msra.mxu0 %v1426
  %1546 = vmatprep.subr.bf16.mxu0 %v1431
  %1547 = vmatpush1.bf16.msra.mxu0 %v1430
  %1548 = vmatprep.subr.bf16.mxu0 %v1435
  %1549 = vmatpush1.bf16.msra.mxu0 %v1434
  %1550 = vmatprep.subr.bf16.mxu0 %v1439
  %1551 = vmatpush1.bf16.msra.mxu0 %v1438
  %1552 = vmatprep.subr.bf16.mxu0 %v1443
  %1553 = vmatpush1.bf16.msra.mxu0 %v1442
  %1554 = vmatprep.subr.bf16.mxu0 %v1447
  %1555 = vmatpush1.bf16.msra.mxu0 %v1446
  %1556 = vmatprep.subr.bf16.mxu0 %v1451
  %1557 = vmatpush1.bf16.msra.mxu0 %v1450
  %1558 = vmatprep.subr.bf16.mxu0 %v1455
  %1559 = vmatpush1.bf16.msra.mxu0 %v1454
  %1560 = vmatprep.subr.bf16.mxu0 %v1459
  %1561 = vmatpush1.bf16.msra.mxu0 %v1458
  %1562 = vmatprep.subr.bf16.mxu0 %v1463
  %1563 = vmatpush1.bf16.msra.mxu0 %v1462
  %1564 = vmatprep.subr.bf16.mxu0 %v1467
  %1565 = vmatpush1.bf16.msra.mxu0 %v1466
  %1566 = vmatprep.mubr.bf16.mxu0 %v1073
  %1567 = vmatmul.mubr.bf16.gmra.mrb[0].mxu0 %v1072
  %v1568 = vpop.f32.mrb[0].mxu0
  %v1569 = vadd.f32 0.0, %v1568
  %v1570 = vpop.f32.mrb[0].mxu0
  %v1571 = vadd.f32 0.0, %v1570
  %v1572 = vpop.f32.mrb[0].mxu0
  %v1573 = vadd.f32 0.0, %v1572
  %v1574 = vpop.f32.mrb[0].mxu0
  %v1575 = vadd.f32 0.0, %v1574
  %1576 = vmatprep.mubr.bf16.mxu0 %v1075
  %1577 = vmatmul.mubr.bf16.gmra.mrb[0].mxu0 %v1074
  %v1578 = vpop.f32.mrb[0].mxu0
  %v1579 = vadd.f32 0.0, %v1578
  %v1580 = vpop.f32.mrb[0].mxu0
  %v1581 = vadd.f32 0.0, %v1580
  %v1582 = vpop.f32.mrb[0].mxu0
  %v1583 = vadd.f32 0.0, %v1582
  %v1584 = vpop.f32.mrb[0].mxu0
  %v1585 = vadd.f32 0.0, %v1584
  %1586 = vmatprep.mubr.bf16.mxu0 %v1077
  %1587 = vmatmul.mubr.bf16.gmra.mrb[0].mxu0 %v1076
  %v1588 = vpop.f32.mrb[0].mxu0
  %v1589 = vadd.f32 0.0, %v1588
  %v1590 = vpop.f32.mrb[0].mxu0
  %v1591 = vadd.f32 0.0, %v1590
  %v1592 = vpop.f32.mrb[0].mxu0
  %v1593 = vadd.f32 0.0, %v1592
  %v1594 = vpop.f32.mrb[0].mxu0
  %v1595 = vadd.f32 0.0, %v1594
  %1596 = vmatprep.mubr.bf16.mxu0 %v1079
  %1597 = vmatmul.mubr.bf16.gmra.mrb[0].mxu0 %v1078
  %v1598 = vpop.f32.mrb[0].mxu0
  %v1599 = vadd.f32 0.0, %v1598
  %v1600 = vpop.f32.mrb[0].mxu0
  %v1601 = vadd.f32 0.0, %v1600
  %v1602 = vpop.f32.mrb[0].mxu0
  %v1603 = vadd.f32 0.0, %v1602
  %v1604 = vpop.f32.mrb[0].mxu0
  %v1605 = vadd.f32 0.0, %v1604
  %1606 = vdwg.mxu0
  %1607 = vmatprep.subr.bf16.mxu0 %v1409
  %1608 = vmatpush1.bf16.msra.mxu0 %v1408
  %1609 = vmatprep.subr.bf16.mxu0 %v1413
  %1610 = vmatpush1.bf16.msra.mxu0 %v1412
  %1611 = vmatprep.subr.bf16.mxu0 %v1417
  %1612 = vmatpush1.bf16.msra.mxu0 %v1416
  %1613 = vmatprep.subr.bf16.mxu0 %v1421
  %1614 = vmatpush1.bf16.msra.mxu0 %v1420
  %1615 = vmatprep.subr.bf16.mxu0 %v1425
  %1616 = vmatpush1.bf16.msra.mxu0 %v1424
  %1617 = vmatprep.subr.bf16.mxu0 %v1429
  %1618 = vmatpush1.bf16.msra.mxu0 %v1428
  %1619 = vmatprep.subr.bf16.mxu0 %v1433
  %1620 = vmatpush1.bf16.msra.mxu0 %v1432
  %1621 = vmatprep.subr.bf16.mxu0 %v1437
  %1622 = vmatpush1.bf16.msra.mxu0 %v1436
  %1623 = vmatprep.subr.bf16.mxu0 %v1441
  %1624 = vmatpush1.bf16.msra.mxu0 %v1440
  %1625 = vmatprep.subr.bf16.mxu0 %v1445
  %1626 = vmatpush1.bf16.msra.mxu0 %v1444
  %1627 = vmatprep.subr.bf16.mxu0 %v1449
  %1628 = vmatpush1.bf16.msra.mxu0 %v1448
  %1629 = vmatprep.subr.bf16.mxu0 %v1453
  %1630 = vmatpush1.bf16.msra.mxu0 %v1452
  %1631 = vmatprep.subr.bf16.mxu0 %v1457
  %1632 = vmatpush1.bf16.msra.mxu0 %v1456
  %1633 = vmatprep.subr.bf16.mxu0 %v1461
  %1634 = vmatpush1.bf16.msra.mxu0 %v1460
  %1635 = vmatprep.subr.bf16.mxu0 %v1465
  %1636 = vmatpush1.bf16.msra.mxu0 %v1464
  %1637 = vmatprep.subr.bf16.mxu0 %v1469
  %1638 = vmatpush1.bf16.msra.mxu0 %v1468
  %1639 = vmatprep.mubr.bf16.mxu0 %v1073
  %1640 = vmatmul.mubr.bf16.gmra.mrb[0].mxu0 %v1072
  %v1641 = vpop.f32.mrb[0].mxu0
  %v1642 = vadd.f32 0.0, %v1641
  %v1643 = vpop.f32.mrb[0].mxu0
  %v1644 = vadd.f32 0.0, %v1643
  %v1645 = vpop.f32.mrb[0].mxu0
  %v1646 = vadd.f32 0.0, %v1645
  %v1647 = vpop.f32.mrb[0].mxu0
  %v1648 = vadd.f32 0.0, %v1647
  %1649 = vmatprep.mubr.bf16.mxu0 %v1075
  %1650 = vmatmul.mubr.bf16.gmra.mrb[0].mxu0 %v1074
  %v1651 = vpop.f32.mrb[0].mxu0
  %v1652 = vadd.f32 0.0, %v1651
  %v1653 = vpop.f32.mrb[0].mxu0
  %v1654 = vadd.f32 0.0, %v1653
  %v1655 = vpop.f32.mrb[0].mxu0
  %v1656 = vadd.f32 0.0, %v1655
  %v1657 = vpop.f32.mrb[0].mxu0
  %v1658 = vadd.f32 0.0, %v1657
  %1659 = vmatprep.mubr.bf16.mxu0 %v1077
  %1660 = vmatmul.mubr.bf16.gmra.mrb[0].mxu0 %v1076
  %v1661 = vpop.f32.mrb[0].mxu0
  %v1662 = vadd.f32 0.0, %v1661
  %v1663 = vpop.f32.mrb[0].mxu0
  %v1664 = vadd.f32 0.0, %v1663
  %v1665 = vpop.f32.mrb[0].mxu0
  %v1666 = vadd.f32 0.0, %v1665
  %v1667 = vpop.f32.mrb[0].mxu0
  %v1668 = vadd.f32 0.0, %v1667
  %1669 = vmatprep.mubr.bf16.mxu0 %v1079
  %1670 = vmatmul.mubr.bf16.gmra.mrb[0].mxu0 %v1078
  %v1671 = vpop.f32.mrb[0].mxu0
  %v1672 = vadd.f32 0.0, %v1671
  %v1673 = vpop.f32.mrb[0].mxu0
  %v1674 = vadd.f32 0.0, %v1673
  %v1675 = vpop.f32.mrb[0].mxu0
  %v1676 = vadd.f32 0.0, %v1675
  %v1677 = vpop.f32.mrb[0].mxu0
  %v1678 = vadd.f32 0.0, %v1677
  %1679 = vdwg.mxu0
  %v1681 = vlaneseq
  %v1682 = vshrl.u32 %v1681, 7
  %v1683 = vsub.s32 0, %v1682
  %v1684 = vrot.slane %v1210, %v1683
  %v1685 = vlaneseq
  %v1686 = vshrl.u32 %v1685, 7
  %v1687 = vsub.s32 2, %v1686
  %v1688 = vrot.slane %v1210, %v1687
  %v1689 = vlaneseq
  %v1690 = vshrl.u32 %v1689, 7
  %v1691 = vsub.s32 4, %v1690
  %v1692 = vrot.slane %v1210, %v1691
  %v1693 = vlaneseq
  %v1694 = vshrl.u32 %v1693, 7
  %v1695 = vsub.s32 6, %v1694
  %v1696 = vrot.slane %v1210, %v1695
  %v1701 = vlaneseq
  %v1702 = vshrl.u32 %v1701, 7
  %v1703 = vsub.s32 0, %v1702
  %v1704 = vrot.slane %v1684, %v1703
  %v1705 = vlaneseq
  %v1706 = vshrl.u32 %v1705, 7
  %v1707 = vsub.s32 0, %v1706
  %v1708 = vrot.slane %v1688, %v1707
  %v1709 = vlaneseq
  %v1710 = vshrl.u32 %v1709, 7
  %v1711 = vsub.s32 0, %v1710
  %v1712 = vrot.slane %v1692, %v1711
  %v1713 = vlaneseq
  %v1714 = vshrl.u32 %v1713, 7
  %v1715 = vsub.s32 0, %v1714
  %v1716 = vrot.slane %v1696, %v1715
  %v1717 = vadd.f32 %v1704, %v1569
  %v1718 = vadd.f32 %v1708, %v1571
  %v1719 = vadd.f32 %v1712, %v1642
  %v1720 = vadd.f32 %v1716, %v1644
  %v1721 = vadd.f32 %v1704, %v1573
  %v1722 = vadd.f32 %v1708, %v1575
  %v1723 = vadd.f32 %v1712, %v1646
  %v1724 = vadd.f32 %v1716, %v1648
  %v1725 = vadd.f32 %v1704, %v1579
  %v1726 = vadd.f32 %v1708, %v1581
  %v1727 = vadd.f32 %v1712, %v1652
  %v1728 = vadd.f32 %v1716, %v1654
  %v1729 = vadd.f32 %v1704, %v1583
  %v1730 = vadd.f32 %v1708, %v1585
  %v1731 = vadd.f32 %v1712, %v1656
  %v1732 = vadd.f32 %v1716, %v1658
  %v1733 = vadd.f32 %v1704, %v1589
  %v1734 = vadd.f32 %v1708, %v1591
  %v1735 = vadd.f32 %v1712, %v1662
  %v1736 = vadd.f32 %v1716, %v1664
  %v1737 = vadd.f32 %v1704, %v1593
  %v1738 = vadd.f32 %v1708, %v1595
  %v1739 = vadd.f32 %v1712, %v1666
  %v1740 = vadd.f32 %v1716, %v1668
  %v1741 = vadd.f32 %v1704, %v1599
  %v1742 = vadd.f32 %v1708, %v1601
  %v1743 = vadd.f32 %v1712, %v1672
  %v1744 = vadd.f32 %v1716, %v1674
  %v1745 = vadd.f32 %v1704, %v1603
  %v1746 = vadd.f32 %v1708, %v1605
  %v1747 = vadd.f32 %v1712, %v1676
  %v1748 = vadd.f32 %v1716, %v1678
  %1749 = vst [vmem:[#allocation2] sm:$0xff] %v1717
  %1750 = vst [vmem:[#allocation2 + $0x8] sm:$0xff] %v1718
  %1751 = vst [vmem:[#allocation2 + $0x10] sm:$0xff] %v1719
  %1752 = vst [vmem:[#allocation2 + $0x18] sm:$0xff] %v1720
  %1753 = vst [vmem:[#allocation2 + $0x20] sm:$0xff] %v1721
  %1754 = vst [vmem:[#allocation2 + $0x28] sm:$0xff] %v1722
  %1755 = vst [vmem:[#allocation2 + $0x30] sm:$0xff] %v1723
  %1756 = vst [vmem:[#allocation2 + $0x38] sm:$0xff] %v1724
  %1757 = vst [vmem:[#allocation2 + $0x40] sm:$0xff] %v1725
  %1758 = vst [vmem:[#allocation2 + $0x48] sm:$0xff] %v1726
  %1759 = vst [vmem:[#allocation2 + $0x50] sm:$0xff] %v1727
  %1760 = vst [vmem:[#allocation2 + $0x58] sm:$0xff] %v1728
  %1761 = vst [vmem:[#allocation2 + $0x60] sm:$0xff] %v1729
  %1762 = vst [vmem:[#allocation2 + $0x68] sm:$0xff] %v1730
  %1763 = vst [vmem:[#allocation2 + $0x70] sm:$0xff] %v1731
  %1764 = vst [vmem:[#allocation2 + $0x78] sm:$0xff] %v1732
  %1765 = vst [vmem:[#allocation2 + $0x80] sm:$0xff] %v1733
  %1766 = vst [vmem:[#allocation2 + $0x88] sm:$0xff] %v1734
  %1767 = vst [vmem:[#allocation2 + $0x90] sm:$0xff] %v1735
  %1768 = vst [vmem:[#allocation2 + $0x98] sm:$0xff] %v1736
  %1769 = vst [vmem:[#allocation2 + $0xa0] sm:$0xff] %v1737
  %1770 = vst [vmem:[#allocation2 + $0xa8] sm:$0xff] %v1738
  %1771 = vst [vmem:[#allocation2 + $0xb0] sm:$0xff] %v1739
  %1772 = vst [vmem:[#allocation2 + $0xb8] sm:$0xff] %v1740
  %1773 = vst [vmem:[#allocation2 + $0xc0] sm:$0xff] %v1741
  %1774 = vst [vmem:[#allocation2 + $0xc8] sm:$0xff] %v1742
  %1775 = vst [vmem:[#allocation2 + $0xd0] sm:$0xff] %v1743
  %1776 = vst [vmem:[#allocation2 + $0xd8] sm:$0xff] %v1744
  %1777 = vst [vmem:[#allocation2 + $0xe0] sm:$0xff] %v1745
  %1778 = vst [vmem:[#allocation2 + $0xe8] sm:$0xff] %v1746
  %1779 = vst [vmem:[#allocation2 + $0xf0] sm:$0xff] %v1747
  %1780 = vst [vmem:[#allocation2 + $0xf8] sm:$0xff] %v1748
  %v1845 = vunpack.c.l.b16 %v1145
  %v1846 = vunpack.c.h.b16 %v1145
  %v1847 = vunpack.c.l.b16 %v1146
  %v1848 = vunpack.c.h.b16 %v1146
  %v1849 = vunpack.c.l.b16 %v1147
  %v1850 = vunpack.c.h.b16 %v1147
  %v1851 = vunpack.c.l.b16 %v1148
  %v1852 = vunpack.c.h.b16 %v1148
  %v1853 = vunpack.c.l.b16 %v1149
  %v1854 = vunpack.c.h.b16 %v1149
  %v1855 = vunpack.c.l.b16 %v1150
  %v1856 = vunpack.c.h.b16 %v1150
  %v1857 = vunpack.c.l.b16 %v1151
  %v1858 = vunpack.c.h.b16 %v1151
  %v1859 = vunpack.c.l.b16 %v1152
  %v1860 = vunpack.c.h.b16 %v1152
  %v1861 = vunpack.c.l.b16 %v1153
  %v1862 = vunpack.c.h.b16 %v1153
  %v1863 = vunpack.c.l.b16 %v1154
  %v1864 = vunpack.c.h.b16 %v1154
  %v1865 = vunpack.c.l.b16 %v1155
  %v1866 = vunpack.c.h.b16 %v1155
  %v1867 = vunpack.c.l.b16 %v1156
  %v1868 = vunpack.c.h.b16 %v1156
  %v1869 = vunpack.c.l.b16 %v1157
  %v1870 = vunpack.c.h.b16 %v1157
  %v1871 = vunpack.c.l.b16 %v1158
  %v1872 = vunpack.c.h.b16 %v1158
  %v1873 = vunpack.c.l.b16 %v1159
  %v1874 = vunpack.c.h.b16 %v1159
  %v1875 = vunpack.c.l.b16 %v1160
  %v1876 = vunpack.c.h.b16 %v1160
  %v1877 = vunpack.c.l.b16 %v1161
  %v1878 = vunpack.c.h.b16 %v1161
  %v1879 = vunpack.c.l.b16 %v1162
  %v1880 = vunpack.c.h.b16 %v1162
  %v1881 = vunpack.c.l.b16 %v1163
  %v1882 = vunpack.c.h.b16 %v1163
  %v1883 = vunpack.c.l.b16 %v1164
  %v1884 = vunpack.c.h.b16 %v1164
  %v1885 = vunpack.c.l.b16 %v1165
  %v1886 = vunpack.c.h.b16 %v1165
  %v1887 = vunpack.c.l.b16 %v1166
  %v1888 = vunpack.c.h.b16 %v1166
  %v1889 = vunpack.c.l.b16 %v1167
  %v1890 = vunpack.c.h.b16 %v1167
  %v1891 = vunpack.c.l.b16 %v1168
  %v1892 = vunpack.c.h.b16 %v1168
  %v1893 = vunpack.c.l.b16 %v1169
  %v1894 = vunpack.c.h.b16 %v1169
  %v1895 = vunpack.c.l.b16 %v1170
  %v1896 = vunpack.c.h.b16 %v1170
  %v1897 = vunpack.c.l.b16 %v1171
  %v1898 = vunpack.c.h.b16 %v1171
  %v1899 = vunpack.c.l.b16 %v1172
  %v1900 = vunpack.c.h.b16 %v1172
  %v1901 = vunpack.c.l.b16 %v1173
  %v1902 = vunpack.c.h.b16 %v1173
  %v1903 = vunpack.c.l.b16 %v1174
  %v1904 = vunpack.c.h.b16 %v1174
  %v1905 = vunpack.c.l.b16 %v1175
  %v1906 = vunpack.c.h.b16 %v1175
  %v1907 = vunpack.c.l.b16 %v1176
  %v1908 = vunpack.c.h.b16 %v1176
  %v1909 = vunpack.c.l.b16 %v1177
  %v1910 = vunpack.c.h.b16 %v1177
  %v1911 = vunpack.c.l.b16 %v1178
  %v1912 = vunpack.c.h.b16 %v1178
  %v1913 = vunpack.c.l.b16 %v1179
  %v1914 = vunpack.c.h.b16 %v1179
  %v1915 = vunpack.c.l.b16 %v1180
  %v1916 = vunpack.c.h.b16 %v1180
  %v1917 = vunpack.c.l.b16 %v1181
  %v1918 = vunpack.c.h.b16 %v1181
  %v1919 = vunpack.c.l.b16 %v1182
  %v1920 = vunpack.c.h.b16 %v1182
  %v1921 = vunpack.c.l.b16 %v1183
  %v1922 = vunpack.c.h.b16 %v1183
  %v1923 = vunpack.c.l.b16 %v1184
  %v1924 = vunpack.c.h.b16 %v1184
  %v1925 = vunpack.c.l.b16 %v1185
  %v1926 = vunpack.c.h.b16 %v1185
  %v1927 = vunpack.c.l.b16 %v1186
  %v1928 = vunpack.c.h.b16 %v1186
  %v1929 = vunpack.c.l.b16 %v1187
  %v1930 = vunpack.c.h.b16 %v1187
  %v1931 = vunpack.c.l.b16 %v1188
  %v1932 = vunpack.c.h.b16 %v1188
  %v1933 = vunpack.c.l.b16 %v1189
  %v1934 = vunpack.c.h.b16 %v1189
  %v1935 = vunpack.c.l.b16 %v1190
  %v1936 = vunpack.c.h.b16 %v1190
  %v1937 = vunpack.c.l.b16 %v1191
  %v1938 = vunpack.c.h.b16 %v1191
  %v1939 = vunpack.c.l.b16 %v1192
  %v1940 = vunpack.c.h.b16 %v1192
  %v1941 = vunpack.c.l.b16 %v1193
  %v1942 = vunpack.c.h.b16 %v1193
  %v1943 = vunpack.c.l.b16 %v1194
  %v1944 = vunpack.c.h.b16 %v1194
  %v1945 = vunpack.c.l.b16 %v1195
  %v1946 = vunpack.c.h.b16 %v1195
  %v1947 = vunpack.c.l.b16 %v1196
  %v1948 = vunpack.c.h.b16 %v1196
  %v1949 = vunpack.c.l.b16 %v1197
  %v1950 = vunpack.c.h.b16 %v1197
  %v1951 = vunpack.c.l.b16 %v1198
  %v1952 = vunpack.c.h.b16 %v1198
  %v1953 = vunpack.c.l.b16 %v1199
  %v1954 = vunpack.c.h.b16 %v1199
  %v1955 = vunpack.c.l.b16 %v1200
  %v1956 = vunpack.c.h.b16 %v1200
  %v1957 = vunpack.c.l.b16 %v1201
  %v1958 = vunpack.c.h.b16 %v1201
  %v1959 = vunpack.c.l.b16 %v1202
  %v1960 = vunpack.c.h.b16 %v1202
  %v1961 = vunpack.c.l.b16 %v1203
  %v1962 = vunpack.c.h.b16 %v1203
  %v1963 = vunpack.c.l.b16 %v1204
  %v1964 = vunpack.c.h.b16 %v1204
  %v1965 = vunpack.c.l.b16 %v1205
  %v1966 = vunpack.c.h.b16 %v1205
  %v1967 = vunpack.c.l.b16 %v1206
  %v1968 = vunpack.c.h.b16 %v1206
  %v1969 = vunpack.c.l.b16 %v1207
  %v1970 = vunpack.c.h.b16 %v1207
  %v1971 = vunpack.c.l.b16 %v1208
  %v1972 = vunpack.c.h.b16 %v1208
  %v1973 = vpack.c.b16 %v1849, %v1845
  %v1974 = vpack.c.b16 %v1850, %v1846
  %v1975 = vpack.c.b16 %v1851, %v1847
  %v1976 = vpack.c.b16 %v1852, %v1848
  %v1977 = vpack.c.b16 %v1857, %v1853
  %v1978 = vpack.c.b16 %v1858, %v1854
  %v1979 = vpack.c.b16 %v1859, %v1855
  %v1980 = vpack.c.b16 %v1860, %v1856
  %v1981 = vpack.c.b16 %v1865, %v1861
  %v1982 = vpack.c.b16 %v1866, %v1862
  %v1983 = vpack.c.b16 %v1867, %v1863
  %v1984 = vpack.c.b16 %v1868, %v1864
  %v1985 = vpack.c.b16 %v1873, %v1869
  %v1986 = vpack.c.b16 %v1874, %v1870
  %v1987 = vpack.c.b16 %v1875, %v1871
  %v1988 = vpack.c.b16 %v1876, %v1872
  %v1989 = vpack.c.b16 %v1881, %v1877
  %v1990 = vpack.c.b16 %v1882, %v1878
  %v1991 = vpack.c.b16 %v1883, %v1879
  %v1992 = vpack.c.b16 %v1884, %v1880
  %v1993 = vpack.c.b16 %v1889, %v1885
  %v1994 = vpack.c.b16 %v1890, %v1886
  %v1995 = vpack.c.b16 %v1891, %v1887
  %v1996 = vpack.c.b16 %v1892, %v1888
  %v1997 = vpack.c.b16 %v1897, %v1893
  %v1998 = vpack.c.b16 %v1898, %v1894
  %v1999 = vpack.c.b16 %v1899, %v1895
  %v2000 = vpack.c.b16 %v1900, %v1896
  %v2001 = vpack.c.b16 %v1905, %v1901
  %v2002 = vpack.c.b16 %v1906, %v1902
  %v2003 = vpack.c.b16 %v1907, %v1903
  %v2004 = vpack.c.b16 %v1908, %v1904
  %v2005 = vpack.c.b16 %v1913, %v1909
  %v2006 = vpack.c.b16 %v1914, %v1910
  %v2007 = vpack.c.b16 %v1915, %v1911
  %v2008 = vpack.c.b16 %v1916, %v1912
  %v2009 = vpack.c.b16 %v1921, %v1917
  %v2010 = vpack.c.b16 %v1922, %v1918
  %v2011 = vpack.c.b16 %v1923, %v1919
  %v2012 = vpack.c.b16 %v1924, %v1920
  %v2013 = vpack.c.b16 %v1929, %v1925
  %v2014 = vpack.c.b16 %v1930, %v1926
  %v2015 = vpack.c.b16 %v1931, %v1927
  %v2016 = vpack.c.b16 %v1932, %v1928
  %v2017 = vpack.c.b16 %v1937, %v1933
  %v2018 = vpack.c.b16 %v1938, %v1934
  %v2019 = vpack.c.b16 %v1939, %v1935
  %v2020 = vpack.c.b16 %v1940, %v1936
  %v2021 = vpack.c.b16 %v1945, %v1941
  %v2022 = vpack.c.b16 %v1946, %v1942
  %v2023 = vpack.c.b16 %v1947, %v1943
  %v2024 = vpack.c.b16 %v1948, %v1944
  %v2025 = vpack.c.b16 %v1953, %v1949
  %v2026 = vpack.c.b16 %v1954, %v1950
  %v2027 = vpack.c.b16 %v1955, %v1951
  %v2028 = vpack.c.b16 %v1956, %v1952
  %v2029 = vpack.c.b16 %v1961, %v1957
  %v2030 = vpack.c.b16 %v1962, %v1958
  %v2031 = vpack.c.b16 %v1963, %v1959
  %v2032 = vpack.c.b16 %v1964, %v1960
  %v2033 = vpack.c.b16 %v1969, %v1965
  %v2034 = vpack.c.b16 %v1970, %v1966
  %v2035 = vpack.c.b16 %v1971, %v1967
  %v2036 = vpack.c.b16 %v1972, %v1968
  %2101 = vmatprep.subr.bf16.mxu0 %v1974
  %2102 = vmatpush1.bf16.msra.mxu0 %v1973
  %2103 = vmatprep.subr.bf16.mxu0 %v1978
  %2104 = vmatpush1.bf16.msra.mxu0 %v1977
  %2105 = vmatprep.subr.bf16.mxu0 %v1982
  %2106 = vmatpush1.bf16.msra.mxu0 %v1981
  %2107 = vmatprep.subr.bf16.mxu0 %v1986
  %2108 = vmatpush1.bf16.msra.mxu0 %v1985
  %2109 = vmatprep.subr.bf16.mxu0 %v1990
  %2110 = vmatpush1.bf16.msra.mxu0 %v1989
  %2111 = vmatprep.subr.bf16.mxu0 %v1994
  %2112 = vmatpush1.bf16.msra.mxu0 %v1993
  %2113 = vmatprep.subr.bf16.mxu0 %v1998
  %2114 = vmatpush1.bf16.msra.mxu0 %v1997
  %2115 = vmatprep.subr.bf16.mxu0 %v2002
  %2116 = vmatpush1.bf16.msra.mxu0 %v2001
  %2117 = vmatprep.subr.bf16.mxu0 %v2006
  %2118 = vmatpush1.bf16.msra.mxu0 %v2005
  %2119 = vmatprep.subr.bf16.mxu0 %v2010
  %2120 = vmatpush1.bf16.msra.mxu0 %v2009
  %2121 = vmatprep.subr.bf16.mxu0 %v2014
  %2122 = vmatpush1.bf16.msra.mxu0 %v2013
  %2123 = vmatprep.subr.bf16.mxu0 %v2018
  %2124 = vmatpush1.bf16.msra.mxu0 %v2017
  %2125 = vmatprep.subr.bf16.mxu0 %v2022
  %2126 = vmatpush1.bf16.msra.mxu0 %v2021
  %2127 = vmatprep.subr.bf16.mxu0 %v2026
  %2128 = vmatpush1.bf16.msra.mxu0 %v2025
  %2129 = vmatprep.subr.bf16.mxu0 %v2030
  %2130 = vmatpush1.bf16.msra.mxu0 %v2029
  %2131 = vmatprep.subr.bf16.mxu0 %v2034
  %2132 = vmatpush1.bf16.msra.mxu0 %v2033
  %2133 = vmatprep.mubr.bf16.mxu0 %v1073
  %2134 = vmatmul.mubr.bf16.gmra.mrb[0].mxu0 %v1072
  %v2135 = vpop.f32.mrb[0].mxu0
  %v2136 = vadd.f32 0.0, %v2135
  %v2137 = vpop.f32.mrb[0].mxu0
  %v2138 = vadd.f32 0.0, %v2137
  %v2139 = vpop.f32.mrb[0].mxu0
  %v2140 = vadd.f32 0.0, %v2139
  %v2141 = vpop.f32.mrb[0].mxu0
  %v2142 = vadd.f32 0.0, %v2141
  %2143 = vmatprep.mubr.bf16.mxu0 %v1075
  %2144 = vmatmul.mubr.bf16.gmra.mrb[0].mxu0 %v1074
  %v2145 = vpop.f32.mrb[0].mxu0
  %v2146 = vadd.f32 0.0, %v2145
  %v2147 = vpop.f32.mrb[0].mxu0
  %v2148 = vadd.f32 0.0, %v2147
  %v2149 = vpop.f32.mrb[0].mxu0
  %v2150 = vadd.f32 0.0, %v2149
  %v2151 = vpop.f32.mrb[0].mxu0
  %v2152 = vadd.f32 0.0, %v2151
  %2153 = vmatprep.mubr.bf16.mxu0 %v1077
  %2154 = vmatmul.mubr.bf16.gmra.mrb[0].mxu0 %v1076
  %v2155 = vpop.f32.mrb[0].mxu0
  %v2156 = vadd.f32 0.0, %v2155
  %v2157 = vpop.f32.mrb[0].mxu0
  %v2158 = vadd.f32 0.0, %v2157
  %v2159 = vpop.f32.mrb[0].mxu0
  %v2160 = vadd.f32 0.0, %v2159
  %v2161 = vpop.f32.mrb[0].mxu0
  %v2162 = vadd.f32 0.0, %v2161
  %2163 = vmatprep.mubr.bf16.mxu0 %v1079
  %2164 = vmatmul.mubr.bf16.gmra.mrb[0].mxu0 %v1078
  %v2165 = vpop.f32.mrb[0].mxu0
  %v2166 = vadd.f32 0.0, %v2165
  %v2167 = vpop.f32.mrb[0].mxu0
  %v2168 = vadd.f32 0.0, %v2167
  %v2169 = vpop.f32.mrb[0].mxu0
  %v2170 = vadd.f32 0.0, %v2169
  %v2171 = vpop.f32.mrb[0].mxu0
  %v2172 = vadd.f32 0.0, %v2171
  %2173 = vdwg.mxu0
  %2174 = vmatprep.subr.bf16.mxu0 %v1976
  %2175 = vmatpush1.bf16.msra.mxu0 %v1975
  %2176 = vmatprep.subr.bf16.mxu0 %v1980
  %2177 = vmatpush1.bf16.msra.mxu0 %v1979
  %2178 = vmatprep.subr.bf16.mxu0 %v1984
  %2179 = vmatpush1.bf16.msra.mxu0 %v1983
  %2180 = vmatprep.subr.bf16.mxu0 %v1988
  %2181 = vmatpush1.bf16.msra.mxu0 %v1987
  %2182 = vmatprep.subr.bf16.mxu0 %v1992
  %2183 = vmatpush1.bf16.msra.mxu0 %v1991
  %2184 = vmatprep.subr.bf16.mxu0 %v1996
  %2185 = vmatpush1.bf16.msra.mxu0 %v1995
  %2186 = vmatprep.subr.bf16.mxu0 %v2000
  %2187 = vmatpush1.bf16.msra.mxu0 %v1999
  %2188 = vmatprep.subr.bf16.mxu0 %v2004
  %2189 = vmatpush1.bf16.msra.mxu0 %v2003
  %2190 = vmatprep.subr.bf16.mxu0 %v2008
  %2191 = vmatpush1.bf16.msra.mxu0 %v2007
  %2192 = vmatprep.subr.bf16.mxu0 %v2012
  %2193 = vmatpush1.bf16.msra.mxu0 %v2011
  %2194 = vmatprep.subr.bf16.mxu0 %v2016
  %2195 = vmatpush1.bf16.msra.mxu0 %v2015
  %2196 = vmatprep.subr.bf16.mxu0 %v2020
  %2197 = vmatpush1.bf16.msra.mxu0 %v2019
  %2198 = vmatprep.subr.bf16.mxu0 %v2024
  %2199 = vmatpush1.bf16.msra.mxu0 %v2023
  %2200 = vmatprep.subr.bf16.mxu0 %v2028
  %2201 = vmatpush1.bf16.msra.mxu0 %v2027
  %2202 = vmatprep.subr.bf16.mxu0 %v2032
  %2203 = vmatpush1.bf16.msra.mxu0 %v2031
  %2204 = vmatprep.subr.bf16.mxu0 %v2036
  %2205 = vmatpush1.bf16.msra.mxu0 %v2035
  %2206 = vmatprep.mubr.bf16.mxu0 %v1073
  %2207 = vmatmul.mubr.bf16.gmra.mrb[0].mxu0 %v1072
  %v2208 = vpop.f32.mrb[0].mxu0
  %v2209 = vadd.f32 0.0, %v2208
  %v2210 = vpop.f32.mrb[0].mxu0
  %v2211 = vadd.f32 0.0, %v2210
  %v2212 = vpop.f32.mrb[0].mxu0
  %v2213 = vadd.f32 0.0, %v2212
  %v2214 = vpop.f32.mrb[0].mxu0
  %v2215 = vadd.f32 0.0, %v2214
  %2216 = vmatprep.mubr.bf16.mxu0 %v1075
  %2217 = vmatmul.mubr.bf16.gmra.mrb[0].mxu0 %v1074
  %v2218 = vpop.f32.mrb[0].mxu0
  %v2219 = vadd.f32 0.0, %v2218
  %v2220 = vpop.f32.mrb[0].mxu0
  %v2221 = vadd.f32 0.0, %v2220
  %v2222 = vpop.f32.mrb[0].mxu0
  %v2223 = vadd.f32 0.0, %v2222
  %v2224 = vpop.f32.mrb[0].mxu0
  %v2225 = vadd.f32 0.0, %v2224
  %2226 = vmatprep.mubr.bf16.mxu0 %v1077
  %2227 = vmatmul.mubr.bf16.gmra.mrb[0].mxu0 %v1076
  %v2228 = vpop.f32.mrb[0].mxu0
  %v2229 = vadd.f32 0.0, %v2228
  %v2230 = vpop.f32.mrb[0].mxu0
  %v2231 = vadd.f32 0.0, %v2230
  %v2232 = vpop.f32.mrb[0].mxu0
  %v2233 = vadd.f32 0.0, %v2232
  %v2234 = vpop.f32.mrb[0].mxu0
  %v2235 = vadd.f32 0.0, %v2234
  %2236 = vmatprep.mubr.bf16.mxu0 %v1079
  %2237 = vmatmul.mubr.bf16.gmra.mrb[0].mxu0 %v1078
  %v2238 = vpop.f32.mrb[0].mxu0
  %v2239 = vadd.f32 0.0, %v2238
  %v2240 = vpop.f32.mrb[0].mxu0
  %v2241 = vadd.f32 0.0, %v2240
  %v2242 = vpop.f32.mrb[0].mxu0
  %v2243 = vadd.f32 0.0, %v2242
  %v2244 = vpop.f32.mrb[0].mxu0
  %v2245 = vadd.f32 0.0, %v2244
  %2246 = vdwg.mxu0
  %v2248 = vlaneseq
  %v2249 = vshrl.u32 %v2248, 7
  %v2250 = vsub.s32 0, %v2249
  %v2251 = vrot.slane %v1213, %v2250
  %v2252 = vlaneseq
  %v2253 = vshrl.u32 %v2252, 7
  %v2254 = vsub.s32 2, %v2253
  %v2255 = vrot.slane %v1213, %v2254
  %v2256 = vlaneseq
  %v2257 = vshrl.u32 %v2256, 7
  %v2258 = vsub.s32 4, %v2257
  %v2259 = vrot.slane %v1213, %v2258
  %v2260 = vlaneseq
  %v2261 = vshrl.u32 %v2260, 7
  %v2262 = vsub.s32 6, %v2261
  %v2263 = vrot.slane %v1213, %v2262
  %v2268 = vlaneseq
  %v2269 = vshrl.u32 %v2268, 7
  %v2270 = vsub.s32 0, %v2269
  %v2271 = vrot.slane %v2251, %v2270
  %v2272 = vlaneseq
  %v2273 = vshrl.u32 %v2272, 7
  %v2274 = vsub.s32 0, %v2273
  %v2275 = vrot.slane %v2255, %v2274
  %v2276 = vlaneseq
  %v2277 = vshrl.u32 %v2276, 7
  %v2278 = vsub.s32 0, %v2277
  %v2279 = vrot.slane %v2259, %v2278
  %v2280 = vlaneseq
  %v2281 = vshrl.u32 %v2280, 7
  %v2282 = vsub.s32 0, %v2281
  %v2283 = vrot.slane %v2263, %v2282
  %v2284 = vadd.f32 %v2271, %v2136
  %v2285 = vadd.f32 %v2275, %v2138
  %v2286 = vadd.f32 %v2279, %v2209
  %v2287 = vadd.f32 %v2283, %v2211
  %v2288 = vadd.f32 %v2271, %v2140
  %v2289 = vadd.f32 %v2275, %v2142
  %v2290 = vadd.f32 %v2279, %v2213
  %v2291 = vadd.f32 %v2283, %v2215
  %v2292 = vadd.f32 %v2271, %v2146
  %v2293 = vadd.f32 %v2275, %v2148
  %v2294 = vadd.f32 %v2279, %v2219
  %v2295 = vadd.f32 %v2283, %v2221
  %v2296 = vadd.f32 %v2271, %v2150
  %v2297 = vadd.f32 %v2275, %v2152
  %v2298 = vadd.f32 %v2279, %v2223
  %v2299 = vadd.f32 %v2283, %v2225
  %v2300 = vadd.f32 %v2271, %v2156
  %v2301 = vadd.f32 %v2275, %v2158
  %v2302 = vadd.f32 %v2279, %v2229
  %v2303 = vadd.f32 %v2283, %v2231
  %v2304 = vadd.f32 %v2271, %v2160
  %v2305 = vadd.f32 %v2275, %v2162
  %v2306 = vadd.f32 %v2279, %v2233
  %v2307 = vadd.f32 %v2283, %v2235
  %v2308 = vadd.f32 %v2271, %v2166
  %v2309 = vadd.f32 %v2275, %v2168
  %v2310 = vadd.f32 %v2279, %v2239
  %v2311 = vadd.f32 %v2283, %v2241
  %v2312 = vadd.f32 %v2271, %v2170
  %v2313 = vadd.f32 %v2275, %v2172
  %v2314 = vadd.f32 %v2279, %v2243
  %v2315 = vadd.f32 %v2283, %v2245
  %2316 = vst [vmem:[#allocation3] sm:$0xff] %v2284
  %2317 = vst [vmem:[#allocation3 + $0x8] sm:$0xff] %v2285
  %2318 = vst [vmem:[#allocation3 + $0x10] sm:$0xff] %v2286
  %2319 = vst [vmem:[#allocation3 + $0x18] sm:$0xff] %v2287
  %2320 = vst [vmem:[#allocation3 + $0x20] sm:$0xff] %v2288
  %2321 = vst [vmem:[#allocation3 + $0x28] sm:$0xff] %v2289
  %2322 = vst [vmem:[#allocation3 + $0x30] sm:$0xff] %v2290
  %2323 = vst [vmem:[#allocation3 + $0x38] sm:$0xff] %v2291
  %2324 = vst [vmem:[#allocation3 + $0x40] sm:$0xff] %v2292
  %2325 = vst [vmem:[#allocation3 + $0x48] sm:$0xff] %v2293
  %2326 = vst [vmem:[#allocation3 + $0x50] sm:$0xff] %v2294
  %2327 = vst [vmem:[#allocation3 + $0x58] sm:$0xff] %v2295
  %2328 = vst [vmem:[#allocation3 + $0x60] sm:$0xff] %v2296
  %2329 = vst [vmem:[#allocation3 + $0x68] sm:$0xff] %v2297
  %2330 = vst [vmem:[#allocation3 + $0x70] sm:$0xff] %v2298
  %2331 = vst [vmem:[#allocation3 + $0x78] sm:$0xff] %v2299
  %2332 = vst [vmem:[#allocation3 + $0x80] sm:$0xff] %v2300
  %2333 = vst [vmem:[#allocation3 + $0x88] sm:$0xff] %v2301
  %2334 = vst [vmem:[#allocation3 + $0x90] sm:$0xff] %v2302
  %2335 = vst [vmem:[#allocation3 + $0x98] sm:$0xff] %v2303
  %2336 = vst [vmem:[#allocation3 + $0xa0] sm:$0xff] %v2304
  %2337 = vst [vmem:[#allocation3 + $0xa8] sm:$0xff] %v2305
  %2338 = vst [vmem:[#allocation3 + $0xb0] sm:$0xff] %v2306
  %2339 = vst [vmem:[#allocation3 + $0xb8] sm:$0xff] %v2307
  %2340 = vst [vmem:[#allocation3 + $0xc0] sm:$0xff] %v2308
  %2341 = vst [vmem:[#allocation3 + $0xc8] sm:$0xff] %v2309
  %2342 = vst [vmem:[#allocation3 + $0xd0] sm:$0xff] %v2310
  %2343 = vst [vmem:[#allocation3 + $0xd8] sm:$0xff] %v2311
  %2344 = vst [vmem:[#allocation3 + $0xe0] sm:$0xff] %v2312
  %2345 = vst [vmem:[#allocation3 + $0xe8] sm:$0xff] %v2313
  %2346 = vst [vmem:[#allocation3 + $0xf0] sm:$0xff] %v2314
  %2347 = vst [vmem:[#allocation3 + $0xf8] sm:$0xff] %v2315
  %v2348 = vld [vmem:[%s6] sm:$0xff]
  %v2349 = vld [vmem:[%s6 + $0x8] sm:$0xff]
  %v2350 = vld [vmem:[%s6 + $0x10] sm:$0xff]
  %v2351 = vld [vmem:[%s6 + $0x18] sm:$0xff]
  %v2352 = vld [vmem:[%s6 + $0x20] sm:$0xff]
  %v2353 = vld [vmem:[%s6 + $0x28] sm:$0xff]
  %v2354 = vld [vmem:[%s6 + $0x30] sm:$0xff]
  %v2355 = vld [vmem:[%s6 + $0x38] sm:$0xff]
  %v2356 = vld [vmem:[%s6 + $0x40] sm:$0xff]
  %v2357 = vld [vmem:[%s6 + $0x48] sm:$0xff]
  %v2358 = vld [vmem:[%s6 + $0x50] sm:$0xff]
  %v2359 = vld [vmem:[%s6 + $0x58] sm:$0xff]
  %v2360 = vld [vmem:[%s6 + $0x60] sm:$0xff]
  %v2361 = vld [vmem:[%s6 + $0x68] sm:$0xff]
  %v2362 = vld [vmem:[%s6 + $0x70] sm:$0xff]
  %v2363 = vld [vmem:[%s6 + $0x78] sm:$0xff]
  %v2364 = vld [vmem:[%s6 + $0x80] sm:$0xff]
  %v2365 = vld [vmem:[%s6 + $0x88] sm:$0xff]
  %v2366 = vld [vmem:[%s6 + $0x90] sm:$0xff]
  %v2367 = vld [vmem:[%s6 + $0x98] sm:$0xff]
  %v2368 = vld [vmem:[%s6 + $0xa0] sm:$0xff]
  %v2369 = vld [vmem:[%s6 + $0xa8] sm:$0xff]
  %v2370 = vld [vmem:[%s6 + $0xb0] sm:$0xff]
  %v2371 = vld [vmem:[%s6 + $0xb8] sm:$0xff]
  %v2372 = vld [vmem:[%s6 + $0xc0] sm:$0xff]
  %v2373 = vld [vmem:[%s6 + $0xc8] sm:$0xff]
  %v2374 = vld [vmem:[%s6 + $0xd0] sm:$0xff]
  %v2375 = vld [vmem:[%s6 + $0xd8] sm:$0xff]
  %v2376 = vld [vmem:[%s6 + $0xe0] sm:$0xff]
  %v2377 = vld [vmem:[%s6 + $0xe8] sm:$0xff]
  %v2378 = vld [vmem:[%s6 + $0xf0] sm:$0xff]
  %v2379 = vld [vmem:[%s6 + $0xf8] sm:$0xff]
  %s2380 = scalar_lea.vmem %s6, 256
  %v2381 = vld [vmem:[%s2380] sm:$0xff]
  %v2382 = vld [vmem:[%s2380 + $0x8] sm:$0xff]
  %v2383 = vld [vmem:[%s2380 + $0x10] sm:$0xff]
  %v2384 = vld [vmem:[%s2380 + $0x18] sm:$0xff]
  %v2385 = vld [vmem:[%s2380 + $0x20] sm:$0xff]
  %v2386 = vld [vmem:[%s2380 + $0x28] sm:$0xff]
  %v2387 = vld [vmem:[%s2380 + $0x30] sm:$0xff]
  %v2388 = vld [vmem:[%s2380 + $0x38] sm:$0xff]
  %v2389 = vld [vmem:[%s2380 + $0x40] sm:$0xff]
  %v2390 = vld [vmem:[%s2380 + $0x48] sm:$0xff]
  %v2391 = vld [vmem:[%s2380 + $0x50] sm:$0xff]
  %v2392 = vld [vmem:[%s2380 + $0x58] sm:$0xff]
  %v2393 = vld [vmem:[%s2380 + $0x60] sm:$0xff]
  %v2394 = vld [vmem:[%s2380 + $0x68] sm:$0xff]
  %v2395 = vld [vmem:[%s2380 + $0x70] sm:$0xff]
  %v2396 = vld [vmem:[%s2380 + $0x78] sm:$0xff]
  %v2397 = vld [vmem:[%s2380 + $0x80] sm:$0xff]
  %v2398 = vld [vmem:[%s2380 + $0x88] sm:$0xff]
  %v2399 = vld [vmem:[%s2380 + $0x90] sm:$0xff]
  %v2400 = vld [vmem:[%s2380 + $0x98] sm:$0xff]
  %v2401 = vld [vmem:[%s2380 + $0xa0] sm:$0xff]
  %v2402 = vld [vmem:[%s2380 + $0xa8] sm:$0xff]
  %v2403 = vld [vmem:[%s2380 + $0xb0] sm:$0xff]
  %v2404 = vld [vmem:[%s2380 + $0xb8] sm:$0xff]
  %v2405 = vld [vmem:[%s2380 + $0xc0] sm:$0xff]
  %v2406 = vld [vmem:[%s2380 + $0xc8] sm:$0xff]
  %v2407 = vld [vmem:[%s2380 + $0xd0] sm:$0xff]
  %v2408 = vld [vmem:[%s2380 + $0xd8] sm:$0xff]
  %v2409 = vld [vmem:[%s2380 + $0xe0] sm:$0xff]
  %v2410 = vld [vmem:[%s2380 + $0xe8] sm:$0xff]
  %v2411 = vld [vmem:[%s2380 + $0xf0] sm:$0xff]
  %v2412 = vld [vmem:[%s2380 + $0xf8] sm:$0xff]
  %v2413 = vld [vmem:[#allocation2] sm:$0xff]
  %v2414 = vld [vmem:[#allocation2 + $0x8] sm:$0xff]
  %v2415 = vld [vmem:[#allocation2 + $0x10] sm:$0xff]
  %v2416 = vld [vmem:[#allocation2 + $0x18] sm:$0xff]
  %v2449 = vunpack.c.l.b16 %v2348
  %v2450 = vunpack.c.h.b16 %v2348
  %v2451 = vunpack.c.l.b16 %v2349
  %v2452 = vunpack.c.h.b16 %v2349
  %v2453 = vunpack.c.l.b16 %v2350
  %v2454 = vunpack.c.h.b16 %v2350
  %v2455 = vunpack.c.l.b16 %v2351
  %v2456 = vunpack.c.h.b16 %v2351
  %v2457 = vunpack.c.l.b16 %v2352
  %v2458 = vunpack.c.h.b16 %v2352
  %v2459 = vunpack.c.l.b16 %v2353
  %v2460 = vunpack.c.h.b16 %v2353
  %v2461 = vunpack.c.l.b16 %v2354
  %v2462 = vunpack.c.h.b16 %v2354
  %v2463 = vunpack.c.l.b16 %v2355
  %v2464 = vunpack.c.h.b16 %v2355
  %v2465 = vunpack.c.l.b16 %v2356
  %v2466 = vunpack.c.h.b16 %v2356
  %v2467 = vunpack.c.l.b16 %v2357
  %v2468 = vunpack.c.h.b16 %v2357
  %v2469 = vunpack.c.l.b16 %v2358
  %v2470 = vunpack.c.h.b16 %v2358
  %v2471 = vunpack.c.l.b16 %v2359
  %v2472 = vunpack.c.h.b16 %v2359
  %v2473 = vunpack.c.l.b16 %v2360
  %v2474 = vunpack.c.h.b16 %v2360
  %v2475 = vunpack.c.l.b16 %v2361
  %v2476 = vunpack.c.h.b16 %v2361
  %v2477 = vunpack.c.l.b16 %v2362
  %v2478 = vunpack.c.h.b16 %v2362
  %v2479 = vunpack.c.l.b16 %v2363
  %v2480 = vunpack.c.h.b16 %v2363
  %v2481 = vunpack.c.l.b16 %v2364
  %v2482 = vunpack.c.h.b16 %v2364
  %v2483 = vunpack.c.l.b16 %v2365
  %v2484 = vunpack.c.h.b16 %v2365
  %v2485 = vunpack.c.l.b16 %v2366
  %v2486 = vunpack.c.h.b16 %v2366
  %v2487 = vunpack.c.l.b16 %v2367
  %v2488 = vunpack.c.h.b16 %v2367
  %v2489 = vunpack.c.l.b16 %v2368
  %v2490 = vunpack.c.h.b16 %v2368
  %v2491 = vunpack.c.l.b16 %v2369
  %v2492 = vunpack.c.h.b16 %v2369
  %v2493 = vunpack.c.l.b16 %v2370
  %v2494 = vunpack.c.h.b16 %v2370
  %v2495 = vunpack.c.l.b16 %v2371
  %v2496 = vunpack.c.h.b16 %v2371
  %v2497 = vunpack.c.l.b16 %v2372
  %v2498 = vunpack.c.h.b16 %v2372
  %v2499 = vunpack.c.l.b16 %v2373
  %v2500 = vunpack.c.h.b16 %v2373
  %v2501 = vunpack.c.l.b16 %v2374
  %v2502 = vunpack.c.h.b16 %v2374
  %v2503 = vunpack.c.l.b16 %v2375
  %v2504 = vunpack.c.h.b16 %v2375
  %v2505 = vunpack.c.l.b16 %v2376
  %v2506 = vunpack.c.h.b16 %v2376
  %v2507 = vunpack.c.l.b16 %v2377
  %v2508 = vunpack.c.h.b16 %v2377
  %v2509 = vunpack.c.l.b16 %v2378
  %v2510 = vunpack.c.h.b16 %v2378
  %v2511 = vunpack.c.l.b16 %v2379
  %v2512 = vunpack.c.h.b16 %v2379
  %v2513 = vpack.c.b16 %v2453, %v2449
  %v2514 = vpack.c.b16 %v2454, %v2450
  %v2515 = vpack.c.b16 %v2455, %v2451
  %v2516 = vpack.c.b16 %v2456, %v2452
  %v2517 = vpack.c.b16 %v2461, %v2457
  %v2518 = vpack.c.b16 %v2462, %v2458
  %v2519 = vpack.c.b16 %v2463, %v2459
  %v2520 = vpack.c.b16 %v2464, %v2460
  %v2521 = vpack.c.b16 %v2469, %v2465
  %v2522 = vpack.c.b16 %v2470, %v2466
  %v2523 = vpack.c.b16 %v2471, %v2467
  %v2524 = vpack.c.b16 %v2472, %v2468
  %v2525 = vpack.c.b16 %v2477, %v2473
  %v2526 = vpack.c.b16 %v2478, %v2474
  %v2527 = vpack.c.b16 %v2479, %v2475
  %v2528 = vpack.c.b16 %v2480, %v2476
  %v2529 = vpack.c.b16 %v2485, %v2481
  %v2530 = vpack.c.b16 %v2486, %v2482
  %v2531 = vpack.c.b16 %v2487, %v2483
  %v2532 = vpack.c.b16 %v2488, %v2484
  %v2533 = vpack.c.b16 %v2493, %v2489
  %v2534 = vpack.c.b16 %v2494, %v2490
  %v2535 = vpack.c.b16 %v2495, %v2491
  %v2536 = vpack.c.b16 %v2496, %v2492
  %v2537 = vpack.c.b16 %v2501, %v2497
  %v2538 = vpack.c.b16 %v2502, %v2498
  %v2539 = vpack.c.b16 %v2503, %v2499
  %v2540 = vpack.c.b16 %v2504, %v2500
  %v2541 = vpack.c.b16 %v2509, %v2505
  %v2542 = vpack.c.b16 %v2510, %v2506
  %v2543 = vpack.c.b16 %v2511, %v2507
  %v2544 = vpack.c.b16 %v2512, %v2508
  %2577 = vmatprep.subr.bf16.mxu0 %v2514
  %2578 = vmatpush1.bf16.msra.mxu0 %v2513
  %2579 = vmatprep.subr.bf16.mxu0 %v2518
  %2580 = vmatpush1.bf16.msra.mxu0 %v2517
  %2581 = vmatprep.subr.bf16.mxu0 %v2522
  %2582 = vmatpush1.bf16.msra.mxu0 %v2521
  %2583 = vmatprep.subr.bf16.mxu0 %v2526
  %2584 = vmatpush1.bf16.msra.mxu0 %v2525
  %2585 = vmatprep.subr.bf16.mxu0 %v2530
  %2586 = vmatpush1.bf16.msra.mxu0 %v2529
  %2587 = vmatprep.subr.bf16.mxu0 %v2534
  %2588 = vmatpush1.bf16.msra.mxu0 %v2533
  %2589 = vmatprep.subr.bf16.mxu0 %v2538
  %2590 = vmatpush1.bf16.msra.mxu0 %v2537
  %2591 = vmatprep.subr.bf16.mxu0 %v2542
  %2592 = vmatpush1.bf16.msra.mxu0 %v2541
  %2593 = vmatprep.subr.bf16.mxu0 0
  %2594 = vmatpush1.bf16.msra.mxu0 0
  %2595 = vmatprep.subr.bf16.mxu0 0
  %2596 = vmatpush1.bf16.msra.mxu0 0
  %2597 = vmatprep.subr.bf16.mxu0 0
  %2598 = vmatpush1.bf16.msra.mxu0 0
  %2599 = vmatprep.subr.bf16.mxu0 0
  %2600 = vmatpush1.bf16.msra.mxu0 0
  %2601 = vmatprep.subr.bf16.mxu0 0
  %2602 = vmatpush1.bf16.msra.mxu0 0
  %2603 = vmatprep.subr.bf16.mxu0 0
  %2604 = vmatpush1.bf16.msra.mxu0 0
  %2605 = vmatprep.subr.bf16.mxu0 0
  %2606 = vmatpush1.bf16.msra.mxu0 0
  %2607 = vmatprep.subr.bf16.mxu0 0
  %2608 = vmatpush1.bf16.msra.mxu0 0
  %2609 = vmatprep.mubr.bf16.mxu0 0
  %2610 = vmatmul.mubr.bf16.gmra.mrb[0].mxu0 0
  %v2611 = vpop.f32.mrb[0].mxu0
  %v2612 = vadd.f32 0.0, %v2611
  %v2613 = vpop.f32.mrb[0].mxu0
  %v2614 = vadd.f32 0.0, %v2613
  %v2615 = vpop.f32.mrb[0].mxu0
  %v2616 = vpop.f32.mrb[0].mxu0
  %2617 = vdwg.mxu0
  %2618 = vmatprep.subr.bf16.mxu0 %v2516
  %2619 = vmatpush1.bf16.msra.mxu0 %v2515
  %2620 = vmatprep.subr.bf16.mxu0 %v2520
  %2621 = vmatpush1.bf16.msra.mxu0 %v2519
  %2622 = vmatprep.subr.bf16.mxu0 %v2524
  %2623 = vmatpush1.bf16.msra.mxu0 %v2523
  %2624 = vmatprep.subr.bf16.mxu0 %v2528
  %2625 = vmatpush1.bf16.msra.mxu0 %v2527
  %2626 = vmatprep.subr.bf16.mxu0 %v2532
  %2627 = vmatpush1.bf16.msra.mxu0 %v2531
  %2628 = vmatprep.subr.bf16.mxu0 %v2536
  %2629 = vmatpush1.bf16.msra.mxu0 %v2535
  %2630 = vmatprep.subr.bf16.mxu0 %v2540
  %2631 = vmatpush1.bf16.msra.mxu0 %v2539
  %2632 = vmatprep.subr.bf16.mxu0 %v2544
  %2633 = vmatpush1.bf16.msra.mxu0 %v2543
  %2634 = vmatprep.subr.bf16.mxu0 0
  %2635 = vmatpush1.bf16.msra.mxu0 0
  %2636 = vmatprep.subr.bf16.mxu0 0
  %2637 = vmatpush1.bf16.msra.mxu0 0
  %2638 = vmatprep.subr.bf16.mxu0 0
  %2639 = vmatpush1.bf16.msra.mxu0 0
  %2640 = vmatprep.subr.bf16.mxu0 0
  %2641 = vmatpush1.bf16.msra.mxu0 0
  %2642 = vmatprep.subr.bf16.mxu0 0
  %2643 = vmatpush1.bf16.msra.mxu0 0
  %2644 = vmatprep.subr.bf16.mxu0 0
  %2645 = vmatpush1.bf16.msra.mxu0 0
  %2646 = vmatprep.subr.bf16.mxu0 0
  %2647 = vmatpush1.bf16.msra.mxu0 0
  %2648 = vmatprep.subr.bf16.mxu0 0
  %2649 = vmatpush1.bf16.msra.mxu0 0
  %2650 = vmatprep.mubr.bf16.mxu0 0
  %2651 = vmatmul.mubr.bf16.gmra.mrb[0].mxu0 0
  %v2652 = vpop.f32.mrb[0].mxu0
  %v2653 = vadd.f32 0.0, %v2652
  %v2654 = vpop.f32.mrb[0].mxu0
  %v2655 = vadd.f32 0.0, %v2654
  %v2656 = vpop.f32.mrb[0].mxu0
  %v2657 = vpop.f32.mrb[0].mxu0
  %2658 = vdwg.mxu0
  %v2659 = vadd.f32 %v2413, %v2612
  %v2660 = vadd.f32 %v2414, %v2614
  %v2661 = vadd.f32 %v2415, %v2653
  %v2662 = vadd.f32 %v2416, %v2655
  %s2663 = scalar_lea.vmem [#allocation3], 224
  %v2664 = vld [vmem:[%s2663] sm:$0xff]
  %v2665 = vld [vmem:[%s2663 + $0x8] sm:$0xff]
  %v2666 = vld [vmem:[%s2663 + $0x10] sm:$0xff]
  %v2667 = vld [vmem:[%s2663 + $0x18] sm:$0xff]
  %v2700 = vunpack.c.l.b16 %v2381
  %v2701 = vunpack.c.h.b16 %v2381
  %v2702 = vunpack.c.l.b16 %v2382
  %v2703 = vunpack.c.h.b16 %v2382
  %v2704 = vunpack.c.l.b16 %v2383
  %v2705 = vunpack.c.h.b16 %v2383
  %v2706 = vunpack.c.l.b16 %v2384
  %v2707 = vunpack.c.h.b16 %v2384
  %v2708 = vunpack.c.l.b16 %v2385
  %v2709 = vunpack.c.h.b16 %v2385
  %v2710 = vunpack.c.l.b16 %v2386
  %v2711 = vunpack.c.h.b16 %v2386
  %v2712 = vunpack.c.l.b16 %v2387
  %v2713 = vunpack.c.h.b16 %v2387
  %v2714 = vunpack.c.l.b16 %v2388
  %v2715 = vunpack.c.h.b16 %v2388
  %v2716 = vunpack.c.l.b16 %v2389
  %v2717 = vunpack.c.h.b16 %v2389
  %v2718 = vunpack.c.l.b16 %v2390
  %v2719 = vunpack.c.h.b16 %v2390
  %v2720 = vunpack.c.l.b16 %v2391
  %v2721 = vunpack.c.h.b16 %v2391
  %v2722 = vunpack.c.l.b16 %v2392
  %v2723 = vunpack.c.h.b16 %v2392
  %v2724 = vunpack.c.l.b16 %v2393
  %v2725 = vunpack.c.h.b16 %v2393
  %v2726 = vunpack.c.l.b16 %v2394
  %v2727 = vunpack.c.h.b16 %v2394
  %v2728 = vunpack.c.l.b16 %v2395
  %v2729 = vunpack.c.h.b16 %v2395
  %v2730 = vunpack.c.l.b16 %v2396
  %v2731 = vunpack.c.h.b16 %v2396
  %v2732 = vunpack.c.l.b16 %v2397
  %v2733 = vunpack.c.h.b16 %v2397
  %v2734 = vunpack.c.l.b16 %v2398
  %v2735 = vunpack.c.h.b16 %v2398
  %v2736 = vunpack.c.l.b16 %v2399
  %v2737 = vunpack.c.h.b16 %v2399
  %v2738 = vunpack.c.l.b16 %v2400
  %v2739 = vunpack.c.h.b16 %v2400
  %v2740 = vunpack.c.l.b16 %v2401
  %v2741 = vunpack.c.h.b16 %v2401
  %v2742 = vunpack.c.l.b16 %v2402
  %v2743 = vunpack.c.h.b16 %v2402
  %v2744 = vunpack.c.l.b16 %v2403
  %v2745 = vunpack.c.h.b16 %v2403
  %v2746 = vunpack.c.l.b16 %v2404
  %v2747 = vunpack.c.h.b16 %v2404
  %v2748 = vunpack.c.l.b16 %v2405
  %v2749 = vunpack.c.h.b16 %v2405
  %v2750 = vunpack.c.l.b16 %v2406
  %v2751 = vunpack.c.h.b16 %v2406
  %v2752 = vunpack.c.l.b16 %v2407
  %v2753 = vunpack.c.h.b16 %v2407
  %v2754 = vunpack.c.l.b16 %v2408
  %v2755 = vunpack.c.h.b16 %v2408
  %v2756 = vunpack.c.l.b16 %v2409
  %v2757 = vunpack.c.h.b16 %v2409
  %v2758 = vunpack.c.l.b16 %v2410
  %v2759 = vunpack.c.h.b16 %v2410
  %v2760 = vunpack.c.l.b16 %v2411
  %v2761 = vunpack.c.h.b16 %v2411
  %v2762 = vunpack.c.l.b16 %v2412
  %v2763 = vunpack.c.h.b16 %v2412
  %v2764 = vpack.c.b16 %v2704, %v2700
  %v2765 = vpack.c.b16 %v2705, %v2701
  %v2766 = vpack.c.b16 %v2706, %v2702
  %v2767 = vpack.c.b16 %v2707, %v2703
  %v2768 = vpack.c.b16 %v2712, %v2708
  %v2769 = vpack.c.b16 %v2713, %v2709
  %v2770 = vpack.c.b16 %v2714, %v2710
  %v2771 = vpack.c.b16 %v2715, %v2711
  %v2772 = vpack.c.b16 %v2720, %v2716
  %v2773 = vpack.c.b16 %v2721, %v2717
  %v2774 = vpack.c.b16 %v2722, %v2718
  %v2775 = vpack.c.b16 %v2723, %v2719
  %v2776 = vpack.c.b16 %v2728, %v2724
  %v2777 = vpack.c.b16 %v2729, %v2725
  %v2778 = vpack.c.b16 %v2730, %v2726
  %v2779 = vpack.c.b16 %v2731, %v2727
  %v2780 = vpack.c.b16 %v2736, %v2732
  %v2781 = vpack.c.b16 %v2737, %v2733
  %v2782 = vpack.c.b16 %v2738, %v2734
  %v2783 = vpack.c.b16 %v2739, %v2735
  %v2784 = vpack.c.b16 %v2744, %v2740
  %v2785 = vpack.c.b16 %v2745, %v2741
  %v2786 = vpack.c.b16 %v2746, %v2742
  %v2787 = vpack.c.b16 %v2747, %v2743
  %v2788 = vpack.c.b16 %v2752, %v2748
  %v2789 = vpack.c.b16 %v2753, %v2749
  %v2790 = vpack.c.b16 %v2754, %v2750
  %v2791 = vpack.c.b16 %v2755, %v2751
  %v2792 = vpack.c.b16 %v2760, %v2756
  %v2793 = vpack.c.b16 %v2761, %v2757
  %v2794 = vpack.c.b16 %v2762, %v2758
  %v2795 = vpack.c.b16 %v2763, %v2759
  %2828 = vmatprep.subr.bf16.mxu0 %v2765
  %2829 = vmatpush1.bf16.msra.mxu0 %v2764
  %2830 = vmatprep.subr.bf16.mxu0 %v2769
  %2831 = vmatpush1.bf16.msra.mxu0 %v2768
  %2832 = vmatprep.subr.bf16.mxu0 %v2773
  %2833 = vmatpush1.bf16.msra.mxu0 %v2772
  %2834 = vmatprep.subr.bf16.mxu0 %v2777
  %2835 = vmatpush1.bf16.msra.mxu0 %v2776
  %2836 = vmatprep.subr.bf16.mxu0 %v2781
  %2837 = vmatpush1.bf16.msra.mxu0 %v2780
  %2838 = vmatprep.subr.bf16.mxu0 %v2785
  %2839 = vmatpush1.bf16.msra.mxu0 %v2784
  %2840 = vmatprep.subr.bf16.mxu0 %v2789
  %2841 = vmatpush1.bf16.msra.mxu0 %v2788
  %2842 = vmatprep.subr.bf16.mxu0 %v2793
  %2843 = vmatpush1.bf16.msra.mxu0 %v2792
  %2844 = vmatprep.subr.bf16.mxu0 0
  %2845 = vmatpush1.bf16.msra.mxu0 0
  %2846 = vmatprep.subr.bf16.mxu0 0
  %2847 = vmatpush1.bf16.msra.mxu0 0
  %2848 = vmatprep.subr.bf16.mxu0 0
  %2849 = vmatpush1.bf16.msra.mxu0 0
  %2850 = vmatprep.subr.bf16.mxu0 0
  %2851 = vmatpush1.bf16.msra.mxu0 0
  %2852 = vmatprep.subr.bf16.mxu0 0
  %2853 = vmatpush1.bf16.msra.mxu0 0
  %2854 = vmatprep.subr.bf16.mxu0 0
  %2855 = vmatpush1.bf16.msra.mxu0 0
  %2856 = vmatprep.subr.bf16.mxu0 0
  %2857 = vmatpush1.bf16.msra.mxu0 0
  %2858 = vmatprep.subr.bf16.mxu0 0
  %2859 = vmatpush1.bf16.msra.mxu0 0
  %2860 = vmatprep.mubr.bf16.mxu0 0
  %2861 = vmatmul.mubr.bf16.gmra.mrb[0].mxu0 0
  %v2862 = vpop.f32.mrb[0].mxu0
  %v2863 = vadd.f32 0.0, %v2862
  %v2864 = vpop.f32.mrb[0].mxu0
  %v2865 = vadd.f32 0.0, %v2864
  %v2866 = vpop.f32.mrb[0].mxu0
  %v2867 = vpop.f32.mrb[0].mxu0
  %2868 = vdwg.mxu0
  %2869 = vmatprep.subr.bf16.mxu0 %v2767
  %2870 = vmatpush1.bf16.msra.mxu0 %v2766
  %2871 = vmatprep.subr.bf16.mxu0 %v2771
  %2872 = vmatpush1.bf16.msra.mxu0 %v2770
  %2873 = vmatprep.subr.bf16.mxu0 %v2775
  %2874 = vmatpush1.bf16.msra.mxu0 %v2774
  %2875 = vmatprep.subr.bf16.mxu0 %v2779
  %2876 = vmatpush1.bf16.msra.mxu0 %v2778
  %2877 = vmatprep.subr.bf16.mxu0 %v2783
  %2878 = vmatpush1.bf16.msra.mxu0 %v2782
  %2879 = vmatprep.subr.bf16.mxu0 %v2787
  %2880 = vmatpush1.bf16.msra.mxu0 %v2786
  %2881 = vmatprep.subr.bf16.mxu0 %v2791
  %2882 = vmatpush1.bf16.msra.mxu0 %v2790
  %2883 = vmatprep.subr.bf16.mxu0 %v2795
  %2884 = vmatpush1.bf16.msra.mxu0 %v2794
  %2885 = vmatprep.subr.bf16.mxu0 0
  %2886 = vmatpush1.bf16.msra.mxu0 0
  %2887 = vmatprep.subr.bf16.mxu0 0
  %2888 = vmatpush1.bf16.msra.mxu0 0
  %2889 = vmatprep.subr.bf16.mxu0 0
  %2890 = vmatpush1.bf16.msra.mxu0 0
  %2891 = vmatprep.subr.bf16.mxu0 0
  %2892 = vmatpush1.bf16.msra.mxu0 0
  %2893 = vmatprep.subr.bf16.mxu0 0
  %2894 = vmatpush1.bf16.msra.mxu0 0
  %2895 = vmatprep.subr.bf16.mxu0 0
  %2896 = vmatpush1.bf16.msra.mxu0 0
  %2897 = vmatprep.subr.bf16.mxu0 0
  %2898 = vmatpush1.bf16.msra.mxu0 0
  %2899 = vmatprep.subr.bf16.mxu0 0
  %2900 = vmatpush1.bf16.msra.mxu0 0
  %2901 = vmatprep.mubr.bf16.mxu0 0
  %2902 = vmatmul.mubr.bf16.gmra.mrb[0].mxu0 0
  %v2903 = vpop.f32.mrb[0].mxu0
  %v2904 = vadd.f32 0.0, %v2903
  %v2905 = vpop.f32.mrb[0].mxu0
  %v2906 = vadd.f32 0.0, %v2905
  %v2907 = vpop.f32.mrb[0].mxu0
  %v2908 = vpop.f32.mrb[0].mxu0
  %2909 = vdwg.mxu0
  %v2910 = vadd.f32 %v2664, %v2863
  %v2911 = vadd.f32 %v2665, %v2865
  %v2912 = vadd.f32 %v2666, %v2904
  %v2913 = vadd.f32 %v2667, %v2906
  %v2914 = vxor.u32 %v2659, 2147483648
  %v2915 = vmul.f32 %v2914, 1.442695
  %v2916 = vpow.pop %v2915
  %v2917 = vadd.f32 %v2916, 1.0
  %v2918 = vrcp.pop %v2917
  %v2919 = vmul.f32 1.0, %v2918
  %v2920 = vxor.u32 %v2660, 2147483648
  %v2921 = vmul.f32 %v2920, 1.442695
  %v2922 = vpow.pop %v2921
  %v2923 = vadd.f32 %v2922, 1.0
  %v2924 = vrcp.pop %v2923
  %v2925 = vmul.f32 1.0, %v2924
  %v2926 = vtanh.pop %v2661
  %v2927 = vxor.u32 %v2662, 2147483648
  %v2928 = vmul.f32 %v2927, 1.442695
  %v2929 = vpow.pop %v2928
  %v2930 = vadd.f32 %v2929, 1.0
  %v2931 = vrcp.pop %v2930
  %v2932 = vmul.f32 1.0, %v2931
  %v2933 = vmul.f32 %v2925, 0.0
  %v2934 = vmul.f32 %v2919, %v2926
  %v2935 = vadd.f32 %v2933, %v2934
  %v2936 = vtanh.pop %v2935
  %v2937 = vmul.f32 %v2932, %v2936
  %v2938 = vxor.u32 %v2910, 2147483648
  %v2939 = vmul.f32 %v2938, 1.442695
  %v2940 = vpow.pop %v2939
  %v2941 = vadd.f32 %v2940, 1.0
  %v2942 = vrcp.pop %v2941
  %v2943 = vmul.f32 1.0, %v2942
  %v2944 = vxor.u32 %v2911, 2147483648
  %v2945 = vmul.f32 %v2944, 1.442695
  %v2946 = vpow.pop %v2945
  %v2947 = vadd.f32 %v2946, 1.0
  %v2948 = vrcp.pop %v2947
  %v2949 = vmul.f32 1.0, %v2948
  %v2950 = vtanh.pop %v2912
  %v2951 = vxor.u32 %v2913, 2147483648
  %v2952 = vmul.f32 %v2951, 1.442695
  %v2953 = vpow.pop %v2952
  %v2954 = vadd.f32 %v2953, 1.0
  %v2955 = vrcp.pop %v2954
  %v2956 = vmul.f32 1.0, %v2955
  %v2957 = vmul.f32 %v2949, 0.0
  %v2958 = vmul.f32 %v2943, %v2950
  %v2959 = vadd.f32 %v2957, %v2958
  %v2960 = vtanh.pop %v2959
  %v2961 = vmul.f32 %v2956, %v2960
  %2962 = vst [vmem:[#allocation4] sm:$0xff] %v2937
  %s2963 = scalar_lea.vmem [#allocation5], 56
  %2964 = vst [vmem:[%s2963] sm:$0xff] %v2961
  %v2965 = vpack.c.bf16 %v2937, %v2937
  %v2966 = vpack.c.bf16 %v2961, %v2961
  %s2967 = scalar_lea.vmem [#allocation2], 32
  %v2968 = vld [vmem:[%s2967] sm:$0xff]
  %v2969 = vld [vmem:[%s2967 + $0x8] sm:$0xff]
  %v2970 = vld [vmem:[%s2967 + $0x10] sm:$0xff]
  %v2971 = vld [vmem:[%s2967 + $0x18] sm:$0xff]
  %2972 = vmatprep.subr.bf16.mxu0 %v2514
  %2973 = vmatpush1.bf16.msra.mxu0 %v2513
  %2974 = vmatprep.subr.bf16.mxu0 %v2518
  %2975 = vmatpush1.bf16.msra.mxu0 %v2517
  %2976 = vmatprep.subr.bf16.mxu0 %v2522
  %2977 = vmatpush1.bf16.msra.mxu0 %v2521
  %2978 = vmatprep.subr.bf16.mxu0 %v2526
  %2979 = vmatpush1.bf16.msra.mxu0 %v2525
  %2980 = vmatprep.subr.bf16.mxu0 %v2530
  %2981 = vmatpush1.bf16.msra.mxu0 %v2529
  %2982 = vmatprep.subr.bf16.mxu0 %v2534
  %2983 = vmatpush1.bf16.msra.mxu0 %v2533
  %2984 = vmatprep.subr.bf16.mxu0 %v2538
  %2985 = vmatpush1.bf16.msra.mxu0 %v2537
  %2986 = vmatprep.subr.bf16.mxu0 %v2542
  %2987 = vmatpush1.bf16.msra.mxu0 %v2541
  %2988 = vmatprep.subr.bf16.mxu0 0
  %2989 = vmatpush1.bf16.msra.mxu0 0
  %2990 = vmatprep.subr.bf16.mxu0 0
  %2991 = vmatpush1.bf16.msra.mxu0 0
  %2992 = vmatprep.subr.bf16.mxu0 0
  %2993 = vmatpush1.bf16.msra.mxu0 0
  %2994 = vmatprep.subr.bf16.mxu0 0
  %2995 = vmatpush1.bf16.msra.mxu0 0
  %2996 = vmatprep.subr.bf16.mxu0 0
  %2997 = vmatpush1.bf16.msra.mxu0 0
  %2998 = vmatprep.subr.bf16.mxu0 0
  %2999 = vmatpush1.bf16.msra.mxu0 0
  %3000 = vmatprep.subr.bf16.mxu0 0
  %3001 = vmatpush1.bf16.msra.mxu0 0
  %3002 = vmatprep.subr.bf16.mxu0 0
  %3003 = vmatpush1.bf16.msra.mxu0 0
  %3004 = vmatprep.mubr.bf16.mxu0 0
  %3005 = vmatmul.mubr.bf16.gmra.mrb[0].mxu0 %v2965
  %v3006 = vpop.f32.mrb[0].mxu0
  %v3007 = vadd.f32 0.0, %v3006
  %v3008 = vpop.f32.mrb[0].mxu0
  %v3009 = vadd.f32 0.0, %v3008
  %v3010 = vpop.f32.mrb[0].mxu0
  %v3011 = vpop.f32.mrb[0].mxu0
  %3012 = vdwg.mxu0
  %3013 = vmatprep.subr.bf16.mxu0 %v2516
  %3014 = vmatpush1.bf16.msra.mxu0 %v2515
  %3015 = vmatprep.subr.bf16.mxu0 %v2520
  %3016 = vmatpush1.bf16.msra.mxu0 %v2519
  %3017 = vmatprep.subr.bf16.mxu0 %v2524
  %3018 = vmatpush1.bf16.msra.mxu0 %v2523
  %3019 = vmatprep.subr.bf16.mxu0 %v2528
  %3020 = vmatpush1.bf16.msra.mxu0 %v2527
  %3021 = vmatprep.subr.bf16.mxu0 %v2532
  %3022 = vmatpush1.bf16.msra.mxu0 %v2531
  %3023 = vmatprep.subr.bf16.mxu0 %v2536
  %3024 = vmatpush1.bf16.msra.mxu0 %v2535
  %3025 = vmatprep.subr.bf16.mxu0 %v2540
  %3026 = vmatpush1.bf16.msra.mxu0 %v2539
  %3027 = vmatprep.subr.bf16.mxu0 %v2544
  %3028 = vmatpush1.bf16.msra.mxu0 %v2543
  %3029 = vmatprep.subr.bf16.mxu0 0
  %3030 = vmatpush1.bf16.msra.mxu0 0
  %3031 = vmatprep.subr.bf16.mxu0 0
  %3032 = vmatpush1.bf16.msra.mxu0 0
  %3033 = vmatprep.subr.bf16.mxu0 0
  %3034 = vmatpush1.bf16.msra.mxu0 0
  %3035 = vmatprep.subr.bf16.mxu0 0
  %3036 = vmatpush1.bf16.msra.mxu0 0
  %3037 = vmatprep.subr.bf16.mxu0 0
  %3038 = vmatpush1.bf16.msra.mxu0 0
  %3039 = vmatprep.subr.bf16.mxu0 0
  %3040 = vmatpush1.bf16.msra.mxu0 0
  %3041 = vmatprep.subr.bf16.mxu0 0
  %3042 = vmatpush1.bf16.msra.mxu0 0
  %3043 = vmatprep.subr.bf16.mxu0 0
  %3044 = vmatpush1.bf16.msra.mxu0 0
  %3045 = vmatprep.mubr.bf16.mxu0 0
  %3046 = vmatmul.mubr.bf16.gmra.mrb[0].mxu0 %v2965
  %v3047 = vpop.f32.mrb[0].mxu0
  %v3048 = vadd.f32 0.0, %v3047
  %v3049 = vpop.f32.mrb[0].mxu0
  %v3050 = vadd.f32 0.0, %v3049
  %v3051 = vpop.f32.mrb[0].mxu0
  %v3052 = vpop.f32.mrb[0].mxu0
  %3053 = vdwg.mxu0
  %v3054 = vadd.f32 %v2968, %v3007
  %v3055 = vadd.f32 %v2969, %v3009
  %v3056 = vadd.f32 %v2970, %v3048
  %v3057 = vadd.f32 %v2971, %v3050
  %s3058 = scalar_lea.vmem [#allocation3], 192
  %v3059 = vld [vmem:[%s3058] sm:$0xff]
  %v3060 = vld [vmem:[%s3058 + $0x8] sm:$0xff]
  %v3061 = vld [vmem:[%s3058 + $0x10] sm:$0xff]
  %v3062 = vld [vmem:[%s3058 + $0x18] sm:$0xff]
  %3063 = vmatprep.subr.bf16.mxu0 %v2765
  %3064 = vmatpush1.bf16.msra.mxu0 %v2764
  %3065 = vmatprep.subr.bf16.mxu0 %v2769
  %3066 = vmatpush1.bf16.msra.mxu0 %v2768
  %3067 = vmatprep.subr.bf16.mxu0 %v2773
  %3068 = vmatpush1.bf16.msra.mxu0 %v2772
  %3069 = vmatprep.subr.bf16.mxu0 %v2777
  %3070 = vmatpush1.bf16.msra.mxu0 %v2776
  %3071 = vmatprep.subr.bf16.mxu0 %v2781
  %3072 = vmatpush1.bf16.msra.mxu0 %v2780
  %3073 = vmatprep.subr.bf16.mxu0 %v2785
  %3074 = vmatpush1.bf16.msra.mxu0 %v2784
  %3075 = vmatprep.subr.bf16.mxu0 %v2789
  %3076 = vmatpush1.bf16.msra.mxu0 %v2788
  %3077 = vmatprep.subr.bf16.mxu0 %v2793
  %3078 = vmatpush1.bf16.msra.mxu0 %v2792
  %3079 = vmatprep.subr.bf16.mxu0 0
  %3080 = vmatpush1.bf16.msra.mxu0 0
  %3081 = vmatprep.subr.bf16.mxu0 0
  %3082 = vmatpush1.bf16.msra.mxu0 0
  %3083 = vmatprep.subr.bf16.mxu0 0
  %3084 = vmatpush1.bf16.msra.mxu0 0
  %3085 = vmatprep.subr.bf16.mxu0 0
  %3086 = vmatpush1.bf16.msra.mxu0 0
  %3087 = vmatprep.subr.bf16.mxu0 0
  %3088 = vmatpush1.bf16.msra.mxu0 0
  %3089 = vmatprep.subr.bf16.mxu0 0
  %3090 = vmatpush1.bf16.msra.mxu0 0
  %3091 = vmatprep.subr.bf16.mxu0 0
  %3092 = vmatpush1.bf16.msra.mxu0 0
  %3093 = vmatprep.subr.bf16.mxu0 0
  %3094 = vmatpush1.bf16.msra.mxu0 0
  %3095 = vmatprep.mubr.bf16.mxu0 0
  %3096 = vmatmul.mubr.bf16.gmra.mrb[0].mxu0 %v2966
  %v3097 = vpop.f32.mrb[0].mxu0
  %v3098 = vadd.f32 0.0, %v3097
  %v3099 = vpop.f32.mrb[0].mxu0
  %v3100 = vadd.f32 0.0, %v3099
  %v3101 = vpop.f32.mrb[0].mxu0
  %v3102 = vpop.f32.mrb[0].mxu0
  %3103 = vdwg.mxu0
  %3104 = vmatprep.subr.bf16.mxu0 %v2767
  %3105 = vmatpush1.bf16.msra.mxu0 %v2766
  %3106 = vmatprep.subr.bf16.mxu0 %v2771
  %3107 = vmatpush1.bf16.msra.mxu0 %v2770
  %3108 = vmatprep.subr.bf16.mxu0 %v2775
  %3109 = vmatpush1.bf16.msra.mxu0 %v2774
  %3110 = vmatprep.subr.bf16.mxu0 %v2779
  %3111 = vmatpush1.bf16.msra.mxu0 %v2778
  %3112 = vmatprep.subr.bf16.mxu0 %v2783
  %3113 = vmatpush1.bf16.msra.mxu0 %v2782
  %3114 = vmatprep.subr.bf16.mxu0 %v2787
  %3115 = vmatpush1.bf16.msra.mxu0 %v2786
  %3116 = vmatprep.subr.bf16.mxu0 %v2791
  %3117 = vmatpush1.bf16.msra.mxu0 %v2790
  %3118 = vmatprep.subr.bf16.mxu0 %v2795
  %3119 = vmatpush1.bf16.msra.mxu0 %v2794
  %3120 = vmatprep.subr.bf16.mxu0 0
  %3121 = vmatpush1.bf16.msra.mxu0 0
  %3122 = vmatprep.subr.bf16.mxu0 0
  %3123 = vmatpush1.bf16.msra.mxu0 0
  %3124 = vmatprep.subr.bf16.mxu0 0
  %3125 = vmatpush1.bf16.msra.mxu0 0
  %3126 = vmatprep.subr.bf16.mxu0 0
  %3127 = vmatpush1.bf16.msra.mxu0 0
  %3128 = vmatprep.subr.bf16.mxu0 0
  %3129 = vmatpush1.bf16.msra.mxu0 0
  %3130 = vmatprep.subr.bf16.mxu0 0
  %3131 = vmatpush1.bf16.msra.mxu0 0
  %3132 = vmatprep.subr.bf16.mxu0 0
  %3133 = vmatpush1.bf16.msra.mxu0 0
  %3134 = vmatprep.subr.bf16.mxu0 0
  %3135 = vmatpush1.bf16.msra.mxu0 0
  %3136 = vmatprep.mubr.bf16.mxu0 0
  %3137 = vmatmul.mubr.bf16.gmra.mrb[0].mxu0 %v2966
  %v3138 = vpop.f32.mrb[0].mxu0
  %v3139 = vadd.f32 0.0, %v3138
  %v3140 = vpop.f32.mrb[0].mxu0
  %v3141 = vadd.f32 0.0, %v3140
  %v3142 = vpop.f32.mrb[0].mxu0
  %v3143 = vpop.f32.mrb[0].mxu0
  %3144 = vdwg.mxu0
  %v3145 = vadd.f32 %v3059, %v3098
  %v3146 = vadd.f32 %v3060, %v3100
  %v3147 = vadd.f32 %v3061, %v3139
  %v3148 = vadd.f32 %v3062, %v3141
  %v3149 = vxor.u32 %v3054, 2147483648
  %v3150 = vmul.f32 %v3149, 1.442695
  %v3151 = vpow.pop %v3150
  %v3152 = vadd.f32 %v3151, 1.0
  %v3153 = vrcp.pop %v3152
  %v3154 = vmul.f32 1.0, %v3153
  %v3155 = vxor.u32 %v3055, 2147483648
  %v3156 = vmul.f32 %v3155, 1.442695
  %v3157 = vpow.pop %v3156
  %v3158 = vadd.f32 %v3157, 1.0
  %v3159 = vrcp.pop %v3158
  %v3160 = vmul.f32 1.0, %v3159
  %v3161 = vtanh.pop %v3056
  %v3162 = vxor.u32 %v3057, 2147483648
  %v3163 = vmul.f32 %v3162, 1.442695
  %v3164 = vpow.pop %v3163
  %v3165 = vadd.f32 %v3164, 1.0
  %v3166 = vrcp.pop %v3165
  %v3167 = vmul.f32 1.0, %v3166
  %v3168 = vmul.f32 %v3160, %v2935
  %v3169 = vmul.f32 %v3154, %v3161
  %v3170 = vadd.f32 %v3168, %v3169
  %v3171 = vtanh.pop %v3170
  %v3172 = vmul.f32 %v3167, %v3171
  %v3173 = vxor.u32 %v3145, 2147483648
  %v3174 = vmul.f32 %v3173, 1.442695
  %v3175 = vpow.pop %v3174
  %v3176 = vadd.f32 %v3175, 1.0
  %v3177 = vrcp.pop %v3176
  %v3178 = vmul.f32 1.0, %v3177
  %v3179 = vxor.u32 %v3146, 2147483648
  %v3180 = vmul.f32 %v3179, 1.442695
  %v3181 = vpow.pop %v3180
  %v3182 = vadd.f32 %v3181, 1.0
  %v3183 = vrcp.pop %v3182
  %v3184 = vmul.f32 1.0, %v3183
  %v3185 = vtanh.pop %v3147
  %v3186 = vxor.u32 %v3148, 2147483648
  %v3187 = vmul.f32 %v3186, 1.442695
  %v3188 = vpow.pop %v3187
  %v3189 = vadd.f32 %v3188, 1.0
  %v3190 = vrcp.pop %v3189
  %v3191 = vmul.f32 1.0, %v3190
  %v3192 = vmul.f32 %v3184, %v2959
  %v3193 = vmul.f32 %v3178, %v3185
  %v3194 = vadd.f32 %v3192, %v3193
  %v3195 = vtanh.pop %v3194
  %v3196 = vmul.f32 %v3191, %v3195
  %s3197 = scalar_lea.vmem [#allocation4], 8
  %3198 = vst [vmem:[%s3197] sm:$0xff] %v3172
  %s3199 = scalar_lea.vmem [#allocation5], 48
  %3200 = vst [vmem:[%s3199] sm:$0xff] %v3196
  %v3201 = vpack.c.bf16 %v3172, %v3172
  %v3202 = vpack.c.bf16 %v3196, %v3196
  %s3203 = scalar_lea.vmem [#allocation2], 64
  %v3204 = vld [vmem:[%s3203] sm:$0xff]
  %v3205 = vld [vmem:[%s3203 + $0x8] sm:$0xff]
  %v3206 = vld [vmem:[%s3203 + $0x10] sm:$0xff]
  %v3207 = vld [vmem:[%s3203 + $0x18] sm:$0xff]
  %3208 = vmatprep.subr.bf16.mxu0 %v2514
  %3209 = vmatpush1.bf16.msra.mxu0 %v2513
  %3210 = vmatprep.subr.bf16.mxu0 %v2518
  %3211 = vmatpush1.bf16.msra.mxu0 %v2517
  %3212 = vmatprep.subr.bf16.mxu0 %v2522
  %3213 = vmatpush1.bf16.msra.mxu0 %v2521
  %3214 = vmatprep.subr.bf16.mxu0 %v2526
  %3215 = vmatpush1.bf16.msra.mxu0 %v2525
  %3216 = vmatprep.subr.bf16.mxu0 %v2530
  %3217 = vmatpush1.bf16.msra.mxu0 %v2529
  %3218 = vmatprep.subr.bf16.mxu0 %v2534
  %3219 = vmatpush1.bf16.msra.mxu0 %v2533
  %3220 = vmatprep.subr.bf16.mxu0 %v2538
  %3221 = vmatpush1.bf16.msra.mxu0 %v2537
  %3222 = vmatprep.subr.bf16.mxu0 %v2542
  %3223 = vmatpush1.bf16.msra.mxu0 %v2541
  %3224 = vmatprep.subr.bf16.mxu0 0
  %3225 = vmatpush1.bf16.msra.mxu0 0
  %3226 = vmatprep.subr.bf16.mxu0 0
  %3227 = vmatpush1.bf16.msra.mxu0 0
  %3228 = vmatprep.subr.bf16.mxu0 0
  %3229 = vmatpush1.bf16.msra.mxu0 0
  %3230 = vmatprep.subr.bf16.mxu0 0
  %3231 = vmatpush1.bf16.msra.mxu0 0
  %3232 = vmatprep.subr.bf16.mxu0 0
  %3233 = vmatpush1.bf16.msra.mxu0 0
  %3234 = vmatprep.subr.bf16.mxu0 0
  %3235 = vmatpush1.bf16.msra.mxu0 0
  %3236 = vmatprep.subr.bf16.mxu0 0
  %3237 = vmatpush1.bf16.msra.mxu0 0
  %3238 = vmatprep.subr.bf16.mxu0 0
  %3239 = vmatpush1.bf16.msra.mxu0 0
  %3240 = vmatprep.mubr.bf16.mxu0 0
  %3241 = vmatmul.mubr.bf16.gmra.mrb[0].mxu0 %v3201
  %v3242 = vpop.f32.mrb[0].mxu0
  %v3243 = vadd.f32 0.0, %v3242
  %v3244 = vpop.f32.mrb[0].mxu0
  %v3245 = vadd.f32 0.0, %v3244
  %v3246 = vpop.f32.mrb[0].mxu0
  %v3247 = vpop.f32.mrb[0].mxu0
  %3248 = vdwg.mxu0
  %3249 = vmatprep.subr.bf16.mxu0 %v2516
  %3250 = vmatpush1.bf16.msra.mxu0 %v2515
  %3251 = vmatprep.subr.bf16.mxu0 %v2520
  %3252 = vmatpush1.bf16.msra.mxu0 %v2519
  %3253 = vmatprep.subr.bf16.mxu0 %v2524
  %3254 = vmatpush1.bf16.msra.mxu0 %v2523
  %3255 = vmatprep.subr.bf16.mxu0 %v2528
  %3256 = vmatpush1.bf16.msra.mxu0 %v2527
  %3257 = vmatprep.subr.bf16.mxu0 %v2532
  %3258 = vmatpush1.bf16.msra.mxu0 %v2531
  %3259 = vmatprep.subr.bf16.mxu0 %v2536
  %3260 = vmatpush1.bf16.msra.mxu0 %v2535
  %3261 = vmatprep.subr.bf16.mxu0 %v2540
  %3262 = vmatpush1.bf16.msra.mxu0 %v2539
  %3263 = vmatprep.subr.bf16.mxu0 %v2544
  %3264 = vmatpush1.bf16.msra.mxu0 %v2543
  %3265 = vmatprep.subr.bf16.mxu0 0
  %3266 = vmatpush1.bf16.msra.mxu0 0
  %3267 = vmatprep.subr.bf16.mxu0 0
  %3268 = vmatpush1.bf16.msra.mxu0 0
  %3269 = vmatprep.subr.bf16.mxu0 0
  %3270 = vmatpush1.bf16.msra.mxu0 0
  %3271 = vmatprep.subr.bf16.mxu0 0
  %3272 = vmatpush1.bf16.msra.mxu0 0
  %3273 = vmatprep.subr.bf16.mxu0 0
  %3274 = vmatpush1.bf16.msra.mxu0 0
  %3275 = vmatprep.subr.bf16.mxu0 0
  %3276 = vmatpush1.bf16.msra.mxu0 0
  %3277 = vmatprep.subr.bf16.mxu0 0
  %3278 = vmatpush1.bf16.msra.mxu0 0
  %3279 = vmatprep.subr.bf16.mxu0 0
  %3280 = vmatpush1.bf16.msra.mxu0 0
  %3281 = vmatprep.mubr.bf16.mxu0 0
  %3282 = vmatmul.mubr.bf16.gmra.mrb[0].mxu0 %v3201
  %v3283 = vpop.f32.mrb[0].mxu0
  %v3284 = vadd.f32 0.0, %v3283
  %v3285 = vpop.f32.mrb[0].mxu0
  %v3286 = vadd.f32 0.0, %v3285
  %v3287 = vpop.f32.mrb[0].mxu0
  %v3288 = vpop.f32.mrb[0].mxu0
  %3289 = vdwg.mxu0
  %v3290 = vadd.f32 %v3204, %v3243
  %v3291 = vadd.f32 %v3205, %v3245
  %v3292 = vadd.f32 %v3206, %v3284
  %v3293 = vadd.f32 %v3207, %v3286
  %s3294 = scalar_lea.vmem [#allocation3], 160
  %v3295 = vld [vmem:[%s3294] sm:$0xff]
  %v3296 = vld [vmem:[%s3294 + $0x8] sm:$0xff]
  %v3297 = vld [vmem:[%s3294 + $0x10] sm:$0xff]
  %v3298 = vld [vmem:[%s3294 + $0x18] sm:$0xff]
  %3299 = vmatprep.subr.bf16.mxu0 %v2765
  %3300 = vmatpush1.bf16.msra.mxu0 %v2764
  %3301 = vmatprep.subr.bf16.mxu0 %v2769
  %3302 = vmatpush1.bf16.msra.mxu0 %v2768
  %3303 = vmatprep.subr.bf16.mxu0 %v2773
  %3304 = vmatpush1.bf16.msra.mxu0 %v2772
  %3305 = vmatprep.subr.bf16.mxu0 %v2777
  %3306 = vmatpush1.bf16.msra.mxu0 %v2776
  %3307 = vmatprep.subr.bf16.mxu0 %v2781
  %3308 = vmatpush1.bf16.msra.mxu0 %v2780
  %3309 = vmatprep.subr.bf16.mxu0 %v2785
  %3310 = vmatpush1.bf16.msra.mxu0 %v2784
  %3311 = vmatprep.subr.bf16.mxu0 %v2789
  %3312 = vmatpush1.bf16.msra.mxu0 %v2788
  %3313 = vmatprep.subr.bf16.mxu0 %v2793
  %3314 = vmatpush1.bf16.msra.mxu0 %v2792
  %3315 = vmatprep.subr.bf16.mxu0 0
  %3316 = vmatpush1.bf16.msra.mxu0 0
  %3317 = vmatprep.subr.bf16.mxu0 0
  %3318 = vmatpush1.bf16.msra.mxu0 0
  %3319 = vmatprep.subr.bf16.mxu0 0
  %3320 = vmatpush1.bf16.msra.mxu0 0
  %3321 = vmatprep.subr.bf16.mxu0 0
  %3322 = vmatpush1.bf16.msra.mxu0 0
  %3323 = vmatprep.subr.bf16.mxu0 0
  %3324 = vmatpush1.bf16.msra.mxu0 0
  %3325 = vmatprep.subr.bf16.mxu0 0
  %3326 = vmatpush1.bf16.msra.mxu0 0
  %3327 = vmatprep.subr.bf16.mxu0 0
  %3328 = vmatpush1.bf16.msra.mxu0 0
  %3329 = vmatprep.subr.bf16.mxu0 0
  %3330 = vmatpush1.bf16.msra.mxu0 0
  %3331 = vmatprep.mubr.bf16.mxu0 0
  %3332 = vmatmul.mubr.bf16.gmra.mrb[0].mxu0 %v3202
  %v3333 = vpop.f32.mrb[0].mxu0
  %v3334 = vadd.f32 0.0, %v3333
  %v3335 = vpop.f32.mrb[0].mxu0
  %v3336 = vadd.f32 0.0, %v3335
  %v3337 = vpop.f32.mrb[0].mxu0
  %v3338 = vpop.f32.mrb[0].mxu0
  %3339 = vdwg.mxu0
  %3340 = vmatprep.subr.bf16.mxu0 %v2767
  %3341 = vmatpush1.bf16.msra.mxu0 %v2766
  %3342 = vmatprep.subr.bf16.mxu0 %v2771
  %3343 = vmatpush1.bf16.msra.mxu0 %v2770
  %3344 = vmatprep.subr.bf16.mxu0 %v2775
  %3345 = vmatpush1.bf16.msra.mxu0 %v2774
  %3346 = vmatprep.subr.bf16.mxu0 %v2779
  %3347 = vmatpush1.bf16.msra.mxu0 %v2778
  %3348 = vmatprep.subr.bf16.mxu0 %v2783
  %3349 = vmatpush1.bf16.msra.mxu0 %v2782
  %3350 = vmatprep.subr.bf16.mxu0 %v2787
  %3351 = vmatpush1.bf16.msra.mxu0 %v2786
  %3352 = vmatprep.subr.bf16.mxu0 %v2791
  %3353 = vmatpush1.bf16.msra.mxu0 %v2790
  %3354 = vmatprep.subr.bf16.mxu0 %v2795
  %3355 = vmatpush1.bf16.msra.mxu0 %v2794
  %3356 = vmatprep.subr.bf16.mxu0 0
  %3357 = vmatpush1.bf16.msra.mxu0 0
  %3358 = vmatprep.subr.bf16.mxu0 0
  %3359 = vmatpush1.bf16.msra.mxu0 0
  %3360 = vmatprep.subr.bf16.mxu0 0
  %3361 = vmatpush1.bf16.msra.mxu0 0
  %3362 = vmatprep.subr.bf16.mxu0 0
  %3363 = vmatpush1.bf16.msra.mxu0 0
  %3364 = vmatprep.subr.bf16.mxu0 0
  %3365 = vmatpush1.bf16.msra.mxu0 0
  %3366 = vmatprep.subr.bf16.mxu0 0
  %3367 = vmatpush1.bf16.msra.mxu0 0
  %3368 = vmatprep.subr.bf16.mxu0 0
  %3369 = vmatpush1.bf16.msra.mxu0 0
  %3370 = vmatprep.subr.bf16.mxu0 0
  %3371 = vmatpush1.bf16.msra.mxu0 0
  %3372 = vmatprep.mubr.bf16.mxu0 0
  %3373 = vmatmul.mubr.bf16.gmra.mrb[0].mxu0 %v3202
  %v3374 = vpop.f32.mrb[0].mxu0
  %v3375 = vadd.f32 0.0, %v3374
  %v3376 = vpop.f32.mrb[0].mxu0
  %v3377 = vadd.f32 0.0, %v3376
  %v3378 = vpop.f32.mrb[0].mxu0
  %v3379 = vpop.f32.mrb[0].mxu0
  %3380 = vdwg.mxu0
  %v3381 = vadd.f32 %v3295, %v3334
  %v3382 = vadd.f32 %v3296, %v3336
  %v3383 = vadd.f32 %v3297, %v3375
  %v3384 = vadd.f32 %v3298, %v3377
  %v3385 = vxor.u32 %v3290, 2147483648
  %v3386 = vmul.f32 %v3385, 1.442695
  %v3387 = vpow.pop %v3386
  %v3388 = vadd.f32 %v3387, 1.0
  %v3389 = vrcp.pop %v3388
  %v3390 = vmul.f32 1.0, %v3389
  %v3391 = vxor.u32 %v3291, 2147483648
  %v3392 = vmul.f32 %v3391, 1.442695
  %v3393 = vpow.pop %v3392
  %v3394 = vadd.f32 %v3393, 1.0
  %v3395 = vrcp.pop %v3394
  %v3396 = vmul.f32 1.0, %v3395
  %v3397 = vtanh.pop %v3292
  %v3398 = vxor.u32 %v3293, 2147483648
  %v3399 = vmul.f32 %v3398, 1.442695
  %v3400 = vpow.pop %v3399
  %v3401 = vadd.f32 %v3400, 1.0
  %v3402 = vrcp.pop %v3401
  %v3403 = vmul.f32 1.0, %v3402
  %v3404 = vmul.f32 %v3396, %v3170
  %v3405 = vmul.f32 %v3390, %v3397
  %v3406 = vadd.f32 %v3404, %v3405
  %v3407 = vtanh.pop %v3406
  %v3408 = vmul.f32 %v3403, %v3407
  %v3409 = vxor.u32 %v3381, 2147483648
  %v3410 = vmul.f32 %v3409, 1.442695
  %v3411 = vpow.pop %v3410
  %v3412 = vadd.f32 %v3411, 1.0
  %v3413 = vrcp.pop %v3412
  %v3414 = vmul.f32 1.0, %v3413
  %v3415 = vxor.u32 %v3382, 2147483648
  %v3416 = vmul.f32 %v3415, 1.442695
  %v3417 = vpow.pop %v3416
  %v3418 = vadd.f32 %v3417, 1.0
  %v3419 = vrcp.pop %v3418
  %v3420 = vmul.f32 1.0, %v3419
  %v3421 = vtanh.pop %v3383
  %v3422 = vxor.u32 %v3384, 2147483648
  %v3423 = vmul.f32 %v3422, 1.442695
  %v3424 = vpow.pop %v3423
  %v3425 = vadd.f32 %v3424, 1.0
  %v3426 = vrcp.pop %v3425
  %v3427 = vmul.f32 1.0, %v3426
  %v3428 = vmul.f32 %v3420, %v3194
  %v3429 = vmul.f32 %v3414, %v3421
  %v3430 = vadd.f32 %v3428, %v3429
  %v3431 = vtanh.pop %v3430
  %v3432 = vmul.f32 %v3427, %v3431
  %s3433 = scalar_lea.vmem [#allocation4], 16
  %3434 = vst [vmem:[%s3433] sm:$0xff] %v3408
  %s3435 = scalar_lea.vmem [#allocation5], 40
  %3436 = vst [vmem:[%s3435] sm:$0xff] %v3432
  %v3437 = vpack.c.bf16 %v3408, %v3408
  %v3438 = vpack.c.bf16 %v3432, %v3432
  %s3439 = scalar_lea.vmem [#allocation2], 96
  %v3440 = vld [vmem:[%s3439] sm:$0xff]
  %v3441 = vld [vmem:[%s3439 + $0x8] sm:$0xff]
  %v3442 = vld [vmem:[%s3439 + $0x10] sm:$0xff]
  %v3443 = vld [vmem:[%s3439 + $0x18] sm:$0xff]
  %3444 = vmatprep.subr.bf16.mxu0 %v2514
  %3445 = vmatpush1.bf16.msra.mxu0 %v2513
  %3446 = vmatprep.subr.bf16.mxu0 %v2518
  %3447 = vmatpush1.bf16.msra.mxu0 %v2517
  %3448 = vmatprep.subr.bf16.mxu0 %v2522
  %3449 = vmatpush1.bf16.msra.mxu0 %v2521
  %3450 = vmatprep.subr.bf16.mxu0 %v2526
  %3451 = vmatpush1.bf16.msra.mxu0 %v2525
  %3452 = vmatprep.subr.bf16.mxu0 %v2530
  %3453 = vmatpush1.bf16.msra.mxu0 %v2529
  %3454 = vmatprep.subr.bf16.mxu0 %v2534
  %3455 = vmatpush1.bf16.msra.mxu0 %v2533
  %3456 = vmatprep.subr.bf16.mxu0 %v2538
  %3457 = vmatpush1.bf16.msra.mxu0 %v2537
  %3458 = vmatprep.subr.bf16.mxu0 %v2542
  %3459 = vmatpush1.bf16.msra.mxu0 %v2541
  %3460 = vmatprep.subr.bf16.mxu0 0
  %3461 = vmatpush1.bf16.msra.mxu0 0
  %3462 = vmatprep.subr.bf16.mxu0 0
  %3463 = vmatpush1.bf16.msra.mxu0 0
  %3464 = vmatprep.subr.bf16.mxu0 0
  %3465 = vmatpush1.bf16.msra.mxu0 0
  %3466 = vmatprep.subr.bf16.mxu0 0
  %3467 = vmatpush1.bf16.msra.mxu0 0
  %3468 = vmatprep.subr.bf16.mxu0 0
  %3469 = vmatpush1.bf16.msra.mxu0 0
  %3470 = vmatprep.subr.bf16.mxu0 0
  %3471 = vmatpush1.bf16.msra.mxu0 0
  %3472 = vmatprep.subr.bf16.mxu0 0
  %3473 = vmatpush1.bf16.msra.mxu0 0
  %3474 = vmatprep.subr.bf16.mxu0 0
  %3475 = vmatpush1.bf16.msra.mxu0 0
  %3476 = vmatprep.mubr.bf16.mxu0 0
  %3477 = vmatmul.mubr.bf16.gmra.mrb[0].mxu0 %v3437
  %v3478 = vpop.f32.mrb[0].mxu0
  %v3479 = vadd.f32 0.0, %v3478
  %v3480 = vpop.f32.mrb[0].mxu0
  %v3481 = vadd.f32 0.0, %v3480
  %v3482 = vpop.f32.mrb[0].mxu0
  %v3483 = vpop.f32.mrb[0].mxu0
  %3484 = vdwg.mxu0
  %3485 = vmatprep.subr.bf16.mxu0 %v2516
  %3486 = vmatpush1.bf16.msra.mxu0 %v2515
  %3487 = vmatprep.subr.bf16.mxu0 %v2520
  %3488 = vmatpush1.bf16.msra.mxu0 %v2519
  %3489 = vmatprep.subr.bf16.mxu0 %v2524
  %3490 = vmatpush1.bf16.msra.mxu0 %v2523
  %3491 = vmatprep.subr.bf16.mxu0 %v2528
  %3492 = vmatpush1.bf16.msra.mxu0 %v2527
  %3493 = vmatprep.subr.bf16.mxu0 %v2532
  %3494 = vmatpush1.bf16.msra.mxu0 %v2531
  %3495 = vmatprep.subr.bf16.mxu0 %v2536
  %3496 = vmatpush1.bf16.msra.mxu0 %v2535
  %3497 = vmatprep.subr.bf16.mxu0 %v2540
  %3498 = vmatpush1.bf16.msra.mxu0 %v2539
  %3499 = vmatprep.subr.bf16.mxu0 %v2544
  %3500 = vmatpush1.bf16.msra.mxu0 %v2543
  %3501 = vmatprep.subr.bf16.mxu0 0
  %3502 = vmatpush1.bf16.msra.mxu0 0
  %3503 = vmatprep.subr.bf16.mxu0 0
  %3504 = vmatpush1.bf16.msra.mxu0 0
  %3505 = vmatprep.subr.bf16.mxu0 0
  %3506 = vmatpush1.bf16.msra.mxu0 0
  %3507 = vmatprep.subr.bf16.mxu0 0
  %3508 = vmatpush1.bf16.msra.mxu0 0
  %3509 = vmatprep.subr.bf16.mxu0 0
  %3510 = vmatpush1.bf16.msra.mxu0 0
  %3511 = vmatprep.subr.bf16.mxu0 0
  %3512 = vmatpush1.bf16.msra.mxu0 0
  %3513 = vmatprep.subr.bf16.mxu0 0
  %3514 = vmatpush1.bf16.msra.mxu0 0
  %3515 = vmatprep.subr.bf16.mxu0 0
  %3516 = vmatpush1.bf16.msra.mxu0 0
  %3517 = vmatprep.mubr.bf16.mxu0 0
  %3518 = vmatmul.mubr.bf16.gmra.mrb[0].mxu0 %v3437
  %v3519 = vpop.f32.mrb[0].mxu0
  %v3520 = vadd.f32 0.0, %v3519
  %v3521 = vpop.f32.mrb[0].mxu0
  %v3522 = vadd.f32 0.0, %v3521
  %v3523 = vpop.f32.mrb[0].mxu0
  %v3524 = vpop.f32.mrb[0].mxu0
  %3525 = vdwg.mxu0
  %v3526 = vadd.f32 %v3440, %v3479
  %v3527 = vadd.f32 %v3441, %v3481
  %v3528 = vadd.f32 %v3442, %v3520
  %v3529 = vadd.f32 %v3443, %v3522
  %s3530 = scalar_lea.vmem [#allocation3], 128
  %v3531 = vld [vmem:[%s3530] sm:$0xff]
  %v3532 = vld [vmem:[%s3530 + $0x8] sm:$0xff]
  %v3533 = vld [vmem:[%s3530 + $0x10] sm:$0xff]
  %v3534 = vld [vmem:[%s3530 + $0x18] sm:$0xff]
  %3535 = vmatprep.subr.bf16.mxu0 %v2765
  %3536 = vmatpush1.bf16.msra.mxu0 %v2764
  %3537 = vmatprep.subr.bf16.mxu0 %v2769
  %3538 = vmatpush1.bf16.msra.mxu0 %v2768
  %3539 = vmatprep.subr.bf16.mxu0 %v2773
  %3540 = vmatpush1.bf16.msra.mxu0 %v2772
  %3541 = vmatprep.subr.bf16.mxu0 %v2777
  %3542 = vmatpush1.bf16.msra.mxu0 %v2776
  %3543 = vmatprep.subr.bf16.mxu0 %v2781
  %3544 = vmatpush1.bf16.msra.mxu0 %v2780
  %3545 = vmatprep.subr.bf16.mxu0 %v2785
  %3546 = vmatpush1.bf16.msra.mxu0 %v2784
  %3547 = vmatprep.subr.bf16.mxu0 %v2789
  %3548 = vmatpush1.bf16.msra.mxu0 %v2788
  %3549 = vmatprep.subr.bf16.mxu0 %v2793
  %3550 = vmatpush1.bf16.msra.mxu0 %v2792
  %3551 = vmatprep.subr.bf16.mxu0 0
  %3552 = vmatpush1.bf16.msra.mxu0 0
  %3553 = vmatprep.subr.bf16.mxu0 0
  %3554 = vmatpush1.bf16.msra.mxu0 0
  %3555 = vmatprep.subr.bf16.mxu0 0
  %3556 = vmatpush1.bf16.msra.mxu0 0
  %3557 = vmatprep.subr.bf16.mxu0 0
  %3558 = vmatpush1.bf16.msra.mxu0 0
  %3559 = vmatprep.subr.bf16.mxu0 0
  %3560 = vmatpush1.bf16.msra.mxu0 0
  %3561 = vmatprep.subr.bf16.mxu0 0
  %3562 = vmatpush1.bf16.msra.mxu0 0
  %3563 = vmatprep.subr.bf16.mxu0 0
  %3564 = vmatpush1.bf16.msra.mxu0 0
  %3565 = vmatprep.subr.bf16.mxu0 0
  %3566 = vmatpush1.bf16.msra.mxu0 0
  %3567 = vmatprep.mubr.bf16.mxu0 0
  %3568 = vmatmul.mubr.bf16.gmra.mrb[0].mxu0 %v3438
  %v3569 = vpop.f32.mrb[0].mxu0
  %v3570 = vadd.f32 0.0, %v3569
  %v3571 = vpop.f32.mrb[0].mxu0
  %v3572 = vadd.f32 0.0, %v3571
  %v3573 = vpop.f32.mrb[0].mxu0
  %v3574 = vpop.f32.mrb[0].mxu0
  %3575 = vdwg.mxu0
  %3576 = vmatprep.subr.bf16.mxu0 %v2767
  %3577 = vmatpush1.bf16.msra.mxu0 %v2766
  %3578 = vmatprep.subr.bf16.mxu0 %v2771
  %3579 = vmatpush1.bf16.msra.mxu0 %v2770
  %3580 = vmatprep.subr.bf16.mxu0 %v2775
  %3581 = vmatpush1.bf16.msra.mxu0 %v2774
  %3582 = vmatprep.subr.bf16.mxu0 %v2779
  %3583 = vmatpush1.bf16.msra.mxu0 %v2778
  %3584 = vmatprep.subr.bf16.mxu0 %v2783
  %3585 = vmatpush1.bf16.msra.mxu0 %v2782
  %3586 = vmatprep.subr.bf16.mxu0 %v2787
  %3587 = vmatpush1.bf16.msra.mxu0 %v2786
  %3588 = vmatprep.subr.bf16.mxu0 %v2791
  %3589 = vmatpush1.bf16.msra.mxu0 %v2790
  %3590 = vmatprep.subr.bf16.mxu0 %v2795
  %3591 = vmatpush1.bf16.msra.mxu0 %v2794
  %3592 = vmatprep.subr.bf16.mxu0 0
  %3593 = vmatpush1.bf16.msra.mxu0 0
  %3594 = vmatprep.subr.bf16.mxu0 0
  %3595 = vmatpush1.bf16.msra.mxu0 0
  %3596 = vmatprep.subr.bf16.mxu0 0
  %3597 = vmatpush1.bf16.msra.mxu0 0
  %3598 = vmatprep.subr.bf16.mxu0 0
  %3599 = vmatpush1.bf16.msra.mxu0 0
  %3600 = vmatprep.subr.bf16.mxu0 0
  %3601 = vmatpush1.bf16.msra.mxu0 0
  %3602 = vmatprep.subr.bf16.mxu0 0
  %3603 = vmatpush1.bf16.msra.mxu0 0
  %3604 = vmatprep.subr.bf16.mxu0 0
  %3605 = vmatpush1.bf16.msra.mxu0 0
  %3606 = vmatprep.subr.bf16.mxu0 0
  %3607 = vmatpush1.bf16.msra.mxu0 0
  %3608 = vmatprep.mubr.bf16.mxu0 0
  %3609 = vmatmul.mubr.bf16.gmra.mrb[0].mxu0 %v3438
  %v3610 = vpop.f32.mrb[0].mxu0
  %v3611 = vadd.f32 0.0, %v3610
  %v3612 = vpop.f32.mrb[0].mxu0
  %v3613 = vadd.f32 0.0, %v3612
  %v3614 = vpop.f32.mrb[0].mxu0
  %v3615 = vpop.f32.mrb[0].mxu0
  %3616 = vdwg.mxu0
  %v3617 = vadd.f32 %v3531, %v3570
  %v3618 = vadd.f32 %v3532, %v3572
  %v3619 = vadd.f32 %v3533, %v3611
  %v3620 = vadd.f32 %v3534, %v3613
  %v3621 = vxor.u32 %v3526, 2147483648
  %v3622 = vmul.f32 %v3621, 1.442695
  %v3623 = vpow.pop %v3622
  %v3624 = vadd.f32 %v3623, 1.0
  %v3625 = vrcp.pop %v3624
  %v3626 = vmul.f32 1.0, %v3625
  %v3627 = vxor.u32 %v3527, 2147483648
  %v3628 = vmul.f32 %v3627, 1.442695
  %v3629 = vpow.pop %v3628
  %v3630 = vadd.f32 %v3629, 1.0
  %v3631 = vrcp.pop %v3630
  %v3632 = vmul.f32 1.0, %v3631
  %v3633 = vtanh.pop %v3528
  %v3634 = vxor.u32 %v3529, 2147483648
  %v3635 = vmul.f32 %v3634, 1.442695
  %v3636 = vpow.pop %v3635
  %v3637 = vadd.f32 %v3636, 1.0
  %v3638 = vrcp.pop %v3637
  %v3639 = vmul.f32 1.0, %v3638
  %v3640 = vmul.f32 %v3632, %v3406
  %v3641 = vmul.f32 %v3626, %v3633
  %v3642 = vadd.f32 %v3640, %v3641
  %v3643 = vtanh.pop %v3642
  %v3644 = vmul.f32 %v3639, %v3643
  %v3645 = vxor.u32 %v3617, 2147483648
  %v3646 = vmul.f32 %v3645, 1.442695
  %v3647 = vpow.pop %v3646
  %v3648 = vadd.f32 %v3647, 1.0
  %v3649 = vrcp.pop %v3648
  %v3650 = vmul.f32 1.0, %v3649
  %v3651 = vxor.u32 %v3618, 2147483648
  %v3652 = vmul.f32 %v3651, 1.442695
  %v3653 = vpow.pop %v3652
  %v3654 = vadd.f32 %v3653, 1.0
  %v3655 = vrcp.pop %v3654
  %v3656 = vmul.f32 1.0, %v3655
  %v3657 = vtanh.pop %v3619
  %v3658 = vxor.u32 %v3620, 2147483648
  %v3659 = vmul.f32 %v3658, 1.442695
  %v3660 = vpow.pop %v3659
  %v3661 = vadd.f32 %v3660, 1.0
  %v3662 = vrcp.pop %v3661
  %v3663 = vmul.f32 1.0, %v3662
  %v3664 = vmul.f32 %v3656, %v3430
  %v3665 = vmul.f32 %v3650, %v3657
  %v3666 = vadd.f32 %v3664, %v3665
  %v3667 = vtanh.pop %v3666
  %v3668 = vmul.f32 %v3663, %v3667
  %s3669 = scalar_lea.vmem [#allocation4], 24
  %3670 = vst [vmem:[%s3669] sm:$0xff] %v3644
  %s3671 = scalar_lea.vmem [#allocation5], 32
  %3672 = vst [vmem:[%s3671] sm:$0xff] %v3668
  %v3673 = vpack.c.bf16 %v3644, %v3644
  %v3674 = vpack.c.bf16 %v3668, %v3668
  %s3675 = scalar_lea.vmem [#allocation2], 128
  %v3676 = vld [vmem:[%s3675] sm:$0xff]
  %v3677 = vld [vmem:[%s3675 + $0x8] sm:$0xff]
  %v3678 = vld [vmem:[%s3675 + $0x10] sm:$0xff]
  %v3679 = vld [vmem:[%s3675 + $0x18] sm:$0xff]
  %3680 = vmatprep.subr.bf16.mxu0 %v2514
  %3681 = vmatpush1.bf16.msra.mxu0 %v2513
  %3682 = vmatprep.subr.bf16.mxu0 %v2518
  %3683 = vmatpush1.bf16.msra.mxu0 %v2517
  %3684 = vmatprep.subr.bf16.mxu0 %v2522
  %3685 = vmatpush1.bf16.msra.mxu0 %v2521
  %3686 = vmatprep.subr.bf16.mxu0 %v2526
  %3687 = vmatpush1.bf16.msra.mxu0 %v2525
  %3688 = vmatprep.subr.bf16.mxu0 %v2530
  %3689 = vmatpush1.bf16.msra.mxu0 %v2529
  %3690 = vmatprep.subr.bf16.mxu0 %v2534
  %3691 = vmatpush1.bf16.msra.mxu0 %v2533
  %3692 = vmatprep.subr.bf16.mxu0 %v2538
  %3693 = vmatpush1.bf16.msra.mxu0 %v2537
  %3694 = vmatprep.subr.bf16.mxu0 %v2542
  %3695 = vmatpush1.bf16.msra.mxu0 %v2541
  %3696 = vmatprep.subr.bf16.mxu0 0
  %3697 = vmatpush1.bf16.msra.mxu0 0
  %3698 = vmatprep.subr.bf16.mxu0 0
  %3699 = vmatpush1.bf16.msra.mxu0 0
  %3700 = vmatprep.subr.bf16.mxu0 0
  %3701 = vmatpush1.bf16.msra.mxu0 0
  %3702 = vmatprep.subr.bf16.mxu0 0
  %3703 = vmatpush1.bf16.msra.mxu0 0
  %3704 = vmatprep.subr.bf16.mxu0 0
  %3705 = vmatpush1.bf16.msra.mxu0 0
  %3706 = vmatprep.subr.bf16.mxu0 0
  %3707 = vmatpush1.bf16.msra.mxu0 0
  %3708 = vmatprep.subr.bf16.mxu0 0
  %3709 = vmatpush1.bf16.msra.mxu0 0
  %3710 = vmatprep.subr.bf16.mxu0 0
  %3711 = vmatpush1.bf16.msra.mxu0 0
  %3712 = vmatprep.mubr.bf16.mxu0 0
  %3713 = vmatmul.mubr.bf16.gmra.mrb[0].mxu0 %v3673
  %v3714 = vpop.f32.mrb[0].mxu0
  %v3715 = vadd.f32 0.0, %v3714
  %v3716 = vpop.f32.mrb[0].mxu0
  %v3717 = vadd.f32 0.0, %v3716
  %v3718 = vpop.f32.mrb[0].mxu0
  %v3719 = vpop.f32.mrb[0].mxu0
  %3720 = vdwg.mxu0
  %3721 = vmatprep.subr.bf16.mxu0 %v2516
  %3722 = vmatpush1.bf16.msra.mxu0 %v2515
  %3723 = vmatprep.subr.bf16.mxu0 %v2520
  %3724 = vmatpush1.bf16.msra.mxu0 %v2519
  %3725 = vmatprep.subr.bf16.mxu0 %v2524
  %3726 = vmatpush1.bf16.msra.mxu0 %v2523
  %3727 = vmatprep.subr.bf16.mxu0 %v2528
  %3728 = vmatpush1.bf16.msra.mxu0 %v2527
  %3729 = vmatprep.subr.bf16.mxu0 %v2532
  %3730 = vmatpush1.bf16.msra.mxu0 %v2531
  %3731 = vmatprep.subr.bf16.mxu0 %v2536
  %3732 = vmatpush1.bf16.msra.mxu0 %v2535
  %3733 = vmatprep.subr.bf16.mxu0 %v2540
  %3734 = vmatpush1.bf16.msra.mxu0 %v2539
  %3735 = vmatprep.subr.bf16.mxu0 %v2544
  %3736 = vmatpush1.bf16.msra.mxu0 %v2543
  %3737 = vmatprep.subr.bf16.mxu0 0
  %3738 = vmatpush1.bf16.msra.mxu0 0
  %3739 = vmatprep.subr.bf16.mxu0 0
  %3740 = vmatpush1.bf16.msra.mxu0 0
  %3741 = vmatprep.subr.bf16.mxu0 0
  %3742 = vmatpush1.bf16.msra.mxu0 0
  %3743 = vmatprep.subr.bf16.mxu0 0
  %3744 = vmatpush1.bf16.msra.mxu0 0
  %3745 = vmatprep.subr.bf16.mxu0 0
  %3746 = vmatpush1.bf16.msra.mxu0 0
  %3747 = vmatprep.subr.bf16.mxu0 0
  %3748 = vmatpush1.bf16.msra.mxu0 0
  %3749 = vmatprep.subr.bf16.mxu0 0
  %3750 = vmatpush1.bf16.msra.mxu0 0
  %3751 = vmatprep.subr.bf16.mxu0 0
  %3752 = vmatpush1.bf16.msra.mxu0 0
  %3753 = vmatprep.mubr.bf16.mxu0 0
  %3754 = vmatmul.mubr.bf16.gmra.mrb[0].mxu0 %v3673
  %v3755 = vpop.f32.mrb[0].mxu0
  %v3756 = vadd.f32 0.0, %v3755
  %v3757 = vpop.f32.mrb[0].mxu0
  %v3758 = vadd.f32 0.0, %v3757
  %v3759 = vpop.f32.mrb[0].mxu0
  %v3760 = vpop.f32.mrb[0].mxu0
  %3761 = vdwg.mxu0
  %v3762 = vadd.f32 %v3676, %v3715
  %v3763 = vadd.f32 %v3677, %v3717
  %v3764 = vadd.f32 %v3678, %v3756
  %v3765 = vadd.f32 %v3679, %v3758
  %s3766 = scalar_lea.vmem [#allocation3], 96
  %v3767 = vld [vmem:[%s3766] sm:$0xff]
  %v3768 = vld [vmem:[%s3766 + $0x8] sm:$0xff]
  %v3769 = vld [vmem:[%s3766 + $0x10] sm:$0xff]
  %v3770 = vld [vmem:[%s3766 + $0x18] sm:$0xff]
  %3771 = vmatprep.subr.bf16.mxu0 %v2765
  %3772 = vmatpush1.bf16.msra.mxu0 %v2764
  %3773 = vmatprep.subr.bf16.mxu0 %v2769
  %3774 = vmatpush1.bf16.msra.mxu0 %v2768
  %3775 = vmatprep.subr.bf16.mxu0 %v2773
  %3776 = vmatpush1.bf16.msra.mxu0 %v2772
  %3777 = vmatprep.subr.bf16.mxu0 %v2777
  %3778 = vmatpush1.bf16.msra.mxu0 %v2776
  %3779 = vmatprep.subr.bf16.mxu0 %v2781
  %3780 = vmatpush1.bf16.msra.mxu0 %v2780
  %3781 = vmatprep.subr.bf16.mxu0 %v2785
  %3782 = vmatpush1.bf16.msra.mxu0 %v2784
  %3783 = vmatprep.subr.bf16.mxu0 %v2789
  %3784 = vmatpush1.bf16.msra.mxu0 %v2788
  %3785 = vmatprep.subr.bf16.mxu0 %v2793
  %3786 = vmatpush1.bf16.msra.mxu0 %v2792
  %3787 = vmatprep.subr.bf16.mxu0 0
  %3788 = vmatpush1.bf16.msra.mxu0 0
  %3789 = vmatprep.subr.bf16.mxu0 0
  %3790 = vmatpush1.bf16.msra.mxu0 0
  %3791 = vmatprep.subr.bf16.mxu0 0
  %3792 = vmatpush1.bf16.msra.mxu0 0
  %3793 = vmatprep.subr.bf16.mxu0 0
  %3794 = vmatpush1.bf16.msra.mxu0 0
  %3795 = vmatprep.subr.bf16.mxu0 0
  %3796 = vmatpush1.bf16.msra.mxu0 0
  %3797 = vmatprep.subr.bf16.mxu0 0
  %3798 = vmatpush1.bf16.msra.mxu0 0
  %3799 = vmatprep.subr.bf16.mxu0 0
  %3800 = vmatpush1.bf16.msra.mxu0 0
  %3801 = vmatprep.subr.bf16.mxu0 0
  %3802 = vmatpush1.bf16.msra.mxu0 0
  %3803 = vmatprep.mubr.bf16.mxu0 0
  %3804 = vmatmul.mubr.bf16.gmra.mrb[0].mxu0 %v3674
  %v3805 = vpop.f32.mrb[0].mxu0
  %v3806 = vadd.f32 0.0, %v3805
  %v3807 = vpop.f32.mrb[0].mxu0
  %v3808 = vadd.f32 0.0, %v3807
  %v3809 = vpop.f32.mrb[0].mxu0
  %v3810 = vpop.f32.mrb[0].mxu0
  %3811 = vdwg.mxu0
  %3812 = vmatprep.subr.bf16.mxu0 %v2767
  %3813 = vmatpush1.bf16.msra.mxu0 %v2766
  %3814 = vmatprep.subr.bf16.mxu0 %v2771
  %3815 = vmatpush1.bf16.msra.mxu0 %v2770
  %3816 = vmatprep.subr.bf16.mxu0 %v2775
  %3817 = vmatpush1.bf16.msra.mxu0 %v2774
  %3818 = vmatprep.subr.bf16.mxu0 %v2779
  %3819 = vmatpush1.bf16.msra.mxu0 %v2778
  %3820 = vmatprep.subr.bf16.mxu0 %v2783
  %3821 = vmatpush1.bf16.msra.mxu0 %v2782
  %3822 = vmatprep.subr.bf16.mxu0 %v2787
  %3823 = vmatpush1.bf16.msra.mxu0 %v2786
  %3824 = vmatprep.subr.bf16.mxu0 %v2791
  %3825 = vmatpush1.bf16.msra.mxu0 %v2790
  %3826 = vmatprep.subr.bf16.mxu0 %v2795
  %3827 = vmatpush1.bf16.msra.mxu0 %v2794
  %3828 = vmatprep.subr.bf16.mxu0 0
  %3829 = vmatpush1.bf16.msra.mxu0 0
  %3830 = vmatprep.subr.bf16.mxu0 0
  %3831 = vmatpush1.bf16.msra.mxu0 0
  %3832 = vmatprep.subr.bf16.mxu0 0
  %3833 = vmatpush1.bf16.msra.mxu0 0
  %3834 = vmatprep.subr.bf16.mxu0 0
  %3835 = vmatpush1.bf16.msra.mxu0 0
  %3836 = vmatprep.subr.bf16.mxu0 0
  %3837 = vmatpush1.bf16.msra.mxu0 0
  %3838 = vmatprep.subr.bf16.mxu0 0
  %3839 = vmatpush1.bf16.msra.mxu0 0
  %3840 = vmatprep.subr.bf16.mxu0 0
  %3841 = vmatpush1.bf16.msra.mxu0 0
  %3842 = vmatprep.subr.bf16.mxu0 0
  %3843 = vmatpush1.bf16.msra.mxu0 0
  %3844 = vmatprep.mubr.bf16.mxu0 0
  %3845 = vmatmul.mubr.bf16.gmra.mrb[0].mxu0 %v3674
  %v3846 = vpop.f32.mrb[0].mxu0
  %v3847 = vadd.f32 0.0, %v3846
  %v3848 = vpop.f32.mrb[0].mxu0
  %v3849 = vadd.f32 0.0, %v3848
  %v3850 = vpop.f32.mrb[0].mxu0
  %v3851 = vpop.f32.mrb[0].mxu0
  %3852 = vdwg.mxu0
  %v3853 = vadd.f32 %v3767, %v3806
  %v3854 = vadd.f32 %v3768, %v3808
  %v3855 = vadd.f32 %v3769, %v3847
  %v3856 = vadd.f32 %v3770, %v3849
  %v3857 = vxor.u32 %v3762, 2147483648
  %v3858 = vmul.f32 %v3857, 1.442695
  %v3859 = vpow.pop %v3858
  %v3860 = vadd.f32 %v3859, 1.0
  %v3861 = vrcp.pop %v3860
  %v3862 = vmul.f32 1.0, %v3861
  %v3863 = vxor.u32 %v3763, 2147483648
  %v3864 = vmul.f32 %v3863, 1.442695
  %v3865 = vpow.pop %v3864
  %v3866 = vadd.f32 %v3865, 1.0
  %v3867 = vrcp.pop %v3866
  %v3868 = vmul.f32 1.0, %v3867
  %v3869 = vtanh.pop %v3764
  %v3870 = vxor.u32 %v3765, 2147483648
  %v3871 = vmul.f32 %v3870, 1.442695
  %v3872 = vpow.pop %v3871
  %v3873 = vadd.f32 %v3872, 1.0
  %v3874 = vrcp.pop %v3873
  %v3875 = vmul.f32 1.0, %v3874
  %v3876 = vmul.f32 %v3868, %v3642
  %v3877 = vmul.f32 %v3862, %v3869
  %v3878 = vadd.f32 %v3876, %v3877
  %v3879 = vtanh.pop %v3878
  %v3880 = vmul.f32 %v3875, %v3879
  %v3881 = vxor.u32 %v3853, 2147483648
  %v3882 = vmul.f32 %v3881, 1.442695
  %v3883 = vpow.pop %v3882
  %v3884 = vadd.f32 %v3883, 1.0
  %v3885 = vrcp.pop %v3884
  %v3886 = vmul.f32 1.0, %v3885
  %v3887 = vxor.u32 %v3854, 2147483648
  %v3888 = vmul.f32 %v3887, 1.442695
  %v3889 = vpow.pop %v3888
  %v3890 = vadd.f32 %v3889, 1.0
  %v3891 = vrcp.pop %v3890
  %v3892 = vmul.f32 1.0, %v3891
  %v3893 = vtanh.pop %v3855
  %v3894 = vxor.u32 %v3856, 2147483648
  %v3895 = vmul.f32 %v3894, 1.442695
  %v3896 = vpow.pop %v3895
  %v3897 = vadd.f32 %v3896, 1.0
  %v3898 = vrcp.pop %v3897
  %v3899 = vmul.f32 1.0, %v3898
  %v3900 = vmul.f32 %v3892, %v3666
  %v3901 = vmul.f32 %v3886, %v3893
  %v3902 = vadd.f32 %v3900, %v3901
  %v3903 = vtanh.pop %v3902
  %v3904 = vmul.f32 %v3899, %v3903
  %s3905 = scalar_lea.vmem [#allocation4], 32
  %3906 = vst [vmem:[%s3905] sm:$0xff] %v3880
  %s3907 = scalar_lea.vmem [#allocation5], 24
  %3908 = vst [vmem:[%s3907] sm:$0xff] %v3904
  %v3909 = vpack.c.bf16 %v3880, %v3880
  %v3910 = vpack.c.bf16 %v3904, %v3904
  %s3911 = scalar_lea.vmem [#allocation2], 160
  %v3912 = vld [vmem:[%s3911] sm:$0xff]
  %v3913 = vld [vmem:[%s3911 + $0x8] sm:$0xff]
  %v3914 = vld [vmem:[%s3911 + $0x10] sm:$0xff]
  %v3915 = vld [vmem:[%s3911 + $0x18] sm:$0xff]
  %3916 = vmatprep.subr.bf16.mxu0 %v2514
  %3917 = vmatpush1.bf16.msra.mxu0 %v2513
  %3918 = vmatprep.subr.bf16.mxu0 %v2518
  %3919 = vmatpush1.bf16.msra.mxu0 %v2517
  %3920 = vmatprep.subr.bf16.mxu0 %v2522
  %3921 = vmatpush1.bf16.msra.mxu0 %v2521
  %3922 = vmatprep.subr.bf16.mxu0 %v2526
  %3923 = vmatpush1.bf16.msra.mxu0 %v2525
  %3924 = vmatprep.subr.bf16.mxu0 %v2530
  %3925 = vmatpush1.bf16.msra.mxu0 %v2529
  %3926 = vmatprep.subr.bf16.mxu0 %v2534
  %3927 = vmatpush1.bf16.msra.mxu0 %v2533
  %3928 = vmatprep.subr.bf16.mxu0 %v2538
  %3929 = vmatpush1.bf16.msra.mxu0 %v2537
  %3930 = vmatprep.subr.bf16.mxu0 %v2542
  %3931 = vmatpush1.bf16.msra.mxu0 %v2541
  %3932 = vmatprep.subr.bf16.mxu0 0
  %3933 = vmatpush1.bf16.msra.mxu0 0
  %3934 = vmatprep.subr.bf16.mxu0 0
  %3935 = vmatpush1.bf16.msra.mxu0 0
  %3936 = vmatprep.subr.bf16.mxu0 0
  %3937 = vmatpush1.bf16.msra.mxu0 0
  %3938 = vmatprep.subr.bf16.mxu0 0
  %3939 = vmatpush1.bf16.msra.mxu0 0
  %3940 = vmatprep.subr.bf16.mxu0 0
  %3941 = vmatpush1.bf16.msra.mxu0 0
  %3942 = vmatprep.subr.bf16.mxu0 0
  %3943 = vmatpush1.bf16.msra.mxu0 0
  %3944 = vmatprep.subr.bf16.mxu0 0
  %3945 = vmatpush1.bf16.msra.mxu0 0
  %3946 = vmatprep.subr.bf16.mxu0 0
  %3947 = vmatpush1.bf16.msra.mxu0 0
  %3948 = vmatprep.mubr.bf16.mxu0 0
  %3949 = vmatmul.mubr.bf16.gmra.mrb[0].mxu0 %v3909
  %v3950 = vpop.f32.mrb[0].mxu0
  %v3951 = vadd.f32 0.0, %v3950
  %v3952 = vpop.f32.mrb[0].mxu0
  %v3953 = vadd.f32 0.0, %v3952
  %v3954 = vpop.f32.mrb[0].mxu0
  %v3955 = vpop.f32.mrb[0].mxu0
  %3956 = vdwg.mxu0
  %3957 = vmatprep.subr.bf16.mxu0 %v2516
  %3958 = vmatpush1.bf16.msra.mxu0 %v2515
  %3959 = vmatprep.subr.bf16.mxu0 %v2520
  %3960 = vmatpush1.bf16.msra.mxu0 %v2519
  %3961 = vmatprep.subr.bf16.mxu0 %v2524
  %3962 = vmatpush1.bf16.msra.mxu0 %v2523
  %3963 = vmatprep.subr.bf16.mxu0 %v2528
  %3964 = vmatpush1.bf16.msra.mxu0 %v2527
  %3965 = vmatprep.subr.bf16.mxu0 %v2532
  %3966 = vmatpush1.bf16.msra.mxu0 %v2531
  %3967 = vmatprep.subr.bf16.mxu0 %v2536
  %3968 = vmatpush1.bf16.msra.mxu0 %v2535
  %3969 = vmatprep.subr.bf16.mxu0 %v2540
  %3970 = vmatpush1.bf16.msra.mxu0 %v2539
  %3971 = vmatprep.subr.bf16.mxu0 %v2544
  %3972 = vmatpush1.bf16.msra.mxu0 %v2543
  %3973 = vmatprep.subr.bf16.mxu0 0
  %3974 = vmatpush1.bf16.msra.mxu0 0
  %3975 = vmatprep.subr.bf16.mxu0 0
  %3976 = vmatpush1.bf16.msra.mxu0 0
  %3977 = vmatprep.subr.bf16.mxu0 0
  %3978 = vmatpush1.bf16.msra.mxu0 0
  %3979 = vmatprep.subr.bf16.mxu0 0
  %3980 = vmatpush1.bf16.msra.mxu0 0
  %3981 = vmatprep.subr.bf16.mxu0 0
  %3982 = vmatpush1.bf16.msra.mxu0 0
  %3983 = vmatprep.subr.bf16.mxu0 0
  %3984 = vmatpush1.bf16.msra.mxu0 0
  %3985 = vmatprep.subr.bf16.mxu0 0
  %3986 = vmatpush1.bf16.msra.mxu0 0
  %3987 = vmatprep.subr.bf16.mxu0 0
  %3988 = vmatpush1.bf16.msra.mxu0 0
  %3989 = vmatprep.mubr.bf16.mxu0 0
  %3990 = vmatmul.mubr.bf16.gmra.mrb[0].mxu0 %v3909
  %v3991 = vpop.f32.mrb[0].mxu0
  %v3992 = vadd.f32 0.0, %v3991
  %v3993 = vpop.f32.mrb[0].mxu0
  %v3994 = vadd.f32 0.0, %v3993
  %v3995 = vpop.f32.mrb[0].mxu0
  %v3996 = vpop.f32.mrb[0].mxu0
  %3997 = vdwg.mxu0
  %v3998 = vadd.f32 %v3912, %v3951
  %v3999 = vadd.f32 %v3913, %v3953
  %v4000 = vadd.f32 %v3914, %v3992
  %v4001 = vadd.f32 %v3915, %v3994
  %s4002 = scalar_lea.vmem [#allocation3], 64
  %v4003 = vld [vmem:[%s4002] sm:$0xff]
  %v4004 = vld [vmem:[%s4002 + $0x8] sm:$0xff]
  %v4005 = vld [vmem:[%s4002 + $0x10] sm:$0xff]
  %v4006 = vld [vmem:[%s4002 + $0x18] sm:$0xff]
  %4007 = vmatprep.subr.bf16.mxu0 %v2765
  %4008 = vmatpush1.bf16.msra.mxu0 %v2764
  %4009 = vmatprep.subr.bf16.mxu0 %v2769
  %4010 = vmatpush1.bf16.msra.mxu0 %v2768
  %4011 = vmatprep.subr.bf16.mxu0 %v2773
  %4012 = vmatpush1.bf16.msra.mxu0 %v2772
  %4013 = vmatprep.subr.bf16.mxu0 %v2777
  %4014 = vmatpush1.bf16.msra.mxu0 %v2776
  %4015 = vmatprep.subr.bf16.mxu0 %v2781
  %4016 = vmatpush1.bf16.msra.mxu0 %v2780
  %4017 = vmatprep.subr.bf16.mxu0 %v2785
  %4018 = vmatpush1.bf16.msra.mxu0 %v2784
  %4019 = vmatprep.subr.bf16.mxu0 %v2789
  %4020 = vmatpush1.bf16.msra.mxu0 %v2788
  %4021 = vmatprep.subr.bf16.mxu0 %v2793
  %4022 = vmatpush1.bf16.msra.mxu0 %v2792
  %4023 = vmatprep.subr.bf16.mxu0 0
  %4024 = vmatpush1.bf16.msra.mxu0 0
  %4025 = vmatprep.subr.bf16.mxu0 0
  %4026 = vmatpush1.bf16.msra.mxu0 0
  %4027 = vmatprep.subr.bf16.mxu0 0
  %4028 = vmatpush1.bf16.msra.mxu0 0
  %4029 = vmatprep.subr.bf16.mxu0 0
  %4030 = vmatpush1.bf16.msra.mxu0 0
  %4031 = vmatprep.subr.bf16.mxu0 0
  %4032 = vmatpush1.bf16.msra.mxu0 0
  %4033 = vmatprep.subr.bf16.mxu0 0
  %4034 = vmatpush1.bf16.msra.mxu0 0
  %4035 = vmatprep.subr.bf16.mxu0 0
  %4036 = vmatpush1.bf16.msra.mxu0 0
  %4037 = vmatprep.subr.bf16.mxu0 0
  %4038 = vmatpush1.bf16.msra.mxu0 0
  %4039 = vmatprep.mubr.bf16.mxu0 0
  %4040 = vmatmul.mubr.bf16.gmra.mrb[0].mxu0 %v3910
  %v4041 = vpop.f32.mrb[0].mxu0
  %v4042 = vadd.f32 0.0, %v4041
  %v4043 = vpop.f32.mrb[0].mxu0
  %v4044 = vadd.f32 0.0, %v4043
  %v4045 = vpop.f32.mrb[0].mxu0
  %v4046 = vpop.f32.mrb[0].mxu0
  %4047 = vdwg.mxu0
  %4048 = vmatprep.subr.bf16.mxu0 %v2767
  %4049 = vmatpush1.bf16.msra.mxu0 %v2766
  %4050 = vmatprep.subr.bf16.mxu0 %v2771
  %4051 = vmatpush1.bf16.msra.mxu0 %v2770
  %4052 = vmatprep.subr.bf16.mxu0 %v2775
  %4053 = vmatpush1.bf16.msra.mxu0 %v2774
  %4054 = vmatprep.subr.bf16.mxu0 %v2779
  %4055 = vmatpush1.bf16.msra.mxu0 %v2778
  %4056 = vmatprep.subr.bf16.mxu0 %v2783
  %4057 = vmatpush1.bf16.msra.mxu0 %v2782
  %4058 = vmatprep.subr.bf16.mxu0 %v2787
  %4059 = vmatpush1.bf16.msra.mxu0 %v2786
  %4060 = vmatprep.subr.bf16.mxu0 %v2791
  %4061 = vmatpush1.bf16.msra.mxu0 %v2790
  %4062 = vmatprep.subr.bf16.mxu0 %v2795
  %4063 = vmatpush1.bf16.msra.mxu0 %v2794
  %4064 = vmatprep.subr.bf16.mxu0 0
  %4065 = vmatpush1.bf16.msra.mxu0 0
  %4066 = vmatprep.subr.bf16.mxu0 0
  %4067 = vmatpush1.bf16.msra.mxu0 0
  %4068 = vmatprep.subr.bf16.mxu0 0
  %4069 = vmatpush1.bf16.msra.mxu0 0
  %4070 = vmatprep.subr.bf16.mxu0 0
  %4071 = vmatpush1.bf16.msra.mxu0 0
  %4072 = vmatprep.subr.bf16.mxu0 0
  %4073 = vmatpush1.bf16.msra.mxu0 0
  %4074 = vmatprep.subr.bf16.mxu0 0
  %4075 = vmatpush1.bf16.msra.mxu0 0
  %4076 = vmatprep.subr.bf16.mxu0 0
  %4077 = vmatpush1.bf16.msra.mxu0 0
  %4078 = vmatprep.subr.bf16.mxu0 0
  %4079 = vmatpush1.bf16.msra.mxu0 0
  %4080 = vmatprep.mubr.bf16.mxu0 0
  %4081 = vmatmul.mubr.bf16.gmra.mrb[0].mxu0 %v3910
  %v4082 = vpop.f32.mrb[0].mxu0
  %v4083 = vadd.f32 0.0, %v4082
  %v4084 = vpop.f32.mrb[0].mxu0
  %v4085 = vadd.f32 0.0, %v4084
  %v4086 = vpop.f32.mrb[0].mxu0
  %v4087 = vpop.f32.mrb[0].mxu0
  %4088 = vdwg.mxu0
  %v4089 = vadd.f32 %v4003, %v4042
  %v4090 = vadd.f32 %v4004, %v4044
  %v4091 = vadd.f32 %v4005, %v4083
  %v4092 = vadd.f32 %v4006, %v4085
  %v4093 = vxor.u32 %v3998, 2147483648
  %v4094 = vmul.f32 %v4093, 1.442695
  %v4095 = vpow.pop %v4094
  %v4096 = vadd.f32 %v4095, 1.0
  %v4097 = vrcp.pop %v4096
  %v4098 = vmul.f32 1.0, %v4097
  %v4099 = vxor.u32 %v3999, 2147483648
  %v4100 = vmul.f32 %v4099, 1.442695
  %v4101 = vpow.pop %v4100
  %v4102 = vadd.f32 %v4101, 1.0
  %v4103 = vrcp.pop %v4102
  %v4104 = vmul.f32 1.0, %v4103
  %v4105 = vtanh.pop %v4000
  %v4106 = vxor.u32 %v4001, 2147483648
  %v4107 = vmul.f32 %v4106, 1.442695
  %v4108 = vpow.pop %v4107
  %v4109 = vadd.f32 %v4108, 1.0
  %v4110 = vrcp.pop %v4109
  %v4111 = vmul.f32 1.0, %v4110
  %v4112 = vmul.f32 %v4104, %v3878
  %v4113 = vmul.f32 %v4098, %v4105
  %v4114 = vadd.f32 %v4112, %v4113
  %v4115 = vtanh.pop %v4114
  %v4116 = vmul.f32 %v4111, %v4115
  %v4117 = vxor.u32 %v4089, 2147483648
  %v4118 = vmul.f32 %v4117, 1.442695
  %v4119 = vpow.pop %v4118
  %v4120 = vadd.f32 %v4119, 1.0
  %v4121 = vrcp.pop %v4120
  %v4122 = vmul.f32 1.0, %v4121
  %v4123 = vxor.u32 %v4090, 2147483648
  %v4124 = vmul.f32 %v4123, 1.442695
  %v4125 = vpow.pop %v4124
  %v4126 = vadd.f32 %v4125, 1.0
  %v4127 = vrcp.pop %v4126
  %v4128 = vmul.f32 1.0, %v4127
  %v4129 = vtanh.pop %v4091
  %v4130 = vxor.u32 %v4092, 2147483648
  %v4131 = vmul.f32 %v4130, 1.442695
  %v4132 = vpow.pop %v4131
  %v4133 = vadd.f32 %v4132, 1.0
  %v4134 = vrcp.pop %v4133
  %v4135 = vmul.f32 1.0, %v4134
  %v4136 = vmul.f32 %v4128, %v3902
  %v4137 = vmul.f32 %v4122, %v4129
  %v4138 = vadd.f32 %v4136, %v4137
  %v4139 = vtanh.pop %v4138
  %v4140 = vmul.f32 %v4135, %v4139
  %s4141 = scalar_lea.vmem [#allocation4], 40
  %4142 = vst [vmem:[%s4141] sm:$0xff] %v4116
  %s4143 = scalar_lea.vmem [#allocation5], 16
  %4144 = vst [vmem:[%s4143] sm:$0xff] %v4140
  %v4145 = vpack.c.bf16 %v4116, %v4116
  %v4146 = vpack.c.bf16 %v4140, %v4140
  %s4147 = scalar_lea.vmem [#allocation2], 192
  %v4148 = vld [vmem:[%s4147] sm:$0xff]
  %v4149 = vld [vmem:[%s4147 + $0x8] sm:$0xff]
  %v4150 = vld [vmem:[%s4147 + $0x10] sm:$0xff]
  %v4151 = vld [vmem:[%s4147 + $0x18] sm:$0xff]
  %4152 = vmatprep.subr.bf16.mxu0 %v2514
  %4153 = vmatpush1.bf16.msra.mxu0 %v2513
  %4154 = vmatprep.subr.bf16.mxu0 %v2518
  %4155 = vmatpush1.bf16.msra.mxu0 %v2517
  %4156 = vmatprep.subr.bf16.mxu0 %v2522
  %4157 = vmatpush1.bf16.msra.mxu0 %v2521
  %4158 = vmatprep.subr.bf16.mxu0 %v2526
  %4159 = vmatpush1.bf16.msra.mxu0 %v2525
  %4160 = vmatprep.subr.bf16.mxu0 %v2530
  %4161 = vmatpush1.bf16.msra.mxu0 %v2529
  %4162 = vmatprep.subr.bf16.mxu0 %v2534
  %4163 = vmatpush1.bf16.msra.mxu0 %v2533
  %4164 = vmatprep.subr.bf16.mxu0 %v2538
  %4165 = vmatpush1.bf16.msra.mxu0 %v2537
  %4166 = vmatprep.subr.bf16.mxu0 %v2542
  %4167 = vmatpush1.bf16.msra.mxu0 %v2541
  %4168 = vmatprep.subr.bf16.mxu0 0
  %4169 = vmatpush1.bf16.msra.mxu0 0
  %4170 = vmatprep.subr.bf16.mxu0 0
  %4171 = vmatpush1.bf16.msra.mxu0 0
  %4172 = vmatprep.subr.bf16.mxu0 0
  %4173 = vmatpush1.bf16.msra.mxu0 0
  %4174 = vmatprep.subr.bf16.mxu0 0
  %4175 = vmatpush1.bf16.msra.mxu0 0
  %4176 = vmatprep.subr.bf16.mxu0 0
  %4177 = vmatpush1.bf16.msra.mxu0 0
  %4178 = vmatprep.subr.bf16.mxu0 0
  %4179 = vmatpush1.bf16.msra.mxu0 0
  %4180 = vmatprep.subr.bf16.mxu0 0
  %4181 = vmatpush1.bf16.msra.mxu0 0
  %4182 = vmatprep.subr.bf16.mxu0 0
  %4183 = vmatpush1.bf16.msra.mxu0 0
  %4184 = vmatprep.mubr.bf16.mxu0 0
  %4185 = vmatmul.mubr.bf16.gmra.mrb[0].mxu0 %v4145
  %v4186 = vpop.f32.mrb[0].mxu0
  %v4187 = vadd.f32 0.0, %v4186
  %v4188 = vpop.f32.mrb[0].mxu0
  %v4189 = vadd.f32 0.0, %v4188
  %v4190 = vpop.f32.mrb[0].mxu0
  %v4191 = vpop.f32.mrb[0].mxu0
  %4192 = vdwg.mxu0
  %4193 = vmatprep.subr.bf16.mxu0 %v2516
  %4194 = vmatpush1.bf16.msra.mxu0 %v2515
  %4195 = vmatprep.subr.bf16.mxu0 %v2520
  %4196 = vmatpush1.bf16.msra.mxu0 %v2519
  %4197 = vmatprep.subr.bf16.mxu0 %v2524
  %4198 = vmatpush1.bf16.msra.mxu0 %v2523
  %4199 = vmatprep.subr.bf16.mxu0 %v2528
  %4200 = vmatpush1.bf16.msra.mxu0 %v2527
  %4201 = vmatprep.subr.bf16.mxu0 %v2532
  %4202 = vmatpush1.bf16.msra.mxu0 %v2531
  %4203 = vmatprep.subr.bf16.mxu0 %v2536
  %4204 = vmatpush1.bf16.msra.mxu0 %v2535
  %4205 = vmatprep.subr.bf16.mxu0 %v2540
  %4206 = vmatpush1.bf16.msra.mxu0 %v2539
  %4207 = vmatprep.subr.bf16.mxu0 %v2544
  %4208 = vmatpush1.bf16.msra.mxu0 %v2543
  %4209 = vmatprep.subr.bf16.mxu0 0
  %4210 = vmatpush1.bf16.msra.mxu0 0
  %4211 = vmatprep.subr.bf16.mxu0 0
  %4212 = vmatpush1.bf16.msra.mxu0 0
  %4213 = vmatprep.subr.bf16.mxu0 0
  %4214 = vmatpush1.bf16.msra.mxu0 0
  %4215 = vmatprep.subr.bf16.mxu0 0
  %4216 = vmatpush1.bf16.msra.mxu0 0
  %4217 = vmatprep.subr.bf16.mxu0 0
  %4218 = vmatpush1.bf16.msra.mxu0 0
  %4219 = vmatprep.subr.bf16.mxu0 0
  %4220 = vmatpush1.bf16.msra.mxu0 0
  %4221 = vmatprep.subr.bf16.mxu0 0
  %4222 = vmatpush1.bf16.msra.mxu0 0
  %4223 = vmatprep.subr.bf16.mxu0 0
  %4224 = vmatpush1.bf16.msra.mxu0 0
  %4225 = vmatprep.mubr.bf16.mxu0 0
  %4226 = vmatmul.mubr.bf16.gmra.mrb[0].mxu0 %v4145
  %v4227 = vpop.f32.mrb[0].mxu0
  %v4228 = vadd.f32 0.0, %v4227
  %v4229 = vpop.f32.mrb[0].mxu0
  %v4230 = vadd.f32 0.0, %v4229
  %v4231 = vpop.f32.mrb[0].mxu0
  %v4232 = vpop.f32.mrb[0].mxu0
  %4233 = vdwg.mxu0
  %v4234 = vadd.f32 %v4148, %v4187
  %v4235 = vadd.f32 %v4149, %v4189
  %v4236 = vadd.f32 %v4150, %v4228
  %v4237 = vadd.f32 %v4151, %v4230
  %s4238 = scalar_lea.vmem [#allocation3], 32
  %v4239 = vld [vmem:[%s4238] sm:$0xff]
  %v4240 = vld [vmem:[%s4238 + $0x8] sm:$0xff]
  %v4241 = vld [vmem:[%s4238 + $0x10] sm:$0xff]
  %v4242 = vld [vmem:[%s4238 + $0x18] sm:$0xff]
  %4243 = vmatprep.subr.bf16.mxu0 %v2765
  %4244 = vmatpush1.bf16.msra.mxu0 %v2764
  %4245 = vmatprep.subr.bf16.mxu0 %v2769
  %4246 = vmatpush1.bf16.msra.mxu0 %v2768
  %4247 = vmatprep.subr.bf16.mxu0 %v2773
  %4248 = vmatpush1.bf16.msra.mxu0 %v2772
  %4249 = vmatprep.subr.bf16.mxu0 %v2777
  %4250 = vmatpush1.bf16.msra.mxu0 %v2776
  %4251 = vmatprep.subr.bf16.mxu0 %v2781
  %4252 = vmatpush1.bf16.msra.mxu0 %v2780
  %4253 = vmatprep.subr.bf16.mxu0 %v2785
  %4254 = vmatpush1.bf16.msra.mxu0 %v2784
  %4255 = vmatprep.subr.bf16.mxu0 %v2789
  %4256 = vmatpush1.bf16.msra.mxu0 %v2788
  %4257 = vmatprep.subr.bf16.mxu0 %v2793
  %4258 = vmatpush1.bf16.msra.mxu0 %v2792
  %4259 = vmatprep.subr.bf16.mxu0 0
  %4260 = vmatpush1.bf16.msra.mxu0 0
  %4261 = vmatprep.subr.bf16.mxu0 0
  %4262 = vmatpush1.bf16.msra.mxu0 0
  %4263 = vmatprep.subr.bf16.mxu0 0
  %4264 = vmatpush1.bf16.msra.mxu0 0
  %4265 = vmatprep.subr.bf16.mxu0 0
  %4266 = vmatpush1.bf16.msra.mxu0 0
  %4267 = vmatprep.subr.bf16.mxu0 0
  %4268 = vmatpush1.bf16.msra.mxu0 0
  %4269 = vmatprep.subr.bf16.mxu0 0
  %4270 = vmatpush1.bf16.msra.mxu0 0
  %4271 = vmatprep.subr.bf16.mxu0 0
  %4272 = vmatpush1.bf16.msra.mxu0 0
  %4273 = vmatprep.subr.bf16.mxu0 0
  %4274 = vmatpush1.bf16.msra.mxu0 0
  %4275 = vmatprep.mubr.bf16.mxu0 0
  %4276 = vmatmul.mubr.bf16.gmra.mrb[0].mxu0 %v4146
  %v4277 = vpop.f32.mrb[0].mxu0
  %v4278 = vadd.f32 0.0, %v4277
  %v4279 = vpop.f32.mrb[0].mxu0
  %v4280 = vadd.f32 0.0, %v4279
  %v4281 = vpop.f32.mrb[0].mxu0
  %v4282 = vpop.f32.mrb[0].mxu0
  %4283 = vdwg.mxu0
  %4284 = vmatprep.subr.bf16.mxu0 %v2767
  %4285 = vmatpush1.bf16.msra.mxu0 %v2766
  %4286 = vmatprep.subr.bf16.mxu0 %v2771
  %4287 = vmatpush1.bf16.msra.mxu0 %v2770
  %4288 = vmatprep.subr.bf16.mxu0 %v2775
  %4289 = vmatpush1.bf16.msra.mxu0 %v2774
  %4290 = vmatprep.subr.bf16.mxu0 %v2779
  %4291 = vmatpush1.bf16.msra.mxu0 %v2778
  %4292 = vmatprep.subr.bf16.mxu0 %v2783
  %4293 = vmatpush1.bf16.msra.mxu0 %v2782
  %4294 = vmatprep.subr.bf16.mxu0 %v2787
  %4295 = vmatpush1.bf16.msra.mxu0 %v2786
  %4296 = vmatprep.subr.bf16.mxu0 %v2791
  %4297 = vmatpush1.bf16.msra.mxu0 %v2790
  %4298 = vmatprep.subr.bf16.mxu0 %v2795
  %4299 = vmatpush1.bf16.msra.mxu0 %v2794
  %4300 = vmatprep.subr.bf16.mxu0 0
  %4301 = vmatpush1.bf16.msra.mxu0 0
  %4302 = vmatprep.subr.bf16.mxu0 0
  %4303 = vmatpush1.bf16.msra.mxu0 0
  %4304 = vmatprep.subr.bf16.mxu0 0
  %4305 = vmatpush1.bf16.msra.mxu0 0
  %4306 = vmatprep.subr.bf16.mxu0 0
  %4307 = vmatpush1.bf16.msra.mxu0 0
  %4308 = vmatprep.subr.bf16.mxu0 0
  %4309 = vmatpush1.bf16.msra.mxu0 0
  %4310 = vmatprep.subr.bf16.mxu0 0
  %4311 = vmatpush1.bf16.msra.mxu0 0
  %4312 = vmatprep.subr.bf16.mxu0 0
  %4313 = vmatpush1.bf16.msra.mxu0 0
  %4314 = vmatprep.subr.bf16.mxu0 0
  %4315 = vmatpush1.bf16.msra.mxu0 0
  %4316 = vmatprep.mubr.bf16.mxu0 0
  %4317 = vmatmul.mubr.bf16.gmra.mrb[0].mxu0 %v4146
  %v4318 = vpop.f32.mrb[0].mxu0
  %v4319 = vadd.f32 0.0, %v4318
  %v4320 = vpop.f32.mrb[0].mxu0
  %v4321 = vadd.f32 0.0, %v4320
  %v4322 = vpop.f32.mrb[0].mxu0
  %v4323 = vpop.f32.mrb[0].mxu0
  %4324 = vdwg.mxu0
  %v4325 = vadd.f32 %v4239, %v4278
  %v4326 = vadd.f32 %v4240, %v4280
  %v4327 = vadd.f32 %v4241, %v4319
  %v4328 = vadd.f32 %v4242, %v4321
  %v4329 = vxor.u32 %v4234, 2147483648
  %v4330 = vmul.f32 %v4329, 1.442695
  %v4331 = vpow.pop %v4330
  %v4332 = vadd.f32 %v4331, 1.0
  %v4333 = vrcp.pop %v4332
  %v4334 = vmul.f32 1.0, %v4333
  %v4335 = vxor.u32 %v4235, 2147483648
  %v4336 = vmul.f32 %v4335, 1.442695
  %v4337 = vpow.pop %v4336
  %v4338 = vadd.f32 %v4337, 1.0
  %v4339 = vrcp.pop %v4338
  %v4340 = vmul.f32 1.0, %v4339
  %v4341 = vtanh.pop %v4236
  %v4342 = vxor.u32 %v4237, 2147483648
  %v4343 = vmul.f32 %v4342, 1.442695
  %v4344 = vpow.pop %v4343
  %v4345 = vadd.f32 %v4344, 1.0
  %v4346 = vrcp.pop %v4345
  %v4347 = vmul.f32 1.0, %v4346
  %v4348 = vmul.f32 %v4340, %v4114
  %v4349 = vmul.f32 %v4334, %v4341
  %v4350 = vadd.f32 %v4348, %v4349
  %v4351 = vtanh.pop %v4350
  %v4352 = vmul.f32 %v4347, %v4351
  %v4353 = vxor.u32 %v4325, 2147483648
  %v4354 = vmul.f32 %v4353, 1.442695
  %v4355 = vpow.pop %v4354
  %v4356 = vadd.f32 %v4355, 1.0
  %v4357 = vrcp.pop %v4356
  %v4358 = vmul.f32 1.0, %v4357
  %v4359 = vxor.u32 %v4326, 2147483648
  %v4360 = vmul.f32 %v4359, 1.442695
  %v4361 = vpow.pop %v4360
  %v4362 = vadd.f32 %v4361, 1.0
  %v4363 = vrcp.pop %v4362
  %v4364 = vmul.f32 1.0, %v4363
  %v4365 = vtanh.pop %v4327
  %v4366 = vxor.u32 %v4328, 2147483648
  %v4367 = vmul.f32 %v4366, 1.442695
  %v4368 = vpow.pop %v4367
  %v4369 = vadd.f32 %v4368, 1.0
  %v4370 = vrcp.pop %v4369
  %v4371 = vmul.f32 1.0, %v4370
  %v4372 = vmul.f32 %v4364, %v4138
  %v4373 = vmul.f32 %v4358, %v4365
  %v4374 = vadd.f32 %v4372, %v4373
  %v4375 = vtanh.pop %v4374
  %v4376 = vmul.f32 %v4371, %v4375
  %s4377 = scalar_lea.vmem [#allocation4], 48
  %4378 = vst [vmem:[%s4377] sm:$0xff] %v4352
  %s4379 = scalar_lea.vmem [#allocation5], 8
  %4380 = vst [vmem:[%s4379] sm:$0xff] %v4376
  %v4381 = vpack.c.bf16 %v4352, %v4352
  %v4382 = vpack.c.bf16 %v4376, %v4376
  %s4383 = scalar_lea.vmem [#allocation2], 224
  %v4384 = vld [vmem:[%s4383] sm:$0xff]
  %v4385 = vld [vmem:[%s4383 + $0x8] sm:$0xff]
  %v4386 = vld [vmem:[%s4383 + $0x10] sm:$0xff]
  %v4387 = vld [vmem:[%s4383 + $0x18] sm:$0xff]
  %4388 = vmatprep.subr.bf16.mxu0 %v2514
  %4389 = vmatpush1.bf16.msra.mxu0 %v2513
  %4390 = vmatprep.subr.bf16.mxu0 %v2518
  %4391 = vmatpush1.bf16.msra.mxu0 %v2517
  %4392 = vmatprep.subr.bf16.mxu0 %v2522
  %4393 = vmatpush1.bf16.msra.mxu0 %v2521
  %4394 = vmatprep.subr.bf16.mxu0 %v2526
  %4395 = vmatpush1.bf16.msra.mxu0 %v2525
  %4396 = vmatprep.subr.bf16.mxu0 %v2530
  %4397 = vmatpush1.bf16.msra.mxu0 %v2529
  %4398 = vmatprep.subr.bf16.mxu0 %v2534
  %4399 = vmatpush1.bf16.msra.mxu0 %v2533
  %4400 = vmatprep.subr.bf16.mxu0 %v2538
  %4401 = vmatpush1.bf16.msra.mxu0 %v2537
  %4402 = vmatprep.subr.bf16.mxu0 %v2542
  %4403 = vmatpush1.bf16.msra.mxu0 %v2541
  %4404 = vmatprep.subr.bf16.mxu0 0
  %4405 = vmatpush1.bf16.msra.mxu0 0
  %4406 = vmatprep.subr.bf16.mxu0 0
  %4407 = vmatpush1.bf16.msra.mxu0 0
  %4408 = vmatprep.subr.bf16.mxu0 0
  %4409 = vmatpush1.bf16.msra.mxu0 0
  %4410 = vmatprep.subr.bf16.mxu0 0
  %4411 = vmatpush1.bf16.msra.mxu0 0
  %4412 = vmatprep.subr.bf16.mxu0 0
  %4413 = vmatpush1.bf16.msra.mxu0 0
  %4414 = vmatprep.subr.bf16.mxu0 0
  %4415 = vmatpush1.bf16.msra.mxu0 0
  %4416 = vmatprep.subr.bf16.mxu0 0
  %4417 = vmatpush1.bf16.msra.mxu0 0
  %4418 = vmatprep.subr.bf16.mxu0 0
  %4419 = vmatpush1.bf16.msra.mxu0 0
  %4420 = vmatprep.mubr.bf16.mxu0 0
  %4421 = vmatmul.mubr.bf16.gmra.mrb[0].mxu0 %v4381
  %v4422 = vpop.f32.mrb[0].mxu0
  %v4423 = vadd.f32 0.0, %v4422
  %v4424 = vpop.f32.mrb[0].mxu0
  %v4425 = vadd.f32 0.0, %v4424
  %v4426 = vpop.f32.mrb[0].mxu0
  %v4427 = vpop.f32.mrb[0].mxu0
  %4428 = vdwg.mxu0
  %4429 = vmatprep.subr.bf16.mxu0 %v2516
  %4430 = vmatpush1.bf16.msra.mxu0 %v2515
  %4431 = vmatprep.subr.bf16.mxu0 %v2520
  %4432 = vmatpush1.bf16.msra.mxu0 %v2519
  %4433 = vmatprep.subr.bf16.mxu0 %v2524
  %4434 = vmatpush1.bf16.msra.mxu0 %v2523
  %4435 = vmatprep.subr.bf16.mxu0 %v2528
  %4436 = vmatpush1.bf16.msra.mxu0 %v2527
  %4437 = vmatprep.subr.bf16.mxu0 %v2532
  %4438 = vmatpush1.bf16.msra.mxu0 %v2531
  %4439 = vmatprep.subr.bf16.mxu0 %v2536
  %4440 = vmatpush1.bf16.msra.mxu0 %v2535
  %4441 = vmatprep.subr.bf16.mxu0 %v2540
  %4442 = vmatpush1.bf16.msra.mxu0 %v2539
  %4443 = vmatprep.subr.bf16.mxu0 %v2544
  %4444 = vmatpush1.bf16.msra.mxu0 %v2543
  %4445 = vmatprep.subr.bf16.mxu0 0
  %4446 = vmatpush1.bf16.msra.mxu0 0
  %4447 = vmatprep.subr.bf16.mxu0 0
  %4448 = vmatpush1.bf16.msra.mxu0 0
  %4449 = vmatprep.subr.bf16.mxu0 0
  %4450 = vmatpush1.bf16.msra.mxu0 0
  %4451 = vmatprep.subr.bf16.mxu0 0
  %4452 = vmatpush1.bf16.msra.mxu0 0
  %4453 = vmatprep.subr.bf16.mxu0 0
  %4454 = vmatpush1.bf16.msra.mxu0 0
  %4455 = vmatprep.subr.bf16.mxu0 0
  %4456 = vmatpush1.bf16.msra.mxu0 0
  %4457 = vmatprep.subr.bf16.mxu0 0
  %4458 = vmatpush1.bf16.msra.mxu0 0
  %4459 = vmatprep.subr.bf16.mxu0 0
  %4460 = vmatpush1.bf16.msra.mxu0 0
  %4461 = vmatprep.mubr.bf16.mxu0 0
  %4462 = vmatmul.mubr.bf16.gmra.mrb[0].mxu0 %v4381
  %v4463 = vpop.f32.mrb[0].mxu0
  %v4464 = vadd.f32 0.0, %v4463
  %v4465 = vpop.f32.mrb[0].mxu0
  %v4466 = vadd.f32 0.0, %v4465
  %v4467 = vpop.f32.mrb[0].mxu0
  %v4468 = vpop.f32.mrb[0].mxu0
  %4469 = vdwg.mxu0
  %v4470 = vadd.f32 %v4384, %v4423
  %v4471 = vadd.f32 %v4385, %v4425
  %v4472 = vadd.f32 %v4386, %v4464
  %v4473 = vadd.f32 %v4387, %v4466
  %v4474 = vld [vmem:[#allocation3] sm:$0xff]
  %v4475 = vld [vmem:[#allocation3 + $0x8] sm:$0xff]
  %v4476 = vld [vmem:[#allocation3 + $0x10] sm:$0xff]
  %v4477 = vld [vmem:[#allocation3 + $0x18] sm:$0xff]
  %4478 = vmatprep.subr.bf16.mxu0 %v2765
  %4479 = vmatpush1.bf16.msra.mxu0 %v2764
  %4480 = vmatprep.subr.bf16.mxu0 %v2769
  %4481 = vmatpush1.bf16.msra.mxu0 %v2768
  %4482 = vmatprep.subr.bf16.mxu0 %v2773
  %4483 = vmatpush1.bf16.msra.mxu0 %v2772
  %4484 = vmatprep.subr.bf16.mxu0 %v2777
  %4485 = vmatpush1.bf16.msra.mxu0 %v2776
  %4486 = vmatprep.subr.bf16.mxu0 %v2781
  %4487 = vmatpush1.bf16.msra.mxu0 %v2780
  %4488 = vmatprep.subr.bf16.mxu0 %v2785
  %4489 = vmatpush1.bf16.msra.mxu0 %v2784
  %4490 = vmatprep.subr.bf16.mxu0 %v2789
  %4491 = vmatpush1.bf16.msra.mxu0 %v2788
  %4492 = vmatprep.subr.bf16.mxu0 %v2793
  %4493 = vmatpush1.bf16.msra.mxu0 %v2792
  %4494 = vmatprep.subr.bf16.mxu0 0
  %4495 = vmatpush1.bf16.msra.mxu0 0
  %4496 = vmatprep.subr.bf16.mxu0 0
  %4497 = vmatpush1.bf16.msra.mxu0 0
  %4498 = vmatprep.subr.bf16.mxu0 0
  %4499 = vmatpush1.bf16.msra.mxu0 0
  %4500 = vmatprep.subr.bf16.mxu0 0
  %4501 = vmatpush1.bf16.msra.mxu0 0
  %4502 = vmatprep.subr.bf16.mxu0 0
  %4503 = vmatpush1.bf16.msra.mxu0 0
  %4504 = vmatprep.subr.bf16.mxu0 0
  %4505 = vmatpush1.bf16.msra.mxu0 0
  %4506 = vmatprep.subr.bf16.mxu0 0
  %4507 = vmatpush1.bf16.msra.mxu0 0
  %4508 = vmatprep.subr.bf16.mxu0 0
  %4509 = vmatpush1.bf16.msra.mxu0 0
  %4510 = vmatprep.mubr.bf16.mxu0 0
  %4511 = vmatmul.mubr.bf16.gmra.mrb[0].mxu0 %v4382
  %v4512 = vpop.f32.mrb[0].mxu0
  %v4513 = vadd.f32 0.0, %v4512
  %v4514 = vpop.f32.mrb[0].mxu0
  %v4515 = vadd.f32 0.0, %v4514
  %v4516 = vpop.f32.mrb[0].mxu0
  %v4517 = vpop.f32.mrb[0].mxu0
  %4518 = vdwg.mxu0
  %4519 = vmatprep.subr.bf16.mxu0 %v2767
  %4520 = vmatpush1.bf16.msra.mxu0 %v2766
  %4521 = vmatprep.subr.bf16.mxu0 %v2771
  %4522 = vmatpush1.bf16.msra.mxu0 %v2770
  %4523 = vmatprep.subr.bf16.mxu0 %v2775
  %4524 = vmatpush1.bf16.msra.mxu0 %v2774
  %4525 = vmatprep.subr.bf16.mxu0 %v2779
  %4526 = vmatpush1.bf16.msra.mxu0 %v2778
  %4527 = vmatprep.subr.bf16.mxu0 %v2783
  %4528 = vmatpush1.bf16.msra.mxu0 %v2782
  %4529 = vmatprep.subr.bf16.mxu0 %v2787
  %4530 = vmatpush1.bf16.msra.mxu0 %v2786
  %4531 = vmatprep.subr.bf16.mxu0 %v2791
  %4532 = vmatpush1.bf16.msra.mxu0 %v2790
  %4533 = vmatprep.subr.bf16.mxu0 %v2795
  %4534 = vmatpush1.bf16.msra.mxu0 %v2794
  %4535 = vmatprep.subr.bf16.mxu0 0
  %4536 = vmatpush1.bf16.msra.mxu0 0
  %4537 = vmatprep.subr.bf16.mxu0 0
  %4538 = vmatpush1.bf16.msra.mxu0 0
  %4539 = vmatprep.subr.bf16.mxu0 0
  %4540 = vmatpush1.bf16.msra.mxu0 0
  %4541 = vmatprep.subr.bf16.mxu0 0
  %4542 = vmatpush1.bf16.msra.mxu0 0
  %4543 = vmatprep.subr.bf16.mxu0 0
  %4544 = vmatpush1.bf16.msra.mxu0 0
  %4545 = vmatprep.subr.bf16.mxu0 0
  %4546 = vmatpush1.bf16.msra.mxu0 0
  %4547 = vmatprep.subr.bf16.mxu0 0
  %4548 = vmatpush1.bf16.msra.mxu0 0
  %4549 = vmatprep.subr.bf16.mxu0 0
  %4550 = vmatpush1.bf16.msra.mxu0 0
  %4551 = vmatprep.mubr.bf16.mxu0 0
  %4552 = vmatmul.mubr.bf16.gmra.mrb[0].mxu0 %v4382
  %v4553 = vpop.f32.mrb[0].mxu0
  %v4554 = vadd.f32 0.0, %v4553
  %v4555 = vpop.f32.mrb[0].mxu0
  %v4556 = vadd.f32 0.0, %v4555
  %v4557 = vpop.f32.mrb[0].mxu0
  %v4558 = vpop.f32.mrb[0].mxu0
  %4559 = vdwg.mxu0
  %v4560 = vadd.f32 %v4474, %v4513
  %v4561 = vadd.f32 %v4475, %v4515
  %v4562 = vadd.f32 %v4476, %v4554
  %v4563 = vadd.f32 %v4477, %v4556
  %v4564 = vxor.u32 %v4470, 2147483648
  %v4565 = vmul.f32 %v4564, 1.442695
  %v4566 = vpow.pop %v4565
  %v4567 = vadd.f32 %v4566, 1.0
  %v4568 = vrcp.pop %v4567
  %v4569 = vmul.f32 1.0, %v4568
  %v4570 = vxor.u32 %v4471, 2147483648
  %v4571 = vmul.f32 %v4570, 1.442695
  %v4572 = vpow.pop %v4571
  %v4573 = vadd.f32 %v4572, 1.0
  %v4574 = vrcp.pop %v4573
  %v4575 = vmul.f32 1.0, %v4574
  %v4576 = vtanh.pop %v4472
  %v4577 = vxor.u32 %v4473, 2147483648
  %v4578 = vmul.f32 %v4577, 1.442695
  %v4579 = vpow.pop %v4578
  %v4580 = vadd.f32 %v4579, 1.0
  %v4581 = vrcp.pop %v4580
  %v4582 = vmul.f32 1.0, %v4581
  %v4583 = vmul.f32 %v4575, %v4350
  %v4584 = vmul.f32 %v4569, %v4576
  %v4585 = vadd.f32 %v4583, %v4584
  %v4586 = vtanh.pop %v4585
  %v4587 = vmul.f32 %v4582, %v4586
  %v4588 = vxor.u32 %v4560, 2147483648
  %v4589 = vmul.f32 %v4588, 1.442695
  %v4590 = vpow.pop %v4589
  %v4591 = vadd.f32 %v4590, 1.0
  %v4592 = vrcp.pop %v4591
  %v4593 = vmul.f32 1.0, %v4592
  %v4594 = vxor.u32 %v4561, 2147483648
  %v4595 = vmul.f32 %v4594, 1.442695
  %v4596 = vpow.pop %v4595
  %v4597 = vadd.f32 %v4596, 1.0
  %v4598 = vrcp.pop %v4597
  %v4599 = vmul.f32 1.0, %v4598
  %v4600 = vtanh.pop %v4562
  %v4601 = vxor.u32 %v4563, 2147483648
  %v4602 = vmul.f32 %v4601, 1.442695
  %v4603 = vpow.pop %v4602
  %v4604 = vadd.f32 %v4603, 1.0
  %v4605 = vrcp.pop %v4604
  %v4606 = vmul.f32 1.0, %v4605
  %v4607 = vmul.f32 %v4599, %v4374
  %v4608 = vmul.f32 %v4593, %v4600
  %v4609 = vadd.f32 %v4607, %v4608
  %v4610 = vtanh.pop %v4609
  %v4611 = vmul.f32 %v4606, %v4610
  %s4612 = scalar_lea.vmem [#allocation4], 56
  %4613 = vst [vmem:[%s4612] sm:$0xff] %v4587
  %4614 = vst [vmem:[#allocation5] sm:$0xff] %v4611
  %v4615 = vld [vmem:[#allocation4] sm:$0xff]
  %v4616 = vld [vmem:[#allocation4 + $0x8] sm:$0xff]
  %v4617 = vld [vmem:[#allocation4 + $0x10] sm:$0xff]
  %v4618 = vld [vmem:[#allocation4 + $0x18] sm:$0xff]
  %v4619 = vld [vmem:[#allocation4 + $0x20] sm:$0xff]
  %v4620 = vld [vmem:[#allocation4 + $0x28] sm:$0xff]
  %v4621 = vld [vmem:[#allocation4 + $0x30] sm:$0xff]
  %v4622 = vld [vmem:[#allocation4 + $0x38] sm:$0xff]
  %v4623 = vpack.c.bf16 %v4616, %v4615
  %v4624 = vpack.c.bf16 %v4618, %v4617
  %v4625 = vpack.c.bf16 %v4620, %v4619
  %v4626 = vpack.c.bf16 %v4622, %v4621
  %v4627 = vld [vmem:[#allocation5] sm:$0xff]
  %v4628 = vld [vmem:[#allocation5 + $0x8] sm:$0xff]
  %v4629 = vld [vmem:[#allocation5 + $0x10] sm:$0xff]
  %v4630 = vld [vmem:[#allocation5 + $0x18] sm:$0xff]
  %v4631 = vld [vmem:[#allocation5 + $0x20] sm:$0xff]
  %v4632 = vld [vmem:[#allocation5 + $0x28] sm:$0xff]
  %v4633 = vld [vmem:[#allocation5 + $0x30] sm:$0xff]
  %v4634 = vld [vmem:[#allocation5 + $0x38] sm:$0xff]
  %v4635 = vpack.c.bf16 %v4628, %v4627
  %v4636 = vpack.c.bf16 %v4630, %v4629
  %v4637 = vpack.c.bf16 %v4632, %v4631
  %v4638 = vpack.c.bf16 %v4634, %v4633
  %s4639 = scalar_lea.vmem %s5, 1024
  %v4640 = vld [vmem:[%s4639] sm:$0xff]
  %v4641 = vld [vmem:[%s4639 + $0x8] sm:$0xff]
  %v4642 = vld [vmem:[%s4639 + $0x10] sm:$0xff]
  %v4643 = vld [vmem:[%s4639 + $0x18] sm:$0xff]
  %v4644 = vld [vmem:[%s4639 + $0x20] sm:$0xff]
  %v4645 = vld [vmem:[%s4639 + $0x28] sm:$0xff]
  %v4646 = vld [vmem:[%s4639 + $0x30] sm:$0xff]
  %v4647 = vld [vmem:[%s4639 + $0x38] sm:$0xff]
  %v4648 = vld [vmem:[%s4639 + $0x40] sm:$0xff]
  %v4649 = vld [vmem:[%s4639 + $0x48] sm:$0xff]
  %v4650 = vld [vmem:[%s4639 + $0x50] sm:$0xff]
  %v4651 = vld [vmem:[%s4639 + $0x58] sm:$0xff]
  %v4652 = vld [vmem:[%s4639 + $0x60] sm:$0xff]
  %v4653 = vld [vmem:[%s4639 + $0x68] sm:$0xff]
  %v4654 = vld [vmem:[%s4639 + $0x70] sm:$0xff]
  %v4655 = vld [vmem:[%s4639 + $0x78] sm:$0xff]
  %v4656 = vld [vmem:[%s4639 + $0x80] sm:$0xff]
  %v4657 = vld [vmem:[%s4639 + $0x88] sm:$0xff]
  %v4658 = vld [vmem:[%s4639 + $0x90] sm:$0xff]
  %v4659 = vld [vmem:[%s4639 + $0x98] sm:$0xff]
  %v4660 = vld [vmem:[%s4639 + $0xa0] sm:$0xff]
  %v4661 = vld [vmem:[%s4639 + $0xa8] sm:$0xff]
  %v4662 = vld [vmem:[%s4639 + $0xb0] sm:$0xff]
  %v4663 = vld [vmem:[%s4639 + $0xb8] sm:$0xff]
  %v4664 = vld [vmem:[%s4639 + $0xc0] sm:$0xff]
  %v4665 = vld [vmem:[%s4639 + $0xc8] sm:$0xff]
  %v4666 = vld [vmem:[%s4639 + $0xd0] sm:$0xff]
  %v4667 = vld [vmem:[%s4639 + $0xd8] sm:$0xff]
  %v4668 = vld [vmem:[%s4639 + $0xe0] sm:$0xff]
  %v4669 = vld [vmem:[%s4639 + $0xe8] sm:$0xff]
  %v4670 = vld [vmem:[%s4639 + $0xf0] sm:$0xff]
  %v4671 = vld [vmem:[%s4639 + $0xf8] sm:$0xff]
  %v4672 = vld [vmem:[%s4639 + $0x100] sm:$0xff]
  %v4673 = vld [vmem:[%s4639 + $0x108] sm:$0xff]
  %v4674 = vld [vmem:[%s4639 + $0x110] sm:$0xff]
  %v4675 = vld [vmem:[%s4639 + $0x118] sm:$0xff]
  %v4676 = vld [vmem:[%s4639 + $0x120] sm:$0xff]
  %v4677 = vld [vmem:[%s4639 + $0x128] sm:$0xff]
  %v4678 = vld [vmem:[%s4639 + $0x130] sm:$0xff]
  %v4679 = vld [vmem:[%s4639 + $0x138] sm:$0xff]
  %v4680 = vld [vmem:[%s4639 + $0x140] sm:$0xff]
  %v4681 = vld [vmem:[%s4639 + $0x148] sm:$0xff]
  %v4682 = vld [vmem:[%s4639 + $0x150] sm:$0xff]
  %v4683 = vld [vmem:[%s4639 + $0x158] sm:$0xff]
  %v4684 = vld [vmem:[%s4639 + $0x160] sm:$0xff]
  %v4685 = vld [vmem:[%s4639 + $0x168] sm:$0xff]
  %v4686 = vld [vmem:[%s4639 + $0x170] sm:$0xff]
  %v4687 = vld [vmem:[%s4639 + $0x178] sm:$0xff]
  %v4688 = vld [vmem:[%s4639 + $0x180] sm:$0xff]
  %v4689 = vld [vmem:[%s4639 + $0x188] sm:$0xff]
  %v4690 = vld [vmem:[%s4639 + $0x190] sm:$0xff]
  %v4691 = vld [vmem:[%s4639 + $0x198] sm:$0xff]
  %v4692 = vld [vmem:[%s4639 + $0x1a0] sm:$0xff]
  %v4693 = vld [vmem:[%s4639 + $0x1a8] sm:$0xff]
  %v4694 = vld [vmem:[%s4639 + $0x1b0] sm:$0xff]
  %v4695 = vld [vmem:[%s4639 + $0x1b8] sm:$0xff]
  %v4696 = vld [vmem:[%s4639 + $0x1c0] sm:$0xff]
  %v4697 = vld [vmem:[%s4639 + $0x1c8] sm:$0xff]
  %v4698 = vld [vmem:[%s4639 + $0x1d0] sm:$0xff]
  %v4699 = vld [vmem:[%s4639 + $0x1d8] sm:$0xff]
  %v4700 = vld [vmem:[%s4639 + $0x1e0] sm:$0xff]
  %v4701 = vld [vmem:[%s4639 + $0x1e8] sm:$0xff]
  %v4702 = vld [vmem:[%s4639 + $0x1f0] sm:$0xff]
  %v4703 = vld [vmem:[%s4639 + $0x1f8] sm:$0xff]
  %s4704 = scalar_lea.vmem %s5, 1536
  %v4705 = vld [vmem:[%s4704] sm:$0xff]
  %v4706 = vld [vmem:[%s4704 + $0x8] sm:$0xff]
  %v4707 = vld [vmem:[%s4704 + $0x10] sm:$0xff]
  %v4708 = vld [vmem:[%s4704 + $0x18] sm:$0xff]
  %v4709 = vld [vmem:[%s4704 + $0x20] sm:$0xff]
  %v4710 = vld [vmem:[%s4704 + $0x28] sm:$0xff]
  %v4711 = vld [vmem:[%s4704 + $0x30] sm:$0xff]
  %v4712 = vld [vmem:[%s4704 + $0x38] sm:$0xff]
  %v4713 = vld [vmem:[%s4704 + $0x40] sm:$0xff]
  %v4714 = vld [vmem:[%s4704 + $0x48] sm:$0xff]
  %v4715 = vld [vmem:[%s4704 + $0x50] sm:$0xff]
  %v4716 = vld [vmem:[%s4704 + $0x58] sm:$0xff]
  %v4717 = vld [vmem:[%s4704 + $0x60] sm:$0xff]
  %v4718 = vld [vmem:[%s4704 + $0x68] sm:$0xff]
  %v4719 = vld [vmem:[%s4704 + $0x70] sm:$0xff]
  %v4720 = vld [vmem:[%s4704 + $0x78] sm:$0xff]
  %v4721 = vld [vmem:[%s4704 + $0x80] sm:$0xff]
  %v4722 = vld [vmem:[%s4704 + $0x88] sm:$0xff]
  %v4723 = vld [vmem:[%s4704 + $0x90] sm:$0xff]
  %v4724 = vld [vmem:[%s4704 + $0x98] sm:$0xff]
  %v4725 = vld [vmem:[%s4704 + $0xa0] sm:$0xff]
  %v4726 = vld [vmem:[%s4704 + $0xa8] sm:$0xff]
  %v4727 = vld [vmem:[%s4704 + $0xb0] sm:$0xff]
  %v4728 = vld [vmem:[%s4704 + $0xb8] sm:$0xff]
  %v4729 = vld [vmem:[%s4704 + $0xc0] sm:$0xff]
  %v4730 = vld [vmem:[%s4704 + $0xc8] sm:$0xff]
  %v4731 = vld [vmem:[%s4704 + $0xd0] sm:$0xff]
  %v4732 = vld [vmem:[%s4704 + $0xd8] sm:$0xff]
  %v4733 = vld [vmem:[%s4704 + $0xe0] sm:$0xff]
  %v4734 = vld [vmem:[%s4704 + $0xe8] sm:$0xff]
  %v4735 = vld [vmem:[%s4704 + $0xf0] sm:$0xff]
  %v4736 = vld [vmem:[%s4704 + $0xf8] sm:$0xff]
  %v4737 = vld [vmem:[%s4704 + $0x100] sm:$0xff]
  %v4738 = vld [vmem:[%s4704 + $0x108] sm:$0xff]
  %v4739 = vld [vmem:[%s4704 + $0x110] sm:$0xff]
  %v4740 = vld [vmem:[%s4704 + $0x118] sm:$0xff]
  %v4741 = vld [vmem:[%s4704 + $0x120] sm:$0xff]
  %v4742 = vld [vmem:[%s4704 + $0x128] sm:$0xff]
  %v4743 = vld [vmem:[%s4704 + $0x130] sm:$0xff]
  %v4744 = vld [vmem:[%s4704 + $0x138] sm:$0xff]
  %v4745 = vld [vmem:[%s4704 + $0x140] sm:$0xff]
  %v4746 = vld [vmem:[%s4704 + $0x148] sm:$0xff]
  %v4747 = vld [vmem:[%s4704 + $0x150] sm:$0xff]
  %v4748 = vld [vmem:[%s4704 + $0x158] sm:$0xff]
  %v4749 = vld [vmem:[%s4704 + $0x160] sm:$0xff]
  %v4750 = vld [vmem:[%s4704 + $0x168] sm:$0xff]
  %v4751 = vld [vmem:[%s4704 + $0x170] sm:$0xff]
  %v4752 = vld [vmem:[%s4704 + $0x178] sm:$0xff]
  %v4753 = vld [vmem:[%s4704 + $0x180] sm:$0xff]
  %v4754 = vld [vmem:[%s4704 + $0x188] sm:$0xff]
  %v4755 = vld [vmem:[%s4704 + $0x190] sm:$0xff]
  %v4756 = vld [vmem:[%s4704 + $0x198] sm:$0xff]
  %v4757 = vld [vmem:[%s4704 + $0x1a0] sm:$0xff]
  %v4758 = vld [vmem:[%s4704 + $0x1a8] sm:$0xff]
  %v4759 = vld [vmem:[%s4704 + $0x1b0] sm:$0xff]
  %v4760 = vld [vmem:[%s4704 + $0x1b8] sm:$0xff]
  %v4761 = vld [vmem:[%s4704 + $0x1c0] sm:$0xff]
  %v4762 = vld [vmem:[%s4704 + $0x1c8] sm:$0xff]
  %v4763 = vld [vmem:[%s4704 + $0x1d0] sm:$0xff]
  %v4764 = vld [vmem:[%s4704 + $0x1d8] sm:$0xff]
  %v4765 = vld [vmem:[%s4704 + $0x1e0] sm:$0xff]
  %v4766 = vld [vmem:[%s4704 + $0x1e8] sm:$0xff]
  %v4767 = vld [vmem:[%s4704 + $0x1f0] sm:$0xff]
  %v4768 = vld [vmem:[%s4704 + $0x1f8] sm:$0xff]
  %s4769 = scalar_lea.vmem %s7, 8
  %v4770 = vld [vmem:[%s4769] sm:$0xf]
  %v4771 = vunpack.c.l.bf16 %v4770
  %s4772 = scalar_lea.vmem %s7, 12
  %v4773 = vld [vmem:[%s4772] sm:$0xf]
  %v4774 = vunpack.c.l.bf16 %v4773
  %v4807 = vunpack.c.l.b16 %v4640
  %v4808 = vunpack.c.h.b16 %v4640
  %v4809 = vunpack.c.l.b16 %v4641
  %v4810 = vunpack.c.h.b16 %v4641
  %v4811 = vunpack.c.l.b16 %v4642
  %v4812 = vunpack.c.h.b16 %v4642
  %v4813 = vunpack.c.l.b16 %v4643
  %v4814 = vunpack.c.h.b16 %v4643
  %v4815 = vunpack.c.l.b16 %v4644
  %v4816 = vunpack.c.h.b16 %v4644
  %v4817 = vunpack.c.l.b16 %v4645
  %v4818 = vunpack.c.h.b16 %v4645
  %v4819 = vunpack.c.l.b16 %v4646
  %v4820 = vunpack.c.h.b16 %v4646
  %v4821 = vunpack.c.l.b16 %v4647
  %v4822 = vunpack.c.h.b16 %v4647
  %v4823 = vunpack.c.l.b16 %v4648
  %v4824 = vunpack.c.h.b16 %v4648
  %v4825 = vunpack.c.l.b16 %v4649
  %v4826 = vunpack.c.h.b16 %v4649
  %v4827 = vunpack.c.l.b16 %v4650
  %v4828 = vunpack.c.h.b16 %v4650
  %v4829 = vunpack.c.l.b16 %v4651
  %v4830 = vunpack.c.h.b16 %v4651
  %v4831 = vunpack.c.l.b16 %v4652
  %v4832 = vunpack.c.h.b16 %v4652
  %v4833 = vunpack.c.l.b16 %v4653
  %v4834 = vunpack.c.h.b16 %v4653
  %v4835 = vunpack.c.l.b16 %v4654
  %v4836 = vunpack.c.h.b16 %v4654
  %v4837 = vunpack.c.l.b16 %v4655
  %v4838 = vunpack.c.h.b16 %v4655
  %v4839 = vunpack.c.l.b16 %v4656
  %v4840 = vunpack.c.h.b16 %v4656
  %v4841 = vunpack.c.l.b16 %v4657
  %v4842 = vunpack.c.h.b16 %v4657
  %v4843 = vunpack.c.l.b16 %v4658
  %v4844 = vunpack.c.h.b16 %v4658
  %v4845 = vunpack.c.l.b16 %v4659
  %v4846 = vunpack.c.h.b16 %v4659
  %v4847 = vunpack.c.l.b16 %v4660
  %v4848 = vunpack.c.h.b16 %v4660
  %v4849 = vunpack.c.l.b16 %v4661
  %v4850 = vunpack.c.h.b16 %v4661
  %v4851 = vunpack.c.l.b16 %v4662
  %v4852 = vunpack.c.h.b16 %v4662
  %v4853 = vunpack.c.l.b16 %v4663
  %v4854 = vunpack.c.h.b16 %v4663
  %v4855 = vunpack.c.l.b16 %v4664
  %v4856 = vunpack.c.h.b16 %v4664
  %v4857 = vunpack.c.l.b16 %v4665
  %v4858 = vunpack.c.h.b16 %v4665
  %v4859 = vunpack.c.l.b16 %v4666
  %v4860 = vunpack.c.h.b16 %v4666
  %v4861 = vunpack.c.l.b16 %v4667
  %v4862 = vunpack.c.h.b16 %v4667
  %v4863 = vunpack.c.l.b16 %v4668
  %v4864 = vunpack.c.h.b16 %v4668
  %v4865 = vunpack.c.l.b16 %v4669
  %v4866 = vunpack.c.h.b16 %v4669
  %v4867 = vunpack.c.l.b16 %v4670
  %v4868 = vunpack.c.h.b16 %v4670
  %v4869 = vunpack.c.l.b16 %v4671
  %v4870 = vunpack.c.h.b16 %v4671
  %v4871 = vpack.c.b16 %v4811, %v4807
  %v4872 = vpack.c.b16 %v4812, %v4808
  %v4873 = vpack.c.b16 %v4813, %v4809
  %v4874 = vpack.c.b16 %v4814, %v4810
  %v4875 = vpack.c.b16 %v4819, %v4815
  %v4876 = vpack.c.b16 %v4820, %v4816
  %v4877 = vpack.c.b16 %v4821, %v4817
  %v4878 = vpack.c.b16 %v4822, %v4818
  %v4879 = vpack.c.b16 %v4827, %v4823
  %v4880 = vpack.c.b16 %v4828, %v4824
  %v4881 = vpack.c.b16 %v4829, %v4825
  %v4882 = vpack.c.b16 %v4830, %v4826
  %v4883 = vpack.c.b16 %v4835, %v4831
  %v4884 = vpack.c.b16 %v4836, %v4832
  %v4885 = vpack.c.b16 %v4837, %v4833
  %v4886 = vpack.c.b16 %v4838, %v4834
  %v4887 = vpack.c.b16 %v4843, %v4839
  %v4888 = vpack.c.b16 %v4844, %v4840
  %v4889 = vpack.c.b16 %v4845, %v4841
  %v4890 = vpack.c.b16 %v4846, %v4842
  %v4891 = vpack.c.b16 %v4851, %v4847
  %v4892 = vpack.c.b16 %v4852, %v4848
  %v4893 = vpack.c.b16 %v4853, %v4849
  %v4894 = vpack.c.b16 %v4854, %v4850
  %v4895 = vpack.c.b16 %v4859, %v4855
  %v4896 = vpack.c.b16 %v4860, %v4856
  %v4897 = vpack.c.b16 %v4861, %v4857
  %v4898 = vpack.c.b16 %v4862, %v4858
  %v4899 = vpack.c.b16 %v4867, %v4863
  %v4900 = vpack.c.b16 %v4868, %v4864
  %v4901 = vpack.c.b16 %v4869, %v4865
  %v4902 = vpack.c.b16 %v4870, %v4866
  %4935 = vmatprep.subr.bf16.mxu0 %v4872
  %4936 = vmatpush1.bf16.msra.mxu0 %v4871
  %4937 = vmatprep.subr.bf16.mxu0 %v4876
  %4938 = vmatpush1.bf16.msra.mxu0 %v4875
  %4939 = vmatprep.subr.bf16.mxu0 %v4880
  %4940 = vmatpush1.bf16.msra.mxu0 %v4879
  %4941 = vmatprep.subr.bf16.mxu0 %v4884
  %4942 = vmatpush1.bf16.msra.mxu0 %v4883
  %4943 = vmatprep.subr.bf16.mxu0 %v4888
  %4944 = vmatpush1.bf16.msra.mxu0 %v4887
  %4945 = vmatprep.subr.bf16.mxu0 %v4892
  %4946 = vmatpush1.bf16.msra.mxu0 %v4891
  %4947 = vmatprep.subr.bf16.mxu0 %v4896
  %4948 = vmatpush1.bf16.msra.mxu0 %v4895
  %4949 = vmatprep.subr.bf16.mxu0 %v4900
  %4950 = vmatpush1.bf16.msra.mxu0 %v4899
  %4951 = vmatprep.subr.bf16.mxu0 0
  %4952 = vmatpush1.bf16.msra.mxu0 0
  %4953 = vmatprep.subr.bf16.mxu0 0
  %4954 = vmatpush1.bf16.msra.mxu0 0
  %4955 = vmatprep.subr.bf16.mxu0 0
  %4956 = vmatpush1.bf16.msra.mxu0 0
  %4957 = vmatprep.subr.bf16.mxu0 0
  %4958 = vmatpush1.bf16.msra.mxu0 0
  %4959 = vmatprep.subr.bf16.mxu0 0
  %4960 = vmatpush1.bf16.msra.mxu0 0
  %4961 = vmatprep.subr.bf16.mxu0 0
  %4962 = vmatpush1.bf16.msra.mxu0 0
  %4963 = vmatprep.subr.bf16.mxu0 0
  %4964 = vmatpush1.bf16.msra.mxu0 0
  %4965 = vmatprep.subr.bf16.mxu0 0
  %4966 = vmatpush1.bf16.msra.mxu0 0
  %4967 = vmatprep.mubr.bf16.mxu0 0
  %4968 = vmatmul.mubr.bf16.gmra.mrb[0].mxu0 %v4623
  %v4969 = vpop.f32.mrb[0].mxu0
  %v4970 = vadd.f32 0.0, %v4969
  %v4971 = vpop.f32.mrb[0].mxu0
  %v4972 = vadd.f32 0.0, %v4971
  %v4973 = vpop.f32.mrb[0].mxu0
  %v4974 = vadd.f32 0.0, %v4973
  %v4975 = vpop.f32.mrb[0].mxu0
  %v4976 = vadd.f32 0.0, %v4975
  %4977 = vmatprep.mubr.bf16.mxu0 0
  %4978 = vmatmul.mubr.bf16.gmra.mrb[0].mxu0 %v4624
  %v4979 = vpop.f32.mrb[0].mxu0
  %v4980 = vadd.f32 0.0, %v4979
  %v4981 = vpop.f32.mrb[0].mxu0
  %v4982 = vadd.f32 0.0, %v4981
  %v4983 = vpop.f32.mrb[0].mxu0
  %v4984 = vadd.f32 0.0, %v4983
  %v4985 = vpop.f32.mrb[0].mxu0
  %v4986 = vadd.f32 0.0, %v4985
  %4987 = vmatprep.mubr.bf16.mxu0 0
  %4988 = vmatmul.mubr.bf16.gmra.mrb[0].mxu0 %v4625
  %v4989 = vpop.f32.mrb[0].mxu0
  %v4990 = vadd.f32 0.0, %v4989
  %v4991 = vpop.f32.mrb[0].mxu0
  %v4992 = vadd.f32 0.0, %v4991
  %v4993 = vpop.f32.mrb[0].mxu0
  %v4994 = vadd.f32 0.0, %v4993
  %v4995 = vpop.f32.mrb[0].mxu0
  %v4996 = vadd.f32 0.0, %v4995
  %4997 = vmatprep.mubr.bf16.mxu0 0
  %4998 = vmatmul.mubr.bf16.gmra.mrb[0].mxu0 %v4626
  %v4999 = vpop.f32.mrb[0].mxu0
  %v5000 = vadd.f32 0.0, %v4999
  %v5001 = vpop.f32.mrb[0].mxu0
  %v5002 = vadd.f32 0.0, %v5001
  %v5003 = vpop.f32.mrb[0].mxu0
  %v5004 = vadd.f32 0.0, %v5003
  %v5005 = vpop.f32.mrb[0].mxu0
  %v5006 = vadd.f32 0.0, %v5005
  %5007 = vdwg.mxu0
  %5008 = vmatprep.subr.bf16.mxu0 %v4874
  %5009 = vmatpush1.bf16.msra.mxu0 %v4873
  %5010 = vmatprep.subr.bf16.mxu0 %v4878
  %5011 = vmatpush1.bf16.msra.mxu0 %v4877
  %5012 = vmatprep.subr.bf16.mxu0 %v4882
  %5013 = vmatpush1.bf16.msra.mxu0 %v4881
  %5014 = vmatprep.subr.bf16.mxu0 %v4886
  %5015 = vmatpush1.bf16.msra.mxu0 %v4885
  %5016 = vmatprep.subr.bf16.mxu0 %v4890
  %5017 = vmatpush1.bf16.msra.mxu0 %v4889
  %5018 = vmatprep.subr.bf16.mxu0 %v4894
  %5019 = vmatpush1.bf16.msra.mxu0 %v4893
  %5020 = vmatprep.subr.bf16.mxu0 %v4898
  %5021 = vmatpush1.bf16.msra.mxu0 %v4897
  %5022 = vmatprep.subr.bf16.mxu0 %v4902
  %5023 = vmatpush1.bf16.msra.mxu0 %v4901
  %5024 = vmatprep.subr.bf16.mxu0 0
  %5025 = vmatpush1.bf16.msra.mxu0 0
  %5026 = vmatprep.subr.bf16.mxu0 0
  %5027 = vmatpush1.bf16.msra.mxu0 0
  %5028 = vmatprep.subr.bf16.mxu0 0
  %5029 = vmatpush1.bf16.msra.mxu0 0
  %5030 = vmatprep.subr.bf16.mxu0 0
  %5031 = vmatpush1.bf16.msra.mxu0 0
  %5032 = vmatprep.subr.bf16.mxu0 0
  %5033 = vmatpush1.bf16.msra.mxu0 0
  %5034 = vmatprep.subr.bf16.mxu0 0
  %5035 = vmatpush1.bf16.msra.mxu0 0
  %5036 = vmatprep.subr.bf16.mxu0 0
  %5037 = vmatpush1.bf16.msra.mxu0 0
  %5038 = vmatprep.subr.bf16.mxu0 0
  %5039 = vmatpush1.bf16.msra.mxu0 0
  %5040 = vmatprep.mubr.bf16.mxu0 0
  %5041 = vmatmul.mubr.bf16.gmra.mrb[0].mxu0 %v4623
  %v5042 = vpop.f32.mrb[0].mxu0
  %v5043 = vadd.f32 0.0, %v5042
  %v5044 = vpop.f32.mrb[0].mxu0
  %v5045 = vadd.f32 0.0, %v5044
  %v5046 = vpop.f32.mrb[0].mxu0
  %v5047 = vadd.f32 0.0, %v5046
  %v5048 = vpop.f32.mrb[0].mxu0
  %v5049 = vadd.f32 0.0, %v5048
  %5050 = vmatprep.mubr.bf16.mxu0 0
  %5051 = vmatmul.mubr.bf16.gmra.mrb[0].mxu0 %v4624
  %v5052 = vpop.f32.mrb[0].mxu0
  %v5053 = vadd.f32 0.0, %v5052
  %v5054 = vpop.f32.mrb[0].mxu0
  %v5055 = vadd.f32 0.0, %v5054
  %v5056 = vpop.f32.mrb[0].mxu0
  %v5057 = vadd.f32 0.0, %v5056
  %v5058 = vpop.f32.mrb[0].mxu0
  %v5059 = vadd.f32 0.0, %v5058
  %5060 = vmatprep.mubr.bf16.mxu0 0
  %5061 = vmatmul.mubr.bf16.gmra.mrb[0].mxu0 %v4625
  %v5062 = vpop.f32.mrb[0].mxu0
  %v5063 = vadd.f32 0.0, %v5062
  %v5064 = vpop.f32.mrb[0].mxu0
  %v5065 = vadd.f32 0.0, %v5064
  %v5066 = vpop.f32.mrb[0].mxu0
  %v5067 = vadd.f32 0.0, %v5066
  %v5068 = vpop.f32.mrb[0].mxu0
  %v5069 = vadd.f32 0.0, %v5068
  %5070 = vmatprep.mubr.bf16.mxu0 0
  %5071 = vmatmul.mubr.bf16.gmra.mrb[0].mxu0 %v4626
  %v5072 = vpop.f32.mrb[0].mxu0
  %v5073 = vadd.f32 0.0, %v5072
  %v5074 = vpop.f32.mrb[0].mxu0
  %v5075 = vadd.f32 0.0, %v5074
  %v5076 = vpop.f32.mrb[0].mxu0
  %v5077 = vadd.f32 0.0, %v5076
  %v5078 = vpop.f32.mrb[0].mxu0
  %v5079 = vadd.f32 0.0, %v5078
  %5080 = vdwg.mxu0
  %v5082 = vlaneseq
  %v5083 = vshrl.u32 %v5082, 7
  %v5084 = vsub.s32 0, %v5083
  %v5085 = vrot.slane %v4771, %v5084
  %v5086 = vlaneseq
  %v5087 = vshrl.u32 %v5086, 7
  %v5088 = vsub.s32 2, %v5087
  %v5089 = vrot.slane %v4771, %v5088
  %v5090 = vlaneseq
  %v5091 = vshrl.u32 %v5090, 7
  %v5092 = vsub.s32 4, %v5091
  %v5093 = vrot.slane %v4771, %v5092
  %v5094 = vlaneseq
  %v5095 = vshrl.u32 %v5094, 7
  %v5096 = vsub.s32 6, %v5095
  %v5097 = vrot.slane %v4771, %v5096
  %v5102 = vlaneseq
  %v5103 = vshrl.u32 %v5102, 7
  %v5104 = vsub.s32 0, %v5103
  %v5105 = vrot.slane %v5085, %v5104
  %v5106 = vlaneseq
  %v5107 = vshrl.u32 %v5106, 7
  %v5108 = vsub.s32 0, %v5107
  %v5109 = vrot.slane %v5089, %v5108
  %v5110 = vlaneseq
  %v5111 = vshrl.u32 %v5110, 7
  %v5112 = vsub.s32 0, %v5111
  %v5113 = vrot.slane %v5093, %v5112
  %v5114 = vlaneseq
  %v5115 = vshrl.u32 %v5114, 7
  %v5116 = vsub.s32 0, %v5115
  %v5117 = vrot.slane %v5097, %v5116
  %v5118 = vadd.f32 %v5105, %v4970
  %v5119 = vadd.f32 %v5109, %v4972
  %v5120 = vadd.f32 %v5113, %v5043
  %v5121 = vadd.f32 %v5117, %v5045
  %v5122 = vadd.f32 %v5105, %v4974
  %v5123 = vadd.f32 %v5109, %v4976
  %v5124 = vadd.f32 %v5113, %v5047
  %v5125 = vadd.f32 %v5117, %v5049
  %v5126 = vadd.f32 %v5105, %v4980
  %v5127 = vadd.f32 %v5109, %v4982
  %v5128 = vadd.f32 %v5113, %v5053
  %v5129 = vadd.f32 %v5117, %v5055
  %v5130 = vadd.f32 %v5105, %v4984
  %v5131 = vadd.f32 %v5109, %v4986
  %v5132 = vadd.f32 %v5113, %v5057
  %v5133 = vadd.f32 %v5117, %v5059
  %v5134 = vadd.f32 %v5105, %v4990
  %v5135 = vadd.f32 %v5109, %v4992
  %v5136 = vadd.f32 %v5113, %v5063
  %v5137 = vadd.f32 %v5117, %v5065
  %v5138 = vadd.f32 %v5105, %v4994
  %v5139 = vadd.f32 %v5109, %v4996
  %v5140 = vadd.f32 %v5113, %v5067
  %v5141 = vadd.f32 %v5117, %v5069
  %v5142 = vadd.f32 %v5105, %v5000
  %v5143 = vadd.f32 %v5109, %v5002
  %v5144 = vadd.f32 %v5113, %v5073
  %v5145 = vadd.f32 %v5117, %v5075
  %v5146 = vadd.f32 %v5105, %v5004
  %v5147 = vadd.f32 %v5109, %v5006
  %v5148 = vadd.f32 %v5113, %v5077
  %v5149 = vadd.f32 %v5117, %v5079
  %v5182 = vunpack.c.l.b16 %v4672
  %v5183 = vunpack.c.h.b16 %v4672
  %v5184 = vunpack.c.l.b16 %v4673
  %v5185 = vunpack.c.h.b16 %v4673
  %v5186 = vunpack.c.l.b16 %v4674
  %v5187 = vunpack.c.h.b16 %v4674
  %v5188 = vunpack.c.l.b16 %v4675
  %v5189 = vunpack.c.h.b16 %v4675
  %v5190 = vunpack.c.l.b16 %v4676
  %v5191 = vunpack.c.h.b16 %v4676
  %v5192 = vunpack.c.l.b16 %v4677
  %v5193 = vunpack.c.h.b16 %v4677
  %v5194 = vunpack.c.l.b16 %v4678
  %v5195 = vunpack.c.h.b16 %v4678
  %v5196 = vunpack.c.l.b16 %v4679
  %v5197 = vunpack.c.h.b16 %v4679
  %v5198 = vunpack.c.l.b16 %v4680
  %v5199 = vunpack.c.h.b16 %v4680
  %v5200 = vunpack.c.l.b16 %v4681
  %v5201 = vunpack.c.h.b16 %v4681
  %v5202 = vunpack.c.l.b16 %v4682
  %v5203 = vunpack.c.h.b16 %v4682
  %v5204 = vunpack.c.l.b16 %v4683
  %v5205 = vunpack.c.h.b16 %v4683
  %v5206 = vunpack.c.l.b16 %v4684
  %v5207 = vunpack.c.h.b16 %v4684
  %v5208 = vunpack.c.l.b16 %v4685
  %v5209 = vunpack.c.h.b16 %v4685
  %v5210 = vunpack.c.l.b16 %v4686
  %v5211 = vunpack.c.h.b16 %v4686
  %v5212 = vunpack.c.l.b16 %v4687
  %v5213 = vunpack.c.h.b16 %v4687
  %v5214 = vunpack.c.l.b16 %v4688
  %v5215 = vunpack.c.h.b16 %v4688
  %v5216 = vunpack.c.l.b16 %v4689
  %v5217 = vunpack.c.h.b16 %v4689
  %v5218 = vunpack.c.l.b16 %v4690
  %v5219 = vunpack.c.h.b16 %v4690
  %v5220 = vunpack.c.l.b16 %v4691
  %v5221 = vunpack.c.h.b16 %v4691
  %v5222 = vunpack.c.l.b16 %v4692
  %v5223 = vunpack.c.h.b16 %v4692
  %v5224 = vunpack.c.l.b16 %v4693
  %v5225 = vunpack.c.h.b16 %v4693
  %v5226 = vunpack.c.l.b16 %v4694
  %v5227 = vunpack.c.h.b16 %v4694
  %v5228 = vunpack.c.l.b16 %v4695
  %v5229 = vunpack.c.h.b16 %v4695
  %v5230 = vunpack.c.l.b16 %v4696
  %v5231 = vunpack.c.h.b16 %v4696
  %v5232 = vunpack.c.l.b16 %v4697
  %v5233 = vunpack.c.h.b16 %v4697
  %v5234 = vunpack.c.l.b16 %v4698
  %v5235 = vunpack.c.h.b16 %v4698
  %v5236 = vunpack.c.l.b16 %v4699
  %v5237 = vunpack.c.h.b16 %v4699
  %v5238 = vunpack.c.l.b16 %v4700
  %v5239 = vunpack.c.h.b16 %v4700
  %v5240 = vunpack.c.l.b16 %v4701
  %v5241 = vunpack.c.h.b16 %v4701
  %v5242 = vunpack.c.l.b16 %v4702
  %v5243 = vunpack.c.h.b16 %v4702
  %v5244 = vunpack.c.l.b16 %v4703
  %v5245 = vunpack.c.h.b16 %v4703
  %v5246 = vpack.c.b16 %v5186, %v5182
  %v5247 = vpack.c.b16 %v5187, %v5183
  %v5248 = vpack.c.b16 %v5188, %v5184
  %v5249 = vpack.c.b16 %v5189, %v5185
  %v5250 = vpack.c.b16 %v5194, %v5190
  %v5251 = vpack.c.b16 %v5195, %v5191
  %v5252 = vpack.c.b16 %v5196, %v5192
  %v5253 = vpack.c.b16 %v5197, %v5193
  %v5254 = vpack.c.b16 %v5202, %v5198
  %v5255 = vpack.c.b16 %v5203, %v5199
  %v5256 = vpack.c.b16 %v5204, %v5200
  %v5257 = vpack.c.b16 %v5205, %v5201
  %v5258 = vpack.c.b16 %v5210, %v5206
  %v5259 = vpack.c.b16 %v5211, %v5207
  %v5260 = vpack.c.b16 %v5212, %v5208
  %v5261 = vpack.c.b16 %v5213, %v5209
  %v5262 = vpack.c.b16 %v5218, %v5214
  %v5263 = vpack.c.b16 %v5219, %v5215
  %v5264 = vpack.c.b16 %v5220, %v5216
  %v5265 = vpack.c.b16 %v5221, %v5217
  %v5266 = vpack.c.b16 %v5226, %v5222
  %v5267 = vpack.c.b16 %v5227, %v5223
  %v5268 = vpack.c.b16 %v5228, %v5224
  %v5269 = vpack.c.b16 %v5229, %v5225
  %v5270 = vpack.c.b16 %v5234, %v5230
  %v5271 = vpack.c.b16 %v5235, %v5231
  %v5272 = vpack.c.b16 %v5236, %v5232
  %v5273 = vpack.c.b16 %v5237, %v5233
  %v5274 = vpack.c.b16 %v5242, %v5238
  %v5275 = vpack.c.b16 %v5243, %v5239
  %v5276 = vpack.c.b16 %v5244, %v5240
  %v5277 = vpack.c.b16 %v5245, %v5241
  %5310 = vmatprep.subr.bf16.mxu0 %v5247
  %5311 = vmatpush1.bf16.msra.mxu0 %v5246
  %5312 = vmatprep.subr.bf16.mxu0 %v5251
  %5313 = vmatpush1.bf16.msra.mxu0 %v5250
  %5314 = vmatprep.subr.bf16.mxu0 %v5255
  %5315 = vmatpush1.bf16.msra.mxu0 %v5254
  %5316 = vmatprep.subr.bf16.mxu0 %v5259
  %5317 = vmatpush1.bf16.msra.mxu0 %v5258
  %5318 = vmatprep.subr.bf16.mxu0 %v5263
  %5319 = vmatpush1.bf16.msra.mxu0 %v5262
  %5320 = vmatprep.subr.bf16.mxu0 %v5267
  %5321 = vmatpush1.bf16.msra.mxu0 %v5266
  %5322 = vmatprep.subr.bf16.mxu0 %v5271
  %5323 = vmatpush1.bf16.msra.mxu0 %v5270
  %5324 = vmatprep.subr.bf16.mxu0 %v5275
  %5325 = vmatpush1.bf16.msra.mxu0 %v5274
  %5326 = vmatprep.subr.bf16.mxu0 0
  %5327 = vmatpush1.bf16.msra.mxu0 0
  %5328 = vmatprep.subr.bf16.mxu0 0
  %5329 = vmatpush1.bf16.msra.mxu0 0
  %5330 = vmatprep.subr.bf16.mxu0 0
  %5331 = vmatpush1.bf16.msra.mxu0 0
  %5332 = vmatprep.subr.bf16.mxu0 0
  %5333 = vmatpush1.bf16.msra.mxu0 0
  %5334 = vmatprep.subr.bf16.mxu0 0
  %5335 = vmatpush1.bf16.msra.mxu0 0
  %5336 = vmatprep.subr.bf16.mxu0 0
  %5337 = vmatpush1.bf16.msra.mxu0 0
  %5338 = vmatprep.subr.bf16.mxu0 0
  %5339 = vmatpush1.bf16.msra.mxu0 0
  %5340 = vmatprep.subr.bf16.mxu0 0
  %5341 = vmatpush1.bf16.msra.mxu0 0
  %5342 = vmatprep.mubr.bf16.mxu0 0
  %5343 = vmatmul.mubr.bf16.gmra.mrb[0].mxu0 %v4635
  %v5344 = vpop.f32.mrb[0].mxu0
  %v5345 = vadd.f32 0.0, %v5344
  %v5346 = vpop.f32.mrb[0].mxu0
  %v5347 = vadd.f32 0.0, %v5346
  %v5348 = vpop.f32.mrb[0].mxu0
  %v5349 = vadd.f32 0.0, %v5348
  %v5350 = vpop.f32.mrb[0].mxu0
  %v5351 = vadd.f32 0.0, %v5350
  %5352 = vmatprep.mubr.bf16.mxu0 0
  %5353 = vmatmul.mubr.bf16.gmra.mrb[0].mxu0 %v4636
  %v5354 = vpop.f32.mrb[0].mxu0
  %v5355 = vadd.f32 0.0, %v5354
  %v5356 = vpop.f32.mrb[0].mxu0
  %v5357 = vadd.f32 0.0, %v5356
  %v5358 = vpop.f32.mrb[0].mxu0
  %v5359 = vadd.f32 0.0, %v5358
  %v5360 = vpop.f32.mrb[0].mxu0
  %v5361 = vadd.f32 0.0, %v5360
  %5362 = vmatprep.mubr.bf16.mxu0 0
  %5363 = vmatmul.mubr.bf16.gmra.mrb[0].mxu0 %v4637
  %v5364 = vpop.f32.mrb[0].mxu0
  %v5365 = vadd.f32 0.0, %v5364
  %v5366 = vpop.f32.mrb[0].mxu0
  %v5367 = vadd.f32 0.0, %v5366
  %v5368 = vpop.f32.mrb[0].mxu0
  %v5369 = vadd.f32 0.0, %v5368
  %v5370 = vpop.f32.mrb[0].mxu0
  %v5371 = vadd.f32 0.0, %v5370
  %5372 = vmatprep.mubr.bf16.mxu0 0
  %5373 = vmatmul.mubr.bf16.gmra.mrb[0].mxu0 %v4638
  %v5374 = vpop.f32.mrb[0].mxu0
  %v5375 = vadd.f32 0.0, %v5374
  %v5376 = vpop.f32.mrb[0].mxu0
  %v5377 = vadd.f32 0.0, %v5376
  %v5378 = vpop.f32.mrb[0].mxu0
  %v5379 = vadd.f32 0.0, %v5378
  %v5380 = vpop.f32.mrb[0].mxu0
  %v5381 = vadd.f32 0.0, %v5380
  %5382 = vdwg.mxu0
  %5383 = vmatprep.subr.bf16.mxu0 %v5249
  %5384 = vmatpush1.bf16.msra.mxu0 %v5248
  %5385 = vmatprep.subr.bf16.mxu0 %v5253
  %5386 = vmatpush1.bf16.msra.mxu0 %v5252
  %5387 = vmatprep.subr.bf16.mxu0 %v5257
  %5388 = vmatpush1.bf16.msra.mxu0 %v5256
  %5389 = vmatprep.subr.bf16.mxu0 %v5261
  %5390 = vmatpush1.bf16.msra.mxu0 %v5260
  %5391 = vmatprep.subr.bf16.mxu0 %v5265
  %5392 = vmatpush1.bf16.msra.mxu0 %v5264
  %5393 = vmatprep.subr.bf16.mxu0 %v5269
  %5394 = vmatpush1.bf16.msra.mxu0 %v5268
  %5395 = vmatprep.subr.bf16.mxu0 %v5273
  %5396 = vmatpush1.bf16.msra.mxu0 %v5272
  %5397 = vmatprep.subr.bf16.mxu0 %v5277
  %5398 = vmatpush1.bf16.msra.mxu0 %v5276
  %5399 = vmatprep.subr.bf16.mxu0 0
  %5400 = vmatpush1.bf16.msra.mxu0 0
  %5401 = vmatprep.subr.bf16.mxu0 0
  %5402 = vmatpush1.bf16.msra.mxu0 0
  %5403 = vmatprep.subr.bf16.mxu0 0
  %5404 = vmatpush1.bf16.msra.mxu0 0
  %5405 = vmatprep.subr.bf16.mxu0 0
  %5406 = vmatpush1.bf16.msra.mxu0 0
  %5407 = vmatprep.subr.bf16.mxu0 0
  %5408 = vmatpush1.bf16.msra.mxu0 0
  %5409 = vmatprep.subr.bf16.mxu0 0
  %5410 = vmatpush1.bf16.msra.mxu0 0
  %5411 = vmatprep.subr.bf16.mxu0 0
  %5412 = vmatpush1.bf16.msra.mxu0 0
  %5413 = vmatprep.subr.bf16.mxu0 0
  %5414 = vmatpush1.bf16.msra.mxu0 0
  %5415 = vmatprep.mubr.bf16.mxu0 0
  %5416 = vmatmul.mubr.bf16.gmra.mrb[0].mxu0 %v4635
  %v5417 = vpop.f32.mrb[0].mxu0
  %v5418 = vadd.f32 0.0, %v5417
  %v5419 = vpop.f32.mrb[0].mxu0
  %v5420 = vadd.f32 0.0, %v5419
  %v5421 = vpop.f32.mrb[0].mxu0
  %v5422 = vadd.f32 0.0, %v5421
  %v5423 = vpop.f32.mrb[0].mxu0
  %v5424 = vadd.f32 0.0, %v5423
  %5425 = vmatprep.mubr.bf16.mxu0 0
  %5426 = vmatmul.mubr.bf16.gmra.mrb[0].mxu0 %v4636
  %v5427 = vpop.f32.mrb[0].mxu0
  %v5428 = vadd.f32 0.0, %v5427
  %v5429 = vpop.f32.mrb[0].mxu0
  %v5430 = vadd.f32 0.0, %v5429
  %v5431 = vpop.f32.mrb[0].mxu0
  %v5432 = vadd.f32 0.0, %v5431
  %v5433 = vpop.f32.mrb[0].mxu0
  %v5434 = vadd.f32 0.0, %v5433
  %5435 = vmatprep.mubr.bf16.mxu0 0
  %5436 = vmatmul.mubr.bf16.gmra.mrb[0].mxu0 %v4637
  %v5437 = vpop.f32.mrb[0].mxu0
  %v5438 = vadd.f32 0.0, %v5437
  %v5439 = vpop.f32.mrb[0].mxu0
  %v5440 = vadd.f32 0.0, %v5439
  %v5441 = vpop.f32.mrb[0].mxu0
  %v5442 = vadd.f32 0.0, %v5441
  %v5443 = vpop.f32.mrb[0].mxu0
  %v5444 = vadd.f32 0.0, %v5443
  %5445 = vmatprep.mubr.bf16.mxu0 0
  %5446 = vmatmul.mubr.bf16.gmra.mrb[0].mxu0 %v4638
  %v5447 = vpop.f32.mrb[0].mxu0
  %v5448 = vadd.f32 0.0, %v5447
  %v5449 = vpop.f32.mrb[0].mxu0
  %v5450 = vadd.f32 0.0, %v5449
  %v5451 = vpop.f32.mrb[0].mxu0
  %v5452 = vadd.f32 0.0, %v5451
  %v5453 = vpop.f32.mrb[0].mxu0
  %v5454 = vadd.f32 0.0, %v5453
  %5455 = vdwg.mxu0
  %v5456 = vadd.f32 %v5118, %v5345
  %v5457 = vadd.f32 %v5119, %v5347
  %v5458 = vadd.f32 %v5120, %v5418
  %v5459 = vadd.f32 %v5121, %v5420
  %v5460 = vadd.f32 %v5122, %v5349
  %v5461 = vadd.f32 %v5123, %v5351
  %v5462 = vadd.f32 %v5124, %v5422
  %v5463 = vadd.f32 %v5125, %v5424
  %v5464 = vadd.f32 %v5126, %v5355
  %v5465 = vadd.f32 %v5127, %v5357
  %v5466 = vadd.f32 %v5128, %v5428
  %v5467 = vadd.f32 %v5129, %v5430
  %v5468 = vadd.f32 %v5130, %v5359
  %v5469 = vadd.f32 %v5131, %v5361
  %v5470 = vadd.f32 %v5132, %v5432
  %v5471 = vadd.f32 %v5133, %v5434
  %v5472 = vadd.f32 %v5134, %v5365
  %v5473 = vadd.f32 %v5135, %v5367
  %v5474 = vadd.f32 %v5136, %v5438
  %v5475 = vadd.f32 %v5137, %v5440
  %v5476 = vadd.f32 %v5138, %v5369
  %v5477 = vadd.f32 %v5139, %v5371
  %v5478 = vadd.f32 %v5140, %v5442
  %v5479 = vadd.f32 %v5141, %v5444
  %v5480 = vadd.f32 %v5142, %v5375
  %v5481 = vadd.f32 %v5143, %v5377
  %v5482 = vadd.f32 %v5144, %v5448
  %v5483 = vadd.f32 %v5145, %v5450
  %v5484 = vadd.f32 %v5146, %v5379
  %v5485 = vadd.f32 %v5147, %v5381
  %v5486 = vadd.f32 %v5148, %v5452
  %v5487 = vadd.f32 %v5149, %v5454
  %5488 = vst [vmem:[#allocation2] sm:$0xff] %v5456
  %5489 = vst [vmem:[#allocation2 + $0x8] sm:$0xff] %v5457
  %5490 = vst [vmem:[#allocation2 + $0x10] sm:$0xff] %v5458
  %5491 = vst [vmem:[#allocation2 + $0x18] sm:$0xff] %v5459
  %5492 = vst [vmem:[#allocation2 + $0x20] sm:$0xff] %v5460
  %5493 = vst [vmem:[#allocation2 + $0x28] sm:$0xff] %v5461
  %5494 = vst [vmem:[#allocation2 + $0x30] sm:$0xff] %v5462
  %5495 = vst [vmem:[#allocation2 + $0x38] sm:$0xff] %v5463
  %5496 = vst [vmem:[#allocation2 + $0x40] sm:$0xff] %v5464
  %5497 = vst [vmem:[#allocation2 + $0x48] sm:$0xff] %v5465
  %5498 = vst [vmem:[#allocation2 + $0x50] sm:$0xff] %v5466
  %5499 = vst [vmem:[#allocation2 + $0x58] sm:$0xff] %v5467
  %5500 = vst [vmem:[#allocation2 + $0x60] sm:$0xff] %v5468
  %5501 = vst [vmem:[#allocation2 + $0x68] sm:$0xff] %v5469
  %5502 = vst [vmem:[#allocation2 + $0x70] sm:$0xff] %v5470
  %5503 = vst [vmem:[#allocation2 + $0x78] sm:$0xff] %v5471
  %5504 = vst [vmem:[#allocation2 + $0x80] sm:$0xff] %v5472
  %5505 = vst [vmem:[#allocation2 + $0x88] sm:$0xff] %v5473
  %5506 = vst [vmem:[#allocation2 + $0x90] sm:$0xff] %v5474
  %5507 = vst [vmem:[#allocation2 + $0x98] sm:$0xff] %v5475
  %5508 = vst [vmem:[#allocation2 + $0xa0] sm:$0xff] %v5476
  %5509 = vst [vmem:[#allocation2 + $0xa8] sm:$0xff] %v5477
  %5510 = vst [vmem:[#allocation2 + $0xb0] sm:$0xff] %v5478
  %5511 = vst [vmem:[#allocation2 + $0xb8] sm:$0xff] %v5479
  %5512 = vst [vmem:[#allocation2 + $0xc0] sm:$0xff] %v5480
  %5513 = vst [vmem:[#allocation2 + $0xc8] sm:$0xff] %v5481
  %5514 = vst [vmem:[#allocation2 + $0xd0] sm:$0xff] %v5482
  %5515 = vst [vmem:[#allocation2 + $0xd8] sm:$0xff] %v5483
  %5516 = vst [vmem:[#allocation2 + $0xe0] sm:$0xff] %v5484
  %5517 = vst [vmem:[#allocation2 + $0xe8] sm:$0xff] %v5485
  %5518 = vst [vmem:[#allocation2 + $0xf0] sm:$0xff] %v5486
  %5519 = vst [vmem:[#allocation2 + $0xf8] sm:$0xff] %v5487
  %v5552 = vunpack.c.l.b16 %v4705
  %v5553 = vunpack.c.h.b16 %v4705
  %v5554 = vunpack.c.l.b16 %v4706
  %v5555 = vunpack.c.h.b16 %v4706
  %v5556 = vunpack.c.l.b16 %v4707
  %v5557 = vunpack.c.h.b16 %v4707
  %v5558 = vunpack.c.l.b16 %v4708
  %v5559 = vunpack.c.h.b16 %v4708
  %v5560 = vunpack.c.l.b16 %v4709
  %v5561 = vunpack.c.h.b16 %v4709
  %v5562 = vunpack.c.l.b16 %v4710
  %v5563 = vunpack.c.h.b16 %v4710
  %v5564 = vunpack.c.l.b16 %v4711
  %v5565 = vunpack.c.h.b16 %v4711
  %v5566 = vunpack.c.l.b16 %v4712
  %v5567 = vunpack.c.h.b16 %v4712
  %v5568 = vunpack.c.l.b16 %v4713
  %v5569 = vunpack.c.h.b16 %v4713
  %v5570 = vunpack.c.l.b16 %v4714
  %v5571 = vunpack.c.h.b16 %v4714
  %v5572 = vunpack.c.l.b16 %v4715
  %v5573 = vunpack.c.h.b16 %v4715
  %v5574 = vunpack.c.l.b16 %v4716
  %v5575 = vunpack.c.h.b16 %v4716
  %v5576 = vunpack.c.l.b16 %v4717
  %v5577 = vunpack.c.h.b16 %v4717
  %v5578 = vunpack.c.l.b16 %v4718
  %v5579 = vunpack.c.h.b16 %v4718
  %v5580 = vunpack.c.l.b16 %v4719
  %v5581 = vunpack.c.h.b16 %v4719
  %v5582 = vunpack.c.l.b16 %v4720
  %v5583 = vunpack.c.h.b16 %v4720
  %v5584 = vunpack.c.l.b16 %v4721
  %v5585 = vunpack.c.h.b16 %v4721
  %v5586 = vunpack.c.l.b16 %v4722
  %v5587 = vunpack.c.h.b16 %v4722
  %v5588 = vunpack.c.l.b16 %v4723
  %v5589 = vunpack.c.h.b16 %v4723
  %v5590 = vunpack.c.l.b16 %v4724
  %v5591 = vunpack.c.h.b16 %v4724
  %v5592 = vunpack.c.l.b16 %v4725
  %v5593 = vunpack.c.h.b16 %v4725
  %v5594 = vunpack.c.l.b16 %v4726
  %v5595 = vunpack.c.h.b16 %v4726
  %v5596 = vunpack.c.l.b16 %v4727
  %v5597 = vunpack.c.h.b16 %v4727
  %v5598 = vunpack.c.l.b16 %v4728
  %v5599 = vunpack.c.h.b16 %v4728
  %v5600 = vunpack.c.l.b16 %v4729
  %v5601 = vunpack.c.h.b16 %v4729
  %v5602 = vunpack.c.l.b16 %v4730
  %v5603 = vunpack.c.h.b16 %v4730
  %v5604 = vunpack.c.l.b16 %v4731
  %v5605 = vunpack.c.h.b16 %v4731
  %v5606 = vunpack.c.l.b16 %v4732
  %v5607 = vunpack.c.h.b16 %v4732
  %v5608 = vunpack.c.l.b16 %v4733
  %v5609 = vunpack.c.h.b16 %v4733
  %v5610 = vunpack.c.l.b16 %v4734
  %v5611 = vunpack.c.h.b16 %v4734
  %v5612 = vunpack.c.l.b16 %v4735
  %v5613 = vunpack.c.h.b16 %v4735
  %v5614 = vunpack.c.l.b16 %v4736
  %v5615 = vunpack.c.h.b16 %v4736
  %v5616 = vpack.c.b16 %v5556, %v5552
  %v5617 = vpack.c.b16 %v5557, %v5553
  %v5618 = vpack.c.b16 %v5558, %v5554
  %v5619 = vpack.c.b16 %v5559, %v5555
  %v5620 = vpack.c.b16 %v5564, %v5560
  %v5621 = vpack.c.b16 %v5565, %v5561
  %v5622 = vpack.c.b16 %v5566, %v5562
  %v5623 = vpack.c.b16 %v5567, %v5563
  %v5624 = vpack.c.b16 %v5572, %v5568
  %v5625 = vpack.c.b16 %v5573, %v5569
  %v5626 = vpack.c.b16 %v5574, %v5570
  %v5627 = vpack.c.b16 %v5575, %v5571
  %v5628 = vpack.c.b16 %v5580, %v5576
  %v5629 = vpack.c.b16 %v5581, %v5577
  %v5630 = vpack.c.b16 %v5582, %v5578
  %v5631 = vpack.c.b16 %v5583, %v5579
  %v5632 = vpack.c.b16 %v5588, %v5584
  %v5633 = vpack.c.b16 %v5589, %v5585
  %v5634 = vpack.c.b16 %v5590, %v5586
  %v5635 = vpack.c.b16 %v5591, %v5587
  %v5636 = vpack.c.b16 %v5596, %v5592
  %v5637 = vpack.c.b16 %v5597, %v5593
  %v5638 = vpack.c.b16 %v5598, %v5594
  %v5639 = vpack.c.b16 %v5599, %v5595
  %v5640 = vpack.c.b16 %v5604, %v5600
  %v5641 = vpack.c.b16 %v5605, %v5601
  %v5642 = vpack.c.b16 %v5606, %v5602
  %v5643 = vpack.c.b16 %v5607, %v5603
  %v5644 = vpack.c.b16 %v5612, %v5608
  %v5645 = vpack.c.b16 %v5613, %v5609
  %v5646 = vpack.c.b16 %v5614, %v5610
  %v5647 = vpack.c.b16 %v5615, %v5611
  %5680 = vmatprep.subr.bf16.mxu0 %v5617
  %5681 = vmatpush1.bf16.msra.mxu0 %v5616
  %5682 = vmatprep.subr.bf16.mxu0 %v5621
  %5683 = vmatpush1.bf16.msra.mxu0 %v5620
  %5684 = vmatprep.subr.bf16.mxu0 %v5625
  %5685 = vmatpush1.bf16.msra.mxu0 %v5624
  %5686 = vmatprep.subr.bf16.mxu0 %v5629
  %5687 = vmatpush1.bf16.msra.mxu0 %v5628
  %5688 = vmatprep.subr.bf16.mxu0 %v5633
  %5689 = vmatpush1.bf16.msra.mxu0 %v5632
  %5690 = vmatprep.subr.bf16.mxu0 %v5637
  %5691 = vmatpush1.bf16.msra.mxu0 %v5636
  %5692 = vmatprep.subr.bf16.mxu0 %v5641
  %5693 = vmatpush1.bf16.msra.mxu0 %v5640
  %5694 = vmatprep.subr.bf16.mxu0 %v5645
  %5695 = vmatpush1.bf16.msra.mxu0 %v5644
  %5696 = vmatprep.subr.bf16.mxu0 0
  %5697 = vmatpush1.bf16.msra.mxu0 0
  %5698 = vmatprep.subr.bf16.mxu0 0
  %5699 = vmatpush1.bf16.msra.mxu0 0
  %5700 = vmatprep.subr.bf16.mxu0 0
  %5701 = vmatpush1.bf16.msra.mxu0 0
  %5702 = vmatprep.subr.bf16.mxu0 0
  %5703 = vmatpush1.bf16.msra.mxu0 0
  %5704 = vmatprep.subr.bf16.mxu0 0
  %5705 = vmatpush1.bf16.msra.mxu0 0
  %5706 = vmatprep.subr.bf16.mxu0 0
  %5707 = vmatpush1.bf16.msra.mxu0 0
  %5708 = vmatprep.subr.bf16.mxu0 0
  %5709 = vmatpush1.bf16.msra.mxu0 0
  %5710 = vmatprep.subr.bf16.mxu0 0
  %5711 = vmatpush1.bf16.msra.mxu0 0
  %5712 = vmatprep.mubr.bf16.mxu0 0
  %5713 = vmatmul.mubr.bf16.gmra.mrb[0].mxu0 %v4623
  %v5714 = vpop.f32.mrb[0].mxu0
  %v5715 = vadd.f32 0.0, %v5714
  %v5716 = vpop.f32.mrb[0].mxu0
  %v5717 = vadd.f32 0.0, %v5716
  %v5718 = vpop.f32.mrb[0].mxu0
  %v5719 = vadd.f32 0.0, %v5718
  %v5720 = vpop.f32.mrb[0].mxu0
  %v5721 = vadd.f32 0.0, %v5720
  %5722 = vmatprep.mubr.bf16.mxu0 0
  %5723 = vmatmul.mubr.bf16.gmra.mrb[0].mxu0 %v4624
  %v5724 = vpop.f32.mrb[0].mxu0
  %v5725 = vadd.f32 0.0, %v5724
  %v5726 = vpop.f32.mrb[0].mxu0
  %v5727 = vadd.f32 0.0, %v5726
  %v5728 = vpop.f32.mrb[0].mxu0
  %v5729 = vadd.f32 0.0, %v5728
  %v5730 = vpop.f32.mrb[0].mxu0
  %v5731 = vadd.f32 0.0, %v5730
  %5732 = vmatprep.mubr.bf16.mxu0 0
  %5733 = vmatmul.mubr.bf16.gmra.mrb[0].mxu0 %v4625
  %v5734 = vpop.f32.mrb[0].mxu0
  %v5735 = vadd.f32 0.0, %v5734
  %v5736 = vpop.f32.mrb[0].mxu0
  %v5737 = vadd.f32 0.0, %v5736
  %v5738 = vpop.f32.mrb[0].mxu0
  %v5739 = vadd.f32 0.0, %v5738
  %v5740 = vpop.f32.mrb[0].mxu0
  %v5741 = vadd.f32 0.0, %v5740
  %5742 = vmatprep.mubr.bf16.mxu0 0
  %5743 = vmatmul.mubr.bf16.gmra.mrb[0].mxu0 %v4626
  %v5744 = vpop.f32.mrb[0].mxu0
  %v5745 = vadd.f32 0.0, %v5744
  %v5746 = vpop.f32.mrb[0].mxu0
  %v5747 = vadd.f32 0.0, %v5746
  %v5748 = vpop.f32.mrb[0].mxu0
  %v5749 = vadd.f32 0.0, %v5748
  %v5750 = vpop.f32.mrb[0].mxu0
  %v5751 = vadd.f32 0.0, %v5750
  %5752 = vdwg.mxu0
  %5753 = vmatprep.subr.bf16.mxu0 %v5619
  %5754 = vmatpush1.bf16.msra.mxu0 %v5618
  %5755 = vmatprep.subr.bf16.mxu0 %v5623
  %5756 = vmatpush1.bf16.msra.mxu0 %v5622
  %5757 = vmatprep.subr.bf16.mxu0 %v5627
  %5758 = vmatpush1.bf16.msra.mxu0 %v5626
  %5759 = vmatprep.subr.bf16.mxu0 %v5631
  %5760 = vmatpush1.bf16.msra.mxu0 %v5630
  %5761 = vmatprep.subr.bf16.mxu0 %v5635
  %5762 = vmatpush1.bf16.msra.mxu0 %v5634
  %5763 = vmatprep.subr.bf16.mxu0 %v5639
  %5764 = vmatpush1.bf16.msra.mxu0 %v5638
  %5765 = vmatprep.subr.bf16.mxu0 %v5643
  %5766 = vmatpush1.bf16.msra.mxu0 %v5642
  %5767 = vmatprep.subr.bf16.mxu0 %v5647
  %5768 = vmatpush1.bf16.msra.mxu0 %v5646
  %5769 = vmatprep.subr.bf16.mxu0 0
  %5770 = vmatpush1.bf16.msra.mxu0 0
  %5771 = vmatprep.subr.bf16.mxu0 0
  %5772 = vmatpush1.bf16.msra.mxu0 0
  %5773 = vmatprep.subr.bf16.mxu0 0
  %5774 = vmatpush1.bf16.msra.mxu0 0
  %5775 = vmatprep.subr.bf16.mxu0 0
  %5776 = vmatpush1.bf16.msra.mxu0 0
  %5777 = vmatprep.subr.bf16.mxu0 0
  %5778 = vmatpush1.bf16.msra.mxu0 0
  %5779 = vmatprep.subr.bf16.mxu0 0
  %5780 = vmatpush1.bf16.msra.mxu0 0
  %5781 = vmatprep.subr.bf16.mxu0 0
  %5782 = vmatpush1.bf16.msra.mxu0 0
  %5783 = vmatprep.subr.bf16.mxu0 0
  %5784 = vmatpush1.bf16.msra.mxu0 0
  %5785 = vmatprep.mubr.bf16.mxu0 0
  %5786 = vmatmul.mubr.bf16.gmra.mrb[0].mxu0 %v4623
  %v5787 = vpop.f32.mrb[0].mxu0
  %v5788 = vadd.f32 0.0, %v5787
  %v5789 = vpop.f32.mrb[0].mxu0
  %v5790 = vadd.f32 0.0, %v5789
  %v5791 = vpop.f32.mrb[0].mxu0
  %v5792 = vadd.f32 0.0, %v5791
  %v5793 = vpop.f32.mrb[0].mxu0
  %v5794 = vadd.f32 0.0, %v5793
  %5795 = vmatprep.mubr.bf16.mxu0 0
  %5796 = vmatmul.mubr.bf16.gmra.mrb[0].mxu0 %v4624
  %v5797 = vpop.f32.mrb[0].mxu0
  %v5798 = vadd.f32 0.0, %v5797
  %v5799 = vpop.f32.mrb[0].mxu0
  %v5800 = vadd.f32 0.0, %v5799
  %v5801 = vpop.f32.mrb[0].mxu0
  %v5802 = vadd.f32 0.0, %v5801
  %v5803 = vpop.f32.mrb[0].mxu0
  %v5804 = vadd.f32 0.0, %v5803
  %5805 = vmatprep.mubr.bf16.mxu0 0
  %5806 = vmatmul.mubr.bf16.gmra.mrb[0].mxu0 %v4625
  %v5807 = vpop.f32.mrb[0].mxu0
  %v5808 = vadd.f32 0.0, %v5807
  %v5809 = vpop.f32.mrb[0].mxu0
  %v5810 = vadd.f32 0.0, %v5809
  %v5811 = vpop.f32.mrb[0].mxu0
  %v5812 = vadd.f32 0.0, %v5811
  %v5813 = vpop.f32.mrb[0].mxu0
  %v5814 = vadd.f32 0.0, %v5813
  %5815 = vmatprep.mubr.bf16.mxu0 0
  %5816 = vmatmul.mubr.bf16.gmra.mrb[0].mxu0 %v4626
  %v5817 = vpop.f32.mrb[0].mxu0
  %v5818 = vadd.f32 0.0, %v5817
  %v5819 = vpop.f32.mrb[0].mxu0
  %v5820 = vadd.f32 0.0, %v5819
  %v5821 = vpop.f32.mrb[0].mxu0
  %v5822 = vadd.f32 0.0, %v5821
  %v5823 = vpop.f32.mrb[0].mxu0
  %v5824 = vadd.f32 0.0, %v5823
  %5825 = vdwg.mxu0
  %v5827 = vlaneseq
  %v5828 = vshrl.u32 %v5827, 7
  %v5829 = vsub.s32 0, %v5828
  %v5830 = vrot.slane %v4774, %v5829
  %v5831 = vlaneseq
  %v5832 = vshrl.u32 %v5831, 7
  %v5833 = vsub.s32 2, %v5832
  %v5834 = vrot.slane %v4774, %v5833
  %v5835 = vlaneseq
  %v5836 = vshrl.u32 %v5835, 7
  %v5837 = vsub.s32 4, %v5836
  %v5838 = vrot.slane %v4774, %v5837
  %v5839 = vlaneseq
  %v5840 = vshrl.u32 %v5839, 7
  %v5841 = vsub.s32 6, %v5840
  %v5842 = vrot.slane %v4774, %v5841
  %v5847 = vlaneseq
  %v5848 = vshrl.u32 %v5847, 7
  %v5849 = vsub.s32 0, %v5848
  %v5850 = vrot.slane %v5830, %v5849
  %v5851 = vlaneseq
  %v5852 = vshrl.u32 %v5851, 7
  %v5853 = vsub.s32 0, %v5852
  %v5854 = vrot.slane %v5834, %v5853
  %v5855 = vlaneseq
  %v5856 = vshrl.u32 %v5855, 7
  %v5857 = vsub.s32 0, %v5856
  %v5858 = vrot.slane %v5838, %v5857
  %v5859 = vlaneseq
  %v5860 = vshrl.u32 %v5859, 7
  %v5861 = vsub.s32 0, %v5860
  %v5862 = vrot.slane %v5842, %v5861
  %v5863 = vadd.f32 %v5850, %v5715
  %v5864 = vadd.f32 %v5854, %v5717
  %v5865 = vadd.f32 %v5858, %v5788
  %v5866 = vadd.f32 %v5862, %v5790
  %v5867 = vadd.f32 %v5850, %v5719
  %v5868 = vadd.f32 %v5854, %v5721
  %v5869 = vadd.f32 %v5858, %v5792
  %v5870 = vadd.f32 %v5862, %v5794
  %v5871 = vadd.f32 %v5850, %v5725
  %v5872 = vadd.f32 %v5854, %v5727
  %v5873 = vadd.f32 %v5858, %v5798
  %v5874 = vadd.f32 %v5862, %v5800
  %v5875 = vadd.f32 %v5850, %v5729
  %v5876 = vadd.f32 %v5854, %v5731
  %v5877 = vadd.f32 %v5858, %v5802
  %v5878 = vadd.f32 %v5862, %v5804
  %v5879 = vadd.f32 %v5850, %v5735
  %v5880 = vadd.f32 %v5854, %v5737
  %v5881 = vadd.f32 %v5858, %v5808
  %v5882 = vadd.f32 %v5862, %v5810
  %v5883 = vadd.f32 %v5850, %v5739
  %v5884 = vadd.f32 %v5854, %v5741
  %v5885 = vadd.f32 %v5858, %v5812
  %v5886 = vadd.f32 %v5862, %v5814
  %v5887 = vadd.f32 %v5850, %v5745
  %v5888 = vadd.f32 %v5854, %v5747
  %v5889 = vadd.f32 %v5858, %v5818
  %v5890 = vadd.f32 %v5862, %v5820
  %v5891 = vadd.f32 %v5850, %v5749
  %v5892 = vadd.f32 %v5854, %v5751
  %v5893 = vadd.f32 %v5858, %v5822
  %v5894 = vadd.f32 %v5862, %v5824
  %v5927 = vunpack.c.l.b16 %v4737
  %v5928 = vunpack.c.h.b16 %v4737
  %v5929 = vunpack.c.l.b16 %v4738
  %v5930 = vunpack.c.h.b16 %v4738
  %v5931 = vunpack.c.l.b16 %v4739
  %v5932 = vunpack.c.h.b16 %v4739
  %v5933 = vunpack.c.l.b16 %v4740
  %v5934 = vunpack.c.h.b16 %v4740
  %v5935 = vunpack.c.l.b16 %v4741
  %v5936 = vunpack.c.h.b16 %v4741
  %v5937 = vunpack.c.l.b16 %v4742
  %v5938 = vunpack.c.h.b16 %v4742
  %v5939 = vunpack.c.l.b16 %v4743
  %v5940 = vunpack.c.h.b16 %v4743
  %v5941 = vunpack.c.l.b16 %v4744
  %v5942 = vunpack.c.h.b16 %v4744
  %v5943 = vunpack.c.l.b16 %v4745
  %v5944 = vunpack.c.h.b16 %v4745
  %v5945 = vunpack.c.l.b16 %v4746
  %v5946 = vunpack.c.h.b16 %v4746
  %v5947 = vunpack.c.l.b16 %v4747
  %v5948 = vunpack.c.h.b16 %v4747
  %v5949 = vunpack.c.l.b16 %v4748
  %v5950 = vunpack.c.h.b16 %v4748
  %v5951 = vunpack.c.l.b16 %v4749
  %v5952 = vunpack.c.h.b16 %v4749
  %v5953 = vunpack.c.l.b16 %v4750
  %v5954 = vunpack.c.h.b16 %v4750
  %v5955 = vunpack.c.l.b16 %v4751
  %v5956 = vunpack.c.h.b16 %v4751
  %v5957 = vunpack.c.l.b16 %v4752
  %v5958 = vunpack.c.h.b16 %v4752
  %v5959 = vunpack.c.l.b16 %v4753
  %v5960 = vunpack.c.h.b16 %v4753
  %v5961 = vunpack.c.l.b16 %v4754
  %v5962 = vunpack.c.h.b16 %v4754
  %v5963 = vunpack.c.l.b16 %v4755
  %v5964 = vunpack.c.h.b16 %v4755
  %v5965 = vunpack.c.l.b16 %v4756
  %v5966 = vunpack.c.h.b16 %v4756
  %v5967 = vunpack.c.l.b16 %v4757
  %v5968 = vunpack.c.h.b16 %v4757
  %v5969 = vunpack.c.l.b16 %v4758
  %v5970 = vunpack.c.h.b16 %v4758
  %v5971 = vunpack.c.l.b16 %v4759
  %v5972 = vunpack.c.h.b16 %v4759
  %v5973 = vunpack.c.l.b16 %v4760
  %v5974 = vunpack.c.h.b16 %v4760
  %v5975 = vunpack.c.l.b16 %v4761
  %v5976 = vunpack.c.h.b16 %v4761
  %v5977 = vunpack.c.l.b16 %v4762
  %v5978 = vunpack.c.h.b16 %v4762
  %v5979 = vunpack.c.l.b16 %v4763
  %v5980 = vunpack.c.h.b16 %v4763
  %v5981 = vunpack.c.l.b16 %v4764
  %v5982 = vunpack.c.h.b16 %v4764
  %v5983 = vunpack.c.l.b16 %v4765
  %v5984 = vunpack.c.h.b16 %v4765
  %v5985 = vunpack.c.l.b16 %v4766
  %v5986 = vunpack.c.h.b16 %v4766
  %v5987 = vunpack.c.l.b16 %v4767
  %v5988 = vunpack.c.h.b16 %v4767
  %v5989 = vunpack.c.l.b16 %v4768
  %v5990 = vunpack.c.h.b16 %v4768
  %v5991 = vpack.c.b16 %v5931, %v5927
  %v5992 = vpack.c.b16 %v5932, %v5928
  %v5993 = vpack.c.b16 %v5933, %v5929
  %v5994 = vpack.c.b16 %v5934, %v5930
  %v5995 = vpack.c.b16 %v5939, %v5935
  %v5996 = vpack.c.b16 %v5940, %v5936
  %v5997 = vpack.c.b16 %v5941, %v5937
  %v5998 = vpack.c.b16 %v5942, %v5938
  %v5999 = vpack.c.b16 %v5947, %v5943
  %v6000 = vpack.c.b16 %v5948, %v5944
  %v6001 = vpack.c.b16 %v5949, %v5945
  %v6002 = vpack.c.b16 %v5950, %v5946
  %v6003 = vpack.c.b16 %v5955, %v5951
  %v6004 = vpack.c.b16 %v5956, %v5952
  %v6005 = vpack.c.b16 %v5957, %v5953
  %v6006 = vpack.c.b16 %v5958, %v5954
  %v6007 = vpack.c.b16 %v5963, %v5959
  %v6008 = vpack.c.b16 %v5964, %v5960
  %v6009 = vpack.c.b16 %v5965, %v5961
  %v6010 = vpack.c.b16 %v5966, %v5962
  %v6011 = vpack.c.b16 %v5971, %v5967
  %v6012 = vpack.c.b16 %v5972, %v5968
  %v6013 = vpack.c.b16 %v5973, %v5969
  %v6014 = vpack.c.b16 %v5974, %v5970
  %v6015 = vpack.c.b16 %v5979, %v5975
  %v6016 = vpack.c.b16 %v5980, %v5976
  %v6017 = vpack.c.b16 %v5981, %v5977
  %v6018 = vpack.c.b16 %v5982, %v5978
  %v6019 = vpack.c.b16 %v5987, %v5983
  %v6020 = vpack.c.b16 %v5988, %v5984
  %v6021 = vpack.c.b16 %v5989, %v5985
  %v6022 = vpack.c.b16 %v5990, %v5986
  %6055 = vmatprep.subr.bf16.mxu0 %v5992
  %6056 = vmatpush1.bf16.msra.mxu0 %v5991
  %6057 = vmatprep.subr.bf16.mxu0 %v5996
  %6058 = vmatpush1.bf16.msra.mxu0 %v5995
  %6059 = vmatprep.subr.bf16.mxu0 %v6000
  %6060 = vmatpush1.bf16.msra.mxu0 %v5999
  %6061 = vmatprep.subr.bf16.mxu0 %v6004
  %6062 = vmatpush1.bf16.msra.mxu0 %v6003
  %6063 = vmatprep.subr.bf16.mxu0 %v6008
  %6064 = vmatpush1.bf16.msra.mxu0 %v6007
  %6065 = vmatprep.subr.bf16.mxu0 %v6012
  %6066 = vmatpush1.bf16.msra.mxu0 %v6011
  %6067 = vmatprep.subr.bf16.mxu0 %v6016
  %6068 = vmatpush1.bf16.msra.mxu0 %v6015
  %6069 = vmatprep.subr.bf16.mxu0 %v6020
  %6070 = vmatpush1.bf16.msra.mxu0 %v6019
  %6071 = vmatprep.subr.bf16.mxu0 0
  %6072 = vmatpush1.bf16.msra.mxu0 0
  %6073 = vmatprep.subr.bf16.mxu0 0
  %6074 = vmatpush1.bf16.msra.mxu0 0
  %6075 = vmatprep.subr.bf16.mxu0 0
  %6076 = vmatpush1.bf16.msra.mxu0 0
  %6077 = vmatprep.subr.bf16.mxu0 0
  %6078 = vmatpush1.bf16.msra.mxu0 0
  %6079 = vmatprep.subr.bf16.mxu0 0
  %6080 = vmatpush1.bf16.msra.mxu0 0
  %6081 = vmatprep.subr.bf16.mxu0 0
  %6082 = vmatpush1.bf16.msra.mxu0 0
  %6083 = vmatprep.subr.bf16.mxu0 0
  %6084 = vmatpush1.bf16.msra.mxu0 0
  %6085 = vmatprep.subr.bf16.mxu0 0
  %6086 = vmatpush1.bf16.msra.mxu0 0
  %6087 = vmatprep.mubr.bf16.mxu0 0
  %6088 = vmatmul.mubr.bf16.gmra.mrb[0].mxu0 %v4635
  %v6089 = vpop.f32.mrb[0].mxu0
  %v6090 = vadd.f32 0.0, %v6089
  %v6091 = vpop.f32.mrb[0].mxu0
  %v6092 = vadd.f32 0.0, %v6091
  %v6093 = vpop.f32.mrb[0].mxu0
  %v6094 = vadd.f32 0.0, %v6093
  %v6095 = vpop.f32.mrb[0].mxu0
  %v6096 = vadd.f32 0.0, %v6095
  %6097 = vmatprep.mubr.bf16.mxu0 0
  %6098 = vmatmul.mubr.bf16.gmra.mrb[0].mxu0 %v4636
  %v6099 = vpop.f32.mrb[0].mxu0
  %v6100 = vadd.f32 0.0, %v6099
  %v6101 = vpop.f32.mrb[0].mxu0
  %v6102 = vadd.f32 0.0, %v6101
  %v6103 = vpop.f32.mrb[0].mxu0
  %v6104 = vadd.f32 0.0, %v6103
  %v6105 = vpop.f32.mrb[0].mxu0
  %v6106 = vadd.f32 0.0, %v6105
  %6107 = vmatprep.mubr.bf16.mxu0 0
  %6108 = vmatmul.mubr.bf16.gmra.mrb[0].mxu0 %v4637
  %v6109 = vpop.f32.mrb[0].mxu0
  %v6110 = vadd.f32 0.0, %v6109
  %v6111 = vpop.f32.mrb[0].mxu0
  %v6112 = vadd.f32 0.0, %v6111
  %v6113 = vpop.f32.mrb[0].mxu0
  %v6114 = vadd.f32 0.0, %v6113
  %v6115 = vpop.f32.mrb[0].mxu0
  %v6116 = vadd.f32 0.0, %v6115
  %6117 = vmatprep.mubr.bf16.mxu0 0
  %6118 = vmatmul.mubr.bf16.gmra.mrb[0].mxu0 %v4638
  %v6119 = vpop.f32.mrb[0].mxu0
  %v6120 = vadd.f32 0.0, %v6119
  %v6121 = vpop.f32.mrb[0].mxu0
  %v6122 = vadd.f32 0.0, %v6121
  %v6123 = vpop.f32.mrb[0].mxu0
  %v6124 = vadd.f32 0.0, %v6123
  %v6125 = vpop.f32.mrb[0].mxu0
  %v6126 = vadd.f32 0.0, %v6125
  %6127 = vdwg.mxu0
  %6128 = vmatprep.subr.bf16.mxu0 %v5994
  %6129 = vmatpush1.bf16.msra.mxu0 %v5993
  %6130 = vmatprep.subr.bf16.mxu0 %v5998
  %6131 = vmatpush1.bf16.msra.mxu0 %v5997
  %6132 = vmatprep.subr.bf16.mxu0 %v6002
  %6133 = vmatpush1.bf16.msra.mxu0 %v6001
  %6134 = vmatprep.subr.bf16.mxu0 %v6006
  %6135 = vmatpush1.bf16.msra.mxu0 %v6005
  %6136 = vmatprep.subr.bf16.mxu0 %v6010
  %6137 = vmatpush1.bf16.msra.mxu0 %v6009
  %6138 = vmatprep.subr.bf16.mxu0 %v6014
  %6139 = vmatpush1.bf16.msra.mxu0 %v6013
  %6140 = vmatprep.subr.bf16.mxu0 %v6018
  %6141 = vmatpush1.bf16.msra.mxu0 %v6017
  %6142 = vmatprep.subr.bf16.mxu0 %v6022
  %6143 = vmatpush1.bf16.msra.mxu0 %v6021
  %6144 = vmatprep.subr.bf16.mxu0 0
  %6145 = vmatpush1.bf16.msra.mxu0 0
  %6146 = vmatprep.subr.bf16.mxu0 0
  %6147 = vmatpush1.bf16.msra.mxu0 0
  %6148 = vmatprep.subr.bf16.mxu0 0
  %6149 = vmatpush1.bf16.msra.mxu0 0
  %6150 = vmatprep.subr.bf16.mxu0 0
  %6151 = vmatpush1.bf16.msra.mxu0 0
  %6152 = vmatprep.subr.bf16.mxu0 0
  %6153 = vmatpush1.bf16.msra.mxu0 0
  %6154 = vmatprep.subr.bf16.mxu0 0
  %6155 = vmatpush1.bf16.msra.mxu0 0
  %6156 = vmatprep.subr.bf16.mxu0 0
  %6157 = vmatpush1.bf16.msra.mxu0 0
  %6158 = vmatprep.subr.bf16.mxu0 0
  %6159 = vmatpush1.bf16.msra.mxu0 0
  %6160 = vmatprep.mubr.bf16.mxu0 0
  %6161 = vmatmul.mubr.bf16.gmra.mrb[0].mxu0 %v4635
  %v6162 = vpop.f32.mrb[0].mxu0
  %v6163 = vadd.f32 0.0, %v6162
  %v6164 = vpop.f32.mrb[0].mxu0
  %v6165 = vadd.f32 0.0, %v6164
  %v6166 = vpop.f32.mrb[0].mxu0
  %v6167 = vadd.f32 0.0, %v6166
  %v6168 = vpop.f32.mrb[0].mxu0
  %v6169 = vadd.f32 0.0, %v6168
  %6170 = vmatprep.mubr.bf16.mxu0 0
  %6171 = vmatmul.mubr.bf16.gmra.mrb[0].mxu0 %v4636
  %v6172 = vpop.f32.mrb[0].mxu0
  %v6173 = vadd.f32 0.0, %v6172
  %v6174 = vpop.f32.mrb[0].mxu0
  %v6175 = vadd.f32 0.0, %v6174
  %v6176 = vpop.f32.mrb[0].mxu0
  %v6177 = vadd.f32 0.0, %v6176
  %v6178 = vpop.f32.mrb[0].mxu0
  %v6179 = vadd.f32 0.0, %v6178
  %6180 = vmatprep.mubr.bf16.mxu0 0
  %6181 = vmatmul.mubr.bf16.gmra.mrb[0].mxu0 %v4637
  %v6182 = vpop.f32.mrb[0].mxu0
  %v6183 = vadd.f32 0.0, %v6182
  %v6184 = vpop.f32.mrb[0].mxu0
  %v6185 = vadd.f32 0.0, %v6184
  %v6186 = vpop.f32.mrb[0].mxu0
  %v6187 = vadd.f32 0.0, %v6186
  %v6188 = vpop.f32.mrb[0].mxu0
  %v6189 = vadd.f32 0.0, %v6188
  %6190 = vmatprep.mubr.bf16.mxu0 0
  %6191 = vmatmul.mubr.bf16.gmra.mrb[0].mxu0 %v4638
  %v6192 = vpop.f32.mrb[0].mxu0
  %v6193 = vadd.f32 0.0, %v6192
  %v6194 = vpop.f32.mrb[0].mxu0
  %v6195 = vadd.f32 0.0, %v6194
  %v6196 = vpop.f32.mrb[0].mxu0
  %v6197 = vadd.f32 0.0, %v6196
  %v6198 = vpop.f32.mrb[0].mxu0
  %v6199 = vadd.f32 0.0, %v6198
  %6200 = vdwg.mxu0
  %v6201 = vadd.f32 %v5863, %v6090
  %v6202 = vadd.f32 %v5864, %v6092
  %v6203 = vadd.f32 %v5865, %v6163
  %v6204 = vadd.f32 %v5866, %v6165
  %v6205 = vadd.f32 %v5867, %v6094
  %v6206 = vadd.f32 %v5868, %v6096
  %v6207 = vadd.f32 %v5869, %v6167
  %v6208 = vadd.f32 %v5870, %v6169
  %v6209 = vadd.f32 %v5871, %v6100
  %v6210 = vadd.f32 %v5872, %v6102
  %v6211 = vadd.f32 %v5873, %v6173
  %v6212 = vadd.f32 %v5874, %v6175
  %v6213 = vadd.f32 %v5875, %v6104
  %v6214 = vadd.f32 %v5876, %v6106
  %v6215 = vadd.f32 %v5877, %v6177
  %v6216 = vadd.f32 %v5878, %v6179
  %v6217 = vadd.f32 %v5879, %v6110
  %v6218 = vadd.f32 %v5880, %v6112
  %v6219 = vadd.f32 %v5881, %v6183
  %v6220 = vadd.f32 %v5882, %v6185
  %v6221 = vadd.f32 %v5883, %v6114
  %v6222 = vadd.f32 %v5884, %v6116
  %v6223 = vadd.f32 %v5885, %v6187
  %v6224 = vadd.f32 %v5886, %v6189
  %v6225 = vadd.f32 %v5887, %v6120
  %v6226 = vadd.f32 %v5888, %v6122
  %v6227 = vadd.f32 %v5889, %v6193
  %v6228 = vadd.f32 %v5890, %v6195
  %v6229 = vadd.f32 %v5891, %v6124
  %v6230 = vadd.f32 %v5892, %v6126
  %v6231 = vadd.f32 %v5893, %v6197
  %v6232 = vadd.f32 %v5894, %v6199
  %6233 = vst [vmem:[#allocation3] sm:$0xff] %v6201
  %6234 = vst [vmem:[#allocation3 + $0x8] sm:$0xff] %v6202
  %6235 = vst [vmem:[#allocation3 + $0x10] sm:$0xff] %v6203
  %6236 = vst [vmem:[#allocation3 + $0x18] sm:$0xff] %v6204
  %6237 = vst [vmem:[#allocation3 + $0x20] sm:$0xff] %v6205
  %6238 = vst [vmem:[#allocation3 + $0x28] sm:$0xff] %v6206
  %6239 = vst [vmem:[#allocation3 + $0x30] sm:$0xff] %v6207
  %6240 = vst [vmem:[#allocation3 + $0x38] sm:$0xff] %v6208
  %6241 = vst [vmem:[#allocation3 + $0x40] sm:$0xff] %v6209
  %6242 = vst [vmem:[#allocation3 + $0x48] sm:$0xff] %v6210
  %6243 = vst [vmem:[#allocation3 + $0x50] sm:$0xff] %v6211
  %6244 = vst [vmem:[#allocation3 + $0x58] sm:$0xff] %v6212
  %6245 = vst [vmem:[#allocation3 + $0x60] sm:$0xff] %v6213
  %6246 = vst [vmem:[#allocation3 + $0x68] sm:$0xff] %v6214
  %6247 = vst [vmem:[#allocation3 + $0x70] sm:$0xff] %v6215
  %6248 = vst [vmem:[#allocation3 + $0x78] sm:$0xff] %v6216
  %6249 = vst [vmem:[#allocation3 + $0x80] sm:$0xff] %v6217
  %6250 = vst [vmem:[#allocation3 + $0x88] sm:$0xff] %v6218
  %6251 = vst [vmem:[#allocation3 + $0x90] sm:$0xff] %v6219
  %6252 = vst [vmem:[#allocation3 + $0x98] sm:$0xff] %v6220
  %6253 = vst [vmem:[#allocation3 + $0xa0] sm:$0xff] %v6221
  %6254 = vst [vmem:[#allocation3 + $0xa8] sm:$0xff] %v6222
  %6255 = vst [vmem:[#allocation3 + $0xb0] sm:$0xff] %v6223
  %6256 = vst [vmem:[#allocation3 + $0xb8] sm:$0xff] %v6224
  %6257 = vst [vmem:[#allocation3 + $0xc0] sm:$0xff] %v6225
  %6258 = vst [vmem:[#allocation3 + $0xc8] sm:$0xff] %v6226
  %6259 = vst [vmem:[#allocation3 + $0xd0] sm:$0xff] %v6227
  %6260 = vst [vmem:[#allocation3 + $0xd8] sm:$0xff] %v6228
  %6261 = vst [vmem:[#allocation3 + $0xe0] sm:$0xff] %v6229
  %6262 = vst [vmem:[#allocation3 + $0xe8] sm:$0xff] %v6230
  %6263 = vst [vmem:[#allocation3 + $0xf0] sm:$0xff] %v6231
  %6264 = vst [vmem:[#allocation3 + $0xf8] sm:$0xff] %v6232
  %s6265 = scalar_lea.vmem %s6, 512
  %v6266 = vld [vmem:[%s6265] sm:$0xff]
  %v6267 = vld [vmem:[%s6265 + $0x8] sm:$0xff]
  %v6268 = vld [vmem:[%s6265 + $0x10] sm:$0xff]
  %v6269 = vld [vmem:[%s6265 + $0x18] sm:$0xff]
  %v6270 = vld [vmem:[%s6265 + $0x20] sm:$0xff]
  %v6271 = vld [vmem:[%s6265 + $0x28] sm:$0xff]
  %v6272 = vld [vmem:[%s6265 + $0x30] sm:$0xff]
  %v6273 = vld [vmem:[%s6265 + $0x38] sm:$0xff]
  %v6274 = vld [vmem:[%s6265 + $0x40] sm:$0xff]
  %v6275 = vld [vmem:[%s6265 + $0x48] sm:$0xff]
  %v6276 = vld [vmem:[%s6265 + $0x50] sm:$0xff]
  %v6277 = vld [vmem:[%s6265 + $0x58] sm:$0xff]
  %v6278 = vld [vmem:[%s6265 + $0x60] sm:$0xff]
  %v6279 = vld [vmem:[%s6265 + $0x68] sm:$0xff]
  %v6280 = vld [vmem:[%s6265 + $0x70] sm:$0xff]
  %v6281 = vld [vmem:[%s6265 + $0x78] sm:$0xff]
  %v6282 = vld [vmem:[%s6265 + $0x80] sm:$0xff]
  %v6283 = vld [vmem:[%s6265 + $0x88] sm:$0xff]
  %v6284 = vld [vmem:[%s6265 + $0x90] sm:$0xff]
  %v6285 = vld [vmem:[%s6265 + $0x98] sm:$0xff]
  %v6286 = vld [vmem:[%s6265 + $0xa0] sm:$0xff]
  %v6287 = vld [vmem:[%s6265 + $0xa8] sm:$0xff]
  %v6288 = vld [vmem:[%s6265 + $0xb0] sm:$0xff]
  %v6289 = vld [vmem:[%s6265 + $0xb8] sm:$0xff]
  %v6290 = vld [vmem:[%s6265 + $0xc0] sm:$0xff]
  %v6291 = vld [vmem:[%s6265 + $0xc8] sm:$0xff]
  %v6292 = vld [vmem:[%s6265 + $0xd0] sm:$0xff]
  %v6293 = vld [vmem:[%s6265 + $0xd8] sm:$0xff]
  %v6294 = vld [vmem:[%s6265 + $0xe0] sm:$0xff]
  %v6295 = vld [vmem:[%s6265 + $0xe8] sm:$0xff]
  %v6296 = vld [vmem:[%s6265 + $0xf0] sm:$0xff]
  %v6297 = vld [vmem:[%s6265 + $0xf8] sm:$0xff]
  %s6298 = scalar_lea.vmem %s6, 768
  %v6299 = vld [vmem:[%s6298] sm:$0xff]
  %v6300 = vld [vmem:[%s6298 + $0x8] sm:$0xff]
  %v6301 = vld [vmem:[%s6298 + $0x10] sm:$0xff]
  %v6302 = vld [vmem:[%s6298 + $0x18] sm:$0xff]
  %v6303 = vld [vmem:[%s6298 + $0x20] sm:$0xff]
  %v6304 = vld [vmem:[%s6298 + $0x28] sm:$0xff]
  %v6305 = vld [vmem:[%s6298 + $0x30] sm:$0xff]
  %v6306 = vld [vmem:[%s6298 + $0x38] sm:$0xff]
  %v6307 = vld [vmem:[%s6298 + $0x40] sm:$0xff]
  %v6308 = vld [vmem:[%s6298 + $0x48] sm:$0xff]
  %v6309 = vld [vmem:[%s6298 + $0x50] sm:$0xff]
  %v6310 = vld [vmem:[%s6298 + $0x58] sm:$0xff]
  %v6311 = vld [vmem:[%s6298 + $0x60] sm:$0xff]
  %v6312 = vld [vmem:[%s6298 + $0x68] sm:$0xff]
  %v6313 = vld [vmem:[%s6298 + $0x70] sm:$0xff]
  %v6314 = vld [vmem:[%s6298 + $0x78] sm:$0xff]
  %v6315 = vld [vmem:[%s6298 + $0x80] sm:$0xff]
  %v6316 = vld [vmem:[%s6298 + $0x88] sm:$0xff]
  %v6317 = vld [vmem:[%s6298 + $0x90] sm:$0xff]
  %v6318 = vld [vmem:[%s6298 + $0x98] sm:$0xff]
  %v6319 = vld [vmem:[%s6298 + $0xa0] sm:$0xff]
  %v6320 = vld [vmem:[%s6298 + $0xa8] sm:$0xff]
  %v6321 = vld [vmem:[%s6298 + $0xb0] sm:$0xff]
  %v6322 = vld [vmem:[%s6298 + $0xb8] sm:$0xff]
  %v6323 = vld [vmem:[%s6298 + $0xc0] sm:$0xff]
  %v6324 = vld [vmem:[%s6298 + $0xc8] sm:$0xff]
  %v6325 = vld [vmem:[%s6298 + $0xd0] sm:$0xff]
  %v6326 = vld [vmem:[%s6298 + $0xd8] sm:$0xff]
  %v6327 = vld [vmem:[%s6298 + $0xe0] sm:$0xff]
  %v6328 = vld [vmem:[%s6298 + $0xe8] sm:$0xff]
  %v6329 = vld [vmem:[%s6298 + $0xf0] sm:$0xff]
  %v6330 = vld [vmem:[%s6298 + $0xf8] sm:$0xff]
  %v6331 = vld [vmem:[#allocation2] sm:$0xff]
  %v6332 = vld [vmem:[#allocation2 + $0x8] sm:$0xff]
  %v6333 = vld [vmem:[#allocation2 + $0x10] sm:$0xff]
  %v6334 = vld [vmem:[#allocation2 + $0x18] sm:$0xff]
  %v6367 = vunpack.c.l.b16 %v6266
  %v6368 = vunpack.c.h.b16 %v6266
  %v6369 = vunpack.c.l.b16 %v6267
  %v6370 = vunpack.c.h.b16 %v6267
  %v6371 = vunpack.c.l.b16 %v6268
  %v6372 = vunpack.c.h.b16 %v6268
  %v6373 = vunpack.c.l.b16 %v6269
  %v6374 = vunpack.c.h.b16 %v6269
  %v6375 = vunpack.c.l.b16 %v6270
  %v6376 = vunpack.c.h.b16 %v6270
  %v6377 = vunpack.c.l.b16 %v6271
  %v6378 = vunpack.c.h.b16 %v6271
  %v6379 = vunpack.c.l.b16 %v6272
  %v6380 = vunpack.c.h.b16 %v6272
  %v6381 = vunpack.c.l.b16 %v6273
  %v6382 = vunpack.c.h.b16 %v6273
  %v6383 = vunpack.c.l.b16 %v6274
  %v6384 = vunpack.c.h.b16 %v6274
  %v6385 = vunpack.c.l.b16 %v6275
  %v6386 = vunpack.c.h.b16 %v6275
  %v6387 = vunpack.c.l.b16 %v6276
  %v6388 = vunpack.c.h.b16 %v6276
  %v6389 = vunpack.c.l.b16 %v6277
  %v6390 = vunpack.c.h.b16 %v6277
  %v6391 = vunpack.c.l.b16 %v6278
  %v6392 = vunpack.c.h.b16 %v6278
  %v6393 = vunpack.c.l.b16 %v6279
  %v6394 = vunpack.c.h.b16 %v6279
  %v6395 = vunpack.c.l.b16 %v6280
  %v6396 = vunpack.c.h.b16 %v6280
  %v6397 = vunpack.c.l.b16 %v6281
  %v6398 = vunpack.c.h.b16 %v6281
  %v6399 = vunpack.c.l.b16 %v6282
  %v6400 = vunpack.c.h.b16 %v6282
  %v6401 = vunpack.c.l.b16 %v6283
  %v6402 = vunpack.c.h.b16 %v6283
  %v6403 = vunpack.c.l.b16 %v6284
  %v6404 = vunpack.c.h.b16 %v6284
  %v6405 = vunpack.c.l.b16 %v6285
  %v6406 = vunpack.c.h.b16 %v6285
  %v6407 = vunpack.c.l.b16 %v6286
  %v6408 = vunpack.c.h.b16 %v6286
  %v6409 = vunpack.c.l.b16 %v6287
  %v6410 = vunpack.c.h.b16 %v6287
  %v6411 = vunpack.c.l.b16 %v6288
  %v6412 = vunpack.c.h.b16 %v6288
  %v6413 = vunpack.c.l.b16 %v6289
  %v6414 = vunpack.c.h.b16 %v6289
  %v6415 = vunpack.c.l.b16 %v6290
  %v6416 = vunpack.c.h.b16 %v6290
  %v6417 = vunpack.c.l.b16 %v6291
  %v6418 = vunpack.c.h.b16 %v6291
  %v6419 = vunpack.c.l.b16 %v6292
  %v6420 = vunpack.c.h.b16 %v6292
  %v6421 = vunpack.c.l.b16 %v6293
  %v6422 = vunpack.c.h.b16 %v6293
  %v6423 = vunpack.c.l.b16 %v6294
  %v6424 = vunpack.c.h.b16 %v6294
  %v6425 = vunpack.c.l.b16 %v6295
  %v6426 = vunpack.c.h.b16 %v6295
  %v6427 = vunpack.c.l.b16 %v6296
  %v6428 = vunpack.c.h.b16 %v6296
  %v6429 = vunpack.c.l.b16 %v6297
  %v6430 = vunpack.c.h.b16 %v6297
  %v6431 = vpack.c.b16 %v6371, %v6367
  %v6432 = vpack.c.b16 %v6372, %v6368
  %v6433 = vpack.c.b16 %v6373, %v6369
  %v6434 = vpack.c.b16 %v6374, %v6370
  %v6435 = vpack.c.b16 %v6379, %v6375
  %v6436 = vpack.c.b16 %v6380, %v6376
  %v6437 = vpack.c.b16 %v6381, %v6377
  %v6438 = vpack.c.b16 %v6382, %v6378
  %v6439 = vpack.c.b16 %v6387, %v6383
  %v6440 = vpack.c.b16 %v6388, %v6384
  %v6441 = vpack.c.b16 %v6389, %v6385
  %v6442 = vpack.c.b16 %v6390, %v6386
  %v6443 = vpack.c.b16 %v6395, %v6391
  %v6444 = vpack.c.b16 %v6396, %v6392
  %v6445 = vpack.c.b16 %v6397, %v6393
  %v6446 = vpack.c.b16 %v6398, %v6394
  %v6447 = vpack.c.b16 %v6403, %v6399
  %v6448 = vpack.c.b16 %v6404, %v6400
  %v6449 = vpack.c.b16 %v6405, %v6401
  %v6450 = vpack.c.b16 %v6406, %v6402
  %v6451 = vpack.c.b16 %v6411, %v6407
  %v6452 = vpack.c.b16 %v6412, %v6408
  %v6453 = vpack.c.b16 %v6413, %v6409
  %v6454 = vpack.c.b16 %v6414, %v6410
  %v6455 = vpack.c.b16 %v6419, %v6415
  %v6456 = vpack.c.b16 %v6420, %v6416
  %v6457 = vpack.c.b16 %v6421, %v6417
  %v6458 = vpack.c.b16 %v6422, %v6418
  %v6459 = vpack.c.b16 %v6427, %v6423
  %v6460 = vpack.c.b16 %v6428, %v6424
  %v6461 = vpack.c.b16 %v6429, %v6425
  %v6462 = vpack.c.b16 %v6430, %v6426
  %6495 = vmatprep.subr.bf16.mxu0 %v6432
  %6496 = vmatpush1.bf16.msra.mxu0 %v6431
  %6497 = vmatprep.subr.bf16.mxu0 %v6436
  %6498 = vmatpush1.bf16.msra.mxu0 %v6435
  %6499 = vmatprep.subr.bf16.mxu0 %v6440
  %6500 = vmatpush1.bf16.msra.mxu0 %v6439
  %6501 = vmatprep.subr.bf16.mxu0 %v6444
  %6502 = vmatpush1.bf16.msra.mxu0 %v6443
  %6503 = vmatprep.subr.bf16.mxu0 %v6448
  %6504 = vmatpush1.bf16.msra.mxu0 %v6447
  %6505 = vmatprep.subr.bf16.mxu0 %v6452
  %6506 = vmatpush1.bf16.msra.mxu0 %v6451
  %6507 = vmatprep.subr.bf16.mxu0 %v6456
  %6508 = vmatpush1.bf16.msra.mxu0 %v6455
  %6509 = vmatprep.subr.bf16.mxu0 %v6460
  %6510 = vmatpush1.bf16.msra.mxu0 %v6459
  %6511 = vmatprep.subr.bf16.mxu0 0
  %6512 = vmatpush1.bf16.msra.mxu0 0
  %6513 = vmatprep.subr.bf16.mxu0 0
  %6514 = vmatpush1.bf16.msra.mxu0 0
  %6515 = vmatprep.subr.bf16.mxu0 0
  %6516 = vmatpush1.bf16.msra.mxu0 0
  %6517 = vmatprep.subr.bf16.mxu0 0
  %6518 = vmatpush1.bf16.msra.mxu0 0
  %6519 = vmatprep.subr.bf16.mxu0 0
  %6520 = vmatpush1.bf16.msra.mxu0 0
  %6521 = vmatprep.subr.bf16.mxu0 0
  %6522 = vmatpush1.bf16.msra.mxu0 0
  %6523 = vmatprep.subr.bf16.mxu0 0
  %6524 = vmatpush1.bf16.msra.mxu0 0
  %6525 = vmatprep.subr.bf16.mxu0 0
  %6526 = vmatpush1.bf16.msra.mxu0 0
  %6527 = vmatprep.mubr.bf16.mxu0 0
  %6528 = vmatmul.mubr.bf16.gmra.mrb[0].mxu0 0
  %v6529 = vpop.f32.mrb[0].mxu0
  %v6530 = vadd.f32 0.0, %v6529
  %v6531 = vpop.f32.mrb[0].mxu0
  %v6532 = vadd.f32 0.0, %v6531
  %v6533 = vpop.f32.mrb[0].mxu0
  %v6534 = vpop.f32.mrb[0].mxu0
  %6535 = vdwg.mxu0
  %6536 = vmatprep.subr.bf16.mxu0 %v6434
  %6537 = vmatpush1.bf16.msra.mxu0 %v6433
  %6538 = vmatprep.subr.bf16.mxu0 %v6438
  %6539 = vmatpush1.bf16.msra.mxu0 %v6437
  %6540 = vmatprep.subr.bf16.mxu0 %v6442
  %6541 = vmatpush1.bf16.msra.mxu0 %v6441
  %6542 = vmatprep.subr.bf16.mxu0 %v6446
  %6543 = vmatpush1.bf16.msra.mxu0 %v6445
  %6544 = vmatprep.subr.bf16.mxu0 %v6450
  %6545 = vmatpush1.bf16.msra.mxu0 %v6449
  %6546 = vmatprep.subr.bf16.mxu0 %v6454
  %6547 = vmatpush1.bf16.msra.mxu0 %v6453
  %6548 = vmatprep.subr.bf16.mxu0 %v6458
  %6549 = vmatpush1.bf16.msra.mxu0 %v6457
  %6550 = vmatprep.subr.bf16.mxu0 %v6462
  %6551 = vmatpush1.bf16.msra.mxu0 %v6461
  %6552 = vmatprep.subr.bf16.mxu0 0
  %6553 = vmatpush1.bf16.msra.mxu0 0
  %6554 = vmatprep.subr.bf16.mxu0 0
  %6555 = vmatpush1.bf16.msra.mxu0 0
  %6556 = vmatprep.subr.bf16.mxu0 0
  %6557 = vmatpush1.bf16.msra.mxu0 0
  %6558 = vmatprep.subr.bf16.mxu0 0
  %6559 = vmatpush1.bf16.msra.mxu0 0
  %6560 = vmatprep.subr.bf16.mxu0 0
  %6561 = vmatpush1.bf16.msra.mxu0 0
  %6562 = vmatprep.subr.bf16.mxu0 0
  %6563 = vmatpush1.bf16.msra.mxu0 0
  %6564 = vmatprep.subr.bf16.mxu0 0
  %6565 = vmatpush1.bf16.msra.mxu0 0
  %6566 = vmatprep.subr.bf16.mxu0 0
  %6567 = vmatpush1.bf16.msra.mxu0 0
  %6568 = vmatprep.mubr.bf16.mxu0 0
  %6569 = vmatmul.mubr.bf16.gmra.mrb[0].mxu0 0
  %v6570 = vpop.f32.mrb[0].mxu0
  %v6571 = vadd.f32 0.0, %v6570
  %v6572 = vpop.f32.mrb[0].mxu0
  %v6573 = vadd.f32 0.0, %v6572
  %v6574 = vpop.f32.mrb[0].mxu0
  %v6575 = vpop.f32.mrb[0].mxu0
  %6576 = vdwg.mxu0
  %v6577 = vadd.f32 %v6331, %v6530
  %v6578 = vadd.f32 %v6332, %v6532
  %v6579 = vadd.f32 %v6333, %v6571
  %v6580 = vadd.f32 %v6334, %v6573
  %v6581 = vld [vmem:[%s2663] sm:$0xff]
  %v6582 = vld [vmem:[%s2663 + $0x8] sm:$0xff]
  %v6583 = vld [vmem:[%s2663 + $0x10] sm:$0xff]
  %v6584 = vld [vmem:[%s2663 + $0x18] sm:$0xff]
  %v6617 = vunpack.c.l.b16 %v6299
  %v6618 = vunpack.c.h.b16 %v6299
  %v6619 = vunpack.c.l.b16 %v6300
  %v6620 = vunpack.c.h.b16 %v6300
  %v6621 = vunpack.c.l.b16 %v6301
  %v6622 = vunpack.c.h.b16 %v6301
  %v6623 = vunpack.c.l.b16 %v6302
  %v6624 = vunpack.c.h.b16 %v6302
  %v6625 = vunpack.c.l.b16 %v6303
  %v6626 = vunpack.c.h.b16 %v6303
  %v6627 = vunpack.c.l.b16 %v6304
  %v6628 = vunpack.c.h.b16 %v6304
  %v6629 = vunpack.c.l.b16 %v6305
  %v6630 = vunpack.c.h.b16 %v6305
  %v6631 = vunpack.c.l.b16 %v6306
  %v6632 = vunpack.c.h.b16 %v6306
  %v6633 = vunpack.c.l.b16 %v6307
  %v6634 = vunpack.c.h.b16 %v6307
  %v6635 = vunpack.c.l.b16 %v6308
  %v6636 = vunpack.c.h.b16 %v6308
  %v6637 = vunpack.c.l.b16 %v6309
  %v6638 = vunpack.c.h.b16 %v6309
  %v6639 = vunpack.c.l.b16 %v6310
  %v6640 = vunpack.c.h.b16 %v6310
  %v6641 = vunpack.c.l.b16 %v6311
  %v6642 = vunpack.c.h.b16 %v6311
  %v6643 = vunpack.c.l.b16 %v6312
  %v6644 = vunpack.c.h.b16 %v6312
  %v6645 = vunpack.c.l.b16 %v6313
  %v6646 = vunpack.c.h.b16 %v6313
  %v6647 = vunpack.c.l.b16 %v6314
  %v6648 = vunpack.c.h.b16 %v6314
  %v6649 = vunpack.c.l.b16 %v6315
  %v6650 = vunpack.c.h.b16 %v6315
  %v6651 = vunpack.c.l.b16 %v6316
  %v6652 = vunpack.c.h.b16 %v6316
  %v6653 = vunpack.c.l.b16 %v6317
  %v6654 = vunpack.c.h.b16 %v6317
  %v6655 = vunpack.c.l.b16 %v6318
  %v6656 = vunpack.c.h.b16 %v6318
  %v6657 = vunpack.c.l.b16 %v6319
  %v6658 = vunpack.c.h.b16 %v6319
  %v6659 = vunpack.c.l.b16 %v6320
  %v6660 = vunpack.c.h.b16 %v6320
  %v6661 = vunpack.c.l.b16 %v6321
  %v6662 = vunpack.c.h.b16 %v6321
  %v6663 = vunpack.c.l.b16 %v6322
  %v6664 = vunpack.c.h.b16 %v6322
  %v6665 = vunpack.c.l.b16 %v6323
  %v6666 = vunpack.c.h.b16 %v6323
  %v6667 = vunpack.c.l.b16 %v6324
  %v6668 = vunpack.c.h.b16 %v6324
  %v6669 = vunpack.c.l.b16 %v6325
  %v6670 = vunpack.c.h.b16 %v6325
  %v6671 = vunpack.c.l.b16 %v6326
  %v6672 = vunpack.c.h.b16 %v6326
  %v6673 = vunpack.c.l.b16 %v6327
  %v6674 = vunpack.c.h.b16 %v6327
  %v6675 = vunpack.c.l.b16 %v6328
  %v6676 = vunpack.c.h.b16 %v6328
  %v6677 = vunpack.c.l.b16 %v6329
  %v6678 = vunpack.c.h.b16 %v6329
  %v6679 = vunpack.c.l.b16 %v6330
  %v6680 = vunpack.c.h.b16 %v6330
  %v6681 = vpack.c.b16 %v6621, %v6617
  %v6682 = vpack.c.b16 %v6622, %v6618
  %v6683 = vpack.c.b16 %v6623, %v6619
  %v6684 = vpack.c.b16 %v6624, %v6620
  %v6685 = vpack.c.b16 %v6629, %v6625
  %v6686 = vpack.c.b16 %v6630, %v6626
  %v6687 = vpack.c.b16 %v6631, %v6627
  %v6688 = vpack.c.b16 %v6632, %v6628
  %v6689 = vpack.c.b16 %v6637, %v6633
  %v6690 = vpack.c.b16 %v6638, %v6634
  %v6691 = vpack.c.b16 %v6639, %v6635
  %v6692 = vpack.c.b16 %v6640, %v6636
  %v6693 = vpack.c.b16 %v6645, %v6641
  %v6694 = vpack.c.b16 %v6646, %v6642
  %v6695 = vpack.c.b16 %v6647, %v6643
  %v6696 = vpack.c.b16 %v6648, %v6644
  %v6697 = vpack.c.b16 %v6653, %v6649
  %v6698 = vpack.c.b16 %v6654, %v6650
  %v6699 = vpack.c.b16 %v6655, %v6651
  %v6700 = vpack.c.b16 %v6656, %v6652
  %v6701 = vpack.c.b16 %v6661, %v6657
  %v6702 = vpack.c.b16 %v6662, %v6658
  %v6703 = vpack.c.b16 %v6663, %v6659
  %v6704 = vpack.c.b16 %v6664, %v6660
  %v6705 = vpack.c.b16 %v6669, %v6665
  %v6706 = vpack.c.b16 %v6670, %v6666
  %v6707 = vpack.c.b16 %v6671, %v6667
  %v6708 = vpack.c.b16 %v6672, %v6668
  %v6709 = vpack.c.b16 %v6677, %v6673
  %v6710 = vpack.c.b16 %v6678, %v6674
  %v6711 = vpack.c.b16 %v6679, %v6675
  %v6712 = vpack.c.b16 %v6680, %v6676
  %6745 = vmatprep.subr.bf16.mxu0 %v6682
  %6746 = vmatpush1.bf16.msra.mxu0 %v6681
  %6747 = vmatprep.subr.bf16.mxu0 %v6686
  %6748 = vmatpush1.bf16.msra.mxu0 %v6685
  %6749 = vmatprep.subr.bf16.mxu0 %v6690
  %6750 = vmatpush1.bf16.msra.mxu0 %v6689
  %6751 = vmatprep.subr.bf16.mxu0 %v6694
  %6752 = vmatpush1.bf16.msra.mxu0 %v6693
  %6753 = vmatprep.subr.bf16.mxu0 %v6698
  %6754 = vmatpush1.bf16.msra.mxu0 %v6697
  %6755 = vmatprep.subr.bf16.mxu0 %v6702
  %6756 = vmatpush1.bf16.msra.mxu0 %v6701
  %6757 = vmatprep.subr.bf16.mxu0 %v6706
  %6758 = vmatpush1.bf16.msra.mxu0 %v6705
  %6759 = vmatprep.subr.bf16.mxu0 %v6710
  %6760 = vmatpush1.bf16.msra.mxu0 %v6709
  %6761 = vmatprep.subr.bf16.mxu0 0
  %6762 = vmatpush1.bf16.msra.mxu0 0
  %6763 = vmatprep.subr.bf16.mxu0 0
  %6764 = vmatpush1.bf16.msra.mxu0 0
  %6765 = vmatprep.subr.bf16.mxu0 0
  %6766 = vmatpush1.bf16.msra.mxu0 0
  %6767 = vmatprep.subr.bf16.mxu0 0
  %6768 = vmatpush1.bf16.msra.mxu0 0
  %6769 = vmatprep.subr.bf16.mxu0 0
  %6770 = vmatpush1.bf16.msra.mxu0 0
  %6771 = vmatprep.subr.bf16.mxu0 0
  %6772 = vmatpush1.bf16.msra.mxu0 0
  %6773 = vmatprep.subr.bf16.mxu0 0
  %6774 = vmatpush1.bf16.msra.mxu0 0
  %6775 = vmatprep.subr.bf16.mxu0 0
  %6776 = vmatpush1.bf16.msra.mxu0 0
  %6777 = vmatprep.mubr.bf16.mxu0 0
  %6778 = vmatmul.mubr.bf16.gmra.mrb[0].mxu0 0
  %v6779 = vpop.f32.mrb[0].mxu0
  %v6780 = vadd.f32 0.0, %v6779
  %v6781 = vpop.f32.mrb[0].mxu0
  %v6782 = vadd.f32 0.0, %v6781
  %v6783 = vpop.f32.mrb[0].mxu0
  %v6784 = vpop.f32.mrb[0].mxu0
  %6785 = vdwg.mxu0
  %6786 = vmatprep.subr.bf16.mxu0 %v6684
  %6787 = vmatpush1.bf16.msra.mxu0 %v6683
  %6788 = vmatprep.subr.bf16.mxu0 %v6688
  %6789 = vmatpush1.bf16.msra.mxu0 %v6687
  %6790 = vmatprep.subr.bf16.mxu0 %v6692
  %6791 = vmatpush1.bf16.msra.mxu0 %v6691
  %6792 = vmatprep.subr.bf16.mxu0 %v6696
  %6793 = vmatpush1.bf16.msra.mxu0 %v6695
  %6794 = vmatprep.subr.bf16.mxu0 %v6700
  %6795 = vmatpush1.bf16.msra.mxu0 %v6699
  %6796 = vmatprep.subr.bf16.mxu0 %v6704
  %6797 = vmatpush1.bf16.msra.mxu0 %v6703
  %6798 = vmatprep.subr.bf16.mxu0 %v6708
  %6799 = vmatpush1.bf16.msra.mxu0 %v6707
  %6800 = vmatprep.subr.bf16.mxu0 %v6712
  %6801 = vmatpush1.bf16.msra.mxu0 %v6711
  %6802 = vmatprep.subr.bf16.mxu0 0
  %6803 = vmatpush1.bf16.msra.mxu0 0
  %6804 = vmatprep.subr.bf16.mxu0 0
  %6805 = vmatpush1.bf16.msra.mxu0 0
  %6806 = vmatprep.subr.bf16.mxu0 0
  %6807 = vmatpush1.bf16.msra.mxu0 0
  %6808 = vmatprep.subr.bf16.mxu0 0
  %6809 = vmatpush1.bf16.msra.mxu0 0
  %6810 = vmatprep.subr.bf16.mxu0 0
  %6811 = vmatpush1.bf16.msra.mxu0 0
  %6812 = vmatprep.subr.bf16.mxu0 0
  %6813 = vmatpush1.bf16.msra.mxu0 0
  %6814 = vmatprep.subr.bf16.mxu0 0
  %6815 = vmatpush1.bf16.msra.mxu0 0
  %6816 = vmatprep.subr.bf16.mxu0 0
  %6817 = vmatpush1.bf16.msra.mxu0 0
  %6818 = vmatprep.mubr.bf16.mxu0 0
  %6819 = vmatmul.mubr.bf16.gmra.mrb[0].mxu0 0
  %v6820 = vpop.f32.mrb[0].mxu0
  %v6821 = vadd.f32 0.0, %v6820
  %v6822 = vpop.f32.mrb[0].mxu0
  %v6823 = vadd.f32 0.0, %v6822
  %v6824 = vpop.f32.mrb[0].mxu0
  %v6825 = vpop.f32.mrb[0].mxu0
  %6826 = vdwg.mxu0
  %v6827 = vadd.f32 %v6581, %v6780
  %v6828 = vadd.f32 %v6582, %v6782
  %v6829 = vadd.f32 %v6583, %v6821
  %v6830 = vadd.f32 %v6584, %v6823
  %v6831 = vxor.u32 %v6577, 2147483648
  %v6832 = vmul.f32 %v6831, 1.442695
  %v6833 = vpow.pop %v6832
  %v6834 = vadd.f32 %v6833, 1.0
  %v6835 = vrcp.pop %v6834
  %v6836 = vmul.f32 1.0, %v6835
  %v6837 = vxor.u32 %v6578, 2147483648
  %v6838 = vmul.f32 %v6837, 1.442695
  %v6839 = vpow.pop %v6838
  %v6840 = vadd.f32 %v6839, 1.0
  %v6841 = vrcp.pop %v6840
  %v6842 = vmul.f32 1.0, %v6841
  %v6843 = vtanh.pop %v6579
  %v6844 = vxor.u32 %v6580, 2147483648
  %v6845 = vmul.f32 %v6844, 1.442695
  %v6846 = vpow.pop %v6845
  %v6847 = vadd.f32 %v6846, 1.0
  %v6848 = vrcp.pop %v6847
  %v6849 = vmul.f32 1.0, %v6848
  %v6850 = vmul.f32 %v6842, 0.0
  %v6851 = vmul.f32 %v6836, %v6843
  %v6852 = vadd.f32 %v6850, %v6851
  %v6853 = vtanh.pop %v6852
  %v6854 = vmul.f32 %v6849, %v6853
  %v6855 = vxor.u32 %v6827, 2147483648
  %v6856 = vmul.f32 %v6855, 1.442695
  %v6857 = vpow.pop %v6856
  %v6858 = vadd.f32 %v6857, 1.0
  %v6859 = vrcp.pop %v6858
  %v6860 = vmul.f32 1.0, %v6859
  %v6861 = vxor.u32 %v6828, 2147483648
  %v6862 = vmul.f32 %v6861, 1.442695
  %v6863 = vpow.pop %v6862
  %v6864 = vadd.f32 %v6863, 1.0
  %v6865 = vrcp.pop %v6864
  %v6866 = vmul.f32 1.0, %v6865
  %v6867 = vtanh.pop %v6829
  %v6868 = vxor.u32 %v6830, 2147483648
  %v6869 = vmul.f32 %v6868, 1.442695
  %v6870 = vpow.pop %v6869
  %v6871 = vadd.f32 %v6870, 1.0
  %v6872 = vrcp.pop %v6871
  %v6873 = vmul.f32 1.0, %v6872
  %v6874 = vmul.f32 %v6866, 0.0
  %v6875 = vmul.f32 %v6860, %v6867
  %v6876 = vadd.f32 %v6874, %v6875
  %v6877 = vtanh.pop %v6876
  %v6878 = vmul.f32 %v6873, %v6877
  %6879 = vst [vmem:[#allocation6] sm:$0xff] %v6854
  %s6880 = scalar_lea.vmem [#allocation7], 56
  %6881 = vst [vmem:[%s6880] sm:$0xff] %v6878
  %v6882 = vpack.c.bf16 %v6854, %v6854
  %v6883 = vpack.c.bf16 %v6878, %v6878
  %v6884 = vld [vmem:[%s2967] sm:$0xff]
  %v6885 = vld [vmem:[%s2967 + $0x8] sm:$0xff]
  %v6886 = vld [vmem:[%s2967 + $0x10] sm:$0xff]
  %v6887 = vld [vmem:[%s2967 + $0x18] sm:$0xff]
  %6888 = vmatprep.subr.bf16.mxu0 %v6432
  %6889 = vmatpush1.bf16.msra.mxu0 %v6431
  %6890 = vmatprep.subr.bf16.mxu0 %v6436
  %6891 = vmatpush1.bf16.msra.mxu0 %v6435
  %6892 = vmatprep.subr.bf16.mxu0 %v6440
  %6893 = vmatpush1.bf16.msra.mxu0 %v6439
  %6894 = vmatprep.subr.bf16.mxu0 %v6444
  %6895 = vmatpush1.bf16.msra.mxu0 %v6443
  %6896 = vmatprep.subr.bf16.mxu0 %v6448
  %6897 = vmatpush1.bf16.msra.mxu0 %v6447
  %6898 = vmatprep.subr.bf16.mxu0 %v6452
  %6899 = vmatpush1.bf16.msra.mxu0 %v6451
  %6900 = vmatprep.subr.bf16.mxu0 %v6456
  %6901 = vmatpush1.bf16.msra.mxu0 %v6455
  %6902 = vmatprep.subr.bf16.mxu0 %v6460
  %6903 = vmatpush1.bf16.msra.mxu0 %v6459
  %6904 = vmatprep.subr.bf16.mxu0 0
  %6905 = vmatpush1.bf16.msra.mxu0 0
  %6906 = vmatprep.subr.bf16.mxu0 0
  %6907 = vmatpush1.bf16.msra.mxu0 0
  %6908 = vmatprep.subr.bf16.mxu0 0
  %6909 = vmatpush1.bf16.msra.mxu0 0
  %6910 = vmatprep.subr.bf16.mxu0 0
  %6911 = vmatpush1.bf16.msra.mxu0 0
  %6912 = vmatprep.subr.bf16.mxu0 0
  %6913 = vmatpush1.bf16.msra.mxu0 0
  %6914 = vmatprep.subr.bf16.mxu0 0
  %6915 = vmatpush1.bf16.msra.mxu0 0
  %6916 = vmatprep.subr.bf16.mxu0 0
  %6917 = vmatpush1.bf16.msra.mxu0 0
  %6918 = vmatprep.subr.bf16.mxu0 0
  %6919 = vmatpush1.bf16.msra.mxu0 0
  %6920 = vmatprep.mubr.bf16.mxu0 0
  %6921 = vmatmul.mubr.bf16.gmra.mrb[0].mxu0 %v6882
  %v6922 = vpop.f32.mrb[0].mxu0
  %v6923 = vadd.f32 0.0, %v6922
  %v6924 = vpop.f32.mrb[0].mxu0
  %v6925 = vadd.f32 0.0, %v6924
  %v6926 = vpop.f32.mrb[0].mxu0
  %v6927 = vpop.f32.mrb[0].mxu0
  %6928 = vdwg.mxu0
  %6929 = vmatprep.subr.bf16.mxu0 %v6434
  %6930 = vmatpush1.bf16.msra.mxu0 %v6433
  %6931 = vmatprep.subr.bf16.mxu0 %v6438
  %6932 = vmatpush1.bf16.msra.mxu0 %v6437
  %6933 = vmatprep.subr.bf16.mxu0 %v6442
  %6934 = vmatpush1.bf16.msra.mxu0 %v6441
  %6935 = vmatprep.subr.bf16.mxu0 %v6446
  %6936 = vmatpush1.bf16.msra.mxu0 %v6445
  %6937 = vmatprep.subr.bf16.mxu0 %v6450
  %6938 = vmatpush1.bf16.msra.mxu0 %v6449
  %6939 = vmatprep.subr.bf16.mxu0 %v6454
  %6940 = vmatpush1.bf16.msra.mxu0 %v6453
  %6941 = vmatprep.subr.bf16.mxu0 %v6458
  %6942 = vmatpush1.bf16.msra.mxu0 %v6457
  %6943 = vmatprep.subr.bf16.mxu0 %v6462
  %6944 = vmatpush1.bf16.msra.mxu0 %v6461
  %6945 = vmatprep.subr.bf16.mxu0 0
  %6946 = vmatpush1.bf16.msra.mxu0 0
  %6947 = vmatprep.subr.bf16.mxu0 0
  %6948 = vmatpush1.bf16.msra.mxu0 0
  %6949 = vmatprep.subr.bf16.mxu0 0
  %6950 = vmatpush1.bf16.msra.mxu0 0
  %6951 = vmatprep.subr.bf16.mxu0 0
  %6952 = vmatpush1.bf16.msra.mxu0 0
  %6953 = vmatprep.subr.bf16.mxu0 0
  %6954 = vmatpush1.bf16.msra.mxu0 0
  %6955 = vmatprep.subr.bf16.mxu0 0
  %6956 = vmatpush1.bf16.msra.mxu0 0
  %6957 = vmatprep.subr.bf16.mxu0 0
  %6958 = vmatpush1.bf16.msra.mxu0 0
  %6959 = vmatprep.subr.bf16.mxu0 0
  %6960 = vmatpush1.bf16.msra.mxu0 0
  %6961 = vmatprep.mubr.bf16.mxu0 0
  %6962 = vmatmul.mubr.bf16.gmra.mrb[0].mxu0 %v6882
  %v6963 = vpop.f32.mrb[0].mxu0
  %v6964 = vadd.f32 0.0, %v6963
  %v6965 = vpop.f32.mrb[0].mxu0
  %v6966 = vadd.f32 0.0, %v6965
  %v6967 = vpop.f32.mrb[0].mxu0
  %v6968 = vpop.f32.mrb[0].mxu0
  %6969 = vdwg.mxu0
  %v6970 = vadd.f32 %v6884, %v6923
  %v6971 = vadd.f32 %v6885, %v6925
  %v6972 = vadd.f32 %v6886, %v6964
  %v6973 = vadd.f32 %v6887, %v6966
  %v6974 = vld [vmem:[%s3058] sm:$0xff]
  %v6975 = vld [vmem:[%s3058 + $0x8] sm:$0xff]
  %v6976 = vld [vmem:[%s3058 + $0x10] sm:$0xff]
  %v6977 = vld [vmem:[%s3058 + $0x18] sm:$0xff]
  %6978 = vmatprep.subr.bf16.mxu0 %v6682
  %6979 = vmatpush1.bf16.msra.mxu0 %v6681
  %6980 = vmatprep.subr.bf16.mxu0 %v6686
  %6981 = vmatpush1.bf16.msra.mxu0 %v6685
  %6982 = vmatprep.subr.bf16.mxu0 %v6690
  %6983 = vmatpush1.bf16.msra.mxu0 %v6689
  %6984 = vmatprep.subr.bf16.mxu0 %v6694
  %6985 = vmatpush1.bf16.msra.mxu0 %v6693
  %6986 = vmatprep.subr.bf16.mxu0 %v6698
  %6987 = vmatpush1.bf16.msra.mxu0 %v6697
  %6988 = vmatprep.subr.bf16.mxu0 %v6702
  %6989 = vmatpush1.bf16.msra.mxu0 %v6701
  %6990 = vmatprep.subr.bf16.mxu0 %v6706
  %6991 = vmatpush1.bf16.msra.mxu0 %v6705
  %6992 = vmatprep.subr.bf16.mxu0 %v6710
  %6993 = vmatpush1.bf16.msra.mxu0 %v6709
  %6994 = vmatprep.subr.bf16.mxu0 0
  %6995 = vmatpush1.bf16.msra.mxu0 0
  %6996 = vmatprep.subr.bf16.mxu0 0
  %6997 = vmatpush1.bf16.msra.mxu0 0
  %6998 = vmatprep.subr.bf16.mxu0 0
  %6999 = vmatpush1.bf16.msra.mxu0 0
  %7000 = vmatprep.subr.bf16.mxu0 0
  %7001 = vmatpush1.bf16.msra.mxu0 0
  %7002 = vmatprep.subr.bf16.mxu0 0
  %7003 = vmatpush1.bf16.msra.mxu0 0
  %7004 = vmatprep.subr.bf16.mxu0 0
  %7005 = vmatpush1.bf16.msra.mxu0 0
  %7006 = vmatprep.subr.bf16.mxu0 0
  %7007 = vmatpush1.bf16.msra.mxu0 0
  %7008 = vmatprep.subr.bf16.mxu0 0
  %7009 = vmatpush1.bf16.msra.mxu0 0
  %7010 = vmatprep.mubr.bf16.mxu0 0
  %7011 = vmatmul.mubr.bf16.gmra.mrb[0].mxu0 %v6883
  %v7012 = vpop.f32.mrb[0].mxu0
  %v7013 = vadd.f32 0.0, %v7012
  %v7014 = vpop.f32.mrb[0].mxu0
  %v7015 = vadd.f32 0.0, %v7014
  %v7016 = vpop.f32.mrb[0].mxu0
  %v7017 = vpop.f32.mrb[0].mxu0
  %7018 = vdwg.mxu0
  %7019 = vmatprep.subr.bf16.mxu0 %v6684
  %7020 = vmatpush1.bf16.msra.mxu0 %v6683
  %7021 = vmatprep.subr.bf16.mxu0 %v6688
  %7022 = vmatpush1.bf16.msra.mxu0 %v6687
  %7023 = vmatprep.subr.bf16.mxu0 %v6692
  %7024 = vmatpush1.bf16.msra.mxu0 %v6691
  %7025 = vmatprep.subr.bf16.mxu0 %v6696
  %7026 = vmatpush1.bf16.msra.mxu0 %v6695
  %7027 = vmatprep.subr.bf16.mxu0 %v6700
  %7028 = vmatpush1.bf16.msra.mxu0 %v6699
  %7029 = vmatprep.subr.bf16.mxu0 %v6704
  %7030 = vmatpush1.bf16.msra.mxu0 %v6703
  %7031 = vmatprep.subr.bf16.mxu0 %v6708
  %7032 = vmatpush1.bf16.msra.mxu0 %v6707
  %7033 = vmatprep.subr.bf16.mxu0 %v6712
  %7034 = vmatpush1.bf16.msra.mxu0 %v6711
  %7035 = vmatprep.subr.bf16.mxu0 0
  %7036 = vmatpush1.bf16.msra.mxu0 0
  %7037 = vmatprep.subr.bf16.mxu0 0
  %7038 = vmatpush1.bf16.msra.mxu0 0
  %7039 = vmatprep.subr.bf16.mxu0 0
  %7040 = vmatpush1.bf16.msra.mxu0 0
  %7041 = vmatprep.subr.bf16.mxu0 0
  %7042 = vmatpush1.bf16.msra.mxu0 0
  %7043 = vmatprep.subr.bf16.mxu0 0
  %7044 = vmatpush1.bf16.msra.mxu0 0
  %7045 = vmatprep.subr.bf16.mxu0 0
  %7046 = vmatpush1.bf16.msra.mxu0 0
  %7047 = vmatprep.subr.bf16.mxu0 0
  %7048 = vmatpush1.bf16.msra.mxu0 0
  %7049 = vmatprep.subr.bf16.mxu0 0
  %7050 = vmatpush1.bf16.msra.mxu0 0
  %7051 = vmatprep.mubr.bf16.mxu0 0
  %7052 = vmatmul.mubr.bf16.gmra.mrb[0].mxu0 %v6883
  %v7053 = vpop.f32.mrb[0].mxu0
  %v7054 = vadd.f32 0.0, %v7053
  %v7055 = vpop.f32.mrb[0].mxu0
  %v7056 = vadd.f32 0.0, %v7055
  %v7057 = vpop.f32.mrb[0].mxu0
  %v7058 = vpop.f32.mrb[0].mxu0
  %7059 = vdwg.mxu0
  %v7060 = vadd.f32 %v6974, %v7013
  %v7061 = vadd.f32 %v6975, %v7015
  %v7062 = vadd.f32 %v6976, %v7054
  %v7063 = vadd.f32 %v6977, %v7056
  %v7064 = vxor.u32 %v6970, 2147483648
  %v7065 = vmul.f32 %v7064, 1.442695
  %v7066 = vpow.pop %v7065
  %v7067 = vadd.f32 %v7066, 1.0
  %v7068 = vrcp.pop %v7067
  %v7069 = vmul.f32 1.0, %v7068
  %v7070 = vxor.u32 %v6971, 2147483648
  %v7071 = vmul.f32 %v7070, 1.442695
  %v7072 = vpow.pop %v7071
  %v7073 = vadd.f32 %v7072, 1.0
  %v7074 = vrcp.pop %v7073
  %v7075 = vmul.f32 1.0, %v7074
  %v7076 = vtanh.pop %v6972
  %v7077 = vxor.u32 %v6973, 2147483648
  %v7078 = vmul.f32 %v7077, 1.442695
  %v7079 = vpow.pop %v7078
  %v7080 = vadd.f32 %v7079, 1.0
  %v7081 = vrcp.pop %v7080
  %v7082 = vmul.f32 1.0, %v7081
  %v7083 = vmul.f32 %v7075, %v6852
  %v7084 = vmul.f32 %v7069, %v7076
  %v7085 = vadd.f32 %v7083, %v7084
  %v7086 = vtanh.pop %v7085
  %v7087 = vmul.f32 %v7082, %v7086
  %v7088 = vxor.u32 %v7060, 2147483648
  %v7089 = vmul.f32 %v7088, 1.442695
  %v7090 = vpow.pop %v7089
  %v7091 = vadd.f32 %v7090, 1.0
  %v7092 = vrcp.pop %v7091
  %v7093 = vmul.f32 1.0, %v7092
  %v7094 = vxor.u32 %v7061, 2147483648
  %v7095 = vmul.f32 %v7094, 1.442695
  %v7096 = vpow.pop %v7095
  %v7097 = vadd.f32 %v7096, 1.0
  %v7098 = vrcp.pop %v7097
  %v7099 = vmul.f32 1.0, %v7098
  %v7100 = vtanh.pop %v7062
  %v7101 = vxor.u32 %v7063, 2147483648
  %v7102 = vmul.f32 %v7101, 1.442695
  %v7103 = vpow.pop %v7102
  %v7104 = vadd.f32 %v7103, 1.0
  %v7105 = vrcp.pop %v7104
  %v7106 = vmul.f32 1.0, %v7105
  %v7107 = vmul.f32 %v7099, %v6876
  %v7108 = vmul.f32 %v7093, %v7100
  %v7109 = vadd.f32 %v7107, %v7108
  %v7110 = vtanh.pop %v7109
  %v7111 = vmul.f32 %v7106, %v7110
  %s7112 = scalar_lea.vmem [#allocation6], 8
  %7113 = vst [vmem:[%s7112] sm:$0xff] %v7087
  %s7114 = scalar_lea.vmem [#allocation7], 48
  %7115 = vst [vmem:[%s7114] sm:$0xff] %v7111
  %v7116 = vpack.c.bf16 %v7087, %v7087
  %v7117 = vpack.c.bf16 %v7111, %v7111
  %v7118 = vld [vmem:[%s3203] sm:$0xff]
  %v7119 = vld [vmem:[%s3203 + $0x8] sm:$0xff]
  %v7120 = vld [vmem:[%s3203 + $0x10] sm:$0xff]
  %v7121 = vld [vmem:[%s3203 + $0x18] sm:$0xff]
  %7122 = vmatprep.subr.bf16.mxu0 %v6432
  %7123 = vmatpush1.bf16.msra.mxu0 %v6431
  %7124 = vmatprep.subr.bf16.mxu0 %v6436
  %7125 = vmatpush1.bf16.msra.mxu0 %v6435
  %7126 = vmatprep.subr.bf16.mxu0 %v6440
  %7127 = vmatpush1.bf16.msra.mxu0 %v6439
  %7128 = vmatprep.subr.bf16.mxu0 %v6444
  %7129 = vmatpush1.bf16.msra.mxu0 %v6443
  %7130 = vmatprep.subr.bf16.mxu0 %v6448
  %7131 = vmatpush1.bf16.msra.mxu0 %v6447
  %7132 = vmatprep.subr.bf16.mxu0 %v6452
  %7133 = vmatpush1.bf16.msra.mxu0 %v6451
  %7134 = vmatprep.subr.bf16.mxu0 %v6456
  %7135 = vmatpush1.bf16.msra.mxu0 %v6455
  %7136 = vmatprep.subr.bf16.mxu0 %v6460
  %7137 = vmatpush1.bf16.msra.mxu0 %v6459
  %7138 = vmatprep.subr.bf16.mxu0 0
  %7139 = vmatpush1.bf16.msra.mxu0 0
  %7140 = vmatprep.subr.bf16.mxu0 0
  %7141 = vmatpush1.bf16.msra.mxu0 0
  %7142 = vmatprep.subr.bf16.mxu0 0
  %7143 = vmatpush1.bf16.msra.mxu0 0
  %7144 = vmatprep.subr.bf16.mxu0 0
  %7145 = vmatpush1.bf16.msra.mxu0 0
  %7146 = vmatprep.subr.bf16.mxu0 0
  %7147 = vmatpush1.bf16.msra.mxu0 0
  %7148 = vmatprep.subr.bf16.mxu0 0
  %7149 = vmatpush1.bf16.msra.mxu0 0
  %7150 = vmatprep.subr.bf16.mxu0 0
  %7151 = vmatpush1.bf16.msra.mxu0 0
  %7152 = vmatprep.subr.bf16.mxu0 0
  %7153 = vmatpush1.bf16.msra.mxu0 0
  %7154 = vmatprep.mubr.bf16.mxu0 0
  %7155 = vmatmul.mubr.bf16.gmra.mrb[0].mxu0 %v7116
  %v7156 = vpop.f32.mrb[0].mxu0
  %v7157 = vadd.f32 0.0, %v7156
  %v7158 = vpop.f32.mrb[0].mxu0
  %v7159 = vadd.f32 0.0, %v7158
  %v7160 = vpop.f32.mrb[0].mxu0
  %v7161 = vpop.f32.mrb[0].mxu0
  %7162 = vdwg.mxu0
  %7163 = vmatprep.subr.bf16.mxu0 %v6434
  %7164 = vmatpush1.bf16.msra.mxu0 %v6433
  %7165 = vmatprep.subr.bf16.mxu0 %v6438
  %7166 = vmatpush1.bf16.msra.mxu0 %v6437
  %7167 = vmatprep.subr.bf16.mxu0 %v6442
  %7168 = vmatpush1.bf16.msra.mxu0 %v6441
  %7169 = vmatprep.subr.bf16.mxu0 %v6446
  %7170 = vmatpush1.bf16.msra.mxu0 %v6445
  %7171 = vmatprep.subr.bf16.mxu0 %v6450
  %7172 = vmatpush1.bf16.msra.mxu0 %v6449
  %7173 = vmatprep.subr.bf16.mxu0 %v6454
  %7174 = vmatpush1.bf16.msra.mxu0 %v6453
  %7175 = vmatprep.subr.bf16.mxu0 %v6458
  %7176 = vmatpush1.bf16.msra.mxu0 %v6457
  %7177 = vmatprep.subr.bf16.mxu0 %v6462
  %7178 = vmatpush1.bf16.msra.mxu0 %v6461
  %7179 = vmatprep.subr.bf16.mxu0 0
  %7180 = vmatpush1.bf16.msra.mxu0 0
  %7181 = vmatprep.subr.bf16.mxu0 0
  %7182 = vmatpush1.bf16.msra.mxu0 0
  %7183 = vmatprep.subr.bf16.mxu0 0
  %7184 = vmatpush1.bf16.msra.mxu0 0
  %7185 = vmatprep.subr.bf16.mxu0 0
  %7186 = vmatpush1.bf16.msra.mxu0 0
  %7187 = vmatprep.subr.bf16.mxu0 0
  %7188 = vmatpush1.bf16.msra.mxu0 0
  %7189 = vmatprep.subr.bf16.mxu0 0
  %7190 = vmatpush1.bf16.msra.mxu0 0
  %7191 = vmatprep.subr.bf16.mxu0 0
  %7192 = vmatpush1.bf16.msra.mxu0 0
  %7193 = vmatprep.subr.bf16.mxu0 0
  %7194 = vmatpush1.bf16.msra.mxu0 0
  %7195 = vmatprep.mubr.bf16.mxu0 0
  %7196 = vmatmul.mubr.bf16.gmra.mrb[0].mxu0 %v7116
  %v7197 = vpop.f32.mrb[0].mxu0
  %v7198 = vadd.f32 0.0, %v7197
  %v7199 = vpop.f32.mrb[0].mxu0
  %v7200 = vadd.f32 0.0, %v7199
  %v7201 = vpop.f32.mrb[0].mxu0
  %v7202 = vpop.f32.mrb[0].mxu0
  %7203 = vdwg.mxu0
  %v7204 = vadd.f32 %v7118, %v7157
  %v7205 = vadd.f32 %v7119, %v7159
  %v7206 = vadd.f32 %v7120, %v7198
  %v7207 = vadd.f32 %v7121, %v7200
  %v7208 = vld [vmem:[%s3294] sm:$0xff]
  %v7209 = vld [vmem:[%s3294 + $0x8] sm:$0xff]
  %v7210 = vld [vmem:[%s3294 + $0x10] sm:$0xff]
  %v7211 = vld [vmem:[%s3294 + $0x18] sm:$0xff]
  %7212 = vmatprep.subr.bf16.mxu0 %v6682
  %7213 = vmatpush1.bf16.msra.mxu0 %v6681
  %7214 = vmatprep.subr.bf16.mxu0 %v6686
  %7215 = vmatpush1.bf16.msra.mxu0 %v6685
  %7216 = vmatprep.subr.bf16.mxu0 %v6690
  %7217 = vmatpush1.bf16.msra.mxu0 %v6689
  %7218 = vmatprep.subr.bf16.mxu0 %v6694
  %7219 = vmatpush1.bf16.msra.mxu0 %v6693
  %7220 = vmatprep.subr.bf16.mxu0 %v6698
  %7221 = vmatpush1.bf16.msra.mxu0 %v6697
  %7222 = vmatprep.subr.bf16.mxu0 %v6702
  %7223 = vmatpush1.bf16.msra.mxu0 %v6701
  %7224 = vmatprep.subr.bf16.mxu0 %v6706
  %7225 = vmatpush1.bf16.msra.mxu0 %v6705
  %7226 = vmatprep.subr.bf16.mxu0 %v6710
  %7227 = vmatpush1.bf16.msra.mxu0 %v6709
  %7228 = vmatprep.subr.bf16.mxu0 0
  %7229 = vmatpush1.bf16.msra.mxu0 0
  %7230 = vmatprep.subr.bf16.mxu0 0
  %7231 = vmatpush1.bf16.msra.mxu0 0
  %7232 = vmatprep.subr.bf16.mxu0 0
  %7233 = vmatpush1.bf16.msra.mxu0 0
  %7234 = vmatprep.subr.bf16.mxu0 0
  %7235 = vmatpush1.bf16.msra.mxu0 0
  %7236 = vmatprep.subr.bf16.mxu0 0
  %7237 = vmatpush1.bf16.msra.mxu0 0
  %7238 = vmatprep.subr.bf16.mxu0 0
  %7239 = vmatpush1.bf16.msra.mxu0 0
  %7240 = vmatprep.subr.bf16.mxu0 0
  %7241 = vmatpush1.bf16.msra.mxu0 0
  %7242 = vmatprep.subr.bf16.mxu0 0
  %7243 = vmatpush1.bf16.msra.mxu0 0
  %7244 = vmatprep.mubr.bf16.mxu0 0
  %7245 = vmatmul.mubr.bf16.gmra.mrb[0].mxu0 %v7117
  %v7246 = vpop.f32.mrb[0].mxu0
  %v7247 = vadd.f32 0.0, %v7246
  %v7248 = vpop.f32.mrb[0].mxu0
  %v7249 = vadd.f32 0.0, %v7248
  %v7250 = vpop.f32.mrb[0].mxu0
  %v7251 = vpop.f32.mrb[0].mxu0
  %7252 = vdwg.mxu0
  %7253 = vmatprep.subr.bf16.mxu0 %v6684
  %7254 = vmatpush1.bf16.msra.mxu0 %v6683
  %7255 = vmatprep.subr.bf16.mxu0 %v6688
  %7256 = vmatpush1.bf16.msra.mxu0 %v6687
  %7257 = vmatprep.subr.bf16.mxu0 %v6692
  %7258 = vmatpush1.bf16.msra.mxu0 %v6691
  %7259 = vmatprep.subr.bf16.mxu0 %v6696
  %7260 = vmatpush1.bf16.msra.mxu0 %v6695
  %7261 = vmatprep.subr.bf16.mxu0 %v6700
  %7262 = vmatpush1.bf16.msra.mxu0 %v6699
  %7263 = vmatprep.subr.bf16.mxu0 %v6704
  %7264 = vmatpush1.bf16.msra.mxu0 %v6703
  %7265 = vmatprep.subr.bf16.mxu0 %v6708
  %7266 = vmatpush1.bf16.msra.mxu0 %v6707
  %7267 = vmatprep.subr.bf16.mxu0 %v6712
  %7268 = vmatpush1.bf16.msra.mxu0 %v6711
  %7269 = vmatprep.subr.bf16.mxu0 0
  %7270 = vmatpush1.bf16.msra.mxu0 0
  %7271 = vmatprep.subr.bf16.mxu0 0
  %7272 = vmatpush1.bf16.msra.mxu0 0
  %7273 = vmatprep.subr.bf16.mxu0 0
  %7274 = vmatpush1.bf16.msra.mxu0 0
  %7275 = vmatprep.subr.bf16.mxu0 0
  %7276 = vmatpush1.bf16.msra.mxu0 0
  %7277 = vmatprep.subr.bf16.mxu0 0
  %7278 = vmatpush1.bf16.msra.mxu0 0
  %7279 = vmatprep.subr.bf16.mxu0 0
  %7280 = vmatpush1.bf16.msra.mxu0 0
  %7281 = vmatprep.subr.bf16.mxu0 0
  %7282 = vmatpush1.bf16.msra.mxu0 0
  %7283 = vmatprep.subr.bf16.mxu0 0
  %7284 = vmatpush1.bf16.msra.mxu0 0
  %7285 = vmatprep.mubr.bf16.mxu0 0
  %7286 = vmatmul.mubr.bf16.gmra.mrb[0].mxu0 %v7117
  %v7287 = vpop.f32.mrb[0].mxu0
  %v7288 = vadd.f32 0.0, %v7287
  %v7289 = vpop.f32.mrb[0].mxu0
  %v7290 = vadd.f32 0.0, %v7289
  %v7291 = vpop.f32.mrb[0].mxu0
  %v7292 = vpop.f32.mrb[0].mxu0
  %7293 = vdwg.mxu0
  %v7294 = vadd.f32 %v7208, %v7247
  %v7295 = vadd.f32 %v7209, %v7249
  %v7296 = vadd.f32 %v7210, %v7288
  %v7297 = vadd.f32 %v7211, %v7290
  %v7298 = vxor.u32 %v7204, 2147483648
  %v7299 = vmul.f32 %v7298, 1.442695
  %v7300 = vpow.pop %v7299
  %v7301 = vadd.f32 %v7300, 1.0
  %v7302 = vrcp.pop %v7301
  %v7303 = vmul.f32 1.0, %v7302
  %v7304 = vxor.u32 %v7205, 2147483648
  %v7305 = vmul.f32 %v7304, 1.442695
  %v7306 = vpow.pop %v7305
  %v7307 = vadd.f32 %v7306, 1.0
  %v7308 = vrcp.pop %v7307
  %v7309 = vmul.f32 1.0, %v7308
  %v7310 = vtanh.pop %v7206
  %v7311 = vxor.u32 %v7207, 2147483648
  %v7312 = vmul.f32 %v7311, 1.442695
  %v7313 = vpow.pop %v7312
  %v7314 = vadd.f32 %v7313, 1.0
  %v7315 = vrcp.pop %v7314
  %v7316 = vmul.f32 1.0, %v7315
  %v7317 = vmul.f32 %v7309, %v7085
  %v7318 = vmul.f32 %v7303, %v7310
  %v7319 = vadd.f32 %v7317, %v7318
  %v7320 = vtanh.pop %v7319
  %v7321 = vmul.f32 %v7316, %v7320
  %v7322 = vxor.u32 %v7294, 2147483648
  %v7323 = vmul.f32 %v7322, 1.442695
  %v7324 = vpow.pop %v7323
  %v7325 = vadd.f32 %v7324, 1.0
  %v7326 = vrcp.pop %v7325
  %v7327 = vmul.f32 1.0, %v7326
  %v7328 = vxor.u32 %v7295, 2147483648
  %v7329 = vmul.f32 %v7328, 1.442695
  %v7330 = vpow.pop %v7329
  %v7331 = vadd.f32 %v7330, 1.0
  %v7332 = vrcp.pop %v7331
  %v7333 = vmul.f32 1.0, %v7332
  %v7334 = vtanh.pop %v7296
  %v7335 = vxor.u32 %v7297, 2147483648
  %v7336 = vmul.f32 %v7335, 1.442695
  %v7337 = vpow.pop %v7336
  %v7338 = vadd.f32 %v7337, 1.0
  %v7339 = vrcp.pop %v7338
  %v7340 = vmul.f32 1.0, %v7339
  %v7341 = vmul.f32 %v7333, %v7109
  %v7342 = vmul.f32 %v7327, %v7334
  %v7343 = vadd.f32 %v7341, %v7342
  %v7344 = vtanh.pop %v7343
  %v7345 = vmul.f32 %v7340, %v7344
  %s7346 = scalar_lea.vmem [#allocation6], 16
  %7347 = vst [vmem:[%s7346] sm:$0xff] %v7321
  %s7348 = scalar_lea.vmem [#allocation7], 40
  %7349 = vst [vmem:[%s7348] sm:$0xff] %v7345
  %v7350 = vpack.c.bf16 %v7321, %v7321
  %v7351 = vpack.c.bf16 %v7345, %v7345
  %v7352 = vld [vmem:[%s3439] sm:$0xff]
  %v7353 = vld [vmem:[%s3439 + $0x8] sm:$0xff]
  %v7354 = vld [vmem:[%s3439 + $0x10] sm:$0xff]
  %v7355 = vld [vmem:[%s3439 + $0x18] sm:$0xff]
  %7356 = vmatprep.subr.bf16.mxu0 %v6432
  %7357 = vmatpush1.bf16.msra.mxu0 %v6431
  %7358 = vmatprep.subr.bf16.mxu0 %v6436
  %7359 = vmatpush1.bf16.msra.mxu0 %v6435
  %7360 = vmatprep.subr.bf16.mxu0 %v6440
  %7361 = vmatpush1.bf16.msra.mxu0 %v6439
  %7362 = vmatprep.subr.bf16.mxu0 %v6444
  %7363 = vmatpush1.bf16.msra.mxu0 %v6443
  %7364 = vmatprep.subr.bf16.mxu0 %v6448
  %7365 = vmatpush1.bf16.msra.mxu0 %v6447
  %7366 = vmatprep.subr.bf16.mxu0 %v6452
  %7367 = vmatpush1.bf16.msra.mxu0 %v6451
  %7368 = vmatprep.subr.bf16.mxu0 %v6456
  %7369 = vmatpush1.bf16.msra.mxu0 %v6455
  %7370 = vmatprep.subr.bf16.mxu0 %v6460
  %7371 = vmatpush1.bf16.msra.mxu0 %v6459
  %7372 = vmatprep.subr.bf16.mxu0 0
  %7373 = vmatpush1.bf16.msra.mxu0 0
  %7374 = vmatprep.subr.bf16.mxu0 0
  %7375 = vmatpush1.bf16.msra.mxu0 0
  %7376 = vmatprep.subr.bf16.mxu0 0
  %7377 = vmatpush1.bf16.msra.mxu0 0
  %7378 = vmatprep.subr.bf16.mxu0 0
  %7379 = vmatpush1.bf16.msra.mxu0 0
  %7380 = vmatprep.subr.bf16.mxu0 0
  %7381 = vmatpush1.bf16.msra.mxu0 0
  %7382 = vmatprep.subr.bf16.mxu0 0
  %7383 = vmatpush1.bf16.msra.mxu0 0
  %7384 = vmatprep.subr.bf16.mxu0 0
  %7385 = vmatpush1.bf16.msra.mxu0 0
  %7386 = vmatprep.subr.bf16.mxu0 0
  %7387 = vmatpush1.bf16.msra.mxu0 0
  %7388 = vmatprep.mubr.bf16.mxu0 0
  %7389 = vmatmul.mubr.bf16.gmra.mrb[0].mxu0 %v7350
  %v7390 = vpop.f32.mrb[0].mxu0
  %v7391 = vadd.f32 0.0, %v7390
  %v7392 = vpop.f32.mrb[0].mxu0
  %v7393 = vadd.f32 0.0, %v7392
  %v7394 = vpop.f32.mrb[0].mxu0
  %v7395 = vpop.f32.mrb[0].mxu0
  %7396 = vdwg.mxu0
  %7397 = vmatprep.subr.bf16.mxu0 %v6434
  %7398 = vmatpush1.bf16.msra.mxu0 %v6433
  %7399 = vmatprep.subr.bf16.mxu0 %v6438
  %7400 = vmatpush1.bf16.msra.mxu0 %v6437
  %7401 = vmatprep.subr.bf16.mxu0 %v6442
  %7402 = vmatpush1.bf16.msra.mxu0 %v6441
  %7403 = vmatprep.subr.bf16.mxu0 %v6446
  %7404 = vmatpush1.bf16.msra.mxu0 %v6445
  %7405 = vmatprep.subr.bf16.mxu0 %v6450
  %7406 = vmatpush1.bf16.msra.mxu0 %v6449
  %7407 = vmatprep.subr.bf16.mxu0 %v6454
  %7408 = vmatpush1.bf16.msra.mxu0 %v6453
  %7409 = vmatprep.subr.bf16.mxu0 %v6458
  %7410 = vmatpush1.bf16.msra.mxu0 %v6457
  %7411 = vmatprep.subr.bf16.mxu0 %v6462
  %7412 = vmatpush1.bf16.msra.mxu0 %v6461
  %7413 = vmatprep.subr.bf16.mxu0 0
  %7414 = vmatpush1.bf16.msra.mxu0 0
  %7415 = vmatprep.subr.bf16.mxu0 0
  %7416 = vmatpush1.bf16.msra.mxu0 0
  %7417 = vmatprep.subr.bf16.mxu0 0
  %7418 = vmatpush1.bf16.msra.mxu0 0
  %7419 = vmatprep.subr.bf16.mxu0 0
  %7420 = vmatpush1.bf16.msra.mxu0 0
  %7421 = vmatprep.subr.bf16.mxu0 0
  %7422 = vmatpush1.bf16.msra.mxu0 0
  %7423 = vmatprep.subr.bf16.mxu0 0
  %7424 = vmatpush1.bf16.msra.mxu0 0
  %7425 = vmatprep.subr.bf16.mxu0 0
  %7426 = vmatpush1.bf16.msra.mxu0 0
  %7427 = vmatprep.subr.bf16.mxu0 0
  %7428 = vmatpush1.bf16.msra.mxu0 0
  %7429 = vmatprep.mubr.bf16.mxu0 0
  %7430 = vmatmul.mubr.bf16.gmra.mrb[0].mxu0 %v7350
  %v7431 = vpop.f32.mrb[0].mxu0
  %v7432 = vadd.f32 0.0, %v7431
  %v7433 = vpop.f32.mrb[0].mxu0
  %v7434 = vadd.f32 0.0, %v7433
  %v7435 = vpop.f32.mrb[0].mxu0
  %v7436 = vpop.f32.mrb[0].mxu0
  %7437 = vdwg.mxu0
  %v7438 = vadd.f32 %v7352, %v7391
  %v7439 = vadd.f32 %v7353, %v7393
  %v7440 = vadd.f32 %v7354, %v7432
  %v7441 = vadd.f32 %v7355, %v7434
  %v7442 = vld [vmem:[%s3530] sm:$0xff]
  %v7443 = vld [vmem:[%s3530 + $0x8] sm:$0xff]
  %v7444 = vld [vmem:[%s3530 + $0x10] sm:$0xff]
  %v7445 = vld [vmem:[%s3530 + $0x18] sm:$0xff]
  %7446 = vmatprep.subr.bf16.mxu0 %v6682
  %7447 = vmatpush1.bf16.msra.mxu0 %v6681
  %7448 = vmatprep.subr.bf16.mxu0 %v6686
  %7449 = vmatpush1.bf16.msra.mxu0 %v6685
  %7450 = vmatprep.subr.bf16.mxu0 %v6690
  %7451 = vmatpush1.bf16.msra.mxu0 %v6689
  %7452 = vmatprep.subr.bf16.mxu0 %v6694
  %7453 = vmatpush1.bf16.msra.mxu0 %v6693
  %7454 = vmatprep.subr.bf16.mxu0 %v6698
  %7455 = vmatpush1.bf16.msra.mxu0 %v6697
  %7456 = vmatprep.subr.bf16.mxu0 %v6702
  %7457 = vmatpush1.bf16.msra.mxu0 %v6701
  %7458 = vmatprep.subr.bf16.mxu0 %v6706
  %7459 = vmatpush1.bf16.msra.mxu0 %v6705
  %7460 = vmatprep.subr.bf16.mxu0 %v6710
  %7461 = vmatpush1.bf16.msra.mxu0 %v6709
  %7462 = vmatprep.subr.bf16.mxu0 0
  %7463 = vmatpush1.bf16.msra.mxu0 0
  %7464 = vmatprep.subr.bf16.mxu0 0
  %7465 = vmatpush1.bf16.msra.mxu0 0
  %7466 = vmatprep.subr.bf16.mxu0 0
  %7467 = vmatpush1.bf16.msra.mxu0 0
  %7468 = vmatprep.subr.bf16.mxu0 0
  %7469 = vmatpush1.bf16.msra.mxu0 0
  %7470 = vmatprep.subr.bf16.mxu0 0
  %7471 = vmatpush1.bf16.msra.mxu0 0
  %7472 = vmatprep.subr.bf16.mxu0 0
  %7473 = vmatpush1.bf16.msra.mxu0 0
  %7474 = vmatprep.subr.bf16.mxu0 0
  %7475 = vmatpush1.bf16.msra.mxu0 0
  %7476 = vmatprep.subr.bf16.mxu0 0
  %7477 = vmatpush1.bf16.msra.mxu0 0
  %7478 = vmatprep.mubr.bf16.mxu0 0
  %7479 = vmatmul.mubr.bf16.gmra.mrb[0].mxu0 %v7351
  %v7480 = vpop.f32.mrb[0].mxu0
  %v7481 = vadd.f32 0.0, %v7480
  %v7482 = vpop.f32.mrb[0].mxu0
  %v7483 = vadd.f32 0.0, %v7482
  %v7484 = vpop.f32.mrb[0].mxu0
  %v7485 = vpop.f32.mrb[0].mxu0
  %7486 = vdwg.mxu0
  %7487 = vmatprep.subr.bf16.mxu0 %v6684
  %7488 = vmatpush1.bf16.msra.mxu0 %v6683
  %7489 = vmatprep.subr.bf16.mxu0 %v6688
  %7490 = vmatpush1.bf16.msra.mxu0 %v6687
  %7491 = vmatprep.subr.bf16.mxu0 %v6692
  %7492 = vmatpush1.bf16.msra.mxu0 %v6691
  %7493 = vmatprep.subr.bf16.mxu0 %v6696
  %7494 = vmatpush1.bf16.msra.mxu0 %v6695
  %7495 = vmatprep.subr.bf16.mxu0 %v6700
  %7496 = vmatpush1.bf16.msra.mxu0 %v6699
  %7497 = vmatprep.subr.bf16.mxu0 %v6704
  %7498 = vmatpush1.bf16.msra.mxu0 %v6703
  %7499 = vmatprep.subr.bf16.mxu0 %v6708
  %7500 = vmatpush1.bf16.msra.mxu0 %v6707
  %7501 = vmatprep.subr.bf16.mxu0 %v6712
  %7502 = vmatpush1.bf16.msra.mxu0 %v6711
  %7503 = vmatprep.subr.bf16.mxu0 0
  %7504 = vmatpush1.bf16.msra.mxu0 0
  %7505 = vmatprep.subr.bf16.mxu0 0
  %7506 = vmatpush1.bf16.msra.mxu0 0
  %7507 = vmatprep.subr.bf16.mxu0 0
  %7508 = vmatpush1.bf16.msra.mxu0 0
  %7509 = vmatprep.subr.bf16.mxu0 0
  %7510 = vmatpush1.bf16.msra.mxu0 0
  %7511 = vmatprep.subr.bf16.mxu0 0
  %7512 = vmatpush1.bf16.msra.mxu0 0
  %7513 = vmatprep.subr.bf16.mxu0 0
  %7514 = vmatpush1.bf16.msra.mxu0 0
  %7515 = vmatprep.subr.bf16.mxu0 0
  %7516 = vmatpush1.bf16.msra.mxu0 0
  %7517 = vmatprep.subr.bf16.mxu0 0
  %7518 = vmatpush1.bf16.msra.mxu0 0
  %7519 = vmatprep.mubr.bf16.mxu0 0
  %7520 = vmatmul.mubr.bf16.gmra.mrb[0].mxu0 %v7351
  %v7521 = vpop.f32.mrb[0].mxu0
  %v7522 = vadd.f32 0.0, %v7521
  %v7523 = vpop.f32.mrb[0].mxu0
  %v7524 = vadd.f32 0.0, %v7523
  %v7525 = vpop.f32.mrb[0].mxu0
  %v7526 = vpop.f32.mrb[0].mxu0
  %7527 = vdwg.mxu0
  %v7528 = vadd.f32 %v7442, %v7481
  %v7529 = vadd.f32 %v7443, %v7483
  %v7530 = vadd.f32 %v7444, %v7522
  %v7531 = vadd.f32 %v7445, %v7524
  %v7532 = vxor.u32 %v7438, 2147483648
  %v7533 = vmul.f32 %v7532, 1.442695
  %v7534 = vpow.pop %v7533
  %v7535 = vadd.f32 %v7534, 1.0
  %v7536 = vrcp.pop %v7535
  %v7537 = vmul.f32 1.0, %v7536
  %v7538 = vxor.u32 %v7439, 2147483648
  %v7539 = vmul.f32 %v7538, 1.442695
  %v7540 = vpow.pop %v7539
  %v7541 = vadd.f32 %v7540, 1.0
  %v7542 = vrcp.pop %v7541
  %v7543 = vmul.f32 1.0, %v7542
  %v7544 = vtanh.pop %v7440
  %v7545 = vxor.u32 %v7441, 2147483648
  %v7546 = vmul.f32 %v7545, 1.442695
  %v7547 = vpow.pop %v7546
  %v7548 = vadd.f32 %v7547, 1.0
  %v7549 = vrcp.pop %v7548
  %v7550 = vmul.f32 1.0, %v7549
  %v7551 = vmul.f32 %v7543, %v7319
  %v7552 = vmul.f32 %v7537, %v7544
  %v7553 = vadd.f32 %v7551, %v7552
  %v7554 = vtanh.pop %v7553
  %v7555 = vmul.f32 %v7550, %v7554
  %v7556 = vxor.u32 %v7528, 2147483648
  %v7557 = vmul.f32 %v7556, 1.442695
  %v7558 = vpow.pop %v7557
  %v7559 = vadd.f32 %v7558, 1.0
  %v7560 = vrcp.pop %v7559
  %v7561 = vmul.f32 1.0, %v7560
  %v7562 = vxor.u32 %v7529, 2147483648
  %v7563 = vmul.f32 %v7562, 1.442695
  %v7564 = vpow.pop %v7563
  %v7565 = vadd.f32 %v7564, 1.0
  %v7566 = vrcp.pop %v7565
  %v7567 = vmul.f32 1.0, %v7566
  %v7568 = vtanh.pop %v7530
  %v7569 = vxor.u32 %v7531, 2147483648
  %v7570 = vmul.f32 %v7569, 1.442695
  %v7571 = vpow.pop %v7570
  %v7572 = vadd.f32 %v7571, 1.0
  %v7573 = vrcp.pop %v7572
  %v7574 = vmul.f32 1.0, %v7573
  %v7575 = vmul.f32 %v7567, %v7343
  %v7576 = vmul.f32 %v7561, %v7568
  %v7577 = vadd.f32 %v7575, %v7576
  %v7578 = vtanh.pop %v7577
  %v7579 = vmul.f32 %v7574, %v7578
  %s7580 = scalar_lea.vmem [#allocation6], 24
  %7581 = vst [vmem:[%s7580] sm:$0xff] %v7555
  %s7582 = scalar_lea.vmem [#allocation7], 32
  %7583 = vst [vmem:[%s7582] sm:$0xff] %v7579
  %v7584 = vpack.c.bf16 %v7555, %v7555
  %v7585 = vpack.c.bf16 %v7579, %v7579
  %v7586 = vld [vmem:[%s3675] sm:$0xff]
  %v7587 = vld [vmem:[%s3675 + $0x8] sm:$0xff]
  %v7588 = vld [vmem:[%s3675 + $0x10] sm:$0xff]
  %v7589 = vld [vmem:[%s3675 + $0x18] sm:$0xff]
  %7590 = vmatprep.subr.bf16.mxu0 %v6432
  %7591 = vmatpush1.bf16.msra.mxu0 %v6431
  %7592 = vmatprep.subr.bf16.mxu0 %v6436
  %7593 = vmatpush1.bf16.msra.mxu0 %v6435
  %7594 = vmatprep.subr.bf16.mxu0 %v6440
  %7595 = vmatpush1.bf16.msra.mxu0 %v6439
  %7596 = vmatprep.subr.bf16.mxu0 %v6444
  %7597 = vmatpush1.bf16.msra.mxu0 %v6443
  %7598 = vmatprep.subr.bf16.mxu0 %v6448
  %7599 = vmatpush1.bf16.msra.mxu0 %v6447
  %7600 = vmatprep.subr.bf16.mxu0 %v6452
  %7601 = vmatpush1.bf16.msra.mxu0 %v6451
  %7602 = vmatprep.subr.bf16.mxu0 %v6456
  %7603 = vmatpush1.bf16.msra.mxu0 %v6455
  %7604 = vmatprep.subr.bf16.mxu0 %v6460
  %7605 = vmatpush1.bf16.msra.mxu0 %v6459
  %7606 = vmatprep.subr.bf16.mxu0 0
  %7607 = vmatpush1.bf16.msra.mxu0 0
  %7608 = vmatprep.subr.bf16.mxu0 0
  %7609 = vmatpush1.bf16.msra.mxu0 0
  %7610 = vmatprep.subr.bf16.mxu0 0
  %7611 = vmatpush1.bf16.msra.mxu0 0
  %7612 = vmatprep.subr.bf16.mxu0 0
  %7613 = vmatpush1.bf16.msra.mxu0 0
  %7614 = vmatprep.subr.bf16.mxu0 0
  %7615 = vmatpush1.bf16.msra.mxu0 0
  %7616 = vmatprep.subr.bf16.mxu0 0
  %7617 = vmatpush1.bf16.msra.mxu0 0
  %7618 = vmatprep.subr.bf16.mxu0 0
  %7619 = vmatpush1.bf16.msra.mxu0 0
  %7620 = vmatprep.subr.bf16.mxu0 0
  %7621 = vmatpush1.bf16.msra.mxu0 0
  %7622 = vmatprep.mubr.bf16.mxu0 0
  %7623 = vmatmul.mubr.bf16.gmra.mrb[0].mxu0 %v7584
  %v7624 = vpop.f32.mrb[0].mxu0
  %v7625 = vadd.f32 0.0, %v7624
  %v7626 = vpop.f32.mrb[0].mxu0
  %v7627 = vadd.f32 0.0, %v7626
  %v7628 = vpop.f32.mrb[0].mxu0
  %v7629 = vpop.f32.mrb[0].mxu0
  %7630 = vdwg.mxu0
  %7631 = vmatprep.subr.bf16.mxu0 %v6434
  %7632 = vmatpush1.bf16.msra.mxu0 %v6433
  %7633 = vmatprep.subr.bf16.mxu0 %v6438
  %7634 = vmatpush1.bf16.msra.mxu0 %v6437
  %7635 = vmatprep.subr.bf16.mxu0 %v6442
  %7636 = vmatpush1.bf16.msra.mxu0 %v6441
  %7637 = vmatprep.subr.bf16.mxu0 %v6446
  %7638 = vmatpush1.bf16.msra.mxu0 %v6445
  %7639 = vmatprep.subr.bf16.mxu0 %v6450
  %7640 = vmatpush1.bf16.msra.mxu0 %v6449
  %7641 = vmatprep.subr.bf16.mxu0 %v6454
  %7642 = vmatpush1.bf16.msra.mxu0 %v6453
  %7643 = vmatprep.subr.bf16.mxu0 %v6458
  %7644 = vmatpush1.bf16.msra.mxu0 %v6457
  %7645 = vmatprep.subr.bf16.mxu0 %v6462
  %7646 = vmatpush1.bf16.msra.mxu0 %v6461
  %7647 = vmatprep.subr.bf16.mxu0 0
  %7648 = vmatpush1.bf16.msra.mxu0 0
  %7649 = vmatprep.subr.bf16.mxu0 0
  %7650 = vmatpush1.bf16.msra.mxu0 0
  %7651 = vmatprep.subr.bf16.mxu0 0
  %7652 = vmatpush1.bf16.msra.mxu0 0
  %7653 = vmatprep.subr.bf16.mxu0 0
  %7654 = vmatpush1.bf16.msra.mxu0 0
  %7655 = vmatprep.subr.bf16.mxu0 0
  %7656 = vmatpush1.bf16.msra.mxu0 0
  %7657 = vmatprep.subr.bf16.mxu0 0
  %7658 = vmatpush1.bf16.msra.mxu0 0
  %7659 = vmatprep.subr.bf16.mxu0 0
  %7660 = vmatpush1.bf16.msra.mxu0 0
  %7661 = vmatprep.subr.bf16.mxu0 0
  %7662 = vmatpush1.bf16.msra.mxu0 0
  %7663 = vmatprep.mubr.bf16.mxu0 0
  %7664 = vmatmul.mubr.bf16.gmra.mrb[0].mxu0 %v7584
  %v7665 = vpop.f32.mrb[0].mxu0
  %v7666 = vadd.f32 0.0, %v7665
  %v7667 = vpop.f32.mrb[0].mxu0
  %v7668 = vadd.f32 0.0, %v7667
  %v7669 = vpop.f32.mrb[0].mxu0
  %v7670 = vpop.f32.mrb[0].mxu0
  %7671 = vdwg.mxu0
  %v7672 = vadd.f32 %v7586, %v7625
  %v7673 = vadd.f32 %v7587, %v7627
  %v7674 = vadd.f32 %v7588, %v7666
  %v7675 = vadd.f32 %v7589, %v7668
  %v7676 = vld [vmem:[%s3766] sm:$0xff]
  %v7677 = vld [vmem:[%s3766 + $0x8] sm:$0xff]
  %v7678 = vld [vmem:[%s3766 + $0x10] sm:$0xff]
  %v7679 = vld [vmem:[%s3766 + $0x18] sm:$0xff]
  %7680 = vmatprep.subr.bf16.mxu0 %v6682
  %7681 = vmatpush1.bf16.msra.mxu0 %v6681
  %7682 = vmatprep.subr.bf16.mxu0 %v6686
  %7683 = vmatpush1.bf16.msra.mxu0 %v6685
  %7684 = vmatprep.subr.bf16.mxu0 %v6690
  %7685 = vmatpush1.bf16.msra.mxu0 %v6689
  %7686 = vmatprep.subr.bf16.mxu0 %v6694
  %7687 = vmatpush1.bf16.msra.mxu0 %v6693
  %7688 = vmatprep.subr.bf16.mxu0 %v6698
  %7689 = vmatpush1.bf16.msra.mxu0 %v6697
  %7690 = vmatprep.subr.bf16.mxu0 %v6702
  %7691 = vmatpush1.bf16.msra.mxu0 %v6701
  %7692 = vmatprep.subr.bf16.mxu0 %v6706
  %7693 = vmatpush1.bf16.msra.mxu0 %v6705
  %7694 = vmatprep.subr.bf16.mxu0 %v6710
  %7695 = vmatpush1.bf16.msra.mxu0 %v6709
  %7696 = vmatprep.subr.bf16.mxu0 0
  %7697 = vmatpush1.bf16.msra.mxu0 0
  %7698 = vmatprep.subr.bf16.mxu0 0
  %7699 = vmatpush1.bf16.msra.mxu0 0
  %7700 = vmatprep.subr.bf16.mxu0 0
  %7701 = vmatpush1.bf16.msra.mxu0 0
  %7702 = vmatprep.subr.bf16.mxu0 0
  %7703 = vmatpush1.bf16.msra.mxu0 0
  %7704 = vmatprep.subr.bf16.mxu0 0
  %7705 = vmatpush1.bf16.msra.mxu0 0
  %7706 = vmatprep.subr.bf16.mxu0 0
  %7707 = vmatpush1.bf16.msra.mxu0 0
  %7708 = vmatprep.subr.bf16.mxu0 0
  %7709 = vmatpush1.bf16.msra.mxu0 0
  %7710 = vmatprep.subr.bf16.mxu0 0
  %7711 = vmatpush1.bf16.msra.mxu0 0
  %7712 = vmatprep.mubr.bf16.mxu0 0
  %7713 = vmatmul.mubr.bf16.gmra.mrb[0].mxu0 %v7585
  %v7714 = vpop.f32.mrb[0].mxu0
  %v7715 = vadd.f32 0.0, %v7714
  %v7716 = vpop.f32.mrb[0].mxu0
  %v7717 = vadd.f32 0.0, %v7716
  %v7718 = vpop.f32.mrb[0].mxu0
  %v7719 = vpop.f32.mrb[0].mxu0
  %7720 = vdwg.mxu0
  %7721 = vmatprep.subr.bf16.mxu0 %v6684
  %7722 = vmatpush1.bf16.msra.mxu0 %v6683
  %7723 = vmatprep.subr.bf16.mxu0 %v6688
  %7724 = vmatpush1.bf16.msra.mxu0 %v6687
  %7725 = vmatprep.subr.bf16.mxu0 %v6692
  %7726 = vmatpush1.bf16.msra.mxu0 %v6691
  %7727 = vmatprep.subr.bf16.mxu0 %v6696
  %7728 = vmatpush1.bf16.msra.mxu0 %v6695
  %7729 = vmatprep.subr.bf16.mxu0 %v6700
  %7730 = vmatpush1.bf16.msra.mxu0 %v6699
  %7731 = vmatprep.subr.bf16.mxu0 %v6704
  %7732 = vmatpush1.bf16.msra.mxu0 %v6703
  %7733 = vmatprep.subr.bf16.mxu0 %v6708
  %7734 = vmatpush1.bf16.msra.mxu0 %v6707
  %7735 = vmatprep.subr.bf16.mxu0 %v6712
  %7736 = vmatpush1.bf16.msra.mxu0 %v6711
  %7737 = vmatprep.subr.bf16.mxu0 0
  %7738 = vmatpush1.bf16.msra.mxu0 0
  %7739 = vmatprep.subr.bf16.mxu0 0
  %7740 = vmatpush1.bf16.msra.mxu0 0
  %7741 = vmatprep.subr.bf16.mxu0 0
  %7742 = vmatpush1.bf16.msra.mxu0 0
  %7743 = vmatprep.subr.bf16.mxu0 0
  %7744 = vmatpush1.bf16.msra.mxu0 0
  %7745 = vmatprep.subr.bf16.mxu0 0
  %7746 = vmatpush1.bf16.msra.mxu0 0
  %7747 = vmatprep.subr.bf16.mxu0 0
  %7748 = vmatpush1.bf16.msra.mxu0 0
  %7749 = vmatprep.subr.bf16.mxu0 0
  %7750 = vmatpush1.bf16.msra.mxu0 0
  %7751 = vmatprep.subr.bf16.mxu0 0
  %7752 = vmatpush1.bf16.msra.mxu0 0
  %7753 = vmatprep.mubr.bf16.mxu0 0
  %7754 = vmatmul.mubr.bf16.gmra.mrb[0].mxu0 %v7585
  %v7755 = vpop.f32.mrb[0].mxu0
  %v7756 = vadd.f32 0.0, %v7755
  %v7757 = vpop.f32.mrb[0].mxu0
  %v7758 = vadd.f32 0.0, %v7757
  %v7759 = vpop.f32.mrb[0].mxu0
  %v7760 = vpop.f32.mrb[0].mxu0
  %7761 = vdwg.mxu0
  %v7762 = vadd.f32 %v7676, %v7715
  %v7763 = vadd.f32 %v7677, %v7717
  %v7764 = vadd.f32 %v7678, %v7756
  %v7765 = vadd.f32 %v7679, %v7758
  %v7766 = vxor.u32 %v7672, 2147483648
  %v7767 = vmul.f32 %v7766, 1.442695
  %v7768 = vpow.pop %v7767
  %v7769 = vadd.f32 %v7768, 1.0
  %v7770 = vrcp.pop %v7769
  %v7771 = vmul.f32 1.0, %v7770
  %v7772 = vxor.u32 %v7673, 2147483648
  %v7773 = vmul.f32 %v7772, 1.442695
  %v7774 = vpow.pop %v7773
  %v7775 = vadd.f32 %v7774, 1.0
  %v7776 = vrcp.pop %v7775
  %v7777 = vmul.f32 1.0, %v7776
  %v7778 = vtanh.pop %v7674
  %v7779 = vxor.u32 %v7675, 2147483648
  %v7780 = vmul.f32 %v7779, 1.442695
  %v7781 = vpow.pop %v7780
  %v7782 = vadd.f32 %v7781, 1.0
  %v7783 = vrcp.pop %v7782
  %v7784 = vmul.f32 1.0, %v7783
  %v7785 = vmul.f32 %v7777, %v7553
  %v7786 = vmul.f32 %v7771, %v7778
  %v7787 = vadd.f32 %v7785, %v7786
  %v7788 = vtanh.pop %v7787
  %v7789 = vmul.f32 %v7784, %v7788
  %v7790 = vxor.u32 %v7762, 2147483648
  %v7791 = vmul.f32 %v7790, 1.442695
  %v7792 = vpow.pop %v7791
  %v7793 = vadd.f32 %v7792, 1.0
  %v7794 = vrcp.pop %v7793
  %v7795 = vmul.f32 1.0, %v7794
  %v7796 = vxor.u32 %v7763, 2147483648
  %v7797 = vmul.f32 %v7796, 1.442695
  %v7798 = vpow.pop %v7797
  %v7799 = vadd.f32 %v7798, 1.0
  %v7800 = vrcp.pop %v7799
  %v7801 = vmul.f32 1.0, %v7800
  %v7802 = vtanh.pop %v7764
  %v7803 = vxor.u32 %v7765, 2147483648
  %v7804 = vmul.f32 %v7803, 1.442695
  %v7805 = vpow.pop %v7804
  %v7806 = vadd.f32 %v7805, 1.0
  %v7807 = vrcp.pop %v7806
  %v7808 = vmul.f32 1.0, %v7807
  %v7809 = vmul.f32 %v7801, %v7577
  %v7810 = vmul.f32 %v7795, %v7802
  %v7811 = vadd.f32 %v7809, %v7810
  %v7812 = vtanh.pop %v7811
  %v7813 = vmul.f32 %v7808, %v7812
  %s7814 = scalar_lea.vmem [#allocation6], 32
  %7815 = vst [vmem:[%s7814] sm:$0xff] %v7789
  %s7816 = scalar_lea.vmem [#allocation7], 24
  %7817 = vst [vmem:[%s7816] sm:$0xff] %v7813
  %v7818 = vpack.c.bf16 %v7789, %v7789
  %v7819 = vpack.c.bf16 %v7813, %v7813
  %v7820 = vld [vmem:[%s3911] sm:$0xff]
  %v7821 = vld [vmem:[%s3911 + $0x8] sm:$0xff]
  %v7822 = vld [vmem:[%s3911 + $0x10] sm:$0xff]
  %v7823 = vld [vmem:[%s3911 + $0x18] sm:$0xff]
  %7824 = vmatprep.subr.bf16.mxu0 %v6432
  %7825 = vmatpush1.bf16.msra.mxu0 %v6431
  %7826 = vmatprep.subr.bf16.mxu0 %v6436
  %7827 = vmatpush1.bf16.msra.mxu0 %v6435
  %7828 = vmatprep.subr.bf16.mxu0 %v6440
  %7829 = vmatpush1.bf16.msra.mxu0 %v6439
  %7830 = vmatprep.subr.bf16.mxu0 %v6444
  %7831 = vmatpush1.bf16.msra.mxu0 %v6443
  %7832 = vmatprep.subr.bf16.mxu0 %v6448
  %7833 = vmatpush1.bf16.msra.mxu0 %v6447
  %7834 = vmatprep.subr.bf16.mxu0 %v6452
  %7835 = vmatpush1.bf16.msra.mxu0 %v6451
  %7836 = vmatprep.subr.bf16.mxu0 %v6456
  %7837 = vmatpush1.bf16.msra.mxu0 %v6455
  %7838 = vmatprep.subr.bf16.mxu0 %v6460
  %7839 = vmatpush1.bf16.msra.mxu0 %v6459
  %7840 = vmatprep.subr.bf16.mxu0 0
  %7841 = vmatpush1.bf16.msra.mxu0 0
  %7842 = vmatprep.subr.bf16.mxu0 0
  %7843 = vmatpush1.bf16.msra.mxu0 0
  %7844 = vmatprep.subr.bf16.mxu0 0
  %7845 = vmatpush1.bf16.msra.mxu0 0
  %7846 = vmatprep.subr.bf16.mxu0 0
  %7847 = vmatpush1.bf16.msra.mxu0 0
  %7848 = vmatprep.subr.bf16.mxu0 0
  %7849 = vmatpush1.bf16.msra.mxu0 0
  %7850 = vmatprep.subr.bf16.mxu0 0
  %7851 = vmatpush1.bf16.msra.mxu0 0
  %7852 = vmatprep.subr.bf16.mxu0 0
  %7853 = vmatpush1.bf16.msra.mxu0 0
  %7854 = vmatprep.subr.bf16.mxu0 0
  %7855 = vmatpush1.bf16.msra.mxu0 0
  %7856 = vmatprep.mubr.bf16.mxu0 0
  %7857 = vmatmul.mubr.bf16.gmra.mrb[0].mxu0 %v7818
  %v7858 = vpop.f32.mrb[0].mxu0
  %v7859 = vadd.f32 0.0, %v7858
  %v7860 = vpop.f32.mrb[0].mxu0
  %v7861 = vadd.f32 0.0, %v7860
  %v7862 = vpop.f32.mrb[0].mxu0
  %v7863 = vpop.f32.mrb[0].mxu0
  %7864 = vdwg.mxu0
  %7865 = vmatprep.subr.bf16.mxu0 %v6434
  %7866 = vmatpush1.bf16.msra.mxu0 %v6433
  %7867 = vmatprep.subr.bf16.mxu0 %v6438
  %7868 = vmatpush1.bf16.msra.mxu0 %v6437
  %7869 = vmatprep.subr.bf16.mxu0 %v6442
  %7870 = vmatpush1.bf16.msra.mxu0 %v6441
  %7871 = vmatprep.subr.bf16.mxu0 %v6446
  %7872 = vmatpush1.bf16.msra.mxu0 %v6445
  %7873 = vmatprep.subr.bf16.mxu0 %v6450
  %7874 = vmatpush1.bf16.msra.mxu0 %v6449
  %7875 = vmatprep.subr.bf16.mxu0 %v6454
  %7876 = vmatpush1.bf16.msra.mxu0 %v6453
  %7877 = vmatprep.subr.bf16.mxu0 %v6458
  %7878 = vmatpush1.bf16.msra.mxu0 %v6457
  %7879 = vmatprep.subr.bf16.mxu0 %v6462
  %7880 = vmatpush1.bf16.msra.mxu0 %v6461
  %7881 = vmatprep.subr.bf16.mxu0 0
  %7882 = vmatpush1.bf16.msra.mxu0 0
  %7883 = vmatprep.subr.bf16.mxu0 0
  %7884 = vmatpush1.bf16.msra.mxu0 0
  %7885 = vmatprep.subr.bf16.mxu0 0
  %7886 = vmatpush1.bf16.msra.mxu0 0
  %7887 = vmatprep.subr.bf16.mxu0 0
  %7888 = vmatpush1.bf16.msra.mxu0 0
  %7889 = vmatprep.subr.bf16.mxu0 0
  %7890 = vmatpush1.bf16.msra.mxu0 0
  %7891 = vmatprep.subr.bf16.mxu0 0
  %7892 = vmatpush1.bf16.msra.mxu0 0
  %7893 = vmatprep.subr.bf16.mxu0 0
  %7894 = vmatpush1.bf16.msra.mxu0 0
  %7895 = vmatprep.subr.bf16.mxu0 0
  %7896 = vmatpush1.bf16.msra.mxu0 0
  %7897 = vmatprep.mubr.bf16.mxu0 0
  %7898 = vmatmul.mubr.bf16.gmra.mrb[0].mxu0 %v7818
  %v7899 = vpop.f32.mrb[0].mxu0
  %v7900 = vadd.f32 0.0, %v7899
  %v7901 = vpop.f32.mrb[0].mxu0
  %v7902 = vadd.f32 0.0, %v7901
  %v7903 = vpop.f32.mrb[0].mxu0
  %v7904 = vpop.f32.mrb[0].mxu0
  %7905 = vdwg.mxu0
  %v7906 = vadd.f32 %v7820, %v7859
  %v7907 = vadd.f32 %v7821, %v7861
  %v7908 = vadd.f32 %v7822, %v7900
  %v7909 = vadd.f32 %v7823, %v7902
  %v7910 = vld [vmem:[%s4002] sm:$0xff]
  %v7911 = vld [vmem:[%s4002 + $0x8] sm:$0xff]
  %v7912 = vld [vmem:[%s4002 + $0x10] sm:$0xff]
  %v7913 = vld [vmem:[%s4002 + $0x18] sm:$0xff]
  %7914 = vmatprep.subr.bf16.mxu0 %v6682
  %7915 = vmatpush1.bf16.msra.mxu0 %v6681
  %7916 = vmatprep.subr.bf16.mxu0 %v6686
  %7917 = vmatpush1.bf16.msra.mxu0 %v6685
  %7918 = vmatprep.subr.bf16.mxu0 %v6690
  %7919 = vmatpush1.bf16.msra.mxu0 %v6689
  %7920 = vmatprep.subr.bf16.mxu0 %v6694
  %7921 = vmatpush1.bf16.msra.mxu0 %v6693
  %7922 = vmatprep.subr.bf16.mxu0 %v6698
  %7923 = vmatpush1.bf16.msra.mxu0 %v6697
  %7924 = vmatprep.subr.bf16.mxu0 %v6702
  %7925 = vmatpush1.bf16.msra.mxu0 %v6701
  %7926 = vmatprep.subr.bf16.mxu0 %v6706
  %7927 = vmatpush1.bf16.msra.mxu0 %v6705
  %7928 = vmatprep.subr.bf16.mxu0 %v6710
  %7929 = vmatpush1.bf16.msra.mxu0 %v6709
  %7930 = vmatprep.subr.bf16.mxu0 0
  %7931 = vmatpush1.bf16.msra.mxu0 0
  %7932 = vmatprep.subr.bf16.mxu0 0
  %7933 = vmatpush1.bf16.msra.mxu0 0
  %7934 = vmatprep.subr.bf16.mxu0 0
  %7935 = vmatpush1.bf16.msra.mxu0 0
  %7936 = vmatprep.subr.bf16.mxu0 0
  %7937 = vmatpush1.bf16.msra.mxu0 0
  %7938 = vmatprep.subr.bf16.mxu0 0
  %7939 = vmatpush1.bf16.msra.mxu0 0
  %7940 = vmatprep.subr.bf16.mxu0 0
  %7941 = vmatpush1.bf16.msra.mxu0 0
  %7942 = vmatprep.subr.bf16.mxu0 0
  %7943 = vmatpush1.bf16.msra.mxu0 0
  %7944 = vmatprep.subr.bf16.mxu0 0
  %7945 = vmatpush1.bf16.msra.mxu0 0
  %7946 = vmatprep.mubr.bf16.mxu0 0
  %7947 = vmatmul.mubr.bf16.gmra.mrb[0].mxu0 %v7819
  %v7948 = vpop.f32.mrb[0].mxu0
  %v7949 = vadd.f32 0.0, %v7948
  %v7950 = vpop.f32.mrb[0].mxu0
  %v7951 = vadd.f32 0.0, %v7950
  %v7952 = vpop.f32.mrb[0].mxu0
  %v7953 = vpop.f32.mrb[0].mxu0
  %7954 = vdwg.mxu0
  %7955 = vmatprep.subr.bf16.mxu0 %v6684
  %7956 = vmatpush1.bf16.msra.mxu0 %v6683
  %7957 = vmatprep.subr.bf16.mxu0 %v6688
  %7958 = vmatpush1.bf16.msra.mxu0 %v6687
  %7959 = vmatprep.subr.bf16.mxu0 %v6692
  %7960 = vmatpush1.bf16.msra.mxu0 %v6691
  %7961 = vmatprep.subr.bf16.mxu0 %v6696
  %7962 = vmatpush1.bf16.msra.mxu0 %v6695
  %7963 = vmatprep.subr.bf16.mxu0 %v6700
  %7964 = vmatpush1.bf16.msra.mxu0 %v6699
  %7965 = vmatprep.subr.bf16.mxu0 %v6704
  %7966 = vmatpush1.bf16.msra.mxu0 %v6703
  %7967 = vmatprep.subr.bf16.mxu0 %v6708
  %7968 = vmatpush1.bf16.msra.mxu0 %v6707
  %7969 = vmatprep.subr.bf16.mxu0 %v6712
  %7970 = vmatpush1.bf16.msra.mxu0 %v6711
  %7971 = vmatprep.subr.bf16.mxu0 0
  %7972 = vmatpush1.bf16.msra.mxu0 0
  %7973 = vmatprep.subr.bf16.mxu0 0
  %7974 = vmatpush1.bf16.msra.mxu0 0
  %7975 = vmatprep.subr.bf16.mxu0 0
  %7976 = vmatpush1.bf16.msra.mxu0 0
  %7977 = vmatprep.subr.bf16.mxu0 0
  %7978 = vmatpush1.bf16.msra.mxu0 0
  %7979 = vmatprep.subr.bf16.mxu0 0
  %7980 = vmatpush1.bf16.msra.mxu0 0
  %7981 = vmatprep.subr.bf16.mxu0 0
  %7982 = vmatpush1.bf16.msra.mxu0 0
  %7983 = vmatprep.subr.bf16.mxu0 0
  %7984 = vmatpush1.bf16.msra.mxu0 0
  %7985 = vmatprep.subr.bf16.mxu0 0
  %7986 = vmatpush1.bf16.msra.mxu0 0
  %7987 = vmatprep.mubr.bf16.mxu0 0
  %7988 = vmatmul.mubr.bf16.gmra.mrb[0].mxu0 %v7819
  %v7989 = vpop.f32.mrb[0].mxu0
  %v7990 = vadd.f32 0.0, %v7989
  %v7991 = vpop.f32.mrb[0].mxu0
  %v7992 = vadd.f32 0.0, %v7991
  %v7993 = vpop.f32.mrb[0].mxu0
  %v7994 = vpop.f32.mrb[0].mxu0
  %7995 = vdwg.mxu0
  %v7996 = vadd.f32 %v7910, %v7949
  %v7997 = vadd.f32 %v7911, %v7951
  %v7998 = vadd.f32 %v7912, %v7990
  %v7999 = vadd.f32 %v7913, %v7992
  %v8000 = vxor.u32 %v7906, 2147483648
  %v8001 = vmul.f32 %v8000, 1.442695
  %v8002 = vpow.pop %v8001
  %v8003 = vadd.f32 %v8002, 1.0
  %v8004 = vrcp.pop %v8003
  %v8005 = vmul.f32 1.0, %v8004
  %v8006 = vxor.u32 %v7907, 2147483648
  %v8007 = vmul.f32 %v8006, 1.442695
  %v8008 = vpow.pop %v8007
  %v8009 = vadd.f32 %v8008, 1.0
  %v8010 = vrcp.pop %v8009
  %v8011 = vmul.f32 1.0, %v8010
  %v8012 = vtanh.pop %v7908
  %v8013 = vxor.u32 %v7909, 2147483648
  %v8014 = vmul.f32 %v8013, 1.442695
  %v8015 = vpow.pop %v8014
  %v8016 = vadd.f32 %v8015, 1.0
  %v8017 = vrcp.pop %v8016
  %v8018 = vmul.f32 1.0, %v8017
  %v8019 = vmul.f32 %v8011, %v7787
  %v8020 = vmul.f32 %v8005, %v8012
  %v8021 = vadd.f32 %v8019, %v8020
  %v8022 = vtanh.pop %v8021
  %v8023 = vmul.f32 %v8018, %v8022
  %v8024 = vxor.u32 %v7996, 2147483648
  %v8025 = vmul.f32 %v8024, 1.442695
  %v8026 = vpow.pop %v8025
  %v8027 = vadd.f32 %v8026, 1.0
  %v8028 = vrcp.pop %v8027
  %v8029 = vmul.f32 1.0, %v8028
  %v8030 = vxor.u32 %v7997, 2147483648
  %v8031 = vmul.f32 %v8030, 1.442695
  %v8032 = vpow.pop %v8031
  %v8033 = vadd.f32 %v8032, 1.0
  %v8034 = vrcp.pop %v8033
  %v8035 = vmul.f32 1.0, %v8034
  %v8036 = vtanh.pop %v7998
  %v8037 = vxor.u32 %v7999, 2147483648
  %v8038 = vmul.f32 %v8037, 1.442695
  %v8039 = vpow.pop %v8038
  %v8040 = vadd.f32 %v8039, 1.0
  %v8041 = vrcp.pop %v8040
  %v8042 = vmul.f32 1.0, %v8041
  %v8043 = vmul.f32 %v8035, %v7811
  %v8044 = vmul.f32 %v8029, %v8036
  %v8045 = vadd.f32 %v8043, %v8044
  %v8046 = vtanh.pop %v8045
  %v8047 = vmul.f32 %v8042, %v8046
  %s8048 = scalar_lea.vmem [#allocation6], 40
  %8049 = vst [vmem:[%s8048] sm:$0xff] %v8023
  %s8050 = scalar_lea.vmem [#allocation7], 16
  %8051 = vst [vmem:[%s8050] sm:$0xff] %v8047
  %v8052 = vpack.c.bf16 %v8023, %v8023
  %v8053 = vpack.c.bf16 %v8047, %v8047
  %v8054 = vld [vmem:[%s4147] sm:$0xff]
  %v8055 = vld [vmem:[%s4147 + $0x8] sm:$0xff]
  %v8056 = vld [vmem:[%s4147 + $0x10] sm:$0xff]
  %v8057 = vld [vmem:[%s4147 + $0x18] sm:$0xff]
  %8058 = vmatprep.subr.bf16.mxu0 %v6432
  %8059 = vmatpush1.bf16.msra.mxu0 %v6431
  %8060 = vmatprep.subr.bf16.mxu0 %v6436
  %8061 = vmatpush1.bf16.msra.mxu0 %v6435
  %8062 = vmatprep.subr.bf16.mxu0 %v6440
  %8063 = vmatpush1.bf16.msra.mxu0 %v6439
  %8064 = vmatprep.subr.bf16.mxu0 %v6444
  %8065 = vmatpush1.bf16.msra.mxu0 %v6443
  %8066 = vmatprep.subr.bf16.mxu0 %v6448
  %8067 = vmatpush1.bf16.msra.mxu0 %v6447
  %8068 = vmatprep.subr.bf16.mxu0 %v6452
  %8069 = vmatpush1.bf16.msra.mxu0 %v6451
  %8070 = vmatprep.subr.bf16.mxu0 %v6456
  %8071 = vmatpush1.bf16.msra.mxu0 %v6455
  %8072 = vmatprep.subr.bf16.mxu0 %v6460
  %8073 = vmatpush1.bf16.msra.mxu0 %v6459
  %8074 = vmatprep.subr.bf16.mxu0 0
  %8075 = vmatpush1.bf16.msra.mxu0 0
  %8076 = vmatprep.subr.bf16.mxu0 0
  %8077 = vmatpush1.bf16.msra.mxu0 0
  %8078 = vmatprep.subr.bf16.mxu0 0
  %8079 = vmatpush1.bf16.msra.mxu0 0
  %8080 = vmatprep.subr.bf16.mxu0 0
  %8081 = vmatpush1.bf16.msra.mxu0 0
  %8082 = vmatprep.subr.bf16.mxu0 0
  %8083 = vmatpush1.bf16.msra.mxu0 0
  %8084 = vmatprep.subr.bf16.mxu0 0
  %8085 = vmatpush1.bf16.msra.mxu0 0
  %8086 = vmatprep.subr.bf16.mxu0 0
  %8087 = vmatpush1.bf16.msra.mxu0 0
  %8088 = vmatprep.subr.bf16.mxu0 0
  %8089 = vmatpush1.bf16.msra.mxu0 0
  %8090 = vmatprep.mubr.bf16.mxu0 0
  %8091 = vmatmul.mubr.bf16.gmra.mrb[0].mxu0 %v8052
  %v8092 = vpop.f32.mrb[0].mxu0
  %v8093 = vadd.f32 0.0, %v8092
  %v8094 = vpop.f32.mrb[0].mxu0
  %v8095 = vadd.f32 0.0, %v8094
  %v8096 = vpop.f32.mrb[0].mxu0
  %v8097 = vpop.f32.mrb[0].mxu0
  %8098 = vdwg.mxu0
  %8099 = vmatprep.subr.bf16.mxu0 %v6434
  %8100 = vmatpush1.bf16.msra.mxu0 %v6433
  %8101 = vmatprep.subr.bf16.mxu0 %v6438
  %8102 = vmatpush1.bf16.msra.mxu0 %v6437
  %8103 = vmatprep.subr.bf16.mxu0 %v6442
  %8104 = vmatpush1.bf16.msra.mxu0 %v6441
  %8105 = vmatprep.subr.bf16.mxu0 %v6446
  %8106 = vmatpush1.bf16.msra.mxu0 %v6445
  %8107 = vmatprep.subr.bf16.mxu0 %v6450
  %8108 = vmatpush1.bf16.msra.mxu0 %v6449
  %8109 = vmatprep.subr.bf16.mxu0 %v6454
  %8110 = vmatpush1.bf16.msra.mxu0 %v6453
  %8111 = vmatprep.subr.bf16.mxu0 %v6458
  %8112 = vmatpush1.bf16.msra.mxu0 %v6457
  %8113 = vmatprep.subr.bf16.mxu0 %v6462
  %8114 = vmatpush1.bf16.msra.mxu0 %v6461
  %8115 = vmatprep.subr.bf16.mxu0 0
  %8116 = vmatpush1.bf16.msra.mxu0 0
  %8117 = vmatprep.subr.bf16.mxu0 0
  %8118 = vmatpush1.bf16.msra.mxu0 0
  %8119 = vmatprep.subr.bf16.mxu0 0
  %8120 = vmatpush1.bf16.msra.mxu0 0
  %8121 = vmatprep.subr.bf16.mxu0 0
  %8122 = vmatpush1.bf16.msra.mxu0 0
  %8123 = vmatprep.subr.bf16.mxu0 0
  %8124 = vmatpush1.bf16.msra.mxu0 0
  %8125 = vmatprep.subr.bf16.mxu0 0
  %8126 = vmatpush1.bf16.msra.mxu0 0
  %8127 = vmatprep.subr.bf16.mxu0 0
  %8128 = vmatpush1.bf16.msra.mxu0 0
  %8129 = vmatprep.subr.bf16.mxu0 0
  %8130 = vmatpush1.bf16.msra.mxu0 0
  %8131 = vmatprep.mubr.bf16.mxu0 0
  %8132 = vmatmul.mubr.bf16.gmra.mrb[0].mxu0 %v8052
  %v8133 = vpop.f32.mrb[0].mxu0
  %v8134 = vadd.f32 0.0, %v8133
  %v8135 = vpop.f32.mrb[0].mxu0
  %v8136 = vadd.f32 0.0, %v8135
  %v8137 = vpop.f32.mrb[0].mxu0
  %v8138 = vpop.f32.mrb[0].mxu0
  %8139 = vdwg.mxu0
  %v8140 = vadd.f32 %v8054, %v8093
  %v8141 = vadd.f32 %v8055, %v8095
  %v8142 = vadd.f32 %v8056, %v8134
  %v8143 = vadd.f32 %v8057, %v8136
  %v8144 = vld [vmem:[%s4238] sm:$0xff]
  %v8145 = vld [vmem:[%s4238 + $0x8] sm:$0xff]
  %v8146 = vld [vmem:[%s4238 + $0x10] sm:$0xff]
  %v8147 = vld [vmem:[%s4238 + $0x18] sm:$0xff]
  %8148 = vmatprep.subr.bf16.mxu0 %v6682
  %8149 = vmatpush1.bf16.msra.mxu0 %v6681
  %8150 = vmatprep.subr.bf16.mxu0 %v6686
  %8151 = vmatpush1.bf16.msra.mxu0 %v6685
  %8152 = vmatprep.subr.bf16.mxu0 %v6690
  %8153 = vmatpush1.bf16.msra.mxu0 %v6689
  %8154 = vmatprep.subr.bf16.mxu0 %v6694
  %8155 = vmatpush1.bf16.msra.mxu0 %v6693
  %8156 = vmatprep.subr.bf16.mxu0 %v6698
  %8157 = vmatpush1.bf16.msra.mxu0 %v6697
  %8158 = vmatprep.subr.bf16.mxu0 %v6702
  %8159 = vmatpush1.bf16.msra.mxu0 %v6701
  %8160 = vmatprep.subr.bf16.mxu0 %v6706
  %8161 = vmatpush1.bf16.msra.mxu0 %v6705
  %8162 = vmatprep.subr.bf16.mxu0 %v6710
  %8163 = vmatpush1.bf16.msra.mxu0 %v6709
  %8164 = vmatprep.subr.bf16.mxu0 0
  %8165 = vmatpush1.bf16.msra.mxu0 0
  %8166 = vmatprep.subr.bf16.mxu0 0
  %8167 = vmatpush1.bf16.msra.mxu0 0
  %8168 = vmatprep.subr.bf16.mxu0 0
  %8169 = vmatpush1.bf16.msra.mxu0 0
  %8170 = vmatprep.subr.bf16.mxu0 0
  %8171 = vmatpush1.bf16.msra.mxu0 0
  %8172 = vmatprep.subr.bf16.mxu0 0
  %8173 = vmatpush1.bf16.msra.mxu0 0
  %8174 = vmatprep.subr.bf16.mxu0 0
  %8175 = vmatpush1.bf16.msra.mxu0 0
  %8176 = vmatprep.subr.bf16.mxu0 0
  %8177 = vmatpush1.bf16.msra.mxu0 0
  %8178 = vmatprep.subr.bf16.mxu0 0
  %8179 = vmatpush1.bf16.msra.mxu0 0
  %8180 = vmatprep.mubr.bf16.mxu0 0
  %8181 = vmatmul.mubr.bf16.gmra.mrb[0].mxu0 %v8053
  %v8182 = vpop.f32.mrb[0].mxu0
  %v8183 = vadd.f32 0.0, %v8182
  %v8184 = vpop.f32.mrb[0].mxu0
  %v8185 = vadd.f32 0.0, %v8184
  %v8186 = vpop.f32.mrb[0].mxu0
  %v8187 = vpop.f32.mrb[0].mxu0
  %8188 = vdwg.mxu0
  %8189 = vmatprep.subr.bf16.mxu0 %v6684
  %8190 = vmatpush1.bf16.msra.mxu0 %v6683
  %8191 = vmatprep.subr.bf16.mxu0 %v6688
  %8192 = vmatpush1.bf16.msra.mxu0 %v6687
  %8193 = vmatprep.subr.bf16.mxu0 %v6692
  %8194 = vmatpush1.bf16.msra.mxu0 %v6691
  %8195 = vmatprep.subr.bf16.mxu0 %v6696
  %8196 = vmatpush1.bf16.msra.mxu0 %v6695
  %8197 = vmatprep.subr.bf16.mxu0 %v6700
  %8198 = vmatpush1.bf16.msra.mxu0 %v6699
  %8199 = vmatprep.subr.bf16.mxu0 %v6704
  %8200 = vmatpush1.bf16.msra.mxu0 %v6703
  %8201 = vmatprep.subr.bf16.mxu0 %v6708
  %8202 = vmatpush1.bf16.msra.mxu0 %v6707
  %8203 = vmatprep.subr.bf16.mxu0 %v6712
  %8204 = vmatpush1.bf16.msra.mxu0 %v6711
  %8205 = vmatprep.subr.bf16.mxu0 0
  %8206 = vmatpush1.bf16.msra.mxu0 0
  %8207 = vmatprep.subr.bf16.mxu0 0
  %8208 = vmatpush1.bf16.msra.mxu0 0
  %8209 = vmatprep.subr.bf16.mxu0 0
  %8210 = vmatpush1.bf16.msra.mxu0 0
  %8211 = vmatprep.subr.bf16.mxu0 0
  %8212 = vmatpush1.bf16.msra.mxu0 0
  %8213 = vmatprep.subr.bf16.mxu0 0
  %8214 = vmatpush1.bf16.msra.mxu0 0
  %8215 = vmatprep.subr.bf16.mxu0 0
  %8216 = vmatpush1.bf16.msra.mxu0 0
  %8217 = vmatprep.subr.bf16.mxu0 0
  %8218 = vmatpush1.bf16.msra.mxu0 0
  %8219 = vmatprep.subr.bf16.mxu0 0
  %8220 = vmatpush1.bf16.msra.mxu0 0
  %8221 = vmatprep.mubr.bf16.mxu0 0
  %8222 = vmatmul.mubr.bf16.gmra.mrb[0].mxu0 %v8053
  %v8223 = vpop.f32.mrb[0].mxu0
  %v8224 = vadd.f32 0.0, %v8223
  %v8225 = vpop.f32.mrb[0].mxu0
  %v8226 = vadd.f32 0.0, %v8225
  %v8227 = vpop.f32.mrb[0].mxu0
  %v8228 = vpop.f32.mrb[0].mxu0
  %8229 = vdwg.mxu0
  %v8230 = vadd.f32 %v8144, %v8183
  %v8231 = vadd.f32 %v8145, %v8185
  %v8232 = vadd.f32 %v8146, %v8224
  %v8233 = vadd.f32 %v8147, %v8226
  %v8234 = vxor.u32 %v8140, 2147483648
  %v8235 = vmul.f32 %v8234, 1.442695
  %v8236 = vpow.pop %v8235
  %v8237 = vadd.f32 %v8236, 1.0
  %v8238 = vrcp.pop %v8237
  %v8239 = vmul.f32 1.0, %v8238
  %v8240 = vxor.u32 %v8141, 2147483648
  %v8241 = vmul.f32 %v8240, 1.442695
  %v8242 = vpow.pop %v8241
  %v8243 = vadd.f32 %v8242, 1.0
  %v8244 = vrcp.pop %v8243
  %v8245 = vmul.f32 1.0, %v8244
  %v8246 = vtanh.pop %v8142
  %v8247 = vxor.u32 %v8143, 2147483648
  %v8248 = vmul.f32 %v8247, 1.442695
  %v8249 = vpow.pop %v8248
  %v8250 = vadd.f32 %v8249, 1.0
  %v8251 = vrcp.pop %v8250
  %v8252 = vmul.f32 1.0, %v8251
  %v8253 = vmul.f32 %v8245, %v8021
  %v8254 = vmul.f32 %v8239, %v8246
  %v8255 = vadd.f32 %v8253, %v8254
  %v8256 = vtanh.pop %v8255
  %v8257 = vmul.f32 %v8252, %v8256
  %v8258 = vxor.u32 %v8230, 2147483648
  %v8259 = vmul.f32 %v8258, 1.442695
  %v8260 = vpow.pop %v8259
  %v8261 = vadd.f32 %v8260, 1.0
  %v8262 = vrcp.pop %v8261
  %v8263 = vmul.f32 1.0, %v8262
  %v8264 = vxor.u32 %v8231, 2147483648
  %v8265 = vmul.f32 %v8264, 1.442695
  %v8266 = vpow.pop %v8265
  %v8267 = vadd.f32 %v8266, 1.0
  %v8268 = vrcp.pop %v8267
  %v8269 = vmul.f32 1.0, %v8268
  %v8270 = vtanh.pop %v8232
  %v8271 = vxor.u32 %v8233, 2147483648
  %v8272 = vmul.f32 %v8271, 1.442695
  %v8273 = vpow.pop %v8272
  %v8274 = vadd.f32 %v8273, 1.0
  %v8275 = vrcp.pop %v8274
  %v8276 = vmul.f32 1.0, %v8275
  %v8277 = vmul.f32 %v8269, %v8045
  %v8278 = vmul.f32 %v8263, %v8270
  %v8279 = vadd.f32 %v8277, %v8278
  %v8280 = vtanh.pop %v8279
  %v8281 = vmul.f32 %v8276, %v8280
  %s8282 = scalar_lea.vmem [#allocation6], 48
  %8283 = vst [vmem:[%s8282] sm:$0xff] %v8257
  %s8284 = scalar_lea.vmem [#allocation7], 8
  %8285 = vst [vmem:[%s8284] sm:$0xff] %v8281
  %v8286 = vpack.c.bf16 %v8257, %v8257
  %v8287 = vpack.c.bf16 %v8281, %v8281
  %v8288 = vld [vmem:[%s4383] sm:$0xff]
  %v8289 = vld [vmem:[%s4383 + $0x8] sm:$0xff]
  %v8290 = vld [vmem:[%s4383 + $0x10] sm:$0xff]
  %v8291 = vld [vmem:[%s4383 + $0x18] sm:$0xff]
  %8292 = vmatprep.subr.bf16.mxu0 %v6432
  %8293 = vmatpush1.bf16.msra.mxu0 %v6431
  %8294 = vmatprep.subr.bf16.mxu0 %v6436
  %8295 = vmatpush1.bf16.msra.mxu0 %v6435
  %8296 = vmatprep.subr.bf16.mxu0 %v6440
  %8297 = vmatpush1.bf16.msra.mxu0 %v6439
  %8298 = vmatprep.subr.bf16.mxu0 %v6444
  %8299 = vmatpush1.bf16.msra.mxu0 %v6443
  %8300 = vmatprep.subr.bf16.mxu0 %v6448
  %8301 = vmatpush1.bf16.msra.mxu0 %v6447
  %8302 = vmatprep.subr.bf16.mxu0 %v6452
  %8303 = vmatpush1.bf16.msra.mxu0 %v6451
  %8304 = vmatprep.subr.bf16.mxu0 %v6456
  %8305 = vmatpush1.bf16.msra.mxu0 %v6455
  %8306 = vmatprep.subr.bf16.mxu0 %v6460
  %8307 = vmatpush1.bf16.msra.mxu0 %v6459
  %8308 = vmatprep.subr.bf16.mxu0 0
  %8309 = vmatpush1.bf16.msra.mxu0 0
  %8310 = vmatprep.subr.bf16.mxu0 0
  %8311 = vmatpush1.bf16.msra.mxu0 0
  %8312 = vmatprep.subr.bf16.mxu0 0
  %8313 = vmatpush1.bf16.msra.mxu0 0
  %8314 = vmatprep.subr.bf16.mxu0 0
  %8315 = vmatpush1.bf16.msra.mxu0 0
  %8316 = vmatprep.subr.bf16.mxu0 0
  %8317 = vmatpush1.bf16.msra.mxu0 0
  %8318 = vmatprep.subr.bf16.mxu0 0
  %8319 = vmatpush1.bf16.msra.mxu0 0
  %8320 = vmatprep.subr.bf16.mxu0 0
  %8321 = vmatpush1.bf16.msra.mxu0 0
  %8322 = vmatprep.subr.bf16.mxu0 0
  %8323 = vmatpush1.bf16.msra.mxu0 0
  %8324 = vmatprep.mubr.bf16.mxu0 0
  %8325 = vmatmul.mubr.bf16.gmra.mrb[0].mxu0 %v8286
  %v8326 = vpop.f32.mrb[0].mxu0
  %v8327 = vadd.f32 0.0, %v8326
  %v8328 = vpop.f32.mrb[0].mxu0
  %v8329 = vadd.f32 0.0, %v8328
  %v8330 = vpop.f32.mrb[0].mxu0
  %v8331 = vpop.f32.mrb[0].mxu0
  %8332 = vdwg.mxu0
  %8333 = vmatprep.subr.bf16.mxu0 %v6434
  %8334 = vmatpush1.bf16.msra.mxu0 %v6433
  %8335 = vmatprep.subr.bf16.mxu0 %v6438
  %8336 = vmatpush1.bf16.msra.mxu0 %v6437
  %8337 = vmatprep.subr.bf16.mxu0 %v6442
  %8338 = vmatpush1.bf16.msra.mxu0 %v6441
  %8339 = vmatprep.subr.bf16.mxu0 %v6446
  %8340 = vmatpush1.bf16.msra.mxu0 %v6445
  %8341 = vmatprep.subr.bf16.mxu0 %v6450
  %8342 = vmatpush1.bf16.msra.mxu0 %v6449
  %8343 = vmatprep.subr.bf16.mxu0 %v6454
  %8344 = vmatpush1.bf16.msra.mxu0 %v6453
  %8345 = vmatprep.subr.bf16.mxu0 %v6458
  %8346 = vmatpush1.bf16.msra.mxu0 %v6457
  %8347 = vmatprep.subr.bf16.mxu0 %v6462
  %8348 = vmatpush1.bf16.msra.mxu0 %v6461
  %8349 = vmatprep.subr.bf16.mxu0 0
  %8350 = vmatpush1.bf16.msra.mxu0 0
  %8351 = vmatprep.subr.bf16.mxu0 0
  %8352 = vmatpush1.bf16.msra.mxu0 0
  %8353 = vmatprep.subr.bf16.mxu0 0
  %8354 = vmatpush1.bf16.msra.mxu0 0
  %8355 = vmatprep.subr.bf16.mxu0 0
  %8356 = vmatpush1.bf16.msra.mxu0 0
  %8357 = vmatprep.subr.bf16.mxu0 0
  %8358 = vmatpush1.bf16.msra.mxu0 0
  %8359 = vmatprep.subr.bf16.mxu0 0
  %8360 = vmatpush1.bf16.msra.mxu0 0
  %8361 = vmatprep.subr.bf16.mxu0 0
  %8362 = vmatpush1.bf16.msra.mxu0 0
  %8363 = vmatprep.subr.bf16.mxu0 0
  %8364 = vmatpush1.bf16.msra.mxu0 0
  %8365 = vmatprep.mubr.bf16.mxu0 0
  %8366 = vmatmul.mubr.bf16.gmra.mrb[0].mxu0 %v8286
  %v8367 = vpop.f32.mrb[0].mxu0
  %v8368 = vadd.f32 0.0, %v8367
  %v8369 = vpop.f32.mrb[0].mxu0
  %v8370 = vadd.f32 0.0, %v8369
  %v8371 = vpop.f32.mrb[0].mxu0
  %v8372 = vpop.f32.mrb[0].mxu0
  %8373 = vdwg.mxu0
  %v8374 = vadd.f32 %v8288, %v8327
  %v8375 = vadd.f32 %v8289, %v8329
  %v8376 = vadd.f32 %v8290, %v8368
  %v8377 = vadd.f32 %v8291, %v8370
  %v8378 = vld [vmem:[#allocation3] sm:$0xff]
  %v8379 = vld [vmem:[#allocation3 + $0x8] sm:$0xff]
  %v8380 = vld [vmem:[#allocation3 + $0x10] sm:$0xff]
  %v8381 = vld [vmem:[#allocation3 + $0x18] sm:$0xff]
  %8382 = vmatprep.subr.bf16.mxu0 %v6682
  %8383 = vmatpush1.bf16.msra.mxu0 %v6681
  %8384 = vmatprep.subr.bf16.mxu0 %v6686
  %8385 = vmatpush1.bf16.msra.mxu0 %v6685
  %8386 = vmatprep.subr.bf16.mxu0 %v6690
  %8387 = vmatpush1.bf16.msra.mxu0 %v6689
  %8388 = vmatprep.subr.bf16.mxu0 %v6694
  %8389 = vmatpush1.bf16.msra.mxu0 %v6693
  %8390 = vmatprep.subr.bf16.mxu0 %v6698
  %8391 = vmatpush1.bf16.msra.mxu0 %v6697
  %8392 = vmatprep.subr.bf16.mxu0 %v6702
  %8393 = vmatpush1.bf16.msra.mxu0 %v6701
  %8394 = vmatprep.subr.bf16.mxu0 %v6706
  %8395 = vmatpush1.bf16.msra.mxu0 %v6705
  %8396 = vmatprep.subr.bf16.mxu0 %v6710
  %8397 = vmatpush1.bf16.msra.mxu0 %v6709
  %8398 = vmatprep.subr.bf16.mxu0 0
  %8399 = vmatpush1.bf16.msra.mxu0 0
  %8400 = vmatprep.subr.bf16.mxu0 0
  %8401 = vmatpush1.bf16.msra.mxu0 0
  %8402 = vmatprep.subr.bf16.mxu0 0
  %8403 = vmatpush1.bf16.msra.mxu0 0
  %8404 = vmatprep.subr.bf16.mxu0 0
  %8405 = vmatpush1.bf16.msra.mxu0 0
  %8406 = vmatprep.subr.bf16.mxu0 0
  %8407 = vmatpush1.bf16.msra.mxu0 0
  %8408 = vmatprep.subr.bf16.mxu0 0
  %8409 = vmatpush1.bf16.msra.mxu0 0
  %8410 = vmatprep.subr.bf16.mxu0 0
  %8411 = vmatpush1.bf16.msra.mxu0 0
  %8412 = vmatprep.subr.bf16.mxu0 0
  %8413 = vmatpush1.bf16.msra.mxu0 0
  %8414 = vmatprep.mubr.bf16.mxu0 0
  %8415 = vmatmul.mubr.bf16.gmra.mrb[0].mxu0 %v8287
  %v8416 = vpop.f32.mrb[0].mxu0
  %v8417 = vadd.f32 0.0, %v8416
  %v8418 = vpop.f32.mrb[0].mxu0
  %v8419 = vadd.f32 0.0, %v8418
  %v8420 = vpop.f32.mrb[0].mxu0
  %v8421 = vpop.f32.mrb[0].mxu0
  %8422 = vdwg.mxu0
  %8423 = vmatprep.subr.bf16.mxu0 %v6684
  %8424 = vmatpush1.bf16.msra.mxu0 %v6683
  %8425 = vmatprep.subr.bf16.mxu0 %v6688
  %8426 = vmatpush1.bf16.msra.mxu0 %v6687
  %8427 = vmatprep.subr.bf16.mxu0 %v6692
  %8428 = vmatpush1.bf16.msra.mxu0 %v6691
  %8429 = vmatprep.subr.bf16.mxu0 %v6696
  %8430 = vmatpush1.bf16.msra.mxu0 %v6695
  %8431 = vmatprep.subr.bf16.mxu0 %v6700
  %8432 = vmatpush1.bf16.msra.mxu0 %v6699
  %8433 = vmatprep.subr.bf16.mxu0 %v6704
  %8434 = vmatpush1.bf16.msra.mxu0 %v6703
  %8435 = vmatprep.subr.bf16.mxu0 %v6708
  %8436 = vmatpush1.bf16.msra.mxu0 %v6707
  %8437 = vmatprep.subr.bf16.mxu0 %v6712
  %8438 = vmatpush1.bf16.msra.mxu0 %v6711
  %8439 = vmatprep.subr.bf16.mxu0 0
  %8440 = vmatpush1.bf16.msra.mxu0 0
  %8441 = vmatprep.subr.bf16.mxu0 0
  %8442 = vmatpush1.bf16.msra.mxu0 0
  %8443 = vmatprep.subr.bf16.mxu0 0
  %8444 = vmatpush1.bf16.msra.mxu0 0
  %8445 = vmatprep.subr.bf16.mxu0 0
  %8446 = vmatpush1.bf16.msra.mxu0 0
  %8447 = vmatprep.subr.bf16.mxu0 0
  %8448 = vmatpush1.bf16.msra.mxu0 0
  %8449 = vmatprep.subr.bf16.mxu0 0
  %8450 = vmatpush1.bf16.msra.mxu0 0
  %8451 = vmatprep.subr.bf16.mxu0 0
  %8452 = vmatpush1.bf16.msra.mxu0 0
  %8453 = vmatprep.subr.bf16.mxu0 0
  %8454 = vmatpush1.bf16.msra.mxu0 0
  %8455 = vmatprep.mubr.bf16.mxu0 0
  %8456 = vmatmul.mubr.bf16.gmra.mrb[0].mxu0 %v8287
  %v8457 = vpop.f32.mrb[0].mxu0
  %v8458 = vadd.f32 0.0, %v8457
  %v8459 = vpop.f32.mrb[0].mxu0
  %v8460 = vadd.f32 0.0, %v8459
  %v8461 = vpop.f32.mrb[0].mxu0
  %v8462 = vpop.f32.mrb[0].mxu0
  %8463 = vdwg.mxu0
  %v8464 = vadd.f32 %v8378, %v8417
  %v8465 = vadd.f32 %v8379, %v8419
  %v8466 = vadd.f32 %v8380, %v8458
  %v8467 = vadd.f32 %v8381, %v8460
  %v8468 = vxor.u32 %v8374, 2147483648
  %v8469 = vmul.f32 %v8468, 1.442695
  %v8470 = vpow.pop %v8469
  %v8471 = vadd.f32 %v8470, 1.0
  %v8472 = vrcp.pop %v8471
  %v8473 = vmul.f32 1.0, %v8472
  %v8474 = vxor.u32 %v8375, 2147483648
  %v8475 = vmul.f32 %v8474, 1.442695
  %v8476 = vpow.pop %v8475
  %v8477 = vadd.f32 %v8476, 1.0
  %v8478 = vrcp.pop %v8477
  %v8479 = vmul.f32 1.0, %v8478
  %v8480 = vtanh.pop %v8376
  %v8481 = vxor.u32 %v8377, 2147483648
  %v8482 = vmul.f32 %v8481, 1.442695
  %v8483 = vpow.pop %v8482
  %v8484 = vadd.f32 %v8483, 1.0
  %v8485 = vrcp.pop %v8484
  %v8486 = vmul.f32 1.0, %v8485
  %v8487 = vmul.f32 %v8479, %v8255
  %v8488 = vmul.f32 %v8473, %v8480
  %v8489 = vadd.f32 %v8487, %v8488
  %v8490 = vtanh.pop %v8489
  %v8491 = vmul.f32 %v8486, %v8490
  %v8492 = vxor.u32 %v8464, 2147483648
  %v8493 = vmul.f32 %v8492, 1.442695
  %v8494 = vpow.pop %v8493
  %v8495 = vadd.f32 %v8494, 1.0
  %v8496 = vrcp.pop %v8495
  %v8497 = vmul.f32 1.0, %v8496
  %v8498 = vxor.u32 %v8465, 2147483648
  %v8499 = vmul.f32 %v8498, 1.442695
  %v8500 = vpow.pop %v8499
  %v8501 = vadd.f32 %v8500, 1.0
  %v8502 = vrcp.pop %v8501
  %v8503 = vmul.f32 1.0, %v8502
  %v8504 = vtanh.pop %v8466
  %v8505 = vxor.u32 %v8467, 2147483648
  %v8506 = vmul.f32 %v8505, 1.442695
  %v8507 = vpow.pop %v8506
  %v8508 = vadd.f32 %v8507, 1.0
  %v8509 = vrcp.pop %v8508
  %v8510 = vmul.f32 1.0, %v8509
  %v8511 = vmul.f32 %v8503, %v8279
  %v8512 = vmul.f32 %v8497, %v8504
  %v8513 = vadd.f32 %v8511, %v8512
  %v8514 = vtanh.pop %v8513
  %v8515 = vmul.f32 %v8510, %v8514
  %s8516 = scalar_lea.vmem [#allocation6], 56
  %8517 = vst [vmem:[%s8516] sm:$0xff] %v8491
  %8518 = vst [vmem:[#allocation7] sm:$0xff] %v8515
  %v8519 = vld [vmem:[#allocation6] sm:$0xff]
  %v8520 = vld [vmem:[#allocation6 + $0x8] sm:$0xff]
  %v8521 = vld [vmem:[#allocation6 + $0x10] sm:$0xff]
  %v8522 = vld [vmem:[#allocation6 + $0x18] sm:$0xff]
  %v8523 = vld [vmem:[#allocation6 + $0x20] sm:$0xff]
  %v8524 = vld [vmem:[#allocation6 + $0x28] sm:$0xff]
  %v8525 = vld [vmem:[#allocation6 + $0x30] sm:$0xff]
  %v8526 = vld [vmem:[#allocation6 + $0x38] sm:$0xff]
  %v8527 = vpack.c.bf16 %v8520, %v8519
  %v8528 = vpack.c.bf16 %v8522, %v8521
  %v8529 = vpack.c.bf16 %v8524, %v8523
  %v8530 = vpack.c.bf16 %v8526, %v8525
  %v8531 = vld [vmem:[#allocation7] sm:$0xff]
  %v8532 = vld [vmem:[#allocation7 + $0x8] sm:$0xff]
  %v8533 = vld [vmem:[#allocation7 + $0x10] sm:$0xff]
  %v8534 = vld [vmem:[#allocation7 + $0x18] sm:$0xff]
  %v8535 = vld [vmem:[#allocation7 + $0x20] sm:$0xff]
  %v8536 = vld [vmem:[#allocation7 + $0x28] sm:$0xff]
  %v8537 = vld [vmem:[#allocation7 + $0x30] sm:$0xff]
  %v8538 = vld [vmem:[#allocation7 + $0x38] sm:$0xff]
  %v8539 = vpack.c.bf16 %v8532, %v8531
  %v8540 = vpack.c.bf16 %v8534, %v8533
  %v8541 = vpack.c.bf16 %v8536, %v8535
  %v8542 = vpack.c.bf16 %v8538, %v8537
  %v8543 = vld [vmem:[%s8] sm:$0xf]
  %v8544 = vld [vmem:[%s8 + $0x4] sm:$0xf]
  %v8545 = vld [vmem:[%s8 + $0x8] sm:$0xf]
  %v8546 = vld [vmem:[%s8 + $0xc] sm:$0xf]
  %v8547 = vld [vmem:[%s8 + $0x10] sm:$0xf]
  %v8548 = vld [vmem:[%s8 + $0x14] sm:$0xf]
  %v8549 = vld [vmem:[%s8 + $0x18] sm:$0xf]
  %v8550 = vld [vmem:[%s8 + $0x1c] sm:$0xf]
  %v8551 = vld [vmem:[%s8 + $0x20] sm:$0xf]
  %v8552 = vld [vmem:[%s8 + $0x24] sm:$0xf]
  %v8553 = vld [vmem:[%s8 + $0x28] sm:$0xf]
  %v8554 = vld [vmem:[%s8 + $0x2c] sm:$0xf]
  %v8555 = vld [vmem:[%s8 + $0x30] sm:$0xf]
  %v8556 = vld [vmem:[%s8 + $0x34] sm:$0xf]
  %v8557 = vld [vmem:[%s8 + $0x38] sm:$0xf]
  %v8558 = vld [vmem:[%s8 + $0x3c] sm:$0xf]
  %v8559 = vld [vmem:[%s8 + $0x40] sm:$0xf]
  %v8560 = vld [vmem:[%s8 + $0x44] sm:$0xf]
  %v8561 = vld [vmem:[%s8 + $0x48] sm:$0xf]
  %v8562 = vld [vmem:[%s8 + $0x4c] sm:$0xf]
  %v8563 = vld [vmem:[%s8 + $0x50] sm:$0xf]
  %v8564 = vld [vmem:[%s8 + $0x54] sm:$0xf]
  %v8565 = vld [vmem:[%s8 + $0x58] sm:$0xf]
  %v8566 = vld [vmem:[%s8 + $0x5c] sm:$0xf]
  %v8567 = vld [vmem:[%s8 + $0x60] sm:$0xf]
  %v8568 = vld [vmem:[%s8 + $0x64] sm:$0xf]
  %v8569 = vld [vmem:[%s8 + $0x68] sm:$0xf]
  %v8570 = vld [vmem:[%s8 + $0x6c] sm:$0xf]
  %v8571 = vld [vmem:[%s8 + $0x70] sm:$0xf]
  %v8572 = vld [vmem:[%s8 + $0x74] sm:$0xf]
  %v8573 = vld [vmem:[%s8 + $0x78] sm:$0xf]
  %v8574 = vld [vmem:[%s8 + $0x7c] sm:$0xf]
  %v8591 = vunpack.c.l.b16 %v8559
  %v8592 = vunpack.c.l.b16 %v8560
  %v8593 = vunpack.c.l.b16 %v8561
  %v8594 = vunpack.c.l.b16 %v8562
  %v8595 = vunpack.c.l.b16 %v8563
  %v8596 = vunpack.c.l.b16 %v8564
  %v8597 = vunpack.c.l.b16 %v8565
  %v8598 = vunpack.c.l.b16 %v8566
  %v8599 = vunpack.c.l.b16 %v8567
  %v8600 = vunpack.c.l.b16 %v8568
  %v8601 = vunpack.c.l.b16 %v8569
  %v8602 = vunpack.c.l.b16 %v8570
  %v8603 = vunpack.c.l.b16 %v8571
  %v8604 = vunpack.c.l.b16 %v8572
  %v8605 = vunpack.c.l.b16 %v8573
  %v8606 = vunpack.c.l.b16 %v8574
  %v8607 = vpack.c.b16 %v8592, %v8591
  %v8608 = vpack.c.b16 %v8594, %v8593
  %v8609 = vpack.c.b16 %v8596, %v8595
  %v8610 = vpack.c.b16 %v8598, %v8597
  %v8611 = vpack.c.b16 %v8600, %v8599
  %v8612 = vpack.c.b16 %v8602, %v8601
  %v8613 = vpack.c.b16 %v8604, %v8603
  %v8614 = vpack.c.b16 %v8606, %v8605
  %8623 = vmatprep.subr.bf16.mxu0 0
  %8624 = vmatpush1.bf16.msra.mxu0 %v8607
  %8625 = vmatprep.subr.bf16.mxu0 0
  %8626 = vmatpush1.bf16.msra.mxu0 %v8608
  %8627 = vmatprep.subr.bf16.mxu0 0
  %8628 = vmatpush1.bf16.msra.mxu0 %v8609
  %8629 = vmatprep.subr.bf16.mxu0 0
  %8630 = vmatpush1.bf16.msra.mxu0 %v8610
  %8631 = vmatprep.subr.bf16.mxu0 0
  %8632 = vmatpush1.bf16.msra.mxu0 %v8611
  %8633 = vmatprep.subr.bf16.mxu0 0
  %8634 = vmatpush1.bf16.msra.mxu0 %v8612
  %8635 = vmatprep.subr.bf16.mxu0 0
  %8636 = vmatpush1.bf16.msra.mxu0 %v8613
  %8637 = vmatprep.subr.bf16.mxu0 0
  %8638 = vmatpush1.bf16.msra.mxu0 %v8614
  %8639 = vmatprep.subr.bf16.mxu0 0
  %8640 = vmatpush1.bf16.msra.mxu0 0
  %8641 = vmatprep.subr.bf16.mxu0 0
  %8642 = vmatpush1.bf16.msra.mxu0 0
  %8643 = vmatprep.subr.bf16.mxu0 0
  %8644 = vmatpush1.bf16.msra.mxu0 0
  %8645 = vmatprep.subr.bf16.mxu0 0
  %8646 = vmatpush1.bf16.msra.mxu0 0
  %8647 = vmatprep.subr.bf16.mxu0 0
  %8648 = vmatpush1.bf16.msra.mxu0 0
  %8649 = vmatprep.subr.bf16.mxu0 0
  %8650 = vmatpush1.bf16.msra.mxu0 0
  %8651 = vmatprep.subr.bf16.mxu0 0
  %8652 = vmatpush1.bf16.msra.mxu0 0
  %8653 = vmatprep.subr.bf16.mxu0 0
  %8654 = vmatpush1.bf16.msra.mxu0 0
  %8655 = vmatprep.mubr.bf16.mxu0 0
  %8656 = vmatmul.mubr.bf16.gmra.mrb[0].mxu0 %v8539
  %v8657 = vpop.f32.mrb[0].mxu0
  %v8658 = vadd.f32 0.0, %v8657
  %v8659 = vpop.f32.mrb[0].mxu0
  %v8660 = vpop.f32.mrb[0].mxu0
  %v8661 = vadd.f32 0.0, %v8660
  %v8662 = vpop.f32.mrb[0].mxu0
  %8663 = vmatprep.mubr.bf16.mxu0 0
  %8664 = vmatmul.mubr.bf16.gmra.mrb[0].mxu0 %v8540
  %v8665 = vpop.f32.mrb[0].mxu0
  %v8666 = vadd.f32 0.0, %v8665
  %v8667 = vpop.f32.mrb[0].mxu0
  %v8668 = vpop.f32.mrb[0].mxu0
  %v8669 = vadd.f32 0.0, %v8668
  %v8670 = vpop.f32.mrb[0].mxu0
  %8671 = vmatprep.mubr.bf16.mxu0 0
  %8672 = vmatmul.mubr.bf16.gmra.mrb[0].mxu0 %v8541
  %v8673 = vpop.f32.mrb[0].mxu0
  %v8674 = vadd.f32 0.0, %v8673
  %v8675 = vpop.f32.mrb[0].mxu0
  %v8676 = vpop.f32.mrb[0].mxu0
  %v8677 = vadd.f32 0.0, %v8676
  %v8678 = vpop.f32.mrb[0].mxu0
  %8679 = vmatprep.mubr.bf16.mxu0 0
  %8680 = vmatmul.mubr.bf16.gmra.mrb[0].mxu0 %v8542
  %v8681 = vpop.f32.mrb[0].mxu0
  %v8682 = vadd.f32 0.0, %v8681
  %v8683 = vpop.f32.mrb[0].mxu0
  %v8684 = vpop.f32.mrb[0].mxu0
  %v8685 = vadd.f32 0.0, %v8684
  %v8686 = vpop.f32.mrb[0].mxu0
  %8687 = vdwg.mxu0
  %v8704 = vunpack.c.l.b16 %v8543
  %v8705 = vunpack.c.l.b16 %v8544
  %v8706 = vunpack.c.l.b16 %v8545
  %v8707 = vunpack.c.l.b16 %v8546
  %v8708 = vunpack.c.l.b16 %v8547
  %v8709 = vunpack.c.l.b16 %v8548
  %v8710 = vunpack.c.l.b16 %v8549
  %v8711 = vunpack.c.l.b16 %v8550
  %v8712 = vunpack.c.l.b16 %v8551
  %v8713 = vunpack.c.l.b16 %v8552
  %v8714 = vunpack.c.l.b16 %v8553
  %v8715 = vunpack.c.l.b16 %v8554
  %v8716 = vunpack.c.l.b16 %v8555
  %v8717 = vunpack.c.l.b16 %v8556
  %v8718 = vunpack.c.l.b16 %v8557
  %v8719 = vunpack.c.l.b16 %v8558
  %v8720 = vpack.c.b16 %v8705, %v8704
  %v8721 = vpack.c.b16 %v8707, %v8706
  %v8722 = vpack.c.b16 %v8709, %v8708
  %v8723 = vpack.c.b16 %v8711, %v8710
  %v8724 = vpack.c.b16 %v8713, %v8712
  %v8725 = vpack.c.b16 %v8715, %v8714
  %v8726 = vpack.c.b16 %v8717, %v8716
  %v8727 = vpack.c.b16 %v8719, %v8718
  %8736 = vmatprep.subr.bf16.mxu0 0
  %8737 = vmatpush1.bf16.msra.mxu0 %v8720
  %8738 = vmatprep.subr.bf16.mxu0 0
  %8739 = vmatpush1.bf16.msra.mxu0 %v8721
  %8740 = vmatprep.subr.bf16.mxu0 0
  %8741 = vmatpush1.bf16.msra.mxu0 %v8722
  %8742 = vmatprep.subr.bf16.mxu0 0
  %8743 = vmatpush1.bf16.msra.mxu0 %v8723
  %8744 = vmatprep.subr.bf16.mxu0 0
  %8745 = vmatpush1.bf16.msra.mxu0 %v8724
  %8746 = vmatprep.subr.bf16.mxu0 0
  %8747 = vmatpush1.bf16.msra.mxu0 %v8725
  %8748 = vmatprep.subr.bf16.mxu0 0
  %8749 = vmatpush1.bf16.msra.mxu0 %v8726
  %8750 = vmatprep.subr.bf16.mxu0 0
  %8751 = vmatpush1.bf16.msra.mxu0 %v8727
  %8752 = vmatprep.subr.bf16.mxu0 0
  %8753 = vmatpush1.bf16.msra.mxu0 0
  %8754 = vmatprep.subr.bf16.mxu0 0
  %8755 = vmatpush1.bf16.msra.mxu0 0
  %8756 = vmatprep.subr.bf16.mxu0 0
  %8757 = vmatpush1.bf16.msra.mxu0 0
  %8758 = vmatprep.subr.bf16.mxu0 0
  %8759 = vmatpush1.bf16.msra.mxu0 0
  %8760 = vmatprep.subr.bf16.mxu0 0
  %8761 = vmatpush1.bf16.msra.mxu0 0
  %8762 = vmatprep.subr.bf16.mxu0 0
  %8763 = vmatpush1.bf16.msra.mxu0 0
  %8764 = vmatprep.subr.bf16.mxu0 0
  %8765 = vmatpush1.bf16.msra.mxu0 0
  %8766 = vmatprep.subr.bf16.mxu0 0
  %8767 = vmatpush1.bf16.msra.mxu0 0
  %8768 = vmatprep.mubr.bf16.mxu0 0
  %8769 = vmatmul.mubr.bf16.gmra.mrb[0].mxu0 %v8527
  %v8770 = vpop.f32.mrb[0].mxu0
  %v8771 = vadd.f32 %v8658, %v8770
  %v8772 = vpop.f32.mrb[0].mxu0
  %v8773 = vpop.f32.mrb[0].mxu0
  %v8774 = vadd.f32 %v8661, %v8773
  %v8775 = vpop.f32.mrb[0].mxu0
  %8776 = vmatprep.mubr.bf16.mxu0 0
  %8777 = vmatmul.mubr.bf16.gmra.mrb[0].mxu0 %v8528
  %v8778 = vpop.f32.mrb[0].mxu0
  %v8779 = vadd.f32 %v8666, %v8778
  %v8780 = vpop.f32.mrb[0].mxu0
  %v8781 = vpop.f32.mrb[0].mxu0
  %v8782 = vadd.f32 %v8669, %v8781
  %v8783 = vpop.f32.mrb[0].mxu0
  %8784 = vmatprep.mubr.bf16.mxu0 0
  %8785 = vmatmul.mubr.bf16.gmra.mrb[0].mxu0 %v8529
  %v8786 = vpop.f32.mrb[0].mxu0
  %v8787 = vadd.f32 %v8674, %v8786
  %v8788 = vpop.f32.mrb[0].mxu0
  %v8789 = vpop.f32.mrb[0].mxu0
  %v8790 = vadd.f32 %v8677, %v8789
  %v8791 = vpop.f32.mrb[0].mxu0
  %8792 = vmatprep.mubr.bf16.mxu0 0
  %8793 = vmatmul.mubr.bf16.gmra.mrb[0].mxu0 %v8530
  %v8794 = vpop.f32.mrb[0].mxu0
  %v8795 = vadd.f32 %v8682, %v8794
  %v8796 = vpop.f32.mrb[0].mxu0
  %v8797 = vpop.f32.mrb[0].mxu0
  %v8798 = vadd.f32 %v8685, %v8797
  %v8799 = vpop.f32.mrb[0].mxu0
  %8800 = vdwg.mxu0
  %v8801 = vld [vmem:[%s9] sm:$0x1]
  %v8802 = vunpack.c.l.bf16 %v8801
  %v8803 = vlaneseq
  %v8804 = vshrl.u32 %v8803, 7
  %v8805 = vsub.s32 0, %v8804
  %v8806 = vrot.slane %v8802, %v8805
  %v8807 = vadd.f32 %v8771, %v8806
  %v8808 = vadd.f32 %v8774, %v8806
  %v8809 = vadd.f32 %v8779, %v8806
  %v8810 = vadd.f32 %v8782, %v8806
  %v8811 = vadd.f32 %v8787, %v8806
  %v8812 = vadd.f32 %v8790, %v8806
  %v8813 = vadd.f32 %v8795, %v8806
  %v8814 = vadd.f32 %v8798, %v8806
  %v8815 = vmax.f32 %v8807, 0.0
  %v8816 = vmax.f32 %v8808, 0.0
  %v8817 = vmax.f32 %v8809, 0.0
  %v8818 = vmax.f32 %v8810, 0.0
  %v8819 = vmax.f32 %v8811, 0.0
  %v8820 = vmax.f32 %v8812, 0.0
  %v8821 = vmax.f32 %v8813, 0.0
  %v8822 = vmax.f32 %v8814, 0.0
  %v8823 = vpack.c.bf16 %v8816, %v8815
  %v8824 = vpack.c.bf16 %v8818, %v8817
  %v8825 = vpack.c.bf16 %v8820, %v8819
  %v8826 = vpack.c.bf16 %v8822, %v8821
  %v8827 = vld [vmem:[%s10] sm:$0xf]
  %v8828 = vld [vmem:[%s10 + $0x4] sm:$0xf]
  %v8829 = vld [vmem:[%s10 + $0x8] sm:$0xf]
  %v8830 = vld [vmem:[%s10 + $0xc] sm:$0xf]
  %v8831 = vld [vmem:[%s10 + $0x10] sm:$0xf]
  %v8832 = vld [vmem:[%s10 + $0x14] sm:$0xf]
  %v8833 = vld [vmem:[%s10 + $0x18] sm:$0xf]
  %v8834 = vld [vmem:[%s10 + $0x1c] sm:$0xf]
  %v8835 = vld [vmem:[%s10 + $0x20] sm:$0xf]
  %v8836 = vld [vmem:[%s10 + $0x24] sm:$0xf]
  %v8837 = vld [vmem:[%s10 + $0x28] sm:$0xf]
  %v8838 = vld [vmem:[%s10 + $0x2c] sm:$0xf]
  %v8839 = vld [vmem:[%s10 + $0x30] sm:$0xf]
  %v8840 = vld [vmem:[%s10 + $0x34] sm:$0xf]
  %v8841 = vld [vmem:[%s10 + $0x38] sm:$0xf]
  %v8842 = vld [vmem:[%s10 + $0x3c] sm:$0xf]
  %v8843 = vld [vmem:[%s11] sm:$0x1]
  %v8844 = vunpack.c.l.bf16 %v8843
  %v8845 = vlaneseq
  %v8846 = vshrl.u32 %v8845, 7
  %v8847 = vsub.s32 0, %v8846
  %v8848 = vrot.slane %v8844, %v8847
  %v8865 = vunpack.c.l.b16 %v8827
  %v8866 = vunpack.c.l.b16 %v8828
  %v8867 = vunpack.c.l.b16 %v8829
  %v8868 = vunpack.c.l.b16 %v8830
  %v8869 = vunpack.c.l.b16 %v8831
  %v8870 = vunpack.c.l.b16 %v8832
  %v8871 = vunpack.c.l.b16 %v8833
  %v8872 = vunpack.c.l.b16 %v8834
  %v8873 = vunpack.c.l.b16 %v8835
  %v8874 = vunpack.c.l.b16 %v8836
  %v8875 = vunpack.c.l.b16 %v8837
  %v8876 = vunpack.c.l.b16 %v8838
  %v8877 = vunpack.c.l.b16 %v8839
  %v8878 = vunpack.c.l.b16 %v8840
  %v8879 = vunpack.c.l.b16 %v8841
  %v8880 = vunpack.c.l.b16 %v8842
  %v8881 = vpack.c.b16 %v8866, %v8865
  %v8882 = vpack.c.b16 %v8868, %v8867
  %v8883 = vpack.c.b16 %v8870, %v8869
  %v8884 = vpack.c.b16 %v8872, %v8871
  %v8885 = vpack.c.b16 %v8874, %v8873
  %v8886 = vpack.c.b16 %v8876, %v8875
  %v8887 = vpack.c.b16 %v8878, %v8877
  %v8888 = vpack.c.b16 %v8880, %v8879
  %8897 = vmatprep.subr.bf16.mxu0 0
  %8898 = vmatpush1.bf16.msra.mxu0 %v8881
  %8899 = vmatprep.subr.bf16.mxu0 0
  %8900 = vmatpush1.bf16.msra.mxu0 %v8882
  %8901 = vmatprep.subr.bf16.mxu0 0
  %8902 = vmatpush1.bf16.msra.mxu0 %v8883
  %8903 = vmatprep.subr.bf16.mxu0 0
  %8904 = vmatpush1.bf16.msra.mxu0 %v8884
  %8905 = vmatprep.subr.bf16.mxu0 0
  %8906 = vmatpush1.bf16.msra.mxu0 %v8885
  %8907 = vmatprep.subr.bf16.mxu0 0
  %8908 = vmatpush1.bf16.msra.mxu0 %v8886
  %8909 = vmatprep.subr.bf16.mxu0 0
  %8910 = vmatpush1.bf16.msra.mxu0 %v8887
  %8911 = vmatprep.subr.bf16.mxu0 0
  %8912 = vmatpush1.bf16.msra.mxu0 %v8888
  %8913 = vmatprep.subr.bf16.mxu0 0
  %8914 = vmatpush1.bf16.msra.mxu0 0
  %8915 = vmatprep.subr.bf16.mxu0 0
  %8916 = vmatpush1.bf16.msra.mxu0 0
  %8917 = vmatprep.subr.bf16.mxu0 0
  %8918 = vmatpush1.bf16.msra.mxu0 0
  %8919 = vmatprep.subr.bf16.mxu0 0
  %8920 = vmatpush1.bf16.msra.mxu0 0
  %8921 = vmatprep.subr.bf16.mxu0 0
  %8922 = vmatpush1.bf16.msra.mxu0 0
  %8923 = vmatprep.subr.bf16.mxu0 0
  %8924 = vmatpush1.bf16.msra.mxu0 0
  %8925 = vmatprep.subr.bf16.mxu0 0
  %8926 = vmatpush1.bf16.msra.mxu0 0
  %8927 = vmatprep.subr.bf16.mxu0 0
  %8928 = vmatpush1.bf16.msra.mxu0 0
  %8929 = vmatprep.mubr.bf16.mxu0 0
  %8930 = vmatmul.mubr.bf16.gmra.mrb[0].mxu0 %v8823
  %v8931 = vpop.f32.mrb[0].mxu0
  %v8932 = vadd.f32 %v8848, %v8931
  %v8933 = vpop.f32.mrb[0].mxu0
  %v8934 = vpop.f32.mrb[0].mxu0
  %v8935 = vadd.f32 %v8848, %v8934
  %v8936 = vpop.f32.mrb[0].mxu0
  %8937 = vmatprep.mubr.bf16.mxu0 0
  %8938 = vmatmul.mubr.bf16.gmra.mrb[0].mxu0 %v8824
  %v8939 = vpop.f32.mrb[0].mxu0
  %v8940 = vadd.f32 %v8848, %v8939
  %v8941 = vpop.f32.mrb[0].mxu0
  %v8942 = vpop.f32.mrb[0].mxu0
  %v8943 = vadd.f32 %v8848, %v8942
  %v8944 = vpop.f32.mrb[0].mxu0
  %8945 = vmatprep.mubr.bf16.mxu0 0
  %8946 = vmatmul.mubr.bf16.gmra.mrb[0].mxu0 %v8825
  %v8947 = vpop.f32.mrb[0].mxu0
  %v8948 = vadd.f32 %v8848, %v8947
  %v8949 = vpop.f32.mrb[0].mxu0
  %v8950 = vpop.f32.mrb[0].mxu0
  %v8951 = vadd.f32 %v8848, %v8950
  %v8952 = vpop.f32.mrb[0].mxu0
  %8953 = vmatprep.mubr.bf16.mxu0 0
  %8954 = vmatmul.mubr.bf16.gmra.mrb[0].mxu0 %v8826
  %v8955 = vpop.f32.mrb[0].mxu0
  %v8956 = vadd.f32 %v8848, %v8955
  %v8957 = vpop.f32.mrb[0].mxu0
  %v8958 = vpop.f32.mrb[0].mxu0
  %v8959 = vadd.f32 %v8848, %v8958
  %v8960 = vpop.f32.mrb[0].mxu0
  %8961 = vdwg.mxu0
  %v8962 = vmax.f32 %v8932, 0.0
  %v8963 = vmax.f32 %v8935, 0.0
  %v8964 = vmax.f32 %v8940, 0.0
  %v8965 = vmax.f32 %v8943, 0.0
  %v8966 = vmax.f32 %v8948, 0.0
  %v8967 = vmax.f32 %v8951, 0.0
  %v8968 = vmax.f32 %v8956, 0.0
  %v8969 = vmax.f32 %v8959, 0.0
  %v8970 = vpack.c.bf16 %v8963, %v8962
  %v8971 = vpack.c.bf16 %v8965, %v8964
  %v8972 = vpack.c.bf16 %v8967, %v8966
  %v8973 = vpack.c.bf16 %v8969, %v8968
  %v8974 = vld [vmem:[%s12] sm:$0xf]
  %v8975 = vld [vmem:[%s12 + $0x4] sm:$0xf]
  %v8976 = vld [vmem:[%s12 + $0x8] sm:$0xf]
  %v8977 = vld [vmem:[%s12 + $0xc] sm:$0xf]
  %v8978 = vld [vmem:[%s12 + $0x10] sm:$0xf]
  %v8979 = vld [vmem:[%s12 + $0x14] sm:$0xf]
  %v8980 = vld [vmem:[%s12 + $0x18] sm:$0xf]
  %v8981 = vld [vmem:[%s12 + $0x1c] sm:$0xf]
  %v8982 = vld [vmem:[%s12 + $0x20] sm:$0xf]
  %v8983 = vld [vmem:[%s12 + $0x24] sm:$0xf]
  %v8984 = vld [vmem:[%s12 + $0x28] sm:$0xf]
  %v8985 = vld [vmem:[%s12 + $0x2c] sm:$0xf]
  %v8986 = vld [vmem:[%s12 + $0x30] sm:$0xf]
  %v8987 = vld [vmem:[%s12 + $0x34] sm:$0xf]
  %v8988 = vld [vmem:[%s12 + $0x38] sm:$0xf]
  %v8989 = vld [vmem:[%s12 + $0x3c] sm:$0xf]
  %v8990 = vld [vmem:[%s13] sm:$0x1]
  %v8991 = vunpack.c.l.bf16 %v8990
  %v8992 = vlaneseq
  %v8993 = vshrl.u32 %v8992, 7
  %v8994 = vsub.s32 0, %v8993
  %v8995 = vrot.slane %v8991, %v8994
  %v9012 = vunpack.c.l.b16 %v8974
  %v9013 = vunpack.c.l.b16 %v8975
  %v9014 = vunpack.c.l.b16 %v8976
  %v9015 = vunpack.c.l.b16 %v8977
  %v9016 = vunpack.c.l.b16 %v8978
  %v9017 = vunpack.c.l.b16 %v8979
  %v9018 = vunpack.c.l.b16 %v8980
  %v9019 = vunpack.c.l.b16 %v8981
  %v9020 = vunpack.c.l.b16 %v8982
  %v9021 = vunpack.c.l.b16 %v8983
  %v9022 = vunpack.c.l.b16 %v8984
  %v9023 = vunpack.c.l.b16 %v8985
  %v9024 = vunpack.c.l.b16 %v8986
  %v9025 = vunpack.c.l.b16 %v8987
  %v9026 = vunpack.c.l.b16 %v8988
  %v9027 = vunpack.c.l.b16 %v8989
  %v9028 = vpack.c.b16 %v9013, %v9012
  %v9029 = vpack.c.b16 %v9015, %v9014
  %v9030 = vpack.c.b16 %v9017, %v9016
  %v9031 = vpack.c.b16 %v9019, %v9018
  %v9032 = vpack.c.b16 %v9021, %v9020
  %v9033 = vpack.c.b16 %v9023, %v9022
  %v9034 = vpack.c.b16 %v9025, %v9024
  %v9035 = vpack.c.b16 %v9027, %v9026
  %9044 = vmatprep.subr.bf16.mxu0 0
  %9045 = vmatpush1.bf16.msra.mxu0 %v9028
  %9046 = vmatprep.subr.bf16.mxu0 0
  %9047 = vmatpush1.bf16.msra.mxu0 %v9029
  %9048 = vmatprep.subr.bf16.mxu0 0
  %9049 = vmatpush1.bf16.msra.mxu0 %v9030
  %9050 = vmatprep.subr.bf16.mxu0 0
  %9051 = vmatpush1.bf16.msra.mxu0 %v9031
  %9052 = vmatprep.subr.bf16.mxu0 0
  %9053 = vmatpush1.bf16.msra.mxu0 %v9032
  %9054 = vmatprep.subr.bf16.mxu0 0
  %9055 = vmatpush1.bf16.msra.mxu0 %v9033
  %9056 = vmatprep.subr.bf16.mxu0 0
  %9057 = vmatpush1.bf16.msra.mxu0 %v9034
  %9058 = vmatprep.subr.bf16.mxu0 0
  %9059 = vmatpush1.bf16.msra.mxu0 %v9035
  %9060 = vmatprep.subr.bf16.mxu0 0
  %9061 = vmatpush1.bf16.msra.mxu0 0
  %9062 = vmatprep.subr.bf16.mxu0 0
  %9063 = vmatpush1.bf16.msra.mxu0 0
  %9064 = vmatprep.subr.bf16.mxu0 0
  %9065 = vmatpush1.bf16.msra.mxu0 0
  %9066 = vmatprep.subr.bf16.mxu0 0
  %9067 = vmatpush1.bf16.msra.mxu0 0
  %9068 = vmatprep.subr.bf16.mxu0 0
  %9069 = vmatpush1.bf16.msra.mxu0 0
  %9070 = vmatprep.subr.bf16.mxu0 0
  %9071 = vmatpush1.bf16.msra.mxu0 0
  %9072 = vmatprep.subr.bf16.mxu0 0
  %9073 = vmatpush1.bf16.msra.mxu0 0
  %9074 = vmatprep.subr.bf16.mxu0 0
  %9075 = vmatpush1.bf16.msra.mxu0 0
  %9076 = vmatprep.mubr.bf16.mxu0 0
  %9077 = vmatmul.mubr.bf16.gmra.mrb[0].mxu0 %v8970
  %v9078 = vpop.f32.mrb[0].mxu0
  %v9079 = vadd.f32 %v8995, %v9078
  %v9080 = vpop.f32.mrb[0].mxu0
  %v9081 = vpop.f32.mrb[0].mxu0
  %v9082 = vadd.f32 %v8995, %v9081
  %v9083 = vpop.f32.mrb[0].mxu0
  %9084 = vmatprep.mubr.bf16.mxu0 0
  %9085 = vmatmul.mubr.bf16.gmra.mrb[0].mxu0 %v8971
  %v9086 = vpop.f32.mrb[0].mxu0
  %v9087 = vadd.f32 %v8995, %v9086
  %v9088 = vpop.f32.mrb[0].mxu0
  %v9089 = vpop.f32.mrb[0].mxu0
  %v9090 = vadd.f32 %v8995, %v9089
  %v9091 = vpop.f32.mrb[0].mxu0
  %9092 = vmatprep.mubr.bf16.mxu0 0
  %9093 = vmatmul.mubr.bf16.gmra.mrb[0].mxu0 %v8972
  %v9094 = vpop.f32.mrb[0].mxu0
  %v9095 = vadd.f32 %v8995, %v9094
  %v9096 = vpop.f32.mrb[0].mxu0
  %v9097 = vpop.f32.mrb[0].mxu0
  %v9098 = vadd.f32 %v8995, %v9097
  %v9099 = vpop.f32.mrb[0].mxu0
  %9100 = vmatprep.mubr.bf16.mxu0 0
  %9101 = vmatmul.mubr.bf16.gmra.mrb[0].mxu0 %v8973
  %v9102 = vpop.f32.mrb[0].mxu0
  %v9103 = vadd.f32 %v8995, %v9102
  %v9104 = vpop.f32.mrb[0].mxu0
  %v9105 = vpop.f32.mrb[0].mxu0
  %v9106 = vadd.f32 %v8995, %v9105
  %v9107 = vpop.f32.mrb[0].mxu0
  %9108 = vdwg.mxu0
  %v9109 = vadd.f32 %v9079, %v9082
  %v9110 = vadd.f32 %v9109, %v9087
  %v9111 = vadd.f32 %v9110, %v9090
  %v9112 = vadd.f32 %v9111, %v9095
  %v9113 = vadd.f32 %v9112, %v9098
  %v9114 = vadd.f32 %v9113, %v9103
  %v9115 = vadd.f32 %v9114, %v9106
  %9116 = vst [vmem:[%s14] sm:$0xff] %v9115
  // Predicated region
  $region58: #{discriminator_forward.1} parent=0 // pred_check
    _
  $region59: #{discriminator_forward.1} parent=0 // pred_check_branch
    %9118 = sbr.rel (0) target = $region61
  $region60: #{discriminator_forward.1} parent=0 // pred_region
    _
  $region61: #{discriminator_forward.1} parent=0 // pred_fallthru
    _
  // Predicated region
  $region62: #{discriminator_forward.1} parent=0 // pred_check
    _
  $region63: #{discriminator_forward.1} parent=0 // pred_check_branch
    %9120 = sbr.rel (0) target = $region65
  $region64: #{discriminator_forward.1} parent=0 // pred_region
    _
  $region65: #{discriminator_forward.1} parent=0 // pred_fallthru
    _

</llo_original>
